<compile_context>
chip_gen: v5e
topology: v5e:2x2
jax: 0.10.0
libtpu: 0.0.40
codegen_flags: <defaults>
</compile_context>

<pallas_src>
import math
from functools import partial

import jax
import jax.numpy as jnp
from jax.experimental import pallas as pl
from jax.experimental.pallas import tpu as pltpu


# ---------------------------------------------------------------------------
# Fused whole-network Pallas kernel (one image per grid step)
# ---------------------------------------------------------------------------

def _mobilenet_kernel(H, W, cfg, *refs):
    """refs = [x_pad, stem_w, stem_b, (dw_w, pw_w, pw_b)*L, fc_w, fc_b,
               out, pad_scratch*L]"""
    n_sep = len(cfg)
    xpad_ref = refs[0]                       # (1, H+2, W+2, 1) f32
    stem_w_ref = refs[1]                     # (9, C0)  f32 (BN folded)
    stem_b_ref = refs[2]                     # (1, C0)  f32 (BN folded)
    lrefs = refs[3:3 + 3 * n_sep]
    fc_w_ref = refs[3 + 3 * n_sep]           # (C_last, classes) bf16
    fc_b_ref = refs[4 + 3 * n_sep]           # (1, classes) f32
    out_ref = refs[5 + 3 * n_sep]            # (1, 1, classes)
    pad_refs = refs[6 + 3 * n_sep:]          # per-layer VMEM pad scratch

    # ---- stem: 3x3 conv (1 -> C0), stride 1, pad 1, BN folded, ReLU (VPU) ----
    xp = xpad_ref[0]                         # (H+2, W+2, 1)
    sw = stem_w_ref[...]                     # (9, C0)
    c0 = sw.shape[1]
    acc = jnp.zeros((H, W, c0), jnp.float32)
    for dy in range(3):
        for dx in range(3):
            patch = xp[dy:dy + H, dx:dx + W, :]        # (H, W, 1)
            acc = acc + patch * sw[dy * 3 + dx]        # lane-broadcast to C0
    y = jnp.maximum(acc + stem_b_ref[0], 0.0)          # (H, W, C0)

    # ---- separable blocks: depthwise 3x3 -> (stride) -> pointwise+BN+ReLU ----
    h, w = H, W
    for li, (cin, cout, stride) in enumerate(cfg):
        dw = lrefs[3 * li][...]              # (9, cin)  f32
        pw_ref = lrefs[3 * li + 1]           # (cin, cout) bf16 (BN folded)
        pb = lrefs[3 * li + 2][0]            # (cout,)   f32 (BN folded)
        pad_ref = pad_refs[li]               # (h+2, w+2, cin) f32 VMEM scratch

        # Zero only the 1-pixel border strips; the interior gets the activation
        # directly (static-offset ref stores only, every element is covered).
        zrow = jnp.zeros((1, w + 2, cin), jnp.float32)
        zcol = jnp.zeros((h, 1, cin), jnp.float32)
        pad_ref[0:1, :, :] = zrow
        pad_ref[h + 1:h + 2, :, :] = zrow
        pad_ref[1:h + 1, 0:1, :] = zcol
        pad_ref[1:h + 1, w + 1:w + 2, :] = zcol
        pad_ref[1:h + 1, 1:w + 1, :] = y

        # depthwise 3x3, stride 1 (9-tap VPU multiply-accumulate)
        d = jnp.zeros((h, w, cin), jnp.float32)
        for dy in range(3):
            for dx in range(3):
                d = d + pad_ref[dy:dy + h, dx:dx + w, :] * dw[dy * 3 + dx]

        if stride == 2:
            # stride-2 conv (pad=1, even h/w) == stride-1 conv sampled at even
            # positions; subsample in VMEM via reshape + static index.
            d = d.reshape(h // 2, 2, w, cin)[:, 0]           # even rows
            d = d.reshape(h // 2, w // 2, 2, cin)[:, :, 0]   # even cols
            h, w = h // 2, w // 2

        # pointwise 1x1 (+bias, BN folded) + ReLU on the MXU
        z = jnp.dot(d.reshape(h * w, cin).astype(jnp.bfloat16), pw_ref[...],
                    preferred_element_type=jnp.float32)
        y = jnp.maximum(z + pb, 0.0).reshape(h, w, cout)

    # ---- AdaptiveAvgPool2d(1) + flatten + Linear ----
    c_last = y.shape[-1]
    feat = jnp.mean(y.reshape(h * w, c_last), axis=0, keepdims=True)   # (1, C)
    logits = jnp.dot(feat.astype(jnp.bfloat16), fc_w_ref[...],
                     preferred_element_type=jnp.float32) + fc_b_ref[...]
    out_ref[...] = logits[None]              # (1, 1, classes)


def mobilenet_forward(x_nchw, params):
    """x_nchw: (N, 1, H, W) PyTorch-layout input."""
    x = x_nchw[:, 0, :, :].astype(jnp.float32)               # (N, H, W)
    N, H, W = x.shape
    xpad = jnp.pad(x, ((0, 0), (1, 1), (1, 1)))[..., None]   # (N, H+2, W+2, 1)

    cfg = tuple(params["cfg"])

    inputs = [xpad, params["stem_w"], params["stem_b"]]
    for lp in params["sep"]:
        inputs += [lp["dw_w"], lp["pw_w"], lp["pw_b"]]
    inputs += [params["fc_w"], params["fc_b"]]

    in_specs = [pl.BlockSpec((1, H + 2, W + 2, 1), lambda n: (n, 0, 0, 0))]
    # all weight/bias arrays are 2-D and passed as full-array blocks
    in_specs += [pl.BlockSpec(a.shape, lambda n: (0, 0)) for a in inputs[1:]]

    # per-layer zero-padded-activation scratch buffers (VMEM resident)
    scratch_shapes = []
    h, w = H, W
    for cin, cout, stride in cfg:
        scratch_shapes.append(pltpu.VMEM((h + 2, w + 2, cin), jnp.float32))
        if stride == 2:
            # stride-2-as-subsampled-stride-1 is valid only for even h/w, pad 1
            assert h % 2 == 0 and w % 2 == 0, (h, w)
            h, w = h // 2, w // 2

    class_num = params["fc_w"].shape[1]
    out = pl.pallas_call(
        partial(_mobilenet_kernel, H, W, cfg),
        out_shape=jax.ShapeDtypeStruct((N, 1, class_num), jnp.float32),
        grid=(N,),
        in_specs=in_specs,
        out_specs=pl.BlockSpec((1, 1, class_num), lambda n: (n, 0, 0)),
        scratch_shapes=scratch_shapes,
        compiler_params=pltpu.CompilerParams(
            dimension_semantics=("parallel",)),
    )(*inputs)
    return out.reshape(N, class_num)


# ---------------------------------------------------------------------------
# Deterministic parameter initialization (synthetic weights, BN folded)
# ---------------------------------------------------------------------------

def _init_bn(key, c, eps=1e-5):
    k1, k2, k3, k4 = jax.random.split(key, 4)
    gamma = jax.random.uniform(k1, (c,), minval=0.5, maxval=1.5)
    beta = 0.1 * jax.random.normal(k2, (c,))
    mean = 0.1 * jax.random.normal(k3, (c,))
    var = jax.random.uniform(k4, (c,), minval=0.5, maxval=1.5)
    scale = gamma / jnp.sqrt(var + eps)
    shift = beta - mean * scale
    return scale.astype(jnp.float32), shift.astype(jnp.float32)


def _init_sep(key, cin, cout):
    k1, k2, k3, k4 = jax.random.split(key, 4)
    dw = jax.random.normal(k1, (cin, 3, 3)) / 3.0
    dw_w = jnp.transpose(dw.reshape(cin, 9), (1, 0)).astype(jnp.float32)  # (9,cin)
    pw = jax.random.normal(k2, (cin, cout)) / math.sqrt(cin)
    pb = 0.05 * jax.random.normal(k3, (cout,))
    scale, shift = _init_bn(k4, cout)
    # fold BN into the pointwise conv: y = relu(x @ (w*scale) + (b*scale+shift))
    pw_w = (pw * scale[None, :]).astype(jnp.bfloat16)
    pw_b = (pb * scale + shift).reshape(1, cout).astype(jnp.float32)
    return dict(dw_w=dw_w, pw_w=pw_w, pw_b=pw_b)


def init_mobilenet(key, class_num=10, width_multiplier=0.25):
    a = width_multiplier
    c32, c64, c128 = int(32 * a), int(64 * a), int(128 * a)
    c256, c512, c1024 = int(256 * a), int(512 * a), int(1024 * a)

    cfg = [
        (c32, c64, 1),                        # stem separable
        (c64, c128, 2), (c128, c128, 1),      # conv1
        (c128, c256, 2), (c256, c256, 1),     # conv2
        (c256, c512, 2),                      # conv3
        (c512, c512, 1), (c512, c512, 1), (c512, c512, 1),
        (c512, c512, 1), (c512, c512, 1),
        (c512, c1024, 2), (c1024, c1024, 1),  # conv4
    ]

    keys = jax.random.split(key, len(cfg) + 2)

    # stem BasicConv2d(1 -> c32, 3x3, no bias) + BN folded into weights
    k_w, k_bn = jax.random.split(keys[0])
    w = jax.random.normal(k_w, (c32, 9)) / 3.0
    scale, shift = _init_bn(k_bn, c32)
    stem_w = (w.T * scale[None, :]).astype(jnp.float32)       # (9, c32)
    stem_b = shift.reshape(1, c32).astype(jnp.float32)

    sep = [_init_sep(keys[1 + i], cin, cout)
           for i, (cin, cout, _) in enumerate(cfg)]

    k_fw, k_fb = jax.random.split(keys[-1])
    fc_w = (jax.random.normal(k_fw, (c1024, class_num)) /
            math.sqrt(c1024)).astype(jnp.bfloat16)
    fc_b = (0.05 * jax.random.normal(k_fb, (class_num,))
            ).reshape(1, class_num).astype(jnp.float32)

    return dict(cfg=cfg, stem_w=stem_w, stem_b=stem_b,
                sep=sep, fc_w=fc_w, fc_b=fc_b)


# ---------------------------------------------------------------------------

if __name__ == "__main__":
    key = jax.random.PRNGKey(0)
    k_params, k_x = jax.random.split(key)

    params = init_mobilenet(k_params, class_num=10, width_multiplier=0.25)

    # PyTorch-style NCHW input: batch=2, 1 channel, 16x16 spatial.
    x = jax.random.normal(k_x, (2, 1, 16, 16), dtype=jnp.float32)

    logits = mobilenet_forward(x, params)
    logits = jax.block_until_ready(logits)

    assert logits.shape == (2, 10), logits.shape
    assert bool(jnp.all(jnp.isfinite(logits)))
    print("KERNEL_OK")
</pallas_src>

<mosaic_0001>
module attributes {stable_mosaic.version = 11 : i64} {
  func.func @_mobilenet_kernel(%arg0: i32, %arg1: memref<1x18x18x1xf32, #tpu.memory_space<vmem>>, %arg2: memref<9x8xf32, #tpu.memory_space<vmem>>, %arg3: memref<1x8xf32, #tpu.memory_space<vmem>>, %arg4: memref<9x8xf32, #tpu.memory_space<vmem>>, %arg5: memref<8x16xbf16, #tpu.memory_space<vmem>>, %arg6: memref<1x16xf32, #tpu.memory_space<vmem>>, %arg7: memref<9x16xf32, #tpu.memory_space<vmem>>, %arg8: memref<16x32xbf16, #tpu.memory_space<vmem>>, %arg9: memref<1x32xf32, #tpu.memory_space<vmem>>, %arg10: memref<9x32xf32, #tpu.memory_space<vmem>>, %arg11: memref<32x32xbf16, #tpu.memory_space<vmem>>, %arg12: memref<1x32xf32, #tpu.memory_space<vmem>>, %arg13: memref<9x32xf32, #tpu.memory_space<vmem>>, %arg14: memref<32x64xbf16, #tpu.memory_space<vmem>>, %arg15: memref<1x64xf32, #tpu.memory_space<vmem>>, %arg16: memref<9x64xf32, #tpu.memory_space<vmem>>, %arg17: memref<64x64xbf16, #tpu.memory_space<vmem>>, %arg18: memref<1x64xf32, #tpu.memory_space<vmem>>, %arg19: memref<9x64xf32, #tpu.memory_space<vmem>>, %arg20: memref<64x128xbf16, #tpu.memory_space<vmem>>, %arg21: memref<1x128xf32, #tpu.memory_space<vmem>>, %arg22: memref<9x128xf32, #tpu.memory_space<vmem>>, %arg23: memref<128x128xbf16, #tpu.memory_space<vmem>>, %arg24: memref<1x128xf32, #tpu.memory_space<vmem>>, %arg25: memref<9x128xf32, #tpu.memory_space<vmem>>, %arg26: memref<128x128xbf16, #tpu.memory_space<vmem>>, %arg27: memref<1x128xf32, #tpu.memory_space<vmem>>, %arg28: memref<9x128xf32, #tpu.memory_space<vmem>>, %arg29: memref<128x128xbf16, #tpu.memory_space<vmem>>, %arg30: memref<1x128xf32, #tpu.memory_space<vmem>>, %arg31: memref<9x128xf32, #tpu.memory_space<vmem>>, %arg32: memref<128x128xbf16, #tpu.memory_space<vmem>>, %arg33: memref<1x128xf32, #tpu.memory_space<vmem>>, %arg34: memref<9x128xf32, #tpu.memory_space<vmem>>, %arg35: memref<128x128xbf16, #tpu.memory_space<vmem>>, %arg36: memref<1x128xf32, #tpu.memory_space<vmem>>, %arg37: memref<9x128xf32, #tpu.memory_space<vmem>>, %arg38: memref<128x256xbf16, #tpu.memory_space<vmem>>, %arg39: memref<1x256xf32, #tpu.memory_space<vmem>>, %arg40: memref<9x256xf32, #tpu.memory_space<vmem>>, %arg41: memref<256x256xbf16, #tpu.memory_space<vmem>>, %arg42: memref<1x256xf32, #tpu.memory_space<vmem>>, %arg43: memref<256x10xbf16, #tpu.memory_space<vmem>>, %arg44: memref<1x10xf32, #tpu.memory_space<vmem>>, %arg45: memref<1x1x10xf32, #tpu.memory_space<vmem>>, %arg46: memref<18x18x8xf32, #tpu.memory_space<vmem>>, %arg47: memref<18x18x16xf32, #tpu.memory_space<vmem>>, %arg48: memref<10x10x32xf32, #tpu.memory_space<vmem>>, %arg49: memref<10x10x32xf32, #tpu.memory_space<vmem>>, %arg50: memref<6x6x64xf32, #tpu.memory_space<vmem>>, %arg51: memref<6x6x64xf32, #tpu.memory_space<vmem>>, %arg52: memref<4x4x128xf32, #tpu.memory_space<vmem>>, %arg53: memref<4x4x128xf32, #tpu.memory_space<vmem>>, %arg54: memref<4x4x128xf32, #tpu.memory_space<vmem>>, %arg55: memref<4x4x128xf32, #tpu.memory_space<vmem>>, %arg56: memref<4x4x128xf32, #tpu.memory_space<vmem>>, %arg57: memref<4x4x128xf32, #tpu.memory_space<vmem>>, %arg58: memref<3x3x256xf32, #tpu.memory_space<vmem>>) attributes {dimension_semantics = [#tpu.dimension_semantics<parallel>], iteration_bounds = array<i64: 2>, scalar_prefetch = 0 : i64, scratch_operands = 13 : i64, tpu.core_type = #tpu.core_type<tc>, window_params = [{transform_indices = @transform_0, window_bounds = array<i64: 1, 18, 18, 1>}, {pipeline_mode = #tpu.pipeline_mode<synchronous>, transform_indices = @transform_1, window_bounds = array<i64: 9, 8>}, {pipeline_mode = #tpu.pipeline_mode<synchronous>, transform_indices = @transform_2, window_bounds = array<i64: 1, 8>}, {pipeline_mode = #tpu.pipeline_mode<synchronous>, transform_indices = @transform_3, window_bounds = array<i64: 9, 8>}, {pipeline_mode = #tpu.pipeline_mode<synchronous>, transform_indices = @transform_4, window_bounds = array<i64: 8, 16>}, {pipeline_mode = #tpu.pipeline_mode<synchronous>, transform_indices = @transform_5, window_bounds = array<i64: 1, 16>}, {pipeline_mode = #tpu.pipeline_mode<synchronous>, transform_indices = @transform_6, window_bounds = array<i64: 9, 16>}, {pipeline_mode = #tpu.pipeline_mode<synchronous>, transform_indices = @transform_7, window_bounds = array<i64: 16, 32>}, {pipeline_mode = #tpu.pipeline_mode<synchronous>, transform_indices = @transform_8, window_bounds = array<i64: 1, 32>}, {pipeline_mode = #tpu.pipeline_mode<synchronous>, transform_indices = @transform_9, window_bounds = array<i64: 9, 32>}, {pipeline_mode = #tpu.pipeline_mode<synchronous>, transform_indices = @transform_10, window_bounds = array<i64: 32, 32>}, {pipeline_mode = #tpu.pipeline_mode<synchronous>, transform_indices = @transform_11, window_bounds = array<i64: 1, 32>}, {pipeline_mode = #tpu.pipeline_mode<synchronous>, transform_indices = @transform_12, window_bounds = array<i64: 9, 32>}, {pipeline_mode = #tpu.pipeline_mode<synchronous>, transform_indices = @transform_13, window_bounds = array<i64: 32, 64>}, {pipeline_mode = #tpu.pipeline_mode<synchronous>, transform_indices = @transform_14, window_bounds = array<i64: 1, 64>}, {pipeline_mode = #tpu.pipeline_mode<synchronous>, transform_indices = @transform_15, window_bounds = array<i64: 9, 64>}, {pipeline_mode = #tpu.pipeline_mode<synchronous>, transform_indices = @transform_16, window_bounds = array<i64: 64, 64>}, {pipeline_mode = #tpu.pipeline_mode<synchronous>, transform_indices = @transform_17, window_bounds = array<i64: 1, 64>}, {pipeline_mode = #tpu.pipeline_mode<synchronous>, transform_indices = @transform_18, window_bounds = array<i64: 9, 64>}, {pipeline_mode = #tpu.pipeline_mode<synchronous>, transform_indices = @transform_19, window_bounds = array<i64: 64, 128>}, {pipeline_mode = #tpu.pipeline_mode<synchronous>, transform_indices = @transform_20, window_bounds = array<i64: 1, 128>}, {pipeline_mode = #tpu.pipeline_mode<synchronous>, transform_indices = @transform_21, window_bounds = array<i64: 9, 128>}, {pipeline_mode = #tpu.pipeline_mode<synchronous>, transform_indices = @transform_22, window_bounds = array<i64: 128, 128>}, {pipeline_mode = #tpu.pipeline_mode<synchronous>, transform_indices = @transform_23, window_bounds = array<i64: 1, 128>}, {pipeline_mode = #tpu.pipeline_mode<synchronous>, transform_indices = @transform_24, window_bounds = array<i64: 9, 128>}, {pipeline_mode = #tpu.pipeline_mode<synchronous>, transform_indices = @transform_25, window_bounds = array<i64: 128, 128>}, {pipeline_mode = #tpu.pipeline_mode<synchronous>, transform_indices = @transform_26, window_bounds = array<i64: 1, 128>}, {pipeline_mode = #tpu.pipeline_mode<synchronous>, transform_indices = @transform_27, window_bounds = array<i64: 9, 128>}, {pipeline_mode = #tpu.pipeline_mode<synchronous>, transform_indices = @transform_28, window_bounds = array<i64: 128, 128>}, {pipeline_mode = #tpu.pipeline_mode<synchronous>, transform_indices = @transform_29, window_bounds = array<i64: 1, 128>}, {pipeline_mode = #tpu.pipeline_mode<synchronous>, transform_indices = @transform_30, window_bounds = array<i64: 9, 128>}, {pipeline_mode = #tpu.pipeline_mode<synchronous>, transform_indices = @transform_31, window_bounds = array<i64: 128, 128>}, {pipeline_mode = #tpu.pipeline_mode<synchronous>, transform_indices = @transform_32, window_bounds = array<i64: 1, 128>}, {pipeline_mode = #tpu.pipeline_mode<synchronous>, transform_indices = @transform_33, window_bounds = array<i64: 9, 128>}, {pipeline_mode = #tpu.pipeline_mode<synchronous>, transform_indices = @transform_34, window_bounds = array<i64: 128, 128>}, {pipeline_mode = #tpu.pipeline_mode<synchronous>, transform_indices = @transform_35, window_bounds = array<i64: 1, 128>}, {pipeline_mode = #tpu.pipeline_mode<synchronous>, transform_indices = @transform_36, window_bounds = array<i64: 9, 128>}, {pipeline_mode = #tpu.pipeline_mode<synchronous>, transform_indices = @transform_37, window_bounds = array<i64: 128, 256>}, {pipeline_mode = #tpu.pipeline_mode<synchronous>, transform_indices = @transform_38, window_bounds = array<i64: 1, 256>}, {pipeline_mode = #tpu.pipeline_mode<synchronous>, transform_indices = @transform_39, window_bounds = array<i64: 9, 256>}, {pipeline_mode = #tpu.pipeline_mode<synchronous>, transform_indices = @transform_40, window_bounds = array<i64: 256, 256>}, {pipeline_mode = #tpu.pipeline_mode<synchronous>, transform_indices = @transform_41, window_bounds = array<i64: 1, 256>}, {pipeline_mode = #tpu.pipeline_mode<synchronous>, transform_indices = @transform_42, window_bounds = array<i64: 256, 10>}, {pipeline_mode = #tpu.pipeline_mode<synchronous>, transform_indices = @transform_43, window_bounds = array<i64: 1, 10>}, {transform_indices = @transform_44, window_bounds = array<i64: 1, 1, 10>}]} {
    %c0 = arith.constant 0 : index
    %c0_0 = arith.constant 0 : index
    %c0_1 = arith.constant 0 : index
    %c0_2 = arith.constant 0 : index
    %0 = vector.load %arg1[%c0, %c0_0, %c0_1, %c0_2] : memref<1x18x18x1xf32, #tpu.memory_space<vmem>>, vector<1x18x18x1xf32>
    %1 = vector.shape_cast %0 : vector<1x18x18x1xf32> to vector<18x18x1xf32>
    %c0_3 = arith.constant 0 : index
    %c0_4 = arith.constant 0 : index
    %2 = vector.load %arg2[%c0_3, %c0_4] : memref<9x8xf32, #tpu.memory_space<vmem>>, vector<9x8xf32>
    %cst = arith.constant 0.000000e+00 : f32
    %3 = vector.broadcast %cst : f32 to vector<16x16x8xf32>
    %4 = vector.extract_strided_slice %1 {offsets = [0, 0, 0], sizes = [16, 16, 1], strides = [1, 1, 1]} : vector<18x18x1xf32> to vector<16x16x1xf32>
    %5 = vector.extract_strided_slice %2 {offsets = [0, 0], sizes = [1, 8], strides = [1, 1]} : vector<9x8xf32> to vector<1x8xf32>
    %6 = vector.shape_cast %5 : vector<1x8xf32> to vector<8xf32>
    %7 = vector.shape_cast %6 : vector<8xf32> to vector<1x1x8xf32>
    %8 = vector.broadcast %4 : vector<16x16x1xf32> to vector<16x16x8xf32>
    %9 = vector.broadcast %7 : vector<1x1x8xf32> to vector<16x16x8xf32>
    %10 = arith.mulf %8, %9 : vector<16x16x8xf32>
    %11 = arith.addf %3, %10 : vector<16x16x8xf32>
    %12 = vector.extract_strided_slice %1 {offsets = [0, 1, 0], sizes = [16, 16, 1], strides = [1, 1, 1]} : vector<18x18x1xf32> to vector<16x16x1xf32>
    %13 = vector.extract_strided_slice %2 {offsets = [1, 0], sizes = [1, 8], strides = [1, 1]} : vector<9x8xf32> to vector<1x8xf32>
    %14 = vector.shape_cast %13 : vector<1x8xf32> to vector<8xf32>
    %15 = vector.shape_cast %14 : vector<8xf32> to vector<1x1x8xf32>
    %16 = vector.broadcast %12 : vector<16x16x1xf32> to vector<16x16x8xf32>
    %17 = vector.broadcast %15 : vector<1x1x8xf32> to vector<16x16x8xf32>
    %18 = arith.mulf %16, %17 : vector<16x16x8xf32>
    %19 = arith.addf %11, %18 : vector<16x16x8xf32>
    %20 = vector.extract_strided_slice %1 {offsets = [0, 2, 0], sizes = [16, 16, 1], strides = [1, 1, 1]} : vector<18x18x1xf32> to vector<16x16x1xf32>
    %21 = vector.extract_strided_slice %2 {offsets = [2, 0], sizes = [1, 8], strides = [1, 1]} : vector<9x8xf32> to vector<1x8xf32>
    %22 = vector.shape_cast %21 : vector<1x8xf32> to vector<8xf32>
    %23 = vector.shape_cast %22 : vector<8xf32> to vector<1x1x8xf32>
    %24 = vector.broadcast %20 : vector<16x16x1xf32> to vector<16x16x8xf32>
    %25 = vector.broadcast %23 : vector<1x1x8xf32> to vector<16x16x8xf32>
    %26 = arith.mulf %24, %25 : vector<16x16x8xf32>
    %27 = arith.addf %19, %26 : vector<16x16x8xf32>
    %28 = vector.extract_strided_slice %1 {offsets = [1, 0, 0], sizes = [16, 16, 1], strides = [1, 1, 1]} : vector<18x18x1xf32> to vector<16x16x1xf32>
    %29 = vector.extract_strided_slice %2 {offsets = [3, 0], sizes = [1, 8], strides = [1, 1]} : vector<9x8xf32> to vector<1x8xf32>
    %30 = vector.shape_cast %29 : vector<1x8xf32> to vector<8xf32>
    %31 = vector.shape_cast %30 : vector<8xf32> to vector<1x1x8xf32>
    %32 = vector.broadcast %28 : vector<16x16x1xf32> to vector<16x16x8xf32>
    %33 = vector.broadcast %31 : vector<1x1x8xf32> to vector<16x16x8xf32>
    %34 = arith.mulf %32, %33 : vector<16x16x8xf32>
    %35 = arith.addf %27, %34 : vector<16x16x8xf32>
    %36 = vector.extract_strided_slice %1 {offsets = [1, 1, 0], sizes = [16, 16, 1], strides = [1, 1, 1]} : vector<18x18x1xf32> to vector<16x16x1xf32>
    %37 = vector.extract_strided_slice %2 {offsets = [4, 0], sizes = [1, 8], strides = [1, 1]} : vector<9x8xf32> to vector<1x8xf32>
    %38 = vector.shape_cast %37 : vector<1x8xf32> to vector<8xf32>
    %39 = vector.shape_cast %38 : vector<8xf32> to vector<1x1x8xf32>
    %40 = vector.broadcast %36 : vector<16x16x1xf32> to vector<16x16x8xf32>
    %41 = vector.broadcast %39 : vector<1x1x8xf32> to vector<16x16x8xf32>
    %42 = arith.mulf %40, %41 : vector<16x16x8xf32>
    %43 = arith.addf %35, %42 : vector<16x16x8xf32>
    %44 = vector.extract_strided_slice %1 {offsets = [1, 2, 0], sizes = [16, 16, 1], strides = [1, 1, 1]} : vector<18x18x1xf32> to vector<16x16x1xf32>
    %45 = vector.extract_strided_slice %2 {offsets = [5, 0], sizes = [1, 8], strides = [1, 1]} : vector<9x8xf32> to vector<1x8xf32>
    %46 = vector.shape_cast %45 : vector<1x8xf32> to vector<8xf32>
    %47 = vector.shape_cast %46 : vector<8xf32> to vector<1x1x8xf32>
    %48 = vector.broadcast %44 : vector<16x16x1xf32> to vector<16x16x8xf32>
    %49 = vector.broadcast %47 : vector<1x1x8xf32> to vector<16x16x8xf32>
    %50 = arith.mulf %48, %49 : vector<16x16x8xf32>
    %51 = arith.addf %43, %50 : vector<16x16x8xf32>
    %52 = vector.extract_strided_slice %1 {offsets = [2, 0, 0], sizes = [16, 16, 1], strides = [1, 1, 1]} : vector<18x18x1xf32> to vector<16x16x1xf32>
    %53 = vector.extract_strided_slice %2 {offsets = [6, 0], sizes = [1, 8], strides = [1, 1]} : vector<9x8xf32> to vector<1x8xf32>
    %54 = vector.shape_cast %53 : vector<1x8xf32> to vector<8xf32>
    %55 = vector.shape_cast %54 : vector<8xf32> to vector<1x1x8xf32>
    %56 = vector.broadcast %52 : vector<16x16x1xf32> to vector<16x16x8xf32>
    %57 = vector.broadcast %55 : vector<1x1x8xf32> to vector<16x16x8xf32>
    %58 = arith.mulf %56, %57 : vector<16x16x8xf32>
    %59 = arith.addf %51, %58 : vector<16x16x8xf32>
    %60 = vector.extract_strided_slice %1 {offsets = [2, 1, 0], sizes = [16, 16, 1], strides = [1, 1, 1]} : vector<18x18x1xf32> to vector<16x16x1xf32>
    %61 = vector.extract_strided_slice %2 {offsets = [7, 0], sizes = [1, 8], strides = [1, 1]} : vector<9x8xf32> to vector<1x8xf32>
    %62 = vector.shape_cast %61 : vector<1x8xf32> to vector<8xf32>
    %63 = vector.shape_cast %62 : vector<8xf32> to vector<1x1x8xf32>
    %64 = vector.broadcast %60 : vector<16x16x1xf32> to vector<16x16x8xf32>
    %65 = vector.broadcast %63 : vector<1x1x8xf32> to vector<16x16x8xf32>
    %66 = arith.mulf %64, %65 : vector<16x16x8xf32>
    %67 = arith.addf %59, %66 : vector<16x16x8xf32>
    %68 = vector.extract_strided_slice %1 {offsets = [2, 2, 0], sizes = [16, 16, 1], strides = [1, 1, 1]} : vector<18x18x1xf32> to vector<16x16x1xf32>
    %69 = vector.extract_strided_slice %2 {offsets = [8, 0], sizes = [1, 8], strides = [1, 1]} : vector<9x8xf32> to vector<1x8xf32>
    %70 = vector.shape_cast %69 : vector<1x8xf32> to vector<8xf32>
    %71 = vector.shape_cast %70 : vector<8xf32> to vector<1x1x8xf32>
    %72 = vector.broadcast %68 : vector<16x16x1xf32> to vector<16x16x8xf32>
    %73 = vector.broadcast %71 : vector<1x1x8xf32> to vector<16x16x8xf32>
    %74 = arith.mulf %72, %73 : vector<16x16x8xf32>
    %75 = arith.addf %67, %74 : vector<16x16x8xf32>
    %c0_5 = arith.constant 0 : index
    %c0_6 = arith.constant 0 : index
    %76 = vector.load %arg3[%c0_5, %c0_6] : memref<1x8xf32, #tpu.memory_space<vmem>>, vector<1x8xf32>
    %77 = vector.shape_cast %76 : vector<1x8xf32> to vector<8xf32>
    %78 = vector.shape_cast %77 : vector<8xf32> to vector<1x1x8xf32>
    %79 = vector.broadcast %78 : vector<1x1x8xf32> to vector<16x16x8xf32>
    %80 = arith.addf %75, %79 : vector<16x16x8xf32>
    %cst_7 = arith.constant 0.000000e+00 : f32
    %81 = vector.broadcast %cst_7 : f32 to vector<16x16x8xf32>
    %82 = arith.maximumf %80, %81 : vector<16x16x8xf32>
    %c0_8 = arith.constant 0 : index
    %c0_9 = arith.constant 0 : index
    %83 = vector.load %arg4[%c0_8, %c0_9] : memref<9x8xf32, #tpu.memory_space<vmem>>, vector<9x8xf32>
    %c0_10 = arith.constant 0 : index
    %c0_11 = arith.constant 0 : index
    %84 = vector.load %arg6[%c0_10, %c0_11] : memref<1x16xf32, #tpu.memory_space<vmem>>, vector<1x16xf32>
    %85 = vector.shape_cast %84 : vector<1x16xf32> to vector<16xf32>
    %cst_12 = arith.constant 0.000000e+00 : f32
    %86 = vector.broadcast %cst_12 : f32 to vector<1x18x8xf32>
    %cst_13 = arith.constant 0.000000e+00 : f32
    %87 = vector.broadcast %cst_13 : f32 to vector<16x1x8xf32>
    %c0_14 = arith.constant 0 : index
    %c0_15 = arith.constant 0 : index
    %c0_16 = arith.constant 0 : index
    %88 = vector.load %arg46[%c0_14, %c0_15, %c0_16] : memref<18x18x8xf32, #tpu.memory_space<vmem>>, vector<1x18x8xf32>
    tpu.vector_store %arg46[%c0_14, %c0_15, %c0_16], %86 {strides = array<i32>} : memref<18x18x8xf32, #tpu.memory_space<vmem>>, vector<1x18x8xf32>,
    %c17 = arith.constant 17 : index
    %c0_17 = arith.constant 0 : index
    %c0_18 = arith.constant 0 : index
    %89 = vector.load %arg46[%c17, %c0_17, %c0_18] : memref<18x18x8xf32, #tpu.memory_space<vmem>>, vector<1x18x8xf32>
    tpu.vector_store %arg46[%c17, %c0_17, %c0_18], %86 {strides = array<i32>} : memref<18x18x8xf32, #tpu.memory_space<vmem>>, vector<1x18x8xf32>,
    %c1 = arith.constant 1 : index
    %c0_19 = arith.constant 0 : index
    %c0_20 = arith.constant 0 : index
    %90 = vector.load %arg46[%c1, %c0_19, %c0_20] : memref<18x18x8xf32, #tpu.memory_space<vmem>>, vector<16x1x8xf32>
    tpu.vector_store %arg46[%c1, %c0_19, %c0_20], %87 {strides = array<i32>} : memref<18x18x8xf32, #tpu.memory_space<vmem>>, vector<16x1x8xf32>,
    %c1_21 = arith.constant 1 : index
    %c17_22 = arith.constant 17 : index
    %c0_23 = arith.constant 0 : index
    %91 = vector.load %arg46[%c1_21, %c17_22, %c0_23] : memref<18x18x8xf32, #tpu.memory_space<vmem>>, vector<16x1x8xf32>
    tpu.vector_store %arg46[%c1_21, %c17_22, %c0_23], %87 {strides = array<i32>} : memref<18x18x8xf32, #tpu.memory_space<vmem>>, vector<16x1x8xf32>,
    %c1_24 = arith.constant 1 : index
    %c1_25 = arith.constant 1 : index
    %c0_26 = arith.constant 0 : index
    %92 = vector.load %arg46[%c1_24, %c1_25, %c0_26] : memref<18x18x8xf32, #tpu.memory_space<vmem>>, vector<16x16x8xf32>
    tpu.vector_store %arg46[%c1_24, %c1_25, %c0_26], %82 {strides = array<i32>} : memref<18x18x8xf32, #tpu.memory_space<vmem>>, vector<16x16x8xf32>,
    %cst_27 = arith.constant 0.000000e+00 : f32
    %93 = vector.broadcast %cst_27 : f32 to vector<16x16x8xf32>
    %c0_28 = arith.constant 0 : index
    %c0_29 = arith.constant 0 : index
    %c0_30 = arith.constant 0 : index
    %94 = vector.load %arg46[%c0_28, %c0_29, %c0_30] : memref<18x18x8xf32, #tpu.memory_space<vmem>>, vector<16x16x8xf32>
    %95 = vector.extract_strided_slice %83 {offsets = [0, 0], sizes = [1, 8], strides = [1, 1]} : vector<9x8xf32> to vector<1x8xf32>
    %96 = vector.shape_cast %95 : vector<1x8xf32> to vector<8xf32>
    %97 = vector.shape_cast %96 : vector<8xf32> to vector<1x1x8xf32>
    %98 = vector.broadcast %97 : vector<1x1x8xf32> to vector<16x16x8xf32>
    %99 = arith.mulf %94, %98 : vector<16x16x8xf32>
    %100 = arith.addf %93, %99 : vector<16x16x8xf32>
    %c0_31 = arith.constant 0 : index
    %c1_32 = arith.constant 1 : index
    %c0_33 = arith.constant 0 : index
    %101 = vector.load %arg46[%c0_31, %c1_32, %c0_33] : memref<18x18x8xf32, #tpu.memory_space<vmem>>, vector<16x16x8xf32>
    %102 = vector.extract_strided_slice %83 {offsets = [1, 0], sizes = [1, 8], strides = [1, 1]} : vector<9x8xf32> to vector<1x8xf32>
    %103 = vector.shape_cast %102 : vector<1x8xf32> to vector<8xf32>
    %104 = vector.shape_cast %103 : vector<8xf32> to vector<1x1x8xf32>
    %105 = vector.broadcast %104 : vector<1x1x8xf32> to vector<16x16x8xf32>
    %106 = arith.mulf %101, %105 : vector<16x16x8xf32>
    %107 = arith.addf %100, %106 : vector<16x16x8xf32>
    %c0_34 = arith.constant 0 : index
    %c2 = arith.constant 2 : index
    %c0_35 = arith.constant 0 : index
    %108 = vector.load %arg46[%c0_34, %c2, %c0_35] : memref<18x18x8xf32, #tpu.memory_space<vmem>>, vector<16x16x8xf32>
    %109 = vector.extract_strided_slice %83 {offsets = [2, 0], sizes = [1, 8], strides = [1, 1]} : vector<9x8xf32> to vector<1x8xf32>
    %110 = vector.shape_cast %109 : vector<1x8xf32> to vector<8xf32>
    %111 = vector.shape_cast %110 : vector<8xf32> to vector<1x1x8xf32>
    %112 = vector.broadcast %111 : vector<1x1x8xf32> to vector<16x16x8xf32>
    %113 = arith.mulf %108, %112 : vector<16x16x8xf32>
    %114 = arith.addf %107, %113 : vector<16x16x8xf32>
    %c1_36 = arith.constant 1 : index
    %c0_37 = arith.constant 0 : index
    %c0_38 = arith.constant 0 : index
    %115 = vector.load %arg46[%c1_36, %c0_37, %c0_38] : memref<18x18x8xf32, #tpu.memory_space<vmem>>, vector<16x16x8xf32>
    %116 = vector.extract_strided_slice %83 {offsets = [3, 0], sizes = [1, 8], strides = [1, 1]} : vector<9x8xf32> to vector<1x8xf32>
    %117 = vector.shape_cast %116 : vector<1x8xf32> to vector<8xf32>
    %118 = vector.shape_cast %117 : vector<8xf32> to vector<1x1x8xf32>
    %119 = vector.broadcast %118 : vector<1x1x8xf32> to vector<16x16x8xf32>
    %120 = arith.mulf %115, %119 : vector<16x16x8xf32>
    %121 = arith.addf %114, %120 : vector<16x16x8xf32>
    %c1_39 = arith.constant 1 : index
    %c1_40 = arith.constant 1 : index
    %c0_41 = arith.constant 0 : index
    %122 = vector.load %arg46[%c1_39, %c1_40, %c0_41] : memref<18x18x8xf32, #tpu.memory_space<vmem>>, vector<16x16x8xf32>
    %123 = vector.extract_strided_slice %83 {offsets = [4, 0], sizes = [1, 8], strides = [1, 1]} : vector<9x8xf32> to vector<1x8xf32>
    %124 = vector.shape_cast %123 : vector<1x8xf32> to vector<8xf32>
    %125 = vector.shape_cast %124 : vector<8xf32> to vector<1x1x8xf32>
    %126 = vector.broadcast %125 : vector<1x1x8xf32> to vector<16x16x8xf32>
    %127 = arith.mulf %122, %126 : vector<16x16x8xf32>
    %128 = arith.addf %121, %127 : vector<16x16x8xf32>
    %c1_42 = arith.constant 1 : index
    %c2_43 = arith.constant 2 : index
    %c0_44 = arith.constant 0 : index
    %129 = vector.load %arg46[%c1_42, %c2_43, %c0_44] : memref<18x18x8xf32, #tpu.memory_space<vmem>>, vector<16x16x8xf32>
    %130 = vector.extract_strided_slice %83 {offsets = [5, 0], sizes = [1, 8], strides = [1, 1]} : vector<9x8xf32> to vector<1x8xf32>
    %131 = vector.shape_cast %130 : vector<1x8xf32> to vector<8xf32>
    %132 = vector.shape_cast %131 : vector<8xf32> to vector<1x1x8xf32>
    %133 = vector.broadcast %132 : vector<1x1x8xf32> to vector<16x16x8xf32>
    %134 = arith.mulf %129, %133 : vector<16x16x8xf32>
    %135 = arith.addf %128, %134 : vector<16x16x8xf32>
    %c2_45 = arith.constant 2 : index
    %c0_46 = arith.constant 0 : index
    %c0_47 = arith.constant 0 : index
    %136 = vector.load %arg46[%c2_45, %c0_46, %c0_47] : memref<18x18x8xf32, #tpu.memory_space<vmem>>, vector<16x16x8xf32>
    %137 = vector.extract_strided_slice %83 {offsets = [6, 0], sizes = [1, 8], strides = [1, 1]} : vector<9x8xf32> to vector<1x8xf32>
    %138 = vector.shape_cast %137 : vector<1x8xf32> to vector<8xf32>
    %139 = vector.shape_cast %138 : vector<8xf32> to vector<1x1x8xf32>
    %140 = vector.broadcast %139 : vector<1x1x8xf32> to vector<16x16x8xf32>
    %141 = arith.mulf %136, %140 : vector<16x16x8xf32>
    %142 = arith.addf %135, %141 : vector<16x16x8xf32>
    %c2_48 = arith.constant 2 : index
    %c1_49 = arith.constant 1 : index
    %c0_50 = arith.constant 0 : index
    %143 = vector.load %arg46[%c2_48, %c1_49, %c0_50] : memref<18x18x8xf32, #tpu.memory_space<vmem>>, vector<16x16x8xf32>
    %144 = vector.extract_strided_slice %83 {offsets = [7, 0], sizes = [1, 8], strides = [1, 1]} : vector<9x8xf32> to vector<1x8xf32>
    %145 = vector.shape_cast %144 : vector<1x8xf32> to vector<8xf32>
    %146 = vector.shape_cast %145 : vector<8xf32> to vector<1x1x8xf32>
    %147 = vector.broadcast %146 : vector<1x1x8xf32> to vector<16x16x8xf32>
    %148 = arith.mulf %143, %147 : vector<16x16x8xf32>
    %149 = arith.addf %142, %148 : vector<16x16x8xf32>
    %c2_51 = arith.constant 2 : index
    %c2_52 = arith.constant 2 : index
    %c0_53 = arith.constant 0 : index
    %150 = vector.load %arg46[%c2_51, %c2_52, %c0_53] : memref<18x18x8xf32, #tpu.memory_space<vmem>>, vector<16x16x8xf32>
    %151 = vector.extract_strided_slice %83 {offsets = [8, 0], sizes = [1, 8], strides = [1, 1]} : vector<9x8xf32> to vector<1x8xf32>
    %152 = vector.shape_cast %151 : vector<1x8xf32> to vector<8xf32>
    %153 = vector.shape_cast %152 : vector<8xf32> to vector<1x1x8xf32>
    %154 = vector.broadcast %153 : vector<1x1x8xf32> to vector<16x16x8xf32>
    %155 = arith.mulf %150, %154 : vector<16x16x8xf32>
    %156 = arith.addf %149, %155 : vector<16x16x8xf32>
    %157 = vector.shape_cast %156 : vector<16x16x8xf32> to vector<256x8xf32>
    %158 = arith.truncf %157 : vector<256x8xf32> to vector<256x8xbf16>
    %c0_54 = arith.constant 0 : index
    %c0_55 = arith.constant 0 : index
    %159 = vector.load %arg5[%c0_54, %c0_55] : memref<8x16xbf16, #tpu.memory_space<vmem>>, vector<8x16xbf16>
    %cst_56 = arith.constant dense<0.000000e+00> : vector<256x16xf32>
    %160 = tpu.matmul %158, %159, %cst_56 {dimension_numbers = #tpu.dot_dimension_numbers<[1], [0], [0], [1], [0, 0, 1, 1], [], []>} : vector<256x8xbf16>, vector<8x16xbf16>, vector<256x16xf32> -> vector<256x16xf32>
    %161 = vector.shape_cast %85 : vector<16xf32> to vector<1x16xf32>
    %162 = vector.broadcast %161 : vector<1x16xf32> to vector<256x16xf32>
    %163 = arith.addf %160, %162 : vector<256x16xf32>
    %cst_57 = arith.constant 0.000000e+00 : f32
    %164 = vector.broadcast %cst_57 : f32 to vector<256x16xf32>
    %165 = arith.maximumf %163, %164 : vector<256x16xf32>
    %166 = vector.shape_cast %165 : vector<256x16xf32> to vector<16x16x16xf32>
    %c0_58 = arith.constant 0 : index
    %c0_59 = arith.constant 0 : index
    %167 = vector.load %arg7[%c0_58, %c0_59] : memref<9x16xf32, #tpu.memory_space<vmem>>, vector<9x16xf32>
    %c0_60 = arith.constant 0 : index
    %c0_61 = arith.constant 0 : index
    %168 = vector.load %arg9[%c0_60, %c0_61] : memref<1x32xf32, #tpu.memory_space<vmem>>, vector<1x32xf32>
    %169 = vector.shape_cast %168 : vector<1x32xf32> to vector<32xf32>
    %cst_62 = arith.constant 0.000000e+00 : f32
    %170 = vector.broadcast %cst_62 : f32 to vector<1x18x16xf32>
    %cst_63 = arith.constant 0.000000e+00 : f32
    %171 = vector.broadcast %cst_63 : f32 to vector<16x1x16xf32>
    %c0_64 = arith.constant 0 : index
    %c0_65 = arith.constant 0 : index
    %c0_66 = arith.constant 0 : index
    %172 = vector.load %arg47[%c0_64, %c0_65, %c0_66] : memref<18x18x16xf32, #tpu.memory_space<vmem>>, vector<1x18x16xf32>
    tpu.vector_store %arg47[%c0_64, %c0_65, %c0_66], %170 {strides = array<i32>} : memref<18x18x16xf32, #tpu.memory_space<vmem>>, vector<1x18x16xf32>,
    %c17_67 = arith.constant 17 : index
    %c0_68 = arith.constant 0 : index
    %c0_69 = arith.constant 0 : index
    %173 = vector.load %arg47[%c17_67, %c0_68, %c0_69] : memref<18x18x16xf32, #tpu.memory_space<vmem>>, vector<1x18x16xf32>
    tpu.vector_store %arg47[%c17_67, %c0_68, %c0_69], %170 {strides = array<i32>} : memref<18x18x16xf32, #tpu.memory_space<vmem>>, vector<1x18x16xf32>,
    %c1_70 = arith.constant 1 : index
    %c0_71 = arith.constant 0 : index
    %c0_72 = arith.constant 0 : index
    %174 = vector.load %arg47[%c1_70, %c0_71, %c0_72] : memref<18x18x16xf32, #tpu.memory_space<vmem>>, vector<16x1x16xf32>
    tpu.vector_store %arg47[%c1_70, %c0_71, %c0_72], %171 {strides = array<i32>} : memref<18x18x16xf32, #tpu.memory_space<vmem>>, vector<16x1x16xf32>,
    %c1_73 = arith.constant 1 : index
    %c17_74 = arith.constant 17 : index
    %c0_75 = arith.constant 0 : index
    %175 = vector.load %arg47[%c1_73, %c17_74, %c0_75] : memref<18x18x16xf32, #tpu.memory_space<vmem>>, vector<16x1x16xf32>
    tpu.vector_store %arg47[%c1_73, %c17_74, %c0_75], %171 {strides = array<i32>} : memref<18x18x16xf32, #tpu.memory_space<vmem>>, vector<16x1x16xf32>,
    %c1_76 = arith.constant 1 : index
    %c1_77 = arith.constant 1 : index
    %c0_78 = arith.constant 0 : index
    %176 = vector.load %arg47[%c1_76, %c1_77, %c0_78] : memref<18x18x16xf32, #tpu.memory_space<vmem>>, vector<16x16x16xf32>
    tpu.vector_store %arg47[%c1_76, %c1_77, %c0_78], %166 {strides = array<i32>} : memref<18x18x16xf32, #tpu.memory_space<vmem>>, vector<16x16x16xf32>,
    %cst_79 = arith.constant 0.000000e+00 : f32
    %177 = vector.broadcast %cst_79 : f32 to vector<16x16x16xf32>
    %c0_80 = arith.constant 0 : index
    %c0_81 = arith.constant 0 : index
    %c0_82 = arith.constant 0 : index
    %178 = vector.load %arg47[%c0_80, %c0_81, %c0_82] : memref<18x18x16xf32, #tpu.memory_space<vmem>>, vector<16x16x16xf32>
    %179 = vector.extract_strided_slice %167 {offsets = [0, 0], sizes = [1, 16], strides = [1, 1]} : vector<9x16xf32> to vector<1x16xf32>
    %180 = vector.shape_cast %179 : vector<1x16xf32> to vector<16xf32>
    %181 = vector.shape_cast %180 : vector<16xf32> to vector<1x1x16xf32>
    %182 = vector.broadcast %181 : vector<1x1x16xf32> to vector<16x16x16xf32>
    %183 = arith.mulf %178, %182 : vector<16x16x16xf32>
    %184 = arith.addf %177, %183 : vector<16x16x16xf32>
    %c0_83 = arith.constant 0 : index
    %c1_84 = arith.constant 1 : index
    %c0_85 = arith.constant 0 : index
    %185 = vector.load %arg47[%c0_83, %c1_84, %c0_85] : memref<18x18x16xf32, #tpu.memory_space<vmem>>, vector<16x16x16xf32>
    %186 = vector.extract_strided_slice %167 {offsets = [1, 0], sizes = [1, 16], strides = [1, 1]} : vector<9x16xf32> to vector<1x16xf32>
    %187 = vector.shape_cast %186 : vector<1x16xf32> to vector<16xf32>
    %188 = vector.shape_cast %187 : vector<16xf32> to vector<1x1x16xf32>
    %189 = vector.broadcast %188 : vector<1x1x16xf32> to vector<16x16x16xf32>
    %190 = arith.mulf %185, %189 : vector<16x16x16xf32>
    %191 = arith.addf %184, %190 : vector<16x16x16xf32>
    %c0_86 = arith.constant 0 : index
    %c2_87 = arith.constant 2 : index
    %c0_88 = arith.constant 0 : index
    %192 = vector.load %arg47[%c0_86, %c2_87, %c0_88] : memref<18x18x16xf32, #tpu.memory_space<vmem>>, vector<16x16x16xf32>
    %193 = vector.extract_strided_slice %167 {offsets = [2, 0], sizes = [1, 16], strides = [1, 1]} : vector<9x16xf32> to vector<1x16xf32>
    %194 = vector.shape_cast %193 : vector<1x16xf32> to vector<16xf32>
    %195 = vector.shape_cast %194 : vector<16xf32> to vector<1x1x16xf32>
    %196 = vector.broadcast %195 : vector<1x1x16xf32> to vector<16x16x16xf32>
    %197 = arith.mulf %192, %196 : vector<16x16x16xf32>
    %198 = arith.addf %191, %197 : vector<16x16x16xf32>
    %c1_89 = arith.constant 1 : index
    %c0_90 = arith.constant 0 : index
    %c0_91 = arith.constant 0 : index
    %199 = vector.load %arg47[%c1_89, %c0_90, %c0_91] : memref<18x18x16xf32, #tpu.memory_space<vmem>>, vector<16x16x16xf32>
    %200 = vector.extract_strided_slice %167 {offsets = [3, 0], sizes = [1, 16], strides = [1, 1]} : vector<9x16xf32> to vector<1x16xf32>
    %201 = vector.shape_cast %200 : vector<1x16xf32> to vector<16xf32>
    %202 = vector.shape_cast %201 : vector<16xf32> to vector<1x1x16xf32>
    %203 = vector.broadcast %202 : vector<1x1x16xf32> to vector<16x16x16xf32>
    %204 = arith.mulf %199, %203 : vector<16x16x16xf32>
    %205 = arith.addf %198, %204 : vector<16x16x16xf32>
    %c1_92 = arith.constant 1 : index
    %c1_93 = arith.constant 1 : index
    %c0_94 = arith.constant 0 : index
    %206 = vector.load %arg47[%c1_92, %c1_93, %c0_94] : memref<18x18x16xf32, #tpu.memory_space<vmem>>, vector<16x16x16xf32>
    %207 = vector.extract_strided_slice %167 {offsets = [4, 0], sizes = [1, 16], strides = [1, 1]} : vector<9x16xf32> to vector<1x16xf32>
    %208 = vector.shape_cast %207 : vector<1x16xf32> to vector<16xf32>
    %209 = vector.shape_cast %208 : vector<16xf32> to vector<1x1x16xf32>
    %210 = vector.broadcast %209 : vector<1x1x16xf32> to vector<16x16x16xf32>
    %211 = arith.mulf %206, %210 : vector<16x16x16xf32>
    %212 = arith.addf %205, %211 : vector<16x16x16xf32>
    %c1_95 = arith.constant 1 : index
    %c2_96 = arith.constant 2 : index
    %c0_97 = arith.constant 0 : index
    %213 = vector.load %arg47[%c1_95, %c2_96, %c0_97] : memref<18x18x16xf32, #tpu.memory_space<vmem>>, vector<16x16x16xf32>
    %214 = vector.extract_strided_slice %167 {offsets = [5, 0], sizes = [1, 16], strides = [1, 1]} : vector<9x16xf32> to vector<1x16xf32>
    %215 = vector.shape_cast %214 : vector<1x16xf32> to vector<16xf32>
    %216 = vector.shape_cast %215 : vector<16xf32> to vector<1x1x16xf32>
    %217 = vector.broadcast %216 : vector<1x1x16xf32> to vector<16x16x16xf32>
    %218 = arith.mulf %213, %217 : vector<16x16x16xf32>
    %219 = arith.addf %212, %218 : vector<16x16x16xf32>
    %c2_98 = arith.constant 2 : index
    %c0_99 = arith.constant 0 : index
    %c0_100 = arith.constant 0 : index
    %220 = vector.load %arg47[%c2_98, %c0_99, %c0_100] : memref<18x18x16xf32, #tpu.memory_space<vmem>>, vector<16x16x16xf32>
    %221 = vector.extract_strided_slice %167 {offsets = [6, 0], sizes = [1, 16], strides = [1, 1]} : vector<9x16xf32> to vector<1x16xf32>
    %222 = vector.shape_cast %221 : vector<1x16xf32> to vector<16xf32>
    %223 = vector.shape_cast %222 : vector<16xf32> to vector<1x1x16xf32>
    %224 = vector.broadcast %223 : vector<1x1x16xf32> to vector<16x16x16xf32>
    %225 = arith.mulf %220, %224 : vector<16x16x16xf32>
    %226 = arith.addf %219, %225 : vector<16x16x16xf32>
    %c2_101 = arith.constant 2 : index
    %c1_102 = arith.constant 1 : index
    %c0_103 = arith.constant 0 : index
    %227 = vector.load %arg47[%c2_101, %c1_102, %c0_103] : memref<18x18x16xf32, #tpu.memory_space<vmem>>, vector<16x16x16xf32>
    %228 = vector.extract_strided_slice %167 {offsets = [7, 0], sizes = [1, 16], strides = [1, 1]} : vector<9x16xf32> to vector<1x16xf32>
    %229 = vector.shape_cast %228 : vector<1x16xf32> to vector<16xf32>
    %230 = vector.shape_cast %229 : vector<16xf32> to vector<1x1x16xf32>
    %231 = vector.broadcast %230 : vector<1x1x16xf32> to vector<16x16x16xf32>
    %232 = arith.mulf %227, %231 : vector<16x16x16xf32>
    %233 = arith.addf %226, %232 : vector<16x16x16xf32>
    %c2_104 = arith.constant 2 : index
    %c2_105 = arith.constant 2 : index
    %c0_106 = arith.constant 0 : index
    %234 = vector.load %arg47[%c2_104, %c2_105, %c0_106] : memref<18x18x16xf32, #tpu.memory_space<vmem>>, vector<16x16x16xf32>
    %235 = vector.extract_strided_slice %167 {offsets = [8, 0], sizes = [1, 16], strides = [1, 1]} : vector<9x16xf32> to vector<1x16xf32>
    %236 = vector.shape_cast %235 : vector<1x16xf32> to vector<16xf32>
    %237 = vector.shape_cast %236 : vector<16xf32> to vector<1x1x16xf32>
    %238 = vector.broadcast %237 : vector<1x1x16xf32> to vector<16x16x16xf32>
    %239 = arith.mulf %234, %238 : vector<16x16x16xf32>
    %240 = arith.addf %233, %239 : vector<16x16x16xf32>
    %241 = vector.shape_cast %240 : vector<16x16x16xf32> to vector<8x2x16x16xf32>
    %242 = vector.extract_strided_slice %241 {offsets = [0, 0, 0, 0], sizes = [8, 1, 16, 16], strides = [1, 1, 1, 1]} : vector<8x2x16x16xf32> to vector<8x1x16x16xf32>
    %243 = vector.shape_cast %242 : vector<8x1x16x16xf32> to vector<8x16x16xf32>
    %244 = vector.shape_cast %243 : vector<8x16x16xf32> to vector<8x8x2x16xf32>
    %245 = vector.extract_strided_slice %244 {offsets = [0, 0, 0, 0], sizes = [8, 8, 1, 16], strides = [1, 1, 1, 1]} : vector<8x8x2x16xf32> to vector<8x8x1x16xf32>
    %246 = vector.shape_cast %245 : vector<8x8x1x16xf32> to vector<8x8x16xf32>
    %247 = vector.shape_cast %246 : vector<8x8x16xf32> to vector<64x16xf32>
    %248 = arith.truncf %247 : vector<64x16xf32> to vector<64x16xbf16>
    %c0_107 = arith.constant 0 : index
    %c0_108 = arith.constant 0 : index
    %249 = vector.load %arg8[%c0_107, %c0_108] : memref<16x32xbf16, #tpu.memory_space<vmem>>, vector<16x32xbf16>
    %cst_109 = arith.constant dense<0.000000e+00> : vector<64x32xf32>
    %250 = tpu.matmul %248, %249, %cst_109 {dimension_numbers = #tpu.dot_dimension_numbers<[1], [0], [0], [1], [0, 0, 1, 1], [], []>} : vector<64x16xbf16>, vector<16x32xbf16>, vector<64x32xf32> -> vector<64x32xf32>
    %251 = vector.shape_cast %169 : vector<32xf32> to vector<1x32xf32>
    %252 = vector.broadcast %251 : vector<1x32xf32> to vector<64x32xf32>
    %253 = arith.addf %250, %252 : vector<64x32xf32>
    %cst_110 = arith.constant 0.000000e+00 : f32
    %254 = vector.broadcast %cst_110 : f32 to vector<64x32xf32>
    %255 = arith.maximumf %253, %254 : vector<64x32xf32>
    %256 = vector.shape_cast %255 : vector<64x32xf32> to vector<8x8x32xf32>
    %c0_111 = arith.constant 0 : index
    %c0_112 = arith.constant 0 : index
    %257 = vector.load %arg10[%c0_111, %c0_112] : memref<9x32xf32, #tpu.memory_space<vmem>>, vector<9x32xf32>
    %c0_113 = arith.constant 0 : index
    %c0_114 = arith.constant 0 : index
    %258 = vector.load %arg12[%c0_113, %c0_114] : memref<1x32xf32, #tpu.memory_space<vmem>>, vector<1x32xf32>
    %259 = vector.shape_cast %258 : vector<1x32xf32> to vector<32xf32>
    %cst_115 = arith.constant 0.000000e+00 : f32
    %260 = vector.broadcast %cst_115 : f32 to vector<1x10x32xf32>
    %cst_116 = arith.constant 0.000000e+00 : f32
    %261 = vector.broadcast %cst_116 : f32 to vector<8x1x32xf32>
    %c0_117 = arith.constant 0 : index
    %c0_118 = arith.constant 0 : index
    %c0_119 = arith.constant 0 : index
    %262 = vector.load %arg48[%c0_117, %c0_118, %c0_119] : memref<10x10x32xf32, #tpu.memory_space<vmem>>, vector<1x10x32xf32>
    tpu.vector_store %arg48[%c0_117, %c0_118, %c0_119], %260 {strides = array<i32>} : memref<10x10x32xf32, #tpu.memory_space<vmem>>, vector<1x10x32xf32>,
    %c9 = arith.constant 9 : index
    %c0_120 = arith.constant 0 : index
    %c0_121 = arith.constant 0 : index
    %263 = vector.load %arg48[%c9, %c0_120, %c0_121] : memref<10x10x32xf32, #tpu.memory_space<vmem>>, vector<1x10x32xf32>
    tpu.vector_store %arg48[%c9, %c0_120, %c0_121], %260 {strides = array<i32>} : memref<10x10x32xf32, #tpu.memory_space<vmem>>, vector<1x10x32xf32>,
    %c1_122 = arith.constant 1 : index
    %c0_123 = arith.constant 0 : index
    %c0_124 = arith.constant 0 : index
    %264 = vector.load %arg48[%c1_122, %c0_123, %c0_124] : memref<10x10x32xf32, #tpu.memory_space<vmem>>, vector<8x1x32xf32>
    tpu.vector_store %arg48[%c1_122, %c0_123, %c0_124], %261 {strides = array<i32>} : memref<10x10x32xf32, #tpu.memory_space<vmem>>, vector<8x1x32xf32>,
    %c1_125 = arith.constant 1 : index
    %c9_126 = arith.constant 9 : index
    %c0_127 = arith.constant 0 : index
    %265 = vector.load %arg48[%c1_125, %c9_126, %c0_127] : memref<10x10x32xf32, #tpu.memory_space<vmem>>, vector<8x1x32xf32>
    tpu.vector_store %arg48[%c1_125, %c9_126, %c0_127], %261 {strides = array<i32>} : memref<10x10x32xf32, #tpu.memory_space<vmem>>, vector<8x1x32xf32>,
    %c1_128 = arith.constant 1 : index
    %c1_129 = arith.constant 1 : index
    %c0_130 = arith.constant 0 : index
    %266 = vector.load %arg48[%c1_128, %c1_129, %c0_130] : memref<10x10x32xf32, #tpu.memory_space<vmem>>, vector<8x8x32xf32>
    tpu.vector_store %arg48[%c1_128, %c1_129, %c0_130], %256 {strides = array<i32>} : memref<10x10x32xf32, #tpu.memory_space<vmem>>, vector<8x8x32xf32>,
    %cst_131 = arith.constant 0.000000e+00 : f32
    %267 = vector.broadcast %cst_131 : f32 to vector<8x8x32xf32>
    %c0_132 = arith.constant 0 : index
    %c0_133 = arith.constant 0 : index
    %c0_134 = arith.constant 0 : index
    %268 = vector.load %arg48[%c0_132, %c0_133, %c0_134] : memref<10x10x32xf32, #tpu.memory_space<vmem>>, vector<8x8x32xf32>
    %269 = vector.extract_strided_slice %257 {offsets = [0, 0], sizes = [1, 32], strides = [1, 1]} : vector<9x32xf32> to vector<1x32xf32>
    %270 = vector.shape_cast %269 : vector<1x32xf32> to vector<32xf32>
    %271 = vector.shape_cast %270 : vector<32xf32> to vector<1x1x32xf32>
    %272 = vector.broadcast %271 : vector<1x1x32xf32> to vector<8x8x32xf32>
    %273 = arith.mulf %268, %272 : vector<8x8x32xf32>
    %274 = arith.addf %267, %273 : vector<8x8x32xf32>
    %c0_135 = arith.constant 0 : index
    %c1_136 = arith.constant 1 : index
    %c0_137 = arith.constant 0 : index
    %275 = vector.load %arg48[%c0_135, %c1_136, %c0_137] : memref<10x10x32xf32, #tpu.memory_space<vmem>>, vector<8x8x32xf32>
    %276 = vector.extract_strided_slice %257 {offsets = [1, 0], sizes = [1, 32], strides = [1, 1]} : vector<9x32xf32> to vector<1x32xf32>
    %277 = vector.shape_cast %276 : vector<1x32xf32> to vector<32xf32>
    %278 = vector.shape_cast %277 : vector<32xf32> to vector<1x1x32xf32>
    %279 = vector.broadcast %278 : vector<1x1x32xf32> to vector<8x8x32xf32>
    %280 = arith.mulf %275, %279 : vector<8x8x32xf32>
    %281 = arith.addf %274, %280 : vector<8x8x32xf32>
    %c0_138 = arith.constant 0 : index
    %c2_139 = arith.constant 2 : index
    %c0_140 = arith.constant 0 : index
    %282 = vector.load %arg48[%c0_138, %c2_139, %c0_140] : memref<10x10x32xf32, #tpu.memory_space<vmem>>, vector<8x8x32xf32>
    %283 = vector.extract_strided_slice %257 {offsets = [2, 0], sizes = [1, 32], strides = [1, 1]} : vector<9x32xf32> to vector<1x32xf32>
    %284 = vector.shape_cast %283 : vector<1x32xf32> to vector<32xf32>
    %285 = vector.shape_cast %284 : vector<32xf32> to vector<1x1x32xf32>
    %286 = vector.broadcast %285 : vector<1x1x32xf32> to vector<8x8x32xf32>
    %287 = arith.mulf %282, %286 : vector<8x8x32xf32>
    %288 = arith.addf %281, %287 : vector<8x8x32xf32>
    %c1_141 = arith.constant 1 : index
    %c0_142 = arith.constant 0 : index
    %c0_143 = arith.constant 0 : index
    %289 = vector.load %arg48[%c1_141, %c0_142, %c0_143] : memref<10x10x32xf32, #tpu.memory_space<vmem>>, vector<8x8x32xf32>
    %290 = vector.extract_strided_slice %257 {offsets = [3, 0], sizes = [1, 32], strides = [1, 1]} : vector<9x32xf32> to vector<1x32xf32>
    %291 = vector.shape_cast %290 : vector<1x32xf32> to vector<32xf32>
    %292 = vector.shape_cast %291 : vector<32xf32> to vector<1x1x32xf32>
    %293 = vector.broadcast %292 : vector<1x1x32xf32> to vector<8x8x32xf32>
    %294 = arith.mulf %289, %293 : vector<8x8x32xf32>
    %295 = arith.addf %288, %294 : vector<8x8x32xf32>
    %c1_144 = arith.constant 1 : index
    %c1_145 = arith.constant 1 : index
    %c0_146 = arith.constant 0 : index
    %296 = vector.load %arg48[%c1_144, %c1_145, %c0_146] : memref<10x10x32xf32, #tpu.memory_space<vmem>>, vector<8x8x32xf32>
    %297 = vector.extract_strided_slice %257 {offsets = [4, 0], sizes = [1, 32], strides = [1, 1]} : vector<9x32xf32> to vector<1x32xf32>
    %298 = vector.shape_cast %297 : vector<1x32xf32> to vector<32xf32>
    %299 = vector.shape_cast %298 : vector<32xf32> to vector<1x1x32xf32>
    %300 = vector.broadcast %299 : vector<1x1x32xf32> to vector<8x8x32xf32>
    %301 = arith.mulf %296, %300 : vector<8x8x32xf32>
    %302 = arith.addf %295, %301 : vector<8x8x32xf32>
    %c1_147 = arith.constant 1 : index
    %c2_148 = arith.constant 2 : index
    %c0_149 = arith.constant 0 : index
    %303 = vector.load %arg48[%c1_147, %c2_148, %c0_149] : memref<10x10x32xf32, #tpu.memory_space<vmem>>, vector<8x8x32xf32>
    %304 = vector.extract_strided_slice %257 {offsets = [5, 0], sizes = [1, 32], strides = [1, 1]} : vector<9x32xf32> to vector<1x32xf32>
    %305 = vector.shape_cast %304 : vector<1x32xf32> to vector<32xf32>
    %306 = vector.shape_cast %305 : vector<32xf32> to vector<1x1x32xf32>
    %307 = vector.broadcast %306 : vector<1x1x32xf32> to vector<8x8x32xf32>
    %308 = arith.mulf %303, %307 : vector<8x8x32xf32>
    %309 = arith.addf %302, %308 : vector<8x8x32xf32>
    %c2_150 = arith.constant 2 : index
    %c0_151 = arith.constant 0 : index
    %c0_152 = arith.constant 0 : index
    %310 = vector.load %arg48[%c2_150, %c0_151, %c0_152] : memref<10x10x32xf32, #tpu.memory_space<vmem>>, vector<8x8x32xf32>
    %311 = vector.extract_strided_slice %257 {offsets = [6, 0], sizes = [1, 32], strides = [1, 1]} : vector<9x32xf32> to vector<1x32xf32>
    %312 = vector.shape_cast %311 : vector<1x32xf32> to vector<32xf32>
    %313 = vector.shape_cast %312 : vector<32xf32> to vector<1x1x32xf32>
    %314 = vector.broadcast %313 : vector<1x1x32xf32> to vector<8x8x32xf32>
    %315 = arith.mulf %310, %314 : vector<8x8x32xf32>
    %316 = arith.addf %309, %315 : vector<8x8x32xf32>
    %c2_153 = arith.constant 2 : index
    %c1_154 = arith.constant 1 : index
    %c0_155 = arith.constant 0 : index
    %317 = vector.load %arg48[%c2_153, %c1_154, %c0_155] : memref<10x10x32xf32, #tpu.memory_space<vmem>>, vector<8x8x32xf32>
    %318 = vector.extract_strided_slice %257 {offsets = [7, 0], sizes = [1, 32], strides = [1, 1]} : vector<9x32xf32> to vector<1x32xf32>
    %319 = vector.shape_cast %318 : vector<1x32xf32> to vector<32xf32>
    %320 = vector.shape_cast %319 : vector<32xf32> to vector<1x1x32xf32>
    %321 = vector.broadcast %320 : vector<1x1x32xf32> to vector<8x8x32xf32>
    %322 = arith.mulf %317, %321 : vector<8x8x32xf32>
    %323 = arith.addf %316, %322 : vector<8x8x32xf32>
    %c2_156 = arith.constant 2 : index
    %c2_157 = arith.constant 2 : index
    %c0_158 = arith.constant 0 : index
    %324 = vector.load %arg48[%c2_156, %c2_157, %c0_158] : memref<10x10x32xf32, #tpu.memory_space<vmem>>, vector<8x8x32xf32>
    %325 = vector.extract_strided_slice %257 {offsets = [8, 0], sizes = [1, 32], strides = [1, 1]} : vector<9x32xf32> to vector<1x32xf32>
    %326 = vector.shape_cast %325 : vector<1x32xf32> to vector<32xf32>
    %327 = vector.shape_cast %326 : vector<32xf32> to vector<1x1x32xf32>
    %328 = vector.broadcast %327 : vector<1x1x32xf32> to vector<8x8x32xf32>
    %329 = arith.mulf %324, %328 : vector<8x8x32xf32>
    %330 = arith.addf %323, %329 : vector<8x8x32xf32>
    %331 = vector.shape_cast %330 : vector<8x8x32xf32> to vector<64x32xf32>
    %332 = arith.truncf %331 : vector<64x32xf32> to vector<64x32xbf16>
    %c0_159 = arith.constant 0 : index
    %c0_160 = arith.constant 0 : index
    %333 = vector.load %arg11[%c0_159, %c0_160] : memref<32x32xbf16, #tpu.memory_space<vmem>>, vector<32x32xbf16>
    %cst_161 = arith.constant dense<0.000000e+00> : vector<64x32xf32>
    %334 = tpu.matmul %332, %333, %cst_161 {dimension_numbers = #tpu.dot_dimension_numbers<[1], [0], [0], [1], [0, 0, 1, 1], [], []>} : vector<64x32xbf16>, vector<32x32xbf16>, vector<64x32xf32> -> vector<64x32xf32>
    %335 = vector.shape_cast %259 : vector<32xf32> to vector<1x32xf32>
    %336 = vector.broadcast %335 : vector<1x32xf32> to vector<64x32xf32>
    %337 = arith.addf %334, %336 : vector<64x32xf32>
    %cst_162 = arith.constant 0.000000e+00 : f32
    %338 = vector.broadcast %cst_162 : f32 to vector<64x32xf32>
    %339 = arith.maximumf %337, %338 : vector<64x32xf32>
    %340 = vector.shape_cast %339 : vector<64x32xf32> to vector<8x8x32xf32>
    %c0_163 = arith.constant 0 : index
    %c0_164 = arith.constant 0 : index
    %341 = vector.load %arg13[%c0_163, %c0_164] : memref<9x32xf32, #tpu.memory_space<vmem>>, vector<9x32xf32>
    %c0_165 = arith.constant 0 : index
    %c0_166 = arith.constant 0 : index
    %342 = vector.load %arg15[%c0_165, %c0_166] : memref<1x64xf32, #tpu.memory_space<vmem>>, vector<1x64xf32>
    %343 = vector.shape_cast %342 : vector<1x64xf32> to vector<64xf32>
    %cst_167 = arith.constant 0.000000e+00 : f32
    %344 = vector.broadcast %cst_167 : f32 to vector<1x10x32xf32>
    %cst_168 = arith.constant 0.000000e+00 : f32
    %345 = vector.broadcast %cst_168 : f32 to vector<8x1x32xf32>
    %c0_169 = arith.constant 0 : index
    %c0_170 = arith.constant 0 : index
    %c0_171 = arith.constant 0 : index
    %346 = vector.load %arg49[%c0_169, %c0_170, %c0_171] : memref<10x10x32xf32, #tpu.memory_space<vmem>>, vector<1x10x32xf32>
    tpu.vector_store %arg49[%c0_169, %c0_170, %c0_171], %344 {strides = array<i32>} : memref<10x10x32xf32, #tpu.memory_space<vmem>>, vector<1x10x32xf32>,
    %c9_172 = arith.constant 9 : index
    %c0_173 = arith.constant 0 : index
    %c0_174 = arith.constant 0 : index
    %347 = vector.load %arg49[%c9_172, %c0_173, %c0_174] : memref<10x10x32xf32, #tpu.memory_space<vmem>>, vector<1x10x32xf32>
    tpu.vector_store %arg49[%c9_172, %c0_173, %c0_174], %344 {strides = array<i32>} : memref<10x10x32xf32, #tpu.memory_space<vmem>>, vector<1x10x32xf32>,
    %c1_175 = arith.constant 1 : index
    %c0_176 = arith.constant 0 : index
    %c0_177 = arith.constant 0 : index
    %348 = vector.load %arg49[%c1_175, %c0_176, %c0_177] : memref<10x10x32xf32, #tpu.memory_space<vmem>>, vector<8x1x32xf32>
    tpu.vector_store %arg49[%c1_175, %c0_176, %c0_177], %345 {strides = array<i32>} : memref<10x10x32xf32, #tpu.memory_space<vmem>>, vector<8x1x32xf32>,
    %c1_178 = arith.constant 1 : index
    %c9_179 = arith.constant 9 : index
    %c0_180 = arith.constant 0 : index
    %349 = vector.load %arg49[%c1_178, %c9_179, %c0_180] : memref<10x10x32xf32, #tpu.memory_space<vmem>>, vector<8x1x32xf32>
    tpu.vector_store %arg49[%c1_178, %c9_179, %c0_180], %345 {strides = array<i32>} : memref<10x10x32xf32, #tpu.memory_space<vmem>>, vector<8x1x32xf32>,
    %c1_181 = arith.constant 1 : index
    %c1_182 = arith.constant 1 : index
    %c0_183 = arith.constant 0 : index
    %350 = vector.load %arg49[%c1_181, %c1_182, %c0_183] : memref<10x10x32xf32, #tpu.memory_space<vmem>>, vector<8x8x32xf32>
    tpu.vector_store %arg49[%c1_181, %c1_182, %c0_183], %340 {strides = array<i32>} : memref<10x10x32xf32, #tpu.memory_space<vmem>>, vector<8x8x32xf32>,
    %cst_184 = arith.constant 0.000000e+00 : f32
    %351 = vector.broadcast %cst_184 : f32 to vector<8x8x32xf32>
    %c0_185 = arith.constant 0 : index
    %c0_186 = arith.constant 0 : index
    %c0_187 = arith.constant 0 : index
    %352 = vector.load %arg49[%c0_185, %c0_186, %c0_187] : memref<10x10x32xf32, #tpu.memory_space<vmem>>, vector<8x8x32xf32>
    %353 = vector.extract_strided_slice %341 {offsets = [0, 0], sizes = [1, 32], strides = [1, 1]} : vector<9x32xf32> to vector<1x32xf32>
    %354 = vector.shape_cast %353 : vector<1x32xf32> to vector<32xf32>
    %355 = vector.shape_cast %354 : vector<32xf32> to vector<1x1x32xf32>
    %356 = vector.broadcast %355 : vector<1x1x32xf32> to vector<8x8x32xf32>
    %357 = arith.mulf %352, %356 : vector<8x8x32xf32>
    %358 = arith.addf %351, %357 : vector<8x8x32xf32>
    %c0_188 = arith.constant 0 : index
    %c1_189 = arith.constant 1 : index
    %c0_190 = arith.constant 0 : index
    %359 = vector.load %arg49[%c0_188, %c1_189, %c0_190] : memref<10x10x32xf32, #tpu.memory_space<vmem>>, vector<8x8x32xf32>
    %360 = vector.extract_strided_slice %341 {offsets = [1, 0], sizes = [1, 32], strides = [1, 1]} : vector<9x32xf32> to vector<1x32xf32>
    %361 = vector.shape_cast %360 : vector<1x32xf32> to vector<32xf32>
    %362 = vector.shape_cast %361 : vector<32xf32> to vector<1x1x32xf32>
    %363 = vector.broadcast %362 : vector<1x1x32xf32> to vector<8x8x32xf32>
    %364 = arith.mulf %359, %363 : vector<8x8x32xf32>
    %365 = arith.addf %358, %364 : vector<8x8x32xf32>
    %c0_191 = arith.constant 0 : index
    %c2_192 = arith.constant 2 : index
    %c0_193 = arith.constant 0 : index
    %366 = vector.load %arg49[%c0_191, %c2_192, %c0_193] : memref<10x10x32xf32, #tpu.memory_space<vmem>>, vector<8x8x32xf32>
    %367 = vector.extract_strided_slice %341 {offsets = [2, 0], sizes = [1, 32], strides = [1, 1]} : vector<9x32xf32> to vector<1x32xf32>
    %368 = vector.shape_cast %367 : vector<1x32xf32> to vector<32xf32>
    %369 = vector.shape_cast %368 : vector<32xf32> to vector<1x1x32xf32>
    %370 = vector.broadcast %369 : vector<1x1x32xf32> to vector<8x8x32xf32>
    %371 = arith.mulf %366, %370 : vector<8x8x32xf32>
    %372 = arith.addf %365, %371 : vector<8x8x32xf32>
    %c1_194 = arith.constant 1 : index
    %c0_195 = arith.constant 0 : index
    %c0_196 = arith.constant 0 : index
    %373 = vector.load %arg49[%c1_194, %c0_195, %c0_196] : memref<10x10x32xf32, #tpu.memory_space<vmem>>, vector<8x8x32xf32>
    %374 = vector.extract_strided_slice %341 {offsets = [3, 0], sizes = [1, 32], strides = [1, 1]} : vector<9x32xf32> to vector<1x32xf32>
    %375 = vector.shape_cast %374 : vector<1x32xf32> to vector<32xf32>
    %376 = vector.shape_cast %375 : vector<32xf32> to vector<1x1x32xf32>
    %377 = vector.broadcast %376 : vector<1x1x32xf32> to vector<8x8x32xf32>
    %378 = arith.mulf %373, %377 : vector<8x8x32xf32>
    %379 = arith.addf %372, %378 : vector<8x8x32xf32>
    %c1_197 = arith.constant 1 : index
    %c1_198 = arith.constant 1 : index
    %c0_199 = arith.constant 0 : index
    %380 = vector.load %arg49[%c1_197, %c1_198, %c0_199] : memref<10x10x32xf32, #tpu.memory_space<vmem>>, vector<8x8x32xf32>
    %381 = vector.extract_strided_slice %341 {offsets = [4, 0], sizes = [1, 32], strides = [1, 1]} : vector<9x32xf32> to vector<1x32xf32>
    %382 = vector.shape_cast %381 : vector<1x32xf32> to vector<32xf32>
    %383 = vector.shape_cast %382 : vector<32xf32> to vector<1x1x32xf32>
    %384 = vector.broadcast %383 : vector<1x1x32xf32> to vector<8x8x32xf32>
    %385 = arith.mulf %380, %384 : vector<8x8x32xf32>
    %386 = arith.addf %379, %385 : vector<8x8x32xf32>
    %c1_200 = arith.constant 1 : index
    %c2_201 = arith.constant 2 : index
    %c0_202 = arith.constant 0 : index
    %387 = vector.load %arg49[%c1_200, %c2_201, %c0_202] : memref<10x10x32xf32, #tpu.memory_space<vmem>>, vector<8x8x32xf32>
    %388 = vector.extract_strided_slice %341 {offsets = [5, 0], sizes = [1, 32], strides = [1, 1]} : vector<9x32xf32> to vector<1x32xf32>
    %389 = vector.shape_cast %388 : vector<1x32xf32> to vector<32xf32>
    %390 = vector.shape_cast %389 : vector<32xf32> to vector<1x1x32xf32>
    %391 = vector.broadcast %390 : vector<1x1x32xf32> to vector<8x8x32xf32>
    %392 = arith.mulf %387, %391 : vector<8x8x32xf32>
    %393 = arith.addf %386, %392 : vector<8x8x32xf32>
    %c2_203 = arith.constant 2 : index
    %c0_204 = arith.constant 0 : index
    %c0_205 = arith.constant 0 : index
    %394 = vector.load %arg49[%c2_203, %c0_204, %c0_205] : memref<10x10x32xf32, #tpu.memory_space<vmem>>, vector<8x8x32xf32>
    %395 = vector.extract_strided_slice %341 {offsets = [6, 0], sizes = [1, 32], strides = [1, 1]} : vector<9x32xf32> to vector<1x32xf32>
    %396 = vector.shape_cast %395 : vector<1x32xf32> to vector<32xf32>
    %397 = vector.shape_cast %396 : vector<32xf32> to vector<1x1x32xf32>
    %398 = vector.broadcast %397 : vector<1x1x32xf32> to vector<8x8x32xf32>
    %399 = arith.mulf %394, %398 : vector<8x8x32xf32>
    %400 = arith.addf %393, %399 : vector<8x8x32xf32>
    %c2_206 = arith.constant 2 : index
    %c1_207 = arith.constant 1 : index
    %c0_208 = arith.constant 0 : index
    %401 = vector.load %arg49[%c2_206, %c1_207, %c0_208] : memref<10x10x32xf32, #tpu.memory_space<vmem>>, vector<8x8x32xf32>
    %402 = vector.extract_strided_slice %341 {offsets = [7, 0], sizes = [1, 32], strides = [1, 1]} : vector<9x32xf32> to vector<1x32xf32>
    %403 = vector.shape_cast %402 : vector<1x32xf32> to vector<32xf32>
    %404 = vector.shape_cast %403 : vector<32xf32> to vector<1x1x32xf32>
    %405 = vector.broadcast %404 : vector<1x1x32xf32> to vector<8x8x32xf32>
    %406 = arith.mulf %401, %405 : vector<8x8x32xf32>
    %407 = arith.addf %400, %406 : vector<8x8x32xf32>
    %c2_209 = arith.constant 2 : index
    %c2_210 = arith.constant 2 : index
    %c0_211 = arith.constant 0 : index
    %408 = vector.load %arg49[%c2_209, %c2_210, %c0_211] : memref<10x10x32xf32, #tpu.memory_space<vmem>>, vector<8x8x32xf32>
    %409 = vector.extract_strided_slice %341 {offsets = [8, 0], sizes = [1, 32], strides = [1, 1]} : vector<9x32xf32> to vector<1x32xf32>
    %410 = vector.shape_cast %409 : vector<1x32xf32> to vector<32xf32>
    %411 = vector.shape_cast %410 : vector<32xf32> to vector<1x1x32xf32>
    %412 = vector.broadcast %411 : vector<1x1x32xf32> to vector<8x8x32xf32>
    %413 = arith.mulf %408, %412 : vector<8x8x32xf32>
    %414 = arith.addf %407, %413 : vector<8x8x32xf32>
    %415 = vector.shape_cast %414 : vector<8x8x32xf32> to vector<4x2x8x32xf32>
    %416 = vector.extract_strided_slice %415 {offsets = [0, 0, 0, 0], sizes = [4, 1, 8, 32], strides = [1, 1, 1, 1]} : vector<4x2x8x32xf32> to vector<4x1x8x32xf32>
    %417 = vector.shape_cast %416 : vector<4x1x8x32xf32> to vector<4x8x32xf32>
    %418 = vector.shape_cast %417 : vector<4x8x32xf32> to vector<4x4x2x32xf32>
    %419 = vector.extract_strided_slice %418 {offsets = [0, 0, 0, 0], sizes = [4, 4, 1, 32], strides = [1, 1, 1, 1]} : vector<4x4x2x32xf32> to vector<4x4x1x32xf32>
    %420 = vector.shape_cast %419 : vector<4x4x1x32xf32> to vector<4x4x32xf32>
    %421 = vector.shape_cast %420 : vector<4x4x32xf32> to vector<16x32xf32>
    %422 = arith.truncf %421 : vector<16x32xf32> to vector<16x32xbf16>
    %c0_212 = arith.constant 0 : index
    %c0_213 = arith.constant 0 : index
    %423 = vector.load %arg14[%c0_212, %c0_213] : memref<32x64xbf16, #tpu.memory_space<vmem>>, vector<32x64xbf16>
    %cst_214 = arith.constant dense<0.000000e+00> : vector<16x64xf32>
    %424 = tpu.matmul %422, %423, %cst_214 {dimension_numbers = #tpu.dot_dimension_numbers<[1], [0], [0], [1], [0, 0, 1, 1], [], []>} : vector<16x32xbf16>, vector<32x64xbf16>, vector<16x64xf32> -> vector<16x64xf32>
    %425 = vector.shape_cast %343 : vector<64xf32> to vector<1x64xf32>
    %426 = vector.broadcast %425 : vector<1x64xf32> to vector<16x64xf32>
    %427 = arith.addf %424, %426 : vector<16x64xf32>
    %cst_215 = arith.constant 0.000000e+00 : f32
    %428 = vector.broadcast %cst_215 : f32 to vector<16x64xf32>
    %429 = arith.maximumf %427, %428 : vector<16x64xf32>
    %430 = vector.shape_cast %429 : vector<16x64xf32> to vector<4x4x64xf32>
    %c0_216 = arith.constant 0 : index
    %c0_217 = arith.constant 0 : index
    %431 = vector.load %arg16[%c0_216, %c0_217] : memref<9x64xf32, #tpu.memory_space<vmem>>, vector<9x64xf32>
    %c0_218 = arith.constant 0 : index
    %c0_219 = arith.constant 0 : index
    %432 = vector.load %arg18[%c0_218, %c0_219] : memref<1x64xf32, #tpu.memory_space<vmem>>, vector<1x64xf32>
    %433 = vector.shape_cast %432 : vector<1x64xf32> to vector<64xf32>
    %cst_220 = arith.constant 0.000000e+00 : f32
    %434 = vector.broadcast %cst_220 : f32 to vector<1x6x64xf32>
    %cst_221 = arith.constant 0.000000e+00 : f32
    %435 = vector.broadcast %cst_221 : f32 to vector<4x1x64xf32>
    %c0_222 = arith.constant 0 : index
    %c0_223 = arith.constant 0 : index
    %c0_224 = arith.constant 0 : index
    %436 = vector.load %arg50[%c0_222, %c0_223, %c0_224] : memref<6x6x64xf32, #tpu.memory_space<vmem>>, vector<1x6x64xf32>
    tpu.vector_store %arg50[%c0_222, %c0_223, %c0_224], %434 {strides = array<i32>} : memref<6x6x64xf32, #tpu.memory_space<vmem>>, vector<1x6x64xf32>,
    %c5 = arith.constant 5 : index
    %c0_225 = arith.constant 0 : index
    %c0_226 = arith.constant 0 : index
    %437 = vector.load %arg50[%c5, %c0_225, %c0_226] : memref<6x6x64xf32, #tpu.memory_space<vmem>>, vector<1x6x64xf32>
    tpu.vector_store %arg50[%c5, %c0_225, %c0_226], %434 {strides = array<i32>} : memref<6x6x64xf32, #tpu.memory_space<vmem>>, vector<1x6x64xf32>,
    %c1_227 = arith.constant 1 : index
    %c0_228 = arith.constant 0 : index
    %c0_229 = arith.constant 0 : index
    %438 = vector.load %arg50[%c1_227, %c0_228, %c0_229] : memref<6x6x64xf32, #tpu.memory_space<vmem>>, vector<4x1x64xf32>
    tpu.vector_store %arg50[%c1_227, %c0_228, %c0_229], %435 {strides = array<i32>} : memref<6x6x64xf32, #tpu.memory_space<vmem>>, vector<4x1x64xf32>,
    %c1_230 = arith.constant 1 : index
    %c5_231 = arith.constant 5 : index
    %c0_232 = arith.constant 0 : index
    %439 = vector.load %arg50[%c1_230, %c5_231, %c0_232] : memref<6x6x64xf32, #tpu.memory_space<vmem>>, vector<4x1x64xf32>
    tpu.vector_store %arg50[%c1_230, %c5_231, %c0_232], %435 {strides = array<i32>} : memref<6x6x64xf32, #tpu.memory_space<vmem>>, vector<4x1x64xf32>,
    %c1_233 = arith.constant 1 : index
    %c1_234 = arith.constant 1 : index
    %c0_235 = arith.constant 0 : index
    %440 = vector.load %arg50[%c1_233, %c1_234, %c0_235] : memref<6x6x64xf32, #tpu.memory_space<vmem>>, vector<4x4x64xf32>
    tpu.vector_store %arg50[%c1_233, %c1_234, %c0_235], %430 {strides = array<i32>} : memref<6x6x64xf32, #tpu.memory_space<vmem>>, vector<4x4x64xf32>,
    %cst_236 = arith.constant 0.000000e+00 : f32
    %441 = vector.broadcast %cst_236 : f32 to vector<4x4x64xf32>
    %c0_237 = arith.constant 0 : index
    %c0_238 = arith.constant 0 : index
    %c0_239 = arith.constant 0 : index
    %442 = vector.load %arg50[%c0_237, %c0_238, %c0_239] : memref<6x6x64xf32, #tpu.memory_space<vmem>>, vector<4x4x64xf32>
    %443 = vector.extract_strided_slice %431 {offsets = [0, 0], sizes = [1, 64], strides = [1, 1]} : vector<9x64xf32> to vector<1x64xf32>
    %444 = vector.shape_cast %443 : vector<1x64xf32> to vector<64xf32>
    %445 = vector.shape_cast %444 : vector<64xf32> to vector<1x1x64xf32>
    %446 = vector.broadcast %445 : vector<1x1x64xf32> to vector<4x4x64xf32>
    %447 = arith.mulf %442, %446 : vector<4x4x64xf32>
    %448 = arith.addf %441, %447 : vector<4x4x64xf32>
    %c0_240 = arith.constant 0 : index
    %c1_241 = arith.constant 1 : index
    %c0_242 = arith.constant 0 : index
    %449 = vector.load %arg50[%c0_240, %c1_241, %c0_242] : memref<6x6x64xf32, #tpu.memory_space<vmem>>, vector<4x4x64xf32>
    %450 = vector.extract_strided_slice %431 {offsets = [1, 0], sizes = [1, 64], strides = [1, 1]} : vector<9x64xf32> to vector<1x64xf32>
    %451 = vector.shape_cast %450 : vector<1x64xf32> to vector<64xf32>
    %452 = vector.shape_cast %451 : vector<64xf32> to vector<1x1x64xf32>
    %453 = vector.broadcast %452 : vector<1x1x64xf32> to vector<4x4x64xf32>
    %454 = arith.mulf %449, %453 : vector<4x4x64xf32>
    %455 = arith.addf %448, %454 : vector<4x4x64xf32>
    %c0_243 = arith.constant 0 : index
    %c2_244 = arith.constant 2 : index
    %c0_245 = arith.constant 0 : index
    %456 = vector.load %arg50[%c0_243, %c2_244, %c0_245] : memref<6x6x64xf32, #tpu.memory_space<vmem>>, vector<4x4x64xf32>
    %457 = vector.extract_strided_slice %431 {offsets = [2, 0], sizes = [1, 64], strides = [1, 1]} : vector<9x64xf32> to vector<1x64xf32>
    %458 = vector.shape_cast %457 : vector<1x64xf32> to vector<64xf32>
    %459 = vector.shape_cast %458 : vector<64xf32> to vector<1x1x64xf32>
    %460 = vector.broadcast %459 : vector<1x1x64xf32> to vector<4x4x64xf32>
    %461 = arith.mulf %456, %460 : vector<4x4x64xf32>
    %462 = arith.addf %455, %461 : vector<4x4x64xf32>
    %c1_246 = arith.constant 1 : index
    %c0_247 = arith.constant 0 : index
    %c0_248 = arith.constant 0 : index
    %463 = vector.load %arg50[%c1_246, %c0_247, %c0_248] : memref<6x6x64xf32, #tpu.memory_space<vmem>>, vector<4x4x64xf32>
    %464 = vector.extract_strided_slice %431 {offsets = [3, 0], sizes = [1, 64], strides = [1, 1]} : vector<9x64xf32> to vector<1x64xf32>
    %465 = vector.shape_cast %464 : vector<1x64xf32> to vector<64xf32>
    %466 = vector.shape_cast %465 : vector<64xf32> to vector<1x1x64xf32>
    %467 = vector.broadcast %466 : vector<1x1x64xf32> to vector<4x4x64xf32>
    %468 = arith.mulf %463, %467 : vector<4x4x64xf32>
    %469 = arith.addf %462, %468 : vector<4x4x64xf32>
    %c1_249 = arith.constant 1 : index
    %c1_250 = arith.constant 1 : index
    %c0_251 = arith.constant 0 : index
    %470 = vector.load %arg50[%c1_249, %c1_250, %c0_251] : memref<6x6x64xf32, #tpu.memory_space<vmem>>, vector<4x4x64xf32>
    %471 = vector.extract_strided_slice %431 {offsets = [4, 0], sizes = [1, 64], strides = [1, 1]} : vector<9x64xf32> to vector<1x64xf32>
    %472 = vector.shape_cast %471 : vector<1x64xf32> to vector<64xf32>
    %473 = vector.shape_cast %472 : vector<64xf32> to vector<1x1x64xf32>
    %474 = vector.broadcast %473 : vector<1x1x64xf32> to vector<4x4x64xf32>
    %475 = arith.mulf %470, %474 : vector<4x4x64xf32>
    %476 = arith.addf %469, %475 : vector<4x4x64xf32>
    %c1_252 = arith.constant 1 : index
    %c2_253 = arith.constant 2 : index
    %c0_254 = arith.constant 0 : index
    %477 = vector.load %arg50[%c1_252, %c2_253, %c0_254] : memref<6x6x64xf32, #tpu.memory_space<vmem>>, vector<4x4x64xf32>
    %478 = vector.extract_strided_slice %431 {offsets = [5, 0], sizes = [1, 64], strides = [1, 1]} : vector<9x64xf32> to vector<1x64xf32>
    %479 = vector.shape_cast %478 : vector<1x64xf32> to vector<64xf32>
    %480 = vector.shape_cast %479 : vector<64xf32> to vector<1x1x64xf32>
    %481 = vector.broadcast %480 : vector<1x1x64xf32> to vector<4x4x64xf32>
    %482 = arith.mulf %477, %481 : vector<4x4x64xf32>
    %483 = arith.addf %476, %482 : vector<4x4x64xf32>
    %c2_255 = arith.constant 2 : index
    %c0_256 = arith.constant 0 : index
    %c0_257 = arith.constant 0 : index
    %484 = vector.load %arg50[%c2_255, %c0_256, %c0_257] : memref<6x6x64xf32, #tpu.memory_space<vmem>>, vector<4x4x64xf32>
    %485 = vector.extract_strided_slice %431 {offsets = [6, 0], sizes = [1, 64], strides = [1, 1]} : vector<9x64xf32> to vector<1x64xf32>
    %486 = vector.shape_cast %485 : vector<1x64xf32> to vector<64xf32>
    %487 = vector.shape_cast %486 : vector<64xf32> to vector<1x1x64xf32>
    %488 = vector.broadcast %487 : vector<1x1x64xf32> to vector<4x4x64xf32>
    %489 = arith.mulf %484, %488 : vector<4x4x64xf32>
    %490 = arith.addf %483, %489 : vector<4x4x64xf32>
    %c2_258 = arith.constant 2 : index
    %c1_259 = arith.constant 1 : index
    %c0_260 = arith.constant 0 : index
    %491 = vector.load %arg50[%c2_258, %c1_259, %c0_260] : memref<6x6x64xf32, #tpu.memory_space<vmem>>, vector<4x4x64xf32>
    %492 = vector.extract_strided_slice %431 {offsets = [7, 0], sizes = [1, 64], strides = [1, 1]} : vector<9x64xf32> to vector<1x64xf32>
    %493 = vector.shape_cast %492 : vector<1x64xf32> to vector<64xf32>
    %494 = vector.shape_cast %493 : vector<64xf32> to vector<1x1x64xf32>
    %495 = vector.broadcast %494 : vector<1x1x64xf32> to vector<4x4x64xf32>
    %496 = arith.mulf %491, %495 : vector<4x4x64xf32>
    %497 = arith.addf %490, %496 : vector<4x4x64xf32>
    %c2_261 = arith.constant 2 : index
    %c2_262 = arith.constant 2 : index
    %c0_263 = arith.constant 0 : index
    %498 = vector.load %arg50[%c2_261, %c2_262, %c0_263] : memref<6x6x64xf32, #tpu.memory_space<vmem>>, vector<4x4x64xf32>
    %499 = vector.extract_strided_slice %431 {offsets = [8, 0], sizes = [1, 64], strides = [1, 1]} : vector<9x64xf32> to vector<1x64xf32>
    %500 = vector.shape_cast %499 : vector<1x64xf32> to vector<64xf32>
    %501 = vector.shape_cast %500 : vector<64xf32> to vector<1x1x64xf32>
    %502 = vector.broadcast %501 : vector<1x1x64xf32> to vector<4x4x64xf32>
    %503 = arith.mulf %498, %502 : vector<4x4x64xf32>
    %504 = arith.addf %497, %503 : vector<4x4x64xf32>
    %505 = vector.shape_cast %504 : vector<4x4x64xf32> to vector<16x64xf32>
    %506 = arith.truncf %505 : vector<16x64xf32> to vector<16x64xbf16>
    %c0_264 = arith.constant 0 : index
    %c0_265 = arith.constant 0 : index
    %507 = vector.load %arg17[%c0_264, %c0_265] : memref<64x64xbf16, #tpu.memory_space<vmem>>, vector<64x64xbf16>
    %cst_266 = arith.constant dense<0.000000e+00> : vector<16x64xf32>
    %508 = tpu.matmul %506, %507, %cst_266 {dimension_numbers = #tpu.dot_dimension_numbers<[1], [0], [0], [1], [0, 0, 1, 1], [], []>} : vector<16x64xbf16>, vector<64x64xbf16>, vector<16x64xf32> -> vector<16x64xf32>
    %509 = vector.shape_cast %433 : vector<64xf32> to vector<1x64xf32>
    %510 = vector.broadcast %509 : vector<1x64xf32> to vector<16x64xf32>
    %511 = arith.addf %508, %510 : vector<16x64xf32>
    %cst_267 = arith.constant 0.000000e+00 : f32
    %512 = vector.broadcast %cst_267 : f32 to vector<16x64xf32>
    %513 = arith.maximumf %511, %512 : vector<16x64xf32>
    %514 = vector.shape_cast %513 : vector<16x64xf32> to vector<4x4x64xf32>
    %c0_268 = arith.constant 0 : index
    %c0_269 = arith.constant 0 : index
    %515 = vector.load %arg19[%c0_268, %c0_269] : memref<9x64xf32, #tpu.memory_space<vmem>>, vector<9x64xf32>
    %c0_270 = arith.constant 0 : index
    %c0_271 = arith.constant 0 : index
    %516 = vector.load %arg21[%c0_270, %c0_271] : memref<1x128xf32, #tpu.memory_space<vmem>>, vector<1x128xf32>
    %517 = vector.shape_cast %516 : vector<1x128xf32> to vector<128xf32>
    %cst_272 = arith.constant 0.000000e+00 : f32
    %518 = vector.broadcast %cst_272 : f32 to vector<1x6x64xf32>
    %cst_273 = arith.constant 0.000000e+00 : f32
    %519 = vector.broadcast %cst_273 : f32 to vector<4x1x64xf32>
    %c0_274 = arith.constant 0 : index
    %c0_275 = arith.constant 0 : index
    %c0_276 = arith.constant 0 : index
    %520 = vector.load %arg51[%c0_274, %c0_275, %c0_276] : memref<6x6x64xf32, #tpu.memory_space<vmem>>, vector<1x6x64xf32>
    tpu.vector_store %arg51[%c0_274, %c0_275, %c0_276], %518 {strides = array<i32>} : memref<6x6x64xf32, #tpu.memory_space<vmem>>, vector<1x6x64xf32>,
    %c5_277 = arith.constant 5 : index
    %c0_278 = arith.constant 0 : index
    %c0_279 = arith.constant 0 : index
    %521 = vector.load %arg51[%c5_277, %c0_278, %c0_279] : memref<6x6x64xf32, #tpu.memory_space<vmem>>, vector<1x6x64xf32>
    tpu.vector_store %arg51[%c5_277, %c0_278, %c0_279], %518 {strides = array<i32>} : memref<6x6x64xf32, #tpu.memory_space<vmem>>, vector<1x6x64xf32>,
    %c1_280 = arith.constant 1 : index
    %c0_281 = arith.constant 0 : index
    %c0_282 = arith.constant 0 : index
    %522 = vector.load %arg51[%c1_280, %c0_281, %c0_282] : memref<6x6x64xf32, #tpu.memory_space<vmem>>, vector<4x1x64xf32>
    tpu.vector_store %arg51[%c1_280, %c0_281, %c0_282], %519 {strides = array<i32>} : memref<6x6x64xf32, #tpu.memory_space<vmem>>, vector<4x1x64xf32>,
    %c1_283 = arith.constant 1 : index
    %c5_284 = arith.constant 5 : index
    %c0_285 = arith.constant 0 : index
    %523 = vector.load %arg51[%c1_283, %c5_284, %c0_285] : memref<6x6x64xf32, #tpu.memory_space<vmem>>, vector<4x1x64xf32>
    tpu.vector_store %arg51[%c1_283, %c5_284, %c0_285], %519 {strides = array<i32>} : memref<6x6x64xf32, #tpu.memory_space<vmem>>, vector<4x1x64xf32>,
    %c1_286 = arith.constant 1 : index
    %c1_287 = arith.constant 1 : index
    %c0_288 = arith.constant 0 : index
    %524 = vector.load %arg51[%c1_286, %c1_287, %c0_288] : memref<6x6x64xf32, #tpu.memory_space<vmem>>, vector<4x4x64xf32>
    tpu.vector_store %arg51[%c1_286, %c1_287, %c0_288], %514 {strides = array<i32>} : memref<6x6x64xf32, #tpu.memory_space<vmem>>, vector<4x4x64xf32>,
    %cst_289 = arith.constant 0.000000e+00 : f32
    %525 = vector.broadcast %cst_289 : f32 to vector<4x4x64xf32>
    %c0_290 = arith.constant 0 : index
    %c0_291 = arith.constant 0 : index
    %c0_292 = arith.constant 0 : index
    %526 = vector.load %arg51[%c0_290, %c0_291, %c0_292] : memref<6x6x64xf32, #tpu.memory_space<vmem>>, vector<4x4x64xf32>
    %527 = vector.extract_strided_slice %515 {offsets = [0, 0], sizes = [1, 64], strides = [1, 1]} : vector<9x64xf32> to vector<1x64xf32>
    %528 = vector.shape_cast %527 : vector<1x64xf32> to vector<64xf32>
    %529 = vector.shape_cast %528 : vector<64xf32> to vector<1x1x64xf32>
    %530 = vector.broadcast %529 : vector<1x1x64xf32> to vector<4x4x64xf32>
    %531 = arith.mulf %526, %530 : vector<4x4x64xf32>
    %532 = arith.addf %525, %531 : vector<4x4x64xf32>
    %c0_293 = arith.constant 0 : index
    %c1_294 = arith.constant 1 : index
    %c0_295 = arith.constant 0 : index
    %533 = vector.load %arg51[%c0_293, %c1_294, %c0_295] : memref<6x6x64xf32, #tpu.memory_space<vmem>>, vector<4x4x64xf32>
    %534 = vector.extract_strided_slice %515 {offsets = [1, 0], sizes = [1, 64], strides = [1, 1]} : vector<9x64xf32> to vector<1x64xf32>
    %535 = vector.shape_cast %534 : vector<1x64xf32> to vector<64xf32>
    %536 = vector.shape_cast %535 : vector<64xf32> to vector<1x1x64xf32>
    %537 = vector.broadcast %536 : vector<1x1x64xf32> to vector<4x4x64xf32>
    %538 = arith.mulf %533, %537 : vector<4x4x64xf32>
    %539 = arith.addf %532, %538 : vector<4x4x64xf32>
    %c0_296 = arith.constant 0 : index
    %c2_297 = arith.constant 2 : index
    %c0_298 = arith.constant 0 : index
    %540 = vector.load %arg51[%c0_296, %c2_297, %c0_298] : memref<6x6x64xf32, #tpu.memory_space<vmem>>, vector<4x4x64xf32>
    %541 = vector.extract_strided_slice %515 {offsets = [2, 0], sizes = [1, 64], strides = [1, 1]} : vector<9x64xf32> to vector<1x64xf32>
    %542 = vector.shape_cast %541 : vector<1x64xf32> to vector<64xf32>
    %543 = vector.shape_cast %542 : vector<64xf32> to vector<1x1x64xf32>
    %544 = vector.broadcast %543 : vector<1x1x64xf32> to vector<4x4x64xf32>
    %545 = arith.mulf %540, %544 : vector<4x4x64xf32>
    %546 = arith.addf %539, %545 : vector<4x4x64xf32>
    %c1_299 = arith.constant 1 : index
    %c0_300 = arith.constant 0 : index
    %c0_301 = arith.constant 0 : index
    %547 = vector.load %arg51[%c1_299, %c0_300, %c0_301] : memref<6x6x64xf32, #tpu.memory_space<vmem>>, vector<4x4x64xf32>
    %548 = vector.extract_strided_slice %515 {offsets = [3, 0], sizes = [1, 64], strides = [1, 1]} : vector<9x64xf32> to vector<1x64xf32>
    %549 = vector.shape_cast %548 : vector<1x64xf32> to vector<64xf32>
    %550 = vector.shape_cast %549 : vector<64xf32> to vector<1x1x64xf32>
    %551 = vector.broadcast %550 : vector<1x1x64xf32> to vector<4x4x64xf32>
    %552 = arith.mulf %547, %551 : vector<4x4x64xf32>
    %553 = arith.addf %546, %552 : vector<4x4x64xf32>
    %c1_302 = arith.constant 1 : index
    %c1_303 = arith.constant 1 : index
    %c0_304 = arith.constant 0 : index
    %554 = vector.load %arg51[%c1_302, %c1_303, %c0_304] : memref<6x6x64xf32, #tpu.memory_space<vmem>>, vector<4x4x64xf32>
    %555 = vector.extract_strided_slice %515 {offsets = [4, 0], sizes = [1, 64], strides = [1, 1]} : vector<9x64xf32> to vector<1x64xf32>
    %556 = vector.shape_cast %555 : vector<1x64xf32> to vector<64xf32>
    %557 = vector.shape_cast %556 : vector<64xf32> to vector<1x1x64xf32>
    %558 = vector.broadcast %557 : vector<1x1x64xf32> to vector<4x4x64xf32>
    %559 = arith.mulf %554, %558 : vector<4x4x64xf32>
    %560 = arith.addf %553, %559 : vector<4x4x64xf32>
    %c1_305 = arith.constant 1 : index
    %c2_306 = arith.constant 2 : index
    %c0_307 = arith.constant 0 : index
    %561 = vector.load %arg51[%c1_305, %c2_306, %c0_307] : memref<6x6x64xf32, #tpu.memory_space<vmem>>, vector<4x4x64xf32>
    %562 = vector.extract_strided_slice %515 {offsets = [5, 0], sizes = [1, 64], strides = [1, 1]} : vector<9x64xf32> to vector<1x64xf32>
    %563 = vector.shape_cast %562 : vector<1x64xf32> to vector<64xf32>
    %564 = vector.shape_cast %563 : vector<64xf32> to vector<1x1x64xf32>
    %565 = vector.broadcast %564 : vector<1x1x64xf32> to vector<4x4x64xf32>
    %566 = arith.mulf %561, %565 : vector<4x4x64xf32>
    %567 = arith.addf %560, %566 : vector<4x4x64xf32>
    %c2_308 = arith.constant 2 : index
    %c0_309 = arith.constant 0 : index
    %c0_310 = arith.constant 0 : index
    %568 = vector.load %arg51[%c2_308, %c0_309, %c0_310] : memref<6x6x64xf32, #tpu.memory_space<vmem>>, vector<4x4x64xf32>
    %569 = vector.extract_strided_slice %515 {offsets = [6, 0], sizes = [1, 64], strides = [1, 1]} : vector<9x64xf32> to vector<1x64xf32>
    %570 = vector.shape_cast %569 : vector<1x64xf32> to vector<64xf32>
    %571 = vector.shape_cast %570 : vector<64xf32> to vector<1x1x64xf32>
    %572 = vector.broadcast %571 : vector<1x1x64xf32> to vector<4x4x64xf32>
    %573 = arith.mulf %568, %572 : vector<4x4x64xf32>
    %574 = arith.addf %567, %573 : vector<4x4x64xf32>
    %c2_311 = arith.constant 2 : index
    %c1_312 = arith.constant 1 : index
    %c0_313 = arith.constant 0 : index
    %575 = vector.load %arg51[%c2_311, %c1_312, %c0_313] : memref<6x6x64xf32, #tpu.memory_space<vmem>>, vector<4x4x64xf32>
    %576 = vector.extract_strided_slice %515 {offsets = [7, 0], sizes = [1, 64], strides = [1, 1]} : vector<9x64xf32> to vector<1x64xf32>
    %577 = vector.shape_cast %576 : vector<1x64xf32> to vector<64xf32>
    %578 = vector.shape_cast %577 : vector<64xf32> to vector<1x1x64xf32>
    %579 = vector.broadcast %578 : vector<1x1x64xf32> to vector<4x4x64xf32>
    %580 = arith.mulf %575, %579 : vector<4x4x64xf32>
    %581 = arith.addf %574, %580 : vector<4x4x64xf32>
    %c2_314 = arith.constant 2 : index
    %c2_315 = arith.constant 2 : index
    %c0_316 = arith.constant 0 : index
    %582 = vector.load %arg51[%c2_314, %c2_315, %c0_316] : memref<6x6x64xf32, #tpu.memory_space<vmem>>, vector<4x4x64xf32>
    %583 = vector.extract_strided_slice %515 {offsets = [8, 0], sizes = [1, 64], strides = [1, 1]} : vector<9x64xf32> to vector<1x64xf32>
    %584 = vector.shape_cast %583 : vector<1x64xf32> to vector<64xf32>
    %585 = vector.shape_cast %584 : vector<64xf32> to vector<1x1x64xf32>
    %586 = vector.broadcast %585 : vector<1x1x64xf32> to vector<4x4x64xf32>
    %587 = arith.mulf %582, %586 : vector<4x4x64xf32>
    %588 = arith.addf %581, %587 : vector<4x4x64xf32>
    %589 = vector.shape_cast %588 : vector<4x4x64xf32> to vector<2x2x4x64xf32>
    %590 = vector.extract_strided_slice %589 {offsets = [0, 0, 0, 0], sizes = [2, 1, 4, 64], strides = [1, 1, 1, 1]} : vector<2x2x4x64xf32> to vector<2x1x4x64xf32>
    %591 = vector.shape_cast %590 : vector<2x1x4x64xf32> to vector<2x4x64xf32>
    %592 = vector.shape_cast %591 : vector<2x4x64xf32> to vector<2x2x2x64xf32>
    %593 = vector.extract_strided_slice %592 {offsets = [0, 0, 0, 0], sizes = [2, 2, 1, 64], strides = [1, 1, 1, 1]} : vector<2x2x2x64xf32> to vector<2x2x1x64xf32>
    %594 = vector.shape_cast %593 : vector<2x2x1x64xf32> to vector<2x2x64xf32>
    %595 = vector.shape_cast %594 : vector<2x2x64xf32> to vector<4x64xf32>
    %596 = arith.truncf %595 : vector<4x64xf32> to vector<4x64xbf16>
    %c0_317 = arith.constant 0 : index
    %c0_318 = arith.constant 0 : index
    %597 = vector.load %arg20[%c0_317, %c0_318] : memref<64x128xbf16, #tpu.memory_space<vmem>>, vector<64x128xbf16>
    %cst_319 = arith.constant dense<0.000000e+00> : vector<4x128xf32>
    %598 = tpu.matmul %596, %597, %cst_319 {dimension_numbers = #tpu.dot_dimension_numbers<[1], [0], [0], [1], [0, 0, 1, 1], [], []>} : vector<4x64xbf16>, vector<64x128xbf16>, vector<4x128xf32> -> vector<4x128xf32>
    %599 = vector.shape_cast %517 : vector<128xf32> to vector<1x128xf32>
    %600 = vector.broadcast %599 : vector<1x128xf32> to vector<4x128xf32>
    %601 = arith.addf %598, %600 : vector<4x128xf32>
    %cst_320 = arith.constant 0.000000e+00 : f32
    %602 = vector.broadcast %cst_320 : f32 to vector<4x128xf32>
    %603 = arith.maximumf %601, %602 : vector<4x128xf32>
    %604 = vector.shape_cast %603 : vector<4x128xf32> to vector<2x2x128xf32>
    %c0_321 = arith.constant 0 : index
    %c0_322 = arith.constant 0 : index
    %605 = vector.load %arg22[%c0_321, %c0_322] : memref<9x128xf32, #tpu.memory_space<vmem>>, vector<9x128xf32>
    %c0_323 = arith.constant 0 : index
    %c0_324 = arith.constant 0 : index
    %606 = vector.load %arg24[%c0_323, %c0_324] : memref<1x128xf32, #tpu.memory_space<vmem>>, vector<1x128xf32>
    %607 = vector.shape_cast %606 : vector<1x128xf32> to vector<128xf32>
    %cst_325 = arith.constant 0.000000e+00 : f32
    %608 = vector.broadcast %cst_325 : f32 to vector<1x4x128xf32>
    %cst_326 = arith.constant 0.000000e+00 : f32
    %609 = vector.broadcast %cst_326 : f32 to vector<2x1x128xf32>
    %c0_327 = arith.constant 0 : index
    %c0_328 = arith.constant 0 : index
    %c0_329 = arith.constant 0 : index
    %610 = vector.load %arg52[%c0_327, %c0_328, %c0_329] : memref<4x4x128xf32, #tpu.memory_space<vmem>>, vector<1x4x128xf32>
    tpu.vector_store %arg52[%c0_327, %c0_328, %c0_329], %608 {strides = array<i32>} : memref<4x4x128xf32, #tpu.memory_space<vmem>>, vector<1x4x128xf32>,
    %c3 = arith.constant 3 : index
    %c0_330 = arith.constant 0 : index
    %c0_331 = arith.constant 0 : index
    %611 = vector.load %arg52[%c3, %c0_330, %c0_331] : memref<4x4x128xf32, #tpu.memory_space<vmem>>, vector<1x4x128xf32>
    tpu.vector_store %arg52[%c3, %c0_330, %c0_331], %608 {strides = array<i32>} : memref<4x4x128xf32, #tpu.memory_space<vmem>>, vector<1x4x128xf32>,
    %c1_332 = arith.constant 1 : index
    %c0_333 = arith.constant 0 : index
    %c0_334 = arith.constant 0 : index
    %612 = vector.load %arg52[%c1_332, %c0_333, %c0_334] : memref<4x4x128xf32, #tpu.memory_space<vmem>>, vector<2x1x128xf32>
    tpu.vector_store %arg52[%c1_332, %c0_333, %c0_334], %609 {strides = array<i32>} : memref<4x4x128xf32, #tpu.memory_space<vmem>>, vector<2x1x128xf32>,
    %c1_335 = arith.constant 1 : index
    %c3_336 = arith.constant 3 : index
    %c0_337 = arith.constant 0 : index
    %613 = vector.load %arg52[%c1_335, %c3_336, %c0_337] : memref<4x4x128xf32, #tpu.memory_space<vmem>>, vector<2x1x128xf32>
    tpu.vector_store %arg52[%c1_335, %c3_336, %c0_337], %609 {strides = array<i32>} : memref<4x4x128xf32, #tpu.memory_space<vmem>>, vector<2x1x128xf32>,
    %c1_338 = arith.constant 1 : index
    %c1_339 = arith.constant 1 : index
    %c0_340 = arith.constant 0 : index
    %614 = vector.load %arg52[%c1_338, %c1_339, %c0_340] : memref<4x4x128xf32, #tpu.memory_space<vmem>>, vector<2x2x128xf32>
    tpu.vector_store %arg52[%c1_338, %c1_339, %c0_340], %604 {strides = array<i32>} : memref<4x4x128xf32, #tpu.memory_space<vmem>>, vector<2x2x128xf32>,
    %cst_341 = arith.constant 0.000000e+00 : f32
    %615 = vector.broadcast %cst_341 : f32 to vector<2x2x128xf32>
    %c0_342 = arith.constant 0 : index
    %c0_343 = arith.constant 0 : index
    %c0_344 = arith.constant 0 : index
    %616 = vector.load %arg52[%c0_342, %c0_343, %c0_344] : memref<4x4x128xf32, #tpu.memory_space<vmem>>, vector<2x2x128xf32>
    %617 = vector.extract_strided_slice %605 {offsets = [0, 0], sizes = [1, 128], strides = [1, 1]} : vector<9x128xf32> to vector<1x128xf32>
    %618 = vector.shape_cast %617 : vector<1x128xf32> to vector<128xf32>
    %619 = vector.shape_cast %618 : vector<128xf32> to vector<1x1x128xf32>
    %620 = vector.broadcast %619 : vector<1x1x128xf32> to vector<2x2x128xf32>
    %621 = arith.mulf %616, %620 : vector<2x2x128xf32>
    %622 = arith.addf %615, %621 : vector<2x2x128xf32>
    %c0_345 = arith.constant 0 : index
    %c1_346 = arith.constant 1 : index
    %c0_347 = arith.constant 0 : index
    %623 = vector.load %arg52[%c0_345, %c1_346, %c0_347] : memref<4x4x128xf32, #tpu.memory_space<vmem>>, vector<2x2x128xf32>
    %624 = vector.extract_strided_slice %605 {offsets = [1, 0], sizes = [1, 128], strides = [1, 1]} : vector<9x128xf32> to vector<1x128xf32>
    %625 = vector.shape_cast %624 : vector<1x128xf32> to vector<128xf32>
    %626 = vector.shape_cast %625 : vector<128xf32> to vector<1x1x128xf32>
    %627 = vector.broadcast %626 : vector<1x1x128xf32> to vector<2x2x128xf32>
    %628 = arith.mulf %623, %627 : vector<2x2x128xf32>
    %629 = arith.addf %622, %628 : vector<2x2x128xf32>
    %c0_348 = arith.constant 0 : index
    %c2_349 = arith.constant 2 : index
    %c0_350 = arith.constant 0 : index
    %630 = vector.load %arg52[%c0_348, %c2_349, %c0_350] : memref<4x4x128xf32, #tpu.memory_space<vmem>>, vector<2x2x128xf32>
    %631 = vector.extract_strided_slice %605 {offsets = [2, 0], sizes = [1, 128], strides = [1, 1]} : vector<9x128xf32> to vector<1x128xf32>
    %632 = vector.shape_cast %631 : vector<1x128xf32> to vector<128xf32>
    %633 = vector.shape_cast %632 : vector<128xf32> to vector<1x1x128xf32>
    %634 = vector.broadcast %633 : vector<1x1x128xf32> to vector<2x2x128xf32>
    %635 = arith.mulf %630, %634 : vector<2x2x128xf32>
    %636 = arith.addf %629, %635 : vector<2x2x128xf32>
    %c1_351 = arith.constant 1 : index
    %c0_352 = arith.constant 0 : index
    %c0_353 = arith.constant 0 : index
    %637 = vector.load %arg52[%c1_351, %c0_352, %c0_353] : memref<4x4x128xf32, #tpu.memory_space<vmem>>, vector<2x2x128xf32>
    %638 = vector.extract_strided_slice %605 {offsets = [3, 0], sizes = [1, 128], strides = [1, 1]} : vector<9x128xf32> to vector<1x128xf32>
    %639 = vector.shape_cast %638 : vector<1x128xf32> to vector<128xf32>
    %640 = vector.shape_cast %639 : vector<128xf32> to vector<1x1x128xf32>
    %641 = vector.broadcast %640 : vector<1x1x128xf32> to vector<2x2x128xf32>
    %642 = arith.mulf %637, %641 : vector<2x2x128xf32>
    %643 = arith.addf %636, %642 : vector<2x2x128xf32>
    %c1_354 = arith.constant 1 : index
    %c1_355 = arith.constant 1 : index
    %c0_356 = arith.constant 0 : index
    %644 = vector.load %arg52[%c1_354, %c1_355, %c0_356] : memref<4x4x128xf32, #tpu.memory_space<vmem>>, vector<2x2x128xf32>
    %645 = vector.extract_strided_slice %605 {offsets = [4, 0], sizes = [1, 128], strides = [1, 1]} : vector<9x128xf32> to vector<1x128xf32>
    %646 = vector.shape_cast %645 : vector<1x128xf32> to vector<128xf32>
    %647 = vector.shape_cast %646 : vector<128xf32> to vector<1x1x128xf32>
    %648 = vector.broadcast %647 : vector<1x1x128xf32> to vector<2x2x128xf32>
    %649 = arith.mulf %644, %648 : vector<2x2x128xf32>
    %650 = arith.addf %643, %649 : vector<2x2x128xf32>
    %c1_357 = arith.constant 1 : index
    %c2_358 = arith.constant 2 : index
    %c0_359 = arith.constant 0 : index
    %651 = vector.load %arg52[%c1_357, %c2_358, %c0_359] : memref<4x4x128xf32, #tpu.memory_space<vmem>>, vector<2x2x128xf32>
    %652 = vector.extract_strided_slice %605 {offsets = [5, 0], sizes = [1, 128], strides = [1, 1]} : vector<9x128xf32> to vector<1x128xf32>
    %653 = vector.shape_cast %652 : vector<1x128xf32> to vector<128xf32>
    %654 = vector.shape_cast %653 : vector<128xf32> to vector<1x1x128xf32>
    %655 = vector.broadcast %654 : vector<1x1x128xf32> to vector<2x2x128xf32>
    %656 = arith.mulf %651, %655 : vector<2x2x128xf32>
    %657 = arith.addf %650, %656 : vector<2x2x128xf32>
    %c2_360 = arith.constant 2 : index
    %c0_361 = arith.constant 0 : index
    %c0_362 = arith.constant 0 : index
    %658 = vector.load %arg52[%c2_360, %c0_361, %c0_362] : memref<4x4x128xf32, #tpu.memory_space<vmem>>, vector<2x2x128xf32>
    %659 = vector.extract_strided_slice %605 {offsets = [6, 0], sizes = [1, 128], strides = [1, 1]} : vector<9x128xf32> to vector<1x128xf32>
    %660 = vector.shape_cast %659 : vector<1x128xf32> to vector<128xf32>
    %661 = vector.shape_cast %660 : vector<128xf32> to vector<1x1x128xf32>
    %662 = vector.broadcast %661 : vector<1x1x128xf32> to vector<2x2x128xf32>
    %663 = arith.mulf %658, %662 : vector<2x2x128xf32>
    %664 = arith.addf %657, %663 : vector<2x2x128xf32>
    %c2_363 = arith.constant 2 : index
    %c1_364 = arith.constant 1 : index
    %c0_365 = arith.constant 0 : index
    %665 = vector.load %arg52[%c2_363, %c1_364, %c0_365] : memref<4x4x128xf32, #tpu.memory_space<vmem>>, vector<2x2x128xf32>
    %666 = vector.extract_strided_slice %605 {offsets = [7, 0], sizes = [1, 128], strides = [1, 1]} : vector<9x128xf32> to vector<1x128xf32>
    %667 = vector.shape_cast %666 : vector<1x128xf32> to vector<128xf32>
    %668 = vector.shape_cast %667 : vector<128xf32> to vector<1x1x128xf32>
    %669 = vector.broadcast %668 : vector<1x1x128xf32> to vector<2x2x128xf32>
    %670 = arith.mulf %665, %669 : vector<2x2x128xf32>
    %671 = arith.addf %664, %670 : vector<2x2x128xf32>
    %c2_366 = arith.constant 2 : index
    %c2_367 = arith.constant 2 : index
    %c0_368 = arith.constant 0 : index
    %672 = vector.load %arg52[%c2_366, %c2_367, %c0_368] : memref<4x4x128xf32, #tpu.memory_space<vmem>>, vector<2x2x128xf32>
    %673 = vector.extract_strided_slice %605 {offsets = [8, 0], sizes = [1, 128], strides = [1, 1]} : vector<9x128xf32> to vector<1x128xf32>
    %674 = vector.shape_cast %673 : vector<1x128xf32> to vector<128xf32>
    %675 = vector.shape_cast %674 : vector<128xf32> to vector<1x1x128xf32>
    %676 = vector.broadcast %675 : vector<1x1x128xf32> to vector<2x2x128xf32>
    %677 = arith.mulf %672, %676 : vector<2x2x128xf32>
    %678 = arith.addf %671, %677 : vector<2x2x128xf32>
    %679 = vector.shape_cast %678 : vector<2x2x128xf32> to vector<4x128xf32>
    %680 = arith.truncf %679 : vector<4x128xf32> to vector<4x128xbf16>
    %c0_369 = arith.constant 0 : index
    %c0_370 = arith.constant 0 : index
    %681 = vector.load %arg23[%c0_369, %c0_370] : memref<128x128xbf16, #tpu.memory_space<vmem>>, vector<128x128xbf16>
    %cst_371 = arith.constant dense<0.000000e+00> : vector<4x128xf32>
    %682 = tpu.matmul %680, %681, %cst_371 {dimension_numbers = #tpu.dot_dimension_numbers<[1], [0], [0], [1], [0, 0, 1, 1], [], []>} : vector<4x128xbf16>, vector<128x128xbf16>, vector<4x128xf32> -> vector<4x128xf32>
    %683 = vector.shape_cast %607 : vector<128xf32> to vector<1x128xf32>
    %684 = vector.broadcast %683 : vector<1x128xf32> to vector<4x128xf32>
    %685 = arith.addf %682, %684 : vector<4x128xf32>
    %cst_372 = arith.constant 0.000000e+00 : f32
    %686 = vector.broadcast %cst_372 : f32 to vector<4x128xf32>
    %687 = arith.maximumf %685, %686 : vector<4x128xf32>
    %688 = vector.shape_cast %687 : vector<4x128xf32> to vector<2x2x128xf32>
    %c0_373 = arith.constant 0 : index
    %c0_374 = arith.constant 0 : index
    %689 = vector.load %arg25[%c0_373, %c0_374] : memref<9x128xf32, #tpu.memory_space<vmem>>, vector<9x128xf32>
    %c0_375 = arith.constant 0 : index
    %c0_376 = arith.constant 0 : index
    %690 = vector.load %arg27[%c0_375, %c0_376] : memref<1x128xf32, #tpu.memory_space<vmem>>, vector<1x128xf32>
    %691 = vector.shape_cast %690 : vector<1x128xf32> to vector<128xf32>
    %cst_377 = arith.constant 0.000000e+00 : f32
    %692 = vector.broadcast %cst_377 : f32 to vector<1x4x128xf32>
    %cst_378 = arith.constant 0.000000e+00 : f32
    %693 = vector.broadcast %cst_378 : f32 to vector<2x1x128xf32>
    %c0_379 = arith.constant 0 : index
    %c0_380 = arith.constant 0 : index
    %c0_381 = arith.constant 0 : index
    %694 = vector.load %arg53[%c0_379, %c0_380, %c0_381] : memref<4x4x128xf32, #tpu.memory_space<vmem>>, vector<1x4x128xf32>
    tpu.vector_store %arg53[%c0_379, %c0_380, %c0_381], %692 {strides = array<i32>} : memref<4x4x128xf32, #tpu.memory_space<vmem>>, vector<1x4x128xf32>,
    %c3_382 = arith.constant 3 : index
    %c0_383 = arith.constant 0 : index
    %c0_384 = arith.constant 0 : index
    %695 = vector.load %arg53[%c3_382, %c0_383, %c0_384] : memref<4x4x128xf32, #tpu.memory_space<vmem>>, vector<1x4x128xf32>
    tpu.vector_store %arg53[%c3_382, %c0_383, %c0_384], %692 {strides = array<i32>} : memref<4x4x128xf32, #tpu.memory_space<vmem>>, vector<1x4x128xf32>,
    %c1_385 = arith.constant 1 : index
    %c0_386 = arith.constant 0 : index
    %c0_387 = arith.constant 0 : index
    %696 = vector.load %arg53[%c1_385, %c0_386, %c0_387] : memref<4x4x128xf32, #tpu.memory_space<vmem>>, vector<2x1x128xf32>
    tpu.vector_store %arg53[%c1_385, %c0_386, %c0_387], %693 {strides = array<i32>} : memref<4x4x128xf32, #tpu.memory_space<vmem>>, vector<2x1x128xf32>,
    %c1_388 = arith.constant 1 : index
    %c3_389 = arith.constant 3 : index
    %c0_390 = arith.constant 0 : index
    %697 = vector.load %arg53[%c1_388, %c3_389, %c0_390] : memref<4x4x128xf32, #tpu.memory_space<vmem>>, vector<2x1x128xf32>
    tpu.vector_store %arg53[%c1_388, %c3_389, %c0_390], %693 {strides = array<i32>} : memref<4x4x128xf32, #tpu.memory_space<vmem>>, vector<2x1x128xf32>,
    %c1_391 = arith.constant 1 : index
    %c1_392 = arith.constant 1 : index
    %c0_393 = arith.constant 0 : index
    %698 = vector.load %arg53[%c1_391, %c1_392, %c0_393] : memref<4x4x128xf32, #tpu.memory_space<vmem>>, vector<2x2x128xf32>
    tpu.vector_store %arg53[%c1_391, %c1_392, %c0_393], %688 {strides = array<i32>} : memref<4x4x128xf32, #tpu.memory_space<vmem>>, vector<2x2x128xf32>,
    %cst_394 = arith.constant 0.000000e+00 : f32
    %699 = vector.broadcast %cst_394 : f32 to vector<2x2x128xf32>
    %c0_395 = arith.constant 0 : index
    %c0_396 = arith.constant 0 : index
    %c0_397 = arith.constant 0 : index
    %700 = vector.load %arg53[%c0_395, %c0_396, %c0_397] : memref<4x4x128xf32, #tpu.memory_space<vmem>>, vector<2x2x128xf32>
    %701 = vector.extract_strided_slice %689 {offsets = [0, 0], sizes = [1, 128], strides = [1, 1]} : vector<9x128xf32> to vector<1x128xf32>
    %702 = vector.shape_cast %701 : vector<1x128xf32> to vector<128xf32>
    %703 = vector.shape_cast %702 : vector<128xf32> to vector<1x1x128xf32>
    %704 = vector.broadcast %703 : vector<1x1x128xf32> to vector<2x2x128xf32>
    %705 = arith.mulf %700, %704 : vector<2x2x128xf32>
    %706 = arith.addf %699, %705 : vector<2x2x128xf32>
    %c0_398 = arith.constant 0 : index
    %c1_399 = arith.constant 1 : index
    %c0_400 = arith.constant 0 : index
    %707 = vector.load %arg53[%c0_398, %c1_399, %c0_400] : memref<4x4x128xf32, #tpu.memory_space<vmem>>, vector<2x2x128xf32>
    %708 = vector.extract_strided_slice %689 {offsets = [1, 0], sizes = [1, 128], strides = [1, 1]} : vector<9x128xf32> to vector<1x128xf32>
    %709 = vector.shape_cast %708 : vector<1x128xf32> to vector<128xf32>
    %710 = vector.shape_cast %709 : vector<128xf32> to vector<1x1x128xf32>
    %711 = vector.broadcast %710 : vector<1x1x128xf32> to vector<2x2x128xf32>
    %712 = arith.mulf %707, %711 : vector<2x2x128xf32>
    %713 = arith.addf %706, %712 : vector<2x2x128xf32>
    %c0_401 = arith.constant 0 : index
    %c2_402 = arith.constant 2 : index
    %c0_403 = arith.constant 0 : index
    %714 = vector.load %arg53[%c0_401, %c2_402, %c0_403] : memref<4x4x128xf32, #tpu.memory_space<vmem>>, vector<2x2x128xf32>
    %715 = vector.extract_strided_slice %689 {offsets = [2, 0], sizes = [1, 128], strides = [1, 1]} : vector<9x128xf32> to vector<1x128xf32>
    %716 = vector.shape_cast %715 : vector<1x128xf32> to vector<128xf32>
    %717 = vector.shape_cast %716 : vector<128xf32> to vector<1x1x128xf32>
    %718 = vector.broadcast %717 : vector<1x1x128xf32> to vector<2x2x128xf32>
    %719 = arith.mulf %714, %718 : vector<2x2x128xf32>
    %720 = arith.addf %713, %719 : vector<2x2x128xf32>
    %c1_404 = arith.constant 1 : index
    %c0_405 = arith.constant 0 : index
    %c0_406 = arith.constant 0 : index
    %721 = vector.load %arg53[%c1_404, %c0_405, %c0_406] : memref<4x4x128xf32, #tpu.memory_space<vmem>>, vector<2x2x128xf32>
    %722 = vector.extract_strided_slice %689 {offsets = [3, 0], sizes = [1, 128], strides = [1, 1]} : vector<9x128xf32> to vector<1x128xf32>
    %723 = vector.shape_cast %722 : vector<1x128xf32> to vector<128xf32>
    %724 = vector.shape_cast %723 : vector<128xf32> to vector<1x1x128xf32>
    %725 = vector.broadcast %724 : vector<1x1x128xf32> to vector<2x2x128xf32>
    %726 = arith.mulf %721, %725 : vector<2x2x128xf32>
    %727 = arith.addf %720, %726 : vector<2x2x128xf32>
    %c1_407 = arith.constant 1 : index
    %c1_408 = arith.constant 1 : index
    %c0_409 = arith.constant 0 : index
    %728 = vector.load %arg53[%c1_407, %c1_408, %c0_409] : memref<4x4x128xf32, #tpu.memory_space<vmem>>, vector<2x2x128xf32>
    %729 = vector.extract_strided_slice %689 {offsets = [4, 0], sizes = [1, 128], strides = [1, 1]} : vector<9x128xf32> to vector<1x128xf32>
    %730 = vector.shape_cast %729 : vector<1x128xf32> to vector<128xf32>
    %731 = vector.shape_cast %730 : vector<128xf32> to vector<1x1x128xf32>
    %732 = vector.broadcast %731 : vector<1x1x128xf32> to vector<2x2x128xf32>
    %733 = arith.mulf %728, %732 : vector<2x2x128xf32>
    %734 = arith.addf %727, %733 : vector<2x2x128xf32>
    %c1_410 = arith.constant 1 : index
    %c2_411 = arith.constant 2 : index
    %c0_412 = arith.constant 0 : index
    %735 = vector.load %arg53[%c1_410, %c2_411, %c0_412] : memref<4x4x128xf32, #tpu.memory_space<vmem>>, vector<2x2x128xf32>
    %736 = vector.extract_strided_slice %689 {offsets = [5, 0], sizes = [1, 128], strides = [1, 1]} : vector<9x128xf32> to vector<1x128xf32>
    %737 = vector.shape_cast %736 : vector<1x128xf32> to vector<128xf32>
    %738 = vector.shape_cast %737 : vector<128xf32> to vector<1x1x128xf32>
    %739 = vector.broadcast %738 : vector<1x1x128xf32> to vector<2x2x128xf32>
    %740 = arith.mulf %735, %739 : vector<2x2x128xf32>
    %741 = arith.addf %734, %740 : vector<2x2x128xf32>
    %c2_413 = arith.constant 2 : index
    %c0_414 = arith.constant 0 : index
    %c0_415 = arith.constant 0 : index
    %742 = vector.load %arg53[%c2_413, %c0_414, %c0_415] : memref<4x4x128xf32, #tpu.memory_space<vmem>>, vector<2x2x128xf32>
    %743 = vector.extract_strided_slice %689 {offsets = [6, 0], sizes = [1, 128], strides = [1, 1]} : vector<9x128xf32> to vector<1x128xf32>
    %744 = vector.shape_cast %743 : vector<1x128xf32> to vector<128xf32>
    %745 = vector.shape_cast %744 : vector<128xf32> to vector<1x1x128xf32>
    %746 = vector.broadcast %745 : vector<1x1x128xf32> to vector<2x2x128xf32>
    %747 = arith.mulf %742, %746 : vector<2x2x128xf32>
    %748 = arith.addf %741, %747 : vector<2x2x128xf32>
    %c2_416 = arith.constant 2 : index
    %c1_417 = arith.constant 1 : index
    %c0_418 = arith.constant 0 : index
    %749 = vector.load %arg53[%c2_416, %c1_417, %c0_418] : memref<4x4x128xf32, #tpu.memory_space<vmem>>, vector<2x2x128xf32>
    %750 = vector.extract_strided_slice %689 {offsets = [7, 0], sizes = [1, 128], strides = [1, 1]} : vector<9x128xf32> to vector<1x128xf32>
    %751 = vector.shape_cast %750 : vector<1x128xf32> to vector<128xf32>
    %752 = vector.shape_cast %751 : vector<128xf32> to vector<1x1x128xf32>
    %753 = vector.broadcast %752 : vector<1x1x128xf32> to vector<2x2x128xf32>
    %754 = arith.mulf %749, %753 : vector<2x2x128xf32>
    %755 = arith.addf %748, %754 : vector<2x2x128xf32>
    %c2_419 = arith.constant 2 : index
    %c2_420 = arith.constant 2 : index
    %c0_421 = arith.constant 0 : index
    %756 = vector.load %arg53[%c2_419, %c2_420, %c0_421] : memref<4x4x128xf32, #tpu.memory_space<vmem>>, vector<2x2x128xf32>
    %757 = vector.extract_strided_slice %689 {offsets = [8, 0], sizes = [1, 128], strides = [1, 1]} : vector<9x128xf32> to vector<1x128xf32>
    %758 = vector.shape_cast %757 : vector<1x128xf32> to vector<128xf32>
    %759 = vector.shape_cast %758 : vector<128xf32> to vector<1x1x128xf32>
    %760 = vector.broadcast %759 : vector<1x1x128xf32> to vector<2x2x128xf32>
    %761 = arith.mulf %756, %760 : vector<2x2x128xf32>
    %762 = arith.addf %755, %761 : vector<2x2x128xf32>
    %763 = vector.shape_cast %762 : vector<2x2x128xf32> to vector<4x128xf32>
    %764 = arith.truncf %763 : vector<4x128xf32> to vector<4x128xbf16>
    %c0_422 = arith.constant 0 : index
    %c0_423 = arith.constant 0 : index
    %765 = vector.load %arg26[%c0_422, %c0_423] : memref<128x128xbf16, #tpu.memory_space<vmem>>, vector<128x128xbf16>
    %cst_424 = arith.constant dense<0.000000e+00> : vector<4x128xf32>
    %766 = tpu.matmul %764, %765, %cst_424 {dimension_numbers = #tpu.dot_dimension_numbers<[1], [0], [0], [1], [0, 0, 1, 1], [], []>} : vector<4x128xbf16>, vector<128x128xbf16>, vector<4x128xf32> -> vector<4x128xf32>
    %767 = vector.shape_cast %691 : vector<128xf32> to vector<1x128xf32>
    %768 = vector.broadcast %767 : vector<1x128xf32> to vector<4x128xf32>
    %769 = arith.addf %766, %768 : vector<4x128xf32>
    %cst_425 = arith.constant 0.000000e+00 : f32
    %770 = vector.broadcast %cst_425 : f32 to vector<4x128xf32>
    %771 = arith.maximumf %769, %770 : vector<4x128xf32>
    %772 = vector.shape_cast %771 : vector<4x128xf32> to vector<2x2x128xf32>
    %c0_426 = arith.constant 0 : index
    %c0_427 = arith.constant 0 : index
    %773 = vector.load %arg28[%c0_426, %c0_427] : memref<9x128xf32, #tpu.memory_space<vmem>>, vector<9x128xf32>
    %c0_428 = arith.constant 0 : index
    %c0_429 = arith.constant 0 : index
    %774 = vector.load %arg30[%c0_428, %c0_429] : memref<1x128xf32, #tpu.memory_space<vmem>>, vector<1x128xf32>
    %775 = vector.shape_cast %774 : vector<1x128xf32> to vector<128xf32>
    %cst_430 = arith.constant 0.000000e+00 : f32
    %776 = vector.broadcast %cst_430 : f32 to vector<1x4x128xf32>
    %cst_431 = arith.constant 0.000000e+00 : f32
    %777 = vector.broadcast %cst_431 : f32 to vector<2x1x128xf32>
    %c0_432 = arith.constant 0 : index
    %c0_433 = arith.constant 0 : index
    %c0_434 = arith.constant 0 : index
    %778 = vector.load %arg54[%c0_432, %c0_433, %c0_434] : memref<4x4x128xf32, #tpu.memory_space<vmem>>, vector<1x4x128xf32>
    tpu.vector_store %arg54[%c0_432, %c0_433, %c0_434], %776 {strides = array<i32>} : memref<4x4x128xf32, #tpu.memory_space<vmem>>, vector<1x4x128xf32>,
    %c3_435 = arith.constant 3 : index
    %c0_436 = arith.constant 0 : index
    %c0_437 = arith.constant 0 : index
    %779 = vector.load %arg54[%c3_435, %c0_436, %c0_437] : memref<4x4x128xf32, #tpu.memory_space<vmem>>, vector<1x4x128xf32>
    tpu.vector_store %arg54[%c3_435, %c0_436, %c0_437], %776 {strides = array<i32>} : memref<4x4x128xf32, #tpu.memory_space<vmem>>, vector<1x4x128xf32>,
    %c1_438 = arith.constant 1 : index
    %c0_439 = arith.constant 0 : index
    %c0_440 = arith.constant 0 : index
    %780 = vector.load %arg54[%c1_438, %c0_439, %c0_440] : memref<4x4x128xf32, #tpu.memory_space<vmem>>, vector<2x1x128xf32>
    tpu.vector_store %arg54[%c1_438, %c0_439, %c0_440], %777 {strides = array<i32>} : memref<4x4x128xf32, #tpu.memory_space<vmem>>, vector<2x1x128xf32>,
    %c1_441 = arith.constant 1 : index
    %c3_442 = arith.constant 3 : index
    %c0_443 = arith.constant 0 : index
    %781 = vector.load %arg54[%c1_441, %c3_442, %c0_443] : memref<4x4x128xf32, #tpu.memory_space<vmem>>, vector<2x1x128xf32>
    tpu.vector_store %arg54[%c1_441, %c3_442, %c0_443], %777 {strides = array<i32>} : memref<4x4x128xf32, #tpu.memory_space<vmem>>, vector<2x1x128xf32>,
    %c1_444 = arith.constant 1 : index
    %c1_445 = arith.constant 1 : index
    %c0_446 = arith.constant 0 : index
    %782 = vector.load %arg54[%c1_444, %c1_445, %c0_446] : memref<4x4x128xf32, #tpu.memory_space<vmem>>, vector<2x2x128xf32>
    tpu.vector_store %arg54[%c1_444, %c1_445, %c0_446], %772 {strides = array<i32>} : memref<4x4x128xf32, #tpu.memory_space<vmem>>, vector<2x2x128xf32>,
    %cst_447 = arith.constant 0.000000e+00 : f32
    %783 = vector.broadcast %cst_447 : f32 to vector<2x2x128xf32>
    %c0_448 = arith.constant 0 : index
    %c0_449 = arith.constant 0 : index
    %c0_450 = arith.constant 0 : index
    %784 = vector.load %arg54[%c0_448, %c0_449, %c0_450] : memref<4x4x128xf32, #tpu.memory_space<vmem>>, vector<2x2x128xf32>
    %785 = vector.extract_strided_slice %773 {offsets = [0, 0], sizes = [1, 128], strides = [1, 1]} : vector<9x128xf32> to vector<1x128xf32>
    %786 = vector.shape_cast %785 : vector<1x128xf32> to vector<128xf32>
    %787 = vector.shape_cast %786 : vector<128xf32> to vector<1x1x128xf32>
    %788 = vector.broadcast %787 : vector<1x1x128xf32> to vector<2x2x128xf32>
    %789 = arith.mulf %784, %788 : vector<2x2x128xf32>
    %790 = arith.addf %783, %789 : vector<2x2x128xf32>
    %c0_451 = arith.constant 0 : index
    %c1_452 = arith.constant 1 : index
    %c0_453 = arith.constant 0 : index
    %791 = vector.load %arg54[%c0_451, %c1_452, %c0_453] : memref<4x4x128xf32, #tpu.memory_space<vmem>>, vector<2x2x128xf32>
    %792 = vector.extract_strided_slice %773 {offsets = [1, 0], sizes = [1, 128], strides = [1, 1]} : vector<9x128xf32> to vector<1x128xf32>
    %793 = vector.shape_cast %792 : vector<1x128xf32> to vector<128xf32>
    %794 = vector.shape_cast %793 : vector<128xf32> to vector<1x1x128xf32>
    %795 = vector.broadcast %794 : vector<1x1x128xf32> to vector<2x2x128xf32>
    %796 = arith.mulf %791, %795 : vector<2x2x128xf32>
    %797 = arith.addf %790, %796 : vector<2x2x128xf32>
    %c0_454 = arith.constant 0 : index
    %c2_455 = arith.constant 2 : index
    %c0_456 = arith.constant 0 : index
    %798 = vector.load %arg54[%c0_454, %c2_455, %c0_456] : memref<4x4x128xf32, #tpu.memory_space<vmem>>, vector<2x2x128xf32>
    %799 = vector.extract_strided_slice %773 {offsets = [2, 0], sizes = [1, 128], strides = [1, 1]} : vector<9x128xf32> to vector<1x128xf32>
    %800 = vector.shape_cast %799 : vector<1x128xf32> to vector<128xf32>
    %801 = vector.shape_cast %800 : vector<128xf32> to vector<1x1x128xf32>
    %802 = vector.broadcast %801 : vector<1x1x128xf32> to vector<2x2x128xf32>
    %803 = arith.mulf %798, %802 : vector<2x2x128xf32>
    %804 = arith.addf %797, %803 : vector<2x2x128xf32>
    %c1_457 = arith.constant 1 : index
    %c0_458 = arith.constant 0 : index
    %c0_459 = arith.constant 0 : index
    %805 = vector.load %arg54[%c1_457, %c0_458, %c0_459] : memref<4x4x128xf32, #tpu.memory_space<vmem>>, vector<2x2x128xf32>
    %806 = vector.extract_strided_slice %773 {offsets = [3, 0], sizes = [1, 128], strides = [1, 1]} : vector<9x128xf32> to vector<1x128xf32>
    %807 = vector.shape_cast %806 : vector<1x128xf32> to vector<128xf32>
    %808 = vector.shape_cast %807 : vector<128xf32> to vector<1x1x128xf32>
    %809 = vector.broadcast %808 : vector<1x1x128xf32> to vector<2x2x128xf32>
    %810 = arith.mulf %805, %809 : vector<2x2x128xf32>
    %811 = arith.addf %804, %810 : vector<2x2x128xf32>
    %c1_460 = arith.constant 1 : index
    %c1_461 = arith.constant 1 : index
    %c0_462 = arith.constant 0 : index
    %812 = vector.load %arg54[%c1_460, %c1_461, %c0_462] : memref<4x4x128xf32, #tpu.memory_space<vmem>>, vector<2x2x128xf32>
    %813 = vector.extract_strided_slice %773 {offsets = [4, 0], sizes = [1, 128], strides = [1, 1]} : vector<9x128xf32> to vector<1x128xf32>
    %814 = vector.shape_cast %813 : vector<1x128xf32> to vector<128xf32>
    %815 = vector.shape_cast %814 : vector<128xf32> to vector<1x1x128xf32>
    %816 = vector.broadcast %815 : vector<1x1x128xf32> to vector<2x2x128xf32>
    %817 = arith.mulf %812, %816 : vector<2x2x128xf32>
    %818 = arith.addf %811, %817 : vector<2x2x128xf32>
    %c1_463 = arith.constant 1 : index
    %c2_464 = arith.constant 2 : index
    %c0_465 = arith.constant 0 : index
    %819 = vector.load %arg54[%c1_463, %c2_464, %c0_465] : memref<4x4x128xf32, #tpu.memory_space<vmem>>, vector<2x2x128xf32>
    %820 = vector.extract_strided_slice %773 {offsets = [5, 0], sizes = [1, 128], strides = [1, 1]} : vector<9x128xf32> to vector<1x128xf32>
    %821 = vector.shape_cast %820 : vector<1x128xf32> to vector<128xf32>
    %822 = vector.shape_cast %821 : vector<128xf32> to vector<1x1x128xf32>
    %823 = vector.broadcast %822 : vector<1x1x128xf32> to vector<2x2x128xf32>
    %824 = arith.mulf %819, %823 : vector<2x2x128xf32>
    %825 = arith.addf %818, %824 : vector<2x2x128xf32>
    %c2_466 = arith.constant 2 : index
    %c0_467 = arith.constant 0 : index
    %c0_468 = arith.constant 0 : index
    %826 = vector.load %arg54[%c2_466, %c0_467, %c0_468] : memref<4x4x128xf32, #tpu.memory_space<vmem>>, vector<2x2x128xf32>
    %827 = vector.extract_strided_slice %773 {offsets = [6, 0], sizes = [1, 128], strides = [1, 1]} : vector<9x128xf32> to vector<1x128xf32>
    %828 = vector.shape_cast %827 : vector<1x128xf32> to vector<128xf32>
    %829 = vector.shape_cast %828 : vector<128xf32> to vector<1x1x128xf32>
    %830 = vector.broadcast %829 : vector<1x1x128xf32> to vector<2x2x128xf32>
    %831 = arith.mulf %826, %830 : vector<2x2x128xf32>
    %832 = arith.addf %825, %831 : vector<2x2x128xf32>
    %c2_469 = arith.constant 2 : index
    %c1_470 = arith.constant 1 : index
    %c0_471 = arith.constant 0 : index
    %833 = vector.load %arg54[%c2_469, %c1_470, %c0_471] : memref<4x4x128xf32, #tpu.memory_space<vmem>>, vector<2x2x128xf32>
    %834 = vector.extract_strided_slice %773 {offsets = [7, 0], sizes = [1, 128], strides = [1, 1]} : vector<9x128xf32> to vector<1x128xf32>
    %835 = vector.shape_cast %834 : vector<1x128xf32> to vector<128xf32>
    %836 = vector.shape_cast %835 : vector<128xf32> to vector<1x1x128xf32>
    %837 = vector.broadcast %836 : vector<1x1x128xf32> to vector<2x2x128xf32>
    %838 = arith.mulf %833, %837 : vector<2x2x128xf32>
    %839 = arith.addf %832, %838 : vector<2x2x128xf32>
    %c2_472 = arith.constant 2 : index
    %c2_473 = arith.constant 2 : index
    %c0_474 = arith.constant 0 : index
    %840 = vector.load %arg54[%c2_472, %c2_473, %c0_474] : memref<4x4x128xf32, #tpu.memory_space<vmem>>, vector<2x2x128xf32>
    %841 = vector.extract_strided_slice %773 {offsets = [8, 0], sizes = [1, 128], strides = [1, 1]} : vector<9x128xf32> to vector<1x128xf32>
    %842 = vector.shape_cast %841 : vector<1x128xf32> to vector<128xf32>
    %843 = vector.shape_cast %842 : vector<128xf32> to vector<1x1x128xf32>
    %844 = vector.broadcast %843 : vector<1x1x128xf32> to vector<2x2x128xf32>
    %845 = arith.mulf %840, %844 : vector<2x2x128xf32>
    %846 = arith.addf %839, %845 : vector<2x2x128xf32>
    %847 = vector.shape_cast %846 : vector<2x2x128xf32> to vector<4x128xf32>
    %848 = arith.truncf %847 : vector<4x128xf32> to vector<4x128xbf16>
    %c0_475 = arith.constant 0 : index
    %c0_476 = arith.constant 0 : index
    %849 = vector.load %arg29[%c0_475, %c0_476] : memref<128x128xbf16, #tpu.memory_space<vmem>>, vector<128x128xbf16>
    %cst_477 = arith.constant dense<0.000000e+00> : vector<4x128xf32>
    %850 = tpu.matmul %848, %849, %cst_477 {dimension_numbers = #tpu.dot_dimension_numbers<[1], [0], [0], [1], [0, 0, 1, 1], [], []>} : vector<4x128xbf16>, vector<128x128xbf16>, vector<4x128xf32> -> vector<4x128xf32>
    %851 = vector.shape_cast %775 : vector<128xf32> to vector<1x128xf32>
    %852 = vector.broadcast %851 : vector<1x128xf32> to vector<4x128xf32>
    %853 = arith.addf %850, %852 : vector<4x128xf32>
    %cst_478 = arith.constant 0.000000e+00 : f32
    %854 = vector.broadcast %cst_478 : f32 to vector<4x128xf32>
    %855 = arith.maximumf %853, %854 : vector<4x128xf32>
    %856 = vector.shape_cast %855 : vector<4x128xf32> to vector<2x2x128xf32>
    %c0_479 = arith.constant 0 : index
    %c0_480 = arith.constant 0 : index
    %857 = vector.load %arg31[%c0_479, %c0_480] : memref<9x128xf32, #tpu.memory_space<vmem>>, vector<9x128xf32>
    %c0_481 = arith.constant 0 : index
    %c0_482 = arith.constant 0 : index
    %858 = vector.load %arg33[%c0_481, %c0_482] : memref<1x128xf32, #tpu.memory_space<vmem>>, vector<1x128xf32>
    %859 = vector.shape_cast %858 : vector<1x128xf32> to vector<128xf32>
    %cst_483 = arith.constant 0.000000e+00 : f32
    %860 = vector.broadcast %cst_483 : f32 to vector<1x4x128xf32>
    %cst_484 = arith.constant 0.000000e+00 : f32
    %861 = vector.broadcast %cst_484 : f32 to vector<2x1x128xf32>
    %c0_485 = arith.constant 0 : index
    %c0_486 = arith.constant 0 : index
    %c0_487 = arith.constant 0 : index
    %862 = vector.load %arg55[%c0_485, %c0_486, %c0_487] : memref<4x4x128xf32, #tpu.memory_space<vmem>>, vector<1x4x128xf32>
    tpu.vector_store %arg55[%c0_485, %c0_486, %c0_487], %860 {strides = array<i32>} : memref<4x4x128xf32, #tpu.memory_space<vmem>>, vector<1x4x128xf32>,
    %c3_488 = arith.constant 3 : index
    %c0_489 = arith.constant 0 : index
    %c0_490 = arith.constant 0 : index
    %863 = vector.load %arg55[%c3_488, %c0_489, %c0_490] : memref<4x4x128xf32, #tpu.memory_space<vmem>>, vector<1x4x128xf32>
    tpu.vector_store %arg55[%c3_488, %c0_489, %c0_490], %860 {strides = array<i32>} : memref<4x4x128xf32, #tpu.memory_space<vmem>>, vector<1x4x128xf32>,
    %c1_491 = arith.constant 1 : index
    %c0_492 = arith.constant 0 : index
    %c0_493 = arith.constant 0 : index
    %864 = vector.load %arg55[%c1_491, %c0_492, %c0_493] : memref<4x4x128xf32, #tpu.memory_space<vmem>>, vector<2x1x128xf32>
    tpu.vector_store %arg55[%c1_491, %c0_492, %c0_493], %861 {strides = array<i32>} : memref<4x4x128xf32, #tpu.memory_space<vmem>>, vector<2x1x128xf32>,
    %c1_494 = arith.constant 1 : index
    %c3_495 = arith.constant 3 : index
    %c0_496 = arith.constant 0 : index
    %865 = vector.load %arg55[%c1_494, %c3_495, %c0_496] : memref<4x4x128xf32, #tpu.memory_space<vmem>>, vector<2x1x128xf32>
    tpu.vector_store %arg55[%c1_494, %c3_495, %c0_496], %861 {strides = array<i32>} : memref<4x4x128xf32, #tpu.memory_space<vmem>>, vector<2x1x128xf32>,
    %c1_497 = arith.constant 1 : index
    %c1_498 = arith.constant 1 : index
    %c0_499 = arith.constant 0 : index
    %866 = vector.load %arg55[%c1_497, %c1_498, %c0_499] : memref<4x4x128xf32, #tpu.memory_space<vmem>>, vector<2x2x128xf32>
    tpu.vector_store %arg55[%c1_497, %c1_498, %c0_499], %856 {strides = array<i32>} : memref<4x4x128xf32, #tpu.memory_space<vmem>>, vector<2x2x128xf32>,
    %cst_500 = arith.constant 0.000000e+00 : f32
    %867 = vector.broadcast %cst_500 : f32 to vector<2x2x128xf32>
    %c0_501 = arith.constant 0 : index
    %c0_502 = arith.constant 0 : index
    %c0_503 = arith.constant 0 : index
    %868 = vector.load %arg55[%c0_501, %c0_502, %c0_503] : memref<4x4x128xf32, #tpu.memory_space<vmem>>, vector<2x2x128xf32>
    %869 = vector.extract_strided_slice %857 {offsets = [0, 0], sizes = [1, 128], strides = [1, 1]} : vector<9x128xf32> to vector<1x128xf32>
    %870 = vector.shape_cast %869 : vector<1x128xf32> to vector<128xf32>
    %871 = vector.shape_cast %870 : vector<128xf32> to vector<1x1x128xf32>
    %872 = vector.broadcast %871 : vector<1x1x128xf32> to vector<2x2x128xf32>
    %873 = arith.mulf %868, %872 : vector<2x2x128xf32>
    %874 = arith.addf %867, %873 : vector<2x2x128xf32>
    %c0_504 = arith.constant 0 : index
    %c1_505 = arith.constant 1 : index
    %c0_506 = arith.constant 0 : index
    %875 = vector.load %arg55[%c0_504, %c1_505, %c0_506] : memref<4x4x128xf32, #tpu.memory_space<vmem>>, vector<2x2x128xf32>
    %876 = vector.extract_strided_slice %857 {offsets = [1, 0], sizes = [1, 128], strides = [1, 1]} : vector<9x128xf32> to vector<1x128xf32>
    %877 = vector.shape_cast %876 : vector<1x128xf32> to vector<128xf32>
    %878 = vector.shape_cast %877 : vector<128xf32> to vector<1x1x128xf32>
    %879 = vector.broadcast %878 : vector<1x1x128xf32> to vector<2x2x128xf32>
    %880 = arith.mulf %875, %879 : vector<2x2x128xf32>
    %881 = arith.addf %874, %880 : vector<2x2x128xf32>
    %c0_507 = arith.constant 0 : index
    %c2_508 = arith.constant 2 : index
    %c0_509 = arith.constant 0 : index
    %882 = vector.load %arg55[%c0_507, %c2_508, %c0_509] : memref<4x4x128xf32, #tpu.memory_space<vmem>>, vector<2x2x128xf32>
    %883 = vector.extract_strided_slice %857 {offsets = [2, 0], sizes = [1, 128], strides = [1, 1]} : vector<9x128xf32> to vector<1x128xf32>
    %884 = vector.shape_cast %883 : vector<1x128xf32> to vector<128xf32>
    %885 = vector.shape_cast %884 : vector<128xf32> to vector<1x1x128xf32>
    %886 = vector.broadcast %885 : vector<1x1x128xf32> to vector<2x2x128xf32>
    %887 = arith.mulf %882, %886 : vector<2x2x128xf32>
    %888 = arith.addf %881, %887 : vector<2x2x128xf32>
    %c1_510 = arith.constant 1 : index
    %c0_511 = arith.constant 0 : index
    %c0_512 = arith.constant 0 : index
    %889 = vector.load %arg55[%c1_510, %c0_511, %c0_512] : memref<4x4x128xf32, #tpu.memory_space<vmem>>, vector<2x2x128xf32>
    %890 = vector.extract_strided_slice %857 {offsets = [3, 0], sizes = [1, 128], strides = [1, 1]} : vector<9x128xf32> to vector<1x128xf32>
    %891 = vector.shape_cast %890 : vector<1x128xf32> to vector<128xf32>
    %892 = vector.shape_cast %891 : vector<128xf32> to vector<1x1x128xf32>
    %893 = vector.broadcast %892 : vector<1x1x128xf32> to vector<2x2x128xf32>
    %894 = arith.mulf %889, %893 : vector<2x2x128xf32>
    %895 = arith.addf %888, %894 : vector<2x2x128xf32>
    %c1_513 = arith.constant 1 : index
    %c1_514 = arith.constant 1 : index
    %c0_515 = arith.constant 0 : index
    %896 = vector.load %arg55[%c1_513, %c1_514, %c0_515] : memref<4x4x128xf32, #tpu.memory_space<vmem>>, vector<2x2x128xf32>
    %897 = vector.extract_strided_slice %857 {offsets = [4, 0], sizes = [1, 128], strides = [1, 1]} : vector<9x128xf32> to vector<1x128xf32>
    %898 = vector.shape_cast %897 : vector<1x128xf32> to vector<128xf32>
    %899 = vector.shape_cast %898 : vector<128xf32> to vector<1x1x128xf32>
    %900 = vector.broadcast %899 : vector<1x1x128xf32> to vector<2x2x128xf32>
    %901 = arith.mulf %896, %900 : vector<2x2x128xf32>
    %902 = arith.addf %895, %901 : vector<2x2x128xf32>
    %c1_516 = arith.constant 1 : index
    %c2_517 = arith.constant 2 : index
    %c0_518 = arith.constant 0 : index
    %903 = vector.load %arg55[%c1_516, %c2_517, %c0_518] : memref<4x4x128xf32, #tpu.memory_space<vmem>>, vector<2x2x128xf32>
    %904 = vector.extract_strided_slice %857 {offsets = [5, 0], sizes = [1, 128], strides = [1, 1]} : vector<9x128xf32> to vector<1x128xf32>
    %905 = vector.shape_cast %904 : vector<1x128xf32> to vector<128xf32>
    %906 = vector.shape_cast %905 : vector<128xf32> to vector<1x1x128xf32>
    %907 = vector.broadcast %906 : vector<1x1x128xf32> to vector<2x2x128xf32>
    %908 = arith.mulf %903, %907 : vector<2x2x128xf32>
    %909 = arith.addf %902, %908 : vector<2x2x128xf32>
    %c2_519 = arith.constant 2 : index
    %c0_520 = arith.constant 0 : index
    %c0_521 = arith.constant 0 : index
    %910 = vector.load %arg55[%c2_519, %c0_520, %c0_521] : memref<4x4x128xf32, #tpu.memory_space<vmem>>, vector<2x2x128xf32>
    %911 = vector.extract_strided_slice %857 {offsets = [6, 0], sizes = [1, 128], strides = [1, 1]} : vector<9x128xf32> to vector<1x128xf32>
    %912 = vector.shape_cast %911 : vector<1x128xf32> to vector<128xf32>
    %913 = vector.shape_cast %912 : vector<128xf32> to vector<1x1x128xf32>
    %914 = vector.broadcast %913 : vector<1x1x128xf32> to vector<2x2x128xf32>
    %915 = arith.mulf %910, %914 : vector<2x2x128xf32>
    %916 = arith.addf %909, %915 : vector<2x2x128xf32>
    %c2_522 = arith.constant 2 : index
    %c1_523 = arith.constant 1 : index
    %c0_524 = arith.constant 0 : index
    %917 = vector.load %arg55[%c2_522, %c1_523, %c0_524] : memref<4x4x128xf32, #tpu.memory_space<vmem>>, vector<2x2x128xf32>
    %918 = vector.extract_strided_slice %857 {offsets = [7, 0], sizes = [1, 128], strides = [1, 1]} : vector<9x128xf32> to vector<1x128xf32>
    %919 = vector.shape_cast %918 : vector<1x128xf32> to vector<128xf32>
    %920 = vector.shape_cast %919 : vector<128xf32> to vector<1x1x128xf32>
    %921 = vector.broadcast %920 : vector<1x1x128xf32> to vector<2x2x128xf32>
    %922 = arith.mulf %917, %921 : vector<2x2x128xf32>
    %923 = arith.addf %916, %922 : vector<2x2x128xf32>
    %c2_525 = arith.constant 2 : index
    %c2_526 = arith.constant 2 : index
    %c0_527 = arith.constant 0 : index
    %924 = vector.load %arg55[%c2_525, %c2_526, %c0_527] : memref<4x4x128xf32, #tpu.memory_space<vmem>>, vector<2x2x128xf32>
    %925 = vector.extract_strided_slice %857 {offsets = [8, 0], sizes = [1, 128], strides = [1, 1]} : vector<9x128xf32> to vector<1x128xf32>
    %926 = vector.shape_cast %925 : vector<1x128xf32> to vector<128xf32>
    %927 = vector.shape_cast %926 : vector<128xf32> to vector<1x1x128xf32>
    %928 = vector.broadcast %927 : vector<1x1x128xf32> to vector<2x2x128xf32>
    %929 = arith.mulf %924, %928 : vector<2x2x128xf32>
    %930 = arith.addf %923, %929 : vector<2x2x128xf32>
    %931 = vector.shape_cast %930 : vector<2x2x128xf32> to vector<4x128xf32>
    %932 = arith.truncf %931 : vector<4x128xf32> to vector<4x128xbf16>
    %c0_528 = arith.constant 0 : index
    %c0_529 = arith.constant 0 : index
    %933 = vector.load %arg32[%c0_528, %c0_529] : memref<128x128xbf16, #tpu.memory_space<vmem>>, vector<128x128xbf16>
    %cst_530 = arith.constant dense<0.000000e+00> : vector<4x128xf32>
    %934 = tpu.matmul %932, %933, %cst_530 {dimension_numbers = #tpu.dot_dimension_numbers<[1], [0], [0], [1], [0, 0, 1, 1], [], []>} : vector<4x128xbf16>, vector<128x128xbf16>, vector<4x128xf32> -> vector<4x128xf32>
    %935 = vector.shape_cast %859 : vector<128xf32> to vector<1x128xf32>
    %936 = vector.broadcast %935 : vector<1x128xf32> to vector<4x128xf32>
    %937 = arith.addf %934, %936 : vector<4x128xf32>
    %cst_531 = arith.constant 0.000000e+00 : f32
    %938 = vector.broadcast %cst_531 : f32 to vector<4x128xf32>
    %939 = arith.maximumf %937, %938 : vector<4x128xf32>
    %940 = vector.shape_cast %939 : vector<4x128xf32> to vector<2x2x128xf32>
    %c0_532 = arith.constant 0 : index
    %c0_533 = arith.constant 0 : index
    %941 = vector.load %arg34[%c0_532, %c0_533] : memref<9x128xf32, #tpu.memory_space<vmem>>, vector<9x128xf32>
    %c0_534 = arith.constant 0 : index
    %c0_535 = arith.constant 0 : index
    %942 = vector.load %arg36[%c0_534, %c0_535] : memref<1x128xf32, #tpu.memory_space<vmem>>, vector<1x128xf32>
    %943 = vector.shape_cast %942 : vector<1x128xf32> to vector<128xf32>
    %cst_536 = arith.constant 0.000000e+00 : f32
    %944 = vector.broadcast %cst_536 : f32 to vector<1x4x128xf32>
    %cst_537 = arith.constant 0.000000e+00 : f32
    %945 = vector.broadcast %cst_537 : f32 to vector<2x1x128xf32>
    %c0_538 = arith.constant 0 : index
    %c0_539 = arith.constant 0 : index
    %c0_540 = arith.constant 0 : index
    %946 = vector.load %arg56[%c0_538, %c0_539, %c0_540] : memref<4x4x128xf32, #tpu.memory_space<vmem>>, vector<1x4x128xf32>
    tpu.vector_store %arg56[%c0_538, %c0_539, %c0_540], %944 {strides = array<i32>} : memref<4x4x128xf32, #tpu.memory_space<vmem>>, vector<1x4x128xf32>,
    %c3_541 = arith.constant 3 : index
    %c0_542 = arith.constant 0 : index
    %c0_543 = arith.constant 0 : index
    %947 = vector.load %arg56[%c3_541, %c0_542, %c0_543] : memref<4x4x128xf32, #tpu.memory_space<vmem>>, vector<1x4x128xf32>
    tpu.vector_store %arg56[%c3_541, %c0_542, %c0_543], %944 {strides = array<i32>} : memref<4x4x128xf32, #tpu.memory_space<vmem>>, vector<1x4x128xf32>,
    %c1_544 = arith.constant 1 : index
    %c0_545 = arith.constant 0 : index
    %c0_546 = arith.constant 0 : index
    %948 = vector.load %arg56[%c1_544, %c0_545, %c0_546] : memref<4x4x128xf32, #tpu.memory_space<vmem>>, vector<2x1x128xf32>
    tpu.vector_store %arg56[%c1_544, %c0_545, %c0_546], %945 {strides = array<i32>} : memref<4x4x128xf32, #tpu.memory_space<vmem>>, vector<2x1x128xf32>,
    %c1_547 = arith.constant 1 : index
    %c3_548 = arith.constant 3 : index
    %c0_549 = arith.constant 0 : index
    %949 = vector.load %arg56[%c1_547, %c3_548, %c0_549] : memref<4x4x128xf32, #tpu.memory_space<vmem>>, vector<2x1x128xf32>
    tpu.vector_store %arg56[%c1_547, %c3_548, %c0_549], %945 {strides = array<i32>} : memref<4x4x128xf32, #tpu.memory_space<vmem>>, vector<2x1x128xf32>,
    %c1_550 = arith.constant 1 : index
    %c1_551 = arith.constant 1 : index
    %c0_552 = arith.constant 0 : index
    %950 = vector.load %arg56[%c1_550, %c1_551, %c0_552] : memref<4x4x128xf32, #tpu.memory_space<vmem>>, vector<2x2x128xf32>
    tpu.vector_store %arg56[%c1_550, %c1_551, %c0_552], %940 {strides = array<i32>} : memref<4x4x128xf32, #tpu.memory_space<vmem>>, vector<2x2x128xf32>,
    %cst_553 = arith.constant 0.000000e+00 : f32
    %951 = vector.broadcast %cst_553 : f32 to vector<2x2x128xf32>
    %c0_554 = arith.constant 0 : index
    %c0_555 = arith.constant 0 : index
    %c0_556 = arith.constant 0 : index
    %952 = vector.load %arg56[%c0_554, %c0_555, %c0_556] : memref<4x4x128xf32, #tpu.memory_space<vmem>>, vector<2x2x128xf32>
    %953 = vector.extract_strided_slice %941 {offsets = [0, 0], sizes = [1, 128], strides = [1, 1]} : vector<9x128xf32> to vector<1x128xf32>
    %954 = vector.shape_cast %953 : vector<1x128xf32> to vector<128xf32>
    %955 = vector.shape_cast %954 : vector<128xf32> to vector<1x1x128xf32>
    %956 = vector.broadcast %955 : vector<1x1x128xf32> to vector<2x2x128xf32>
    %957 = arith.mulf %952, %956 : vector<2x2x128xf32>
    %958 = arith.addf %951, %957 : vector<2x2x128xf32>
    %c0_557 = arith.constant 0 : index
    %c1_558 = arith.constant 1 : index
    %c0_559 = arith.constant 0 : index
    %959 = vector.load %arg56[%c0_557, %c1_558, %c0_559] : memref<4x4x128xf32, #tpu.memory_space<vmem>>, vector<2x2x128xf32>
    %960 = vector.extract_strided_slice %941 {offsets = [1, 0], sizes = [1, 128], strides = [1, 1]} : vector<9x128xf32> to vector<1x128xf32>
    %961 = vector.shape_cast %960 : vector<1x128xf32> to vector<128xf32>
    %962 = vector.shape_cast %961 : vector<128xf32> to vector<1x1x128xf32>
    %963 = vector.broadcast %962 : vector<1x1x128xf32> to vector<2x2x128xf32>
    %964 = arith.mulf %959, %963 : vector<2x2x128xf32>
    %965 = arith.addf %958, %964 : vector<2x2x128xf32>
    %c0_560 = arith.constant 0 : index
    %c2_561 = arith.constant 2 : index
    %c0_562 = arith.constant 0 : index
    %966 = vector.load %arg56[%c0_560, %c2_561, %c0_562] : memref<4x4x128xf32, #tpu.memory_space<vmem>>, vector<2x2x128xf32>
    %967 = vector.extract_strided_slice %941 {offsets = [2, 0], sizes = [1, 128], strides = [1, 1]} : vector<9x128xf32> to vector<1x128xf32>
    %968 = vector.shape_cast %967 : vector<1x128xf32> to vector<128xf32>
    %969 = vector.shape_cast %968 : vector<128xf32> to vector<1x1x128xf32>
    %970 = vector.broadcast %969 : vector<1x1x128xf32> to vector<2x2x128xf32>
    %971 = arith.mulf %966, %970 : vector<2x2x128xf32>
    %972 = arith.addf %965, %971 : vector<2x2x128xf32>
    %c1_563 = arith.constant 1 : index
    %c0_564 = arith.constant 0 : index
    %c0_565 = arith.constant 0 : index
    %973 = vector.load %arg56[%c1_563, %c0_564, %c0_565] : memref<4x4x128xf32, #tpu.memory_space<vmem>>, vector<2x2x128xf32>
    %974 = vector.extract_strided_slice %941 {offsets = [3, 0], sizes = [1, 128], strides = [1, 1]} : vector<9x128xf32> to vector<1x128xf32>
    %975 = vector.shape_cast %974 : vector<1x128xf32> to vector<128xf32>
    %976 = vector.shape_cast %975 : vector<128xf32> to vector<1x1x128xf32>
    %977 = vector.broadcast %976 : vector<1x1x128xf32> to vector<2x2x128xf32>
    %978 = arith.mulf %973, %977 : vector<2x2x128xf32>
    %979 = arith.addf %972, %978 : vector<2x2x128xf32>
    %c1_566 = arith.constant 1 : index
    %c1_567 = arith.constant 1 : index
    %c0_568 = arith.constant 0 : index
    %980 = vector.load %arg56[%c1_566, %c1_567, %c0_568] : memref<4x4x128xf32, #tpu.memory_space<vmem>>, vector<2x2x128xf32>
    %981 = vector.extract_strided_slice %941 {offsets = [4, 0], sizes = [1, 128], strides = [1, 1]} : vector<9x128xf32> to vector<1x128xf32>
    %982 = vector.shape_cast %981 : vector<1x128xf32> to vector<128xf32>
    %983 = vector.shape_cast %982 : vector<128xf32> to vector<1x1x128xf32>
    %984 = vector.broadcast %983 : vector<1x1x128xf32> to vector<2x2x128xf32>
    %985 = arith.mulf %980, %984 : vector<2x2x128xf32>
    %986 = arith.addf %979, %985 : vector<2x2x128xf32>
    %c1_569 = arith.constant 1 : index
    %c2_570 = arith.constant 2 : index
    %c0_571 = arith.constant 0 : index
    %987 = vector.load %arg56[%c1_569, %c2_570, %c0_571] : memref<4x4x128xf32, #tpu.memory_space<vmem>>, vector<2x2x128xf32>
    %988 = vector.extract_strided_slice %941 {offsets = [5, 0], sizes = [1, 128], strides = [1, 1]} : vector<9x128xf32> to vector<1x128xf32>
    %989 = vector.shape_cast %988 : vector<1x128xf32> to vector<128xf32>
    %990 = vector.shape_cast %989 : vector<128xf32> to vector<1x1x128xf32>
    %991 = vector.broadcast %990 : vector<1x1x128xf32> to vector<2x2x128xf32>
    %992 = arith.mulf %987, %991 : vector<2x2x128xf32>
    %993 = arith.addf %986, %992 : vector<2x2x128xf32>
    %c2_572 = arith.constant 2 : index
    %c0_573 = arith.constant 0 : index
    %c0_574 = arith.constant 0 : index
    %994 = vector.load %arg56[%c2_572, %c0_573, %c0_574] : memref<4x4x128xf32, #tpu.memory_space<vmem>>, vector<2x2x128xf32>
    %995 = vector.extract_strided_slice %941 {offsets = [6, 0], sizes = [1, 128], strides = [1, 1]} : vector<9x128xf32> to vector<1x128xf32>
    %996 = vector.shape_cast %995 : vector<1x128xf32> to vector<128xf32>
    %997 = vector.shape_cast %996 : vector<128xf32> to vector<1x1x128xf32>
    %998 = vector.broadcast %997 : vector<1x1x128xf32> to vector<2x2x128xf32>
    %999 = arith.mulf %994, %998 : vector<2x2x128xf32>
    %1000 = arith.addf %993, %999 : vector<2x2x128xf32>
    %c2_575 = arith.constant 2 : index
    %c1_576 = arith.constant 1 : index
    %c0_577 = arith.constant 0 : index
    %1001 = vector.load %arg56[%c2_575, %c1_576, %c0_577] : memref<4x4x128xf32, #tpu.memory_space<vmem>>, vector<2x2x128xf32>
    %1002 = vector.extract_strided_slice %941 {offsets = [7, 0], sizes = [1, 128], strides = [1, 1]} : vector<9x128xf32> to vector<1x128xf32>
    %1003 = vector.shape_cast %1002 : vector<1x128xf32> to vector<128xf32>
    %1004 = vector.shape_cast %1003 : vector<128xf32> to vector<1x1x128xf32>
    %1005 = vector.broadcast %1004 : vector<1x1x128xf32> to vector<2x2x128xf32>
    %1006 = arith.mulf %1001, %1005 : vector<2x2x128xf32>
    %1007 = arith.addf %1000, %1006 : vector<2x2x128xf32>
    %c2_578 = arith.constant 2 : index
    %c2_579 = arith.constant 2 : index
    %c0_580 = arith.constant 0 : index
    %1008 = vector.load %arg56[%c2_578, %c2_579, %c0_580] : memref<4x4x128xf32, #tpu.memory_space<vmem>>, vector<2x2x128xf32>
    %1009 = vector.extract_strided_slice %941 {offsets = [8, 0], sizes = [1, 128], strides = [1, 1]} : vector<9x128xf32> to vector<1x128xf32>
    %1010 = vector.shape_cast %1009 : vector<1x128xf32> to vector<128xf32>
    %1011 = vector.shape_cast %1010 : vector<128xf32> to vector<1x1x128xf32>
    %1012 = vector.broadcast %1011 : vector<1x1x128xf32> to vector<2x2x128xf32>
    %1013 = arith.mulf %1008, %1012 : vector<2x2x128xf32>
    %1014 = arith.addf %1007, %1013 : vector<2x2x128xf32>
    %1015 = vector.shape_cast %1014 : vector<2x2x128xf32> to vector<4x128xf32>
    %1016 = arith.truncf %1015 : vector<4x128xf32> to vector<4x128xbf16>
    %c0_581 = arith.constant 0 : index
    %c0_582 = arith.constant 0 : index
    %1017 = vector.load %arg35[%c0_581, %c0_582] : memref<128x128xbf16, #tpu.memory_space<vmem>>, vector<128x128xbf16>
    %cst_583 = arith.constant dense<0.000000e+00> : vector<4x128xf32>
    %1018 = tpu.matmul %1016, %1017, %cst_583 {dimension_numbers = #tpu.dot_dimension_numbers<[1], [0], [0], [1], [0, 0, 1, 1], [], []>} : vector<4x128xbf16>, vector<128x128xbf16>, vector<4x128xf32> -> vector<4x128xf32>
    %1019 = vector.shape_cast %943 : vector<128xf32> to vector<1x128xf32>
    %1020 = vector.broadcast %1019 : vector<1x128xf32> to vector<4x128xf32>
    %1021 = arith.addf %1018, %1020 : vector<4x128xf32>
    %cst_584 = arith.constant 0.000000e+00 : f32
    %1022 = vector.broadcast %cst_584 : f32 to vector<4x128xf32>
    %1023 = arith.maximumf %1021, %1022 : vector<4x128xf32>
    %1024 = vector.shape_cast %1023 : vector<4x128xf32> to vector<2x2x128xf32>
    %c0_585 = arith.constant 0 : index
    %c0_586 = arith.constant 0 : index
    %1025 = vector.load %arg37[%c0_585, %c0_586] : memref<9x128xf32, #tpu.memory_space<vmem>>, vector<9x128xf32>
    %c0_587 = arith.constant 0 : index
    %c0_588 = arith.constant 0 : index
    %1026 = vector.load %arg39[%c0_587, %c0_588] : memref<1x256xf32, #tpu.memory_space<vmem>>, vector<1x256xf32>
    %1027 = vector.shape_cast %1026 : vector<1x256xf32> to vector<256xf32>
    %cst_589 = arith.constant 0.000000e+00 : f32
    %1028 = vector.broadcast %cst_589 : f32 to vector<1x4x128xf32>
    %cst_590 = arith.constant 0.000000e+00 : f32
    %1029 = vector.broadcast %cst_590 : f32 to vector<2x1x128xf32>
    %c0_591 = arith.constant 0 : index
    %c0_592 = arith.constant 0 : index
    %c0_593 = arith.constant 0 : index
    %1030 = vector.load %arg57[%c0_591, %c0_592, %c0_593] : memref<4x4x128xf32, #tpu.memory_space<vmem>>, vector<1x4x128xf32>
    tpu.vector_store %arg57[%c0_591, %c0_592, %c0_593], %1028 {strides = array<i32>} : memref<4x4x128xf32, #tpu.memory_space<vmem>>, vector<1x4x128xf32>,
    %c3_594 = arith.constant 3 : index
    %c0_595 = arith.constant 0 : index
    %c0_596 = arith.constant 0 : index
    %1031 = vector.load %arg57[%c3_594, %c0_595, %c0_596] : memref<4x4x128xf32, #tpu.memory_space<vmem>>, vector<1x4x128xf32>
    tpu.vector_store %arg57[%c3_594, %c0_595, %c0_596], %1028 {strides = array<i32>} : memref<4x4x128xf32, #tpu.memory_space<vmem>>, vector<1x4x128xf32>,
    %c1_597 = arith.constant 1 : index
    %c0_598 = arith.constant 0 : index
    %c0_599 = arith.constant 0 : index
    %1032 = vector.load %arg57[%c1_597, %c0_598, %c0_599] : memref<4x4x128xf32, #tpu.memory_space<vmem>>, vector<2x1x128xf32>
    tpu.vector_store %arg57[%c1_597, %c0_598, %c0_599], %1029 {strides = array<i32>} : memref<4x4x128xf32, #tpu.memory_space<vmem>>, vector<2x1x128xf32>,
    %c1_600 = arith.constant 1 : index
    %c3_601 = arith.constant 3 : index
    %c0_602 = arith.constant 0 : index
    %1033 = vector.load %arg57[%c1_600, %c3_601, %c0_602] : memref<4x4x128xf32, #tpu.memory_space<vmem>>, vector<2x1x128xf32>
    tpu.vector_store %arg57[%c1_600, %c3_601, %c0_602], %1029 {strides = array<i32>} : memref<4x4x128xf32, #tpu.memory_space<vmem>>, vector<2x1x128xf32>,
    %c1_603 = arith.constant 1 : index
    %c1_604 = arith.constant 1 : index
    %c0_605 = arith.constant 0 : index
    %1034 = vector.load %arg57[%c1_603, %c1_604, %c0_605] : memref<4x4x128xf32, #tpu.memory_space<vmem>>, vector<2x2x128xf32>
    tpu.vector_store %arg57[%c1_603, %c1_604, %c0_605], %1024 {strides = array<i32>} : memref<4x4x128xf32, #tpu.memory_space<vmem>>, vector<2x2x128xf32>,
    %cst_606 = arith.constant 0.000000e+00 : f32
    %1035 = vector.broadcast %cst_606 : f32 to vector<2x2x128xf32>
    %c0_607 = arith.constant 0 : index
    %c0_608 = arith.constant 0 : index
    %c0_609 = arith.constant 0 : index
    %1036 = vector.load %arg57[%c0_607, %c0_608, %c0_609] : memref<4x4x128xf32, #tpu.memory_space<vmem>>, vector<2x2x128xf32>
    %1037 = vector.extract_strided_slice %1025 {offsets = [0, 0], sizes = [1, 128], strides = [1, 1]} : vector<9x128xf32> to vector<1x128xf32>
    %1038 = vector.shape_cast %1037 : vector<1x128xf32> to vector<128xf32>
    %1039 = vector.shape_cast %1038 : vector<128xf32> to vector<1x1x128xf32>
    %1040 = vector.broadcast %1039 : vector<1x1x128xf32> to vector<2x2x128xf32>
    %1041 = arith.mulf %1036, %1040 : vector<2x2x128xf32>
    %1042 = arith.addf %1035, %1041 : vector<2x2x128xf32>
    %c0_610 = arith.constant 0 : index
    %c1_611 = arith.constant 1 : index
    %c0_612 = arith.constant 0 : index
    %1043 = vector.load %arg57[%c0_610, %c1_611, %c0_612] : memref<4x4x128xf32, #tpu.memory_space<vmem>>, vector<2x2x128xf32>
    %1044 = vector.extract_strided_slice %1025 {offsets = [1, 0], sizes = [1, 128], strides = [1, 1]} : vector<9x128xf32> to vector<1x128xf32>
    %1045 = vector.shape_cast %1044 : vector<1x128xf32> to vector<128xf32>
    %1046 = vector.shape_cast %1045 : vector<128xf32> to vector<1x1x128xf32>
    %1047 = vector.broadcast %1046 : vector<1x1x128xf32> to vector<2x2x128xf32>
    %1048 = arith.mulf %1043, %1047 : vector<2x2x128xf32>
    %1049 = arith.addf %1042, %1048 : vector<2x2x128xf32>
    %c0_613 = arith.constant 0 : index
    %c2_614 = arith.constant 2 : index
    %c0_615 = arith.constant 0 : index
    %1050 = vector.load %arg57[%c0_613, %c2_614, %c0_615] : memref<4x4x128xf32, #tpu.memory_space<vmem>>, vector<2x2x128xf32>
    %1051 = vector.extract_strided_slice %1025 {offsets = [2, 0], sizes = [1, 128], strides = [1, 1]} : vector<9x128xf32> to vector<1x128xf32>
    %1052 = vector.shape_cast %1051 : vector<1x128xf32> to vector<128xf32>
    %1053 = vector.shape_cast %1052 : vector<128xf32> to vector<1x1x128xf32>
    %1054 = vector.broadcast %1053 : vector<1x1x128xf32> to vector<2x2x128xf32>
    %1055 = arith.mulf %1050, %1054 : vector<2x2x128xf32>
    %1056 = arith.addf %1049, %1055 : vector<2x2x128xf32>
    %c1_616 = arith.constant 1 : index
    %c0_617 = arith.constant 0 : index
    %c0_618 = arith.constant 0 : index
    %1057 = vector.load %arg57[%c1_616, %c0_617, %c0_618] : memref<4x4x128xf32, #tpu.memory_space<vmem>>, vector<2x2x128xf32>
    %1058 = vector.extract_strided_slice %1025 {offsets = [3, 0], sizes = [1, 128], strides = [1, 1]} : vector<9x128xf32> to vector<1x128xf32>
    %1059 = vector.shape_cast %1058 : vector<1x128xf32> to vector<128xf32>
    %1060 = vector.shape_cast %1059 : vector<128xf32> to vector<1x1x128xf32>
    %1061 = vector.broadcast %1060 : vector<1x1x128xf32> to vector<2x2x128xf32>
    %1062 = arith.mulf %1057, %1061 : vector<2x2x128xf32>
    %1063 = arith.addf %1056, %1062 : vector<2x2x128xf32>
    %c1_619 = arith.constant 1 : index
    %c1_620 = arith.constant 1 : index
    %c0_621 = arith.constant 0 : index
    %1064 = vector.load %arg57[%c1_619, %c1_620, %c0_621] : memref<4x4x128xf32, #tpu.memory_space<vmem>>, vector<2x2x128xf32>
    %1065 = vector.extract_strided_slice %1025 {offsets = [4, 0], sizes = [1, 128], strides = [1, 1]} : vector<9x128xf32> to vector<1x128xf32>
    %1066 = vector.shape_cast %1065 : vector<1x128xf32> to vector<128xf32>
    %1067 = vector.shape_cast %1066 : vector<128xf32> to vector<1x1x128xf32>
    %1068 = vector.broadcast %1067 : vector<1x1x128xf32> to vector<2x2x128xf32>
    %1069 = arith.mulf %1064, %1068 : vector<2x2x128xf32>
    %1070 = arith.addf %1063, %1069 : vector<2x2x128xf32>
    %c1_622 = arith.constant 1 : index
    %c2_623 = arith.constant 2 : index
    %c0_624 = arith.constant 0 : index
    %1071 = vector.load %arg57[%c1_622, %c2_623, %c0_624] : memref<4x4x128xf32, #tpu.memory_space<vmem>>, vector<2x2x128xf32>
    %1072 = vector.extract_strided_slice %1025 {offsets = [5, 0], sizes = [1, 128], strides = [1, 1]} : vector<9x128xf32> to vector<1x128xf32>
    %1073 = vector.shape_cast %1072 : vector<1x128xf32> to vector<128xf32>
    %1074 = vector.shape_cast %1073 : vector<128xf32> to vector<1x1x128xf32>
    %1075 = vector.broadcast %1074 : vector<1x1x128xf32> to vector<2x2x128xf32>
    %1076 = arith.mulf %1071, %1075 : vector<2x2x128xf32>
    %1077 = arith.addf %1070, %1076 : vector<2x2x128xf32>
    %c2_625 = arith.constant 2 : index
    %c0_626 = arith.constant 0 : index
    %c0_627 = arith.constant 0 : index
    %1078 = vector.load %arg57[%c2_625, %c0_626, %c0_627] : memref<4x4x128xf32, #tpu.memory_space<vmem>>, vector<2x2x128xf32>
    %1079 = vector.extract_strided_slice %1025 {offsets = [6, 0], sizes = [1, 128], strides = [1, 1]} : vector<9x128xf32> to vector<1x128xf32>
    %1080 = vector.shape_cast %1079 : vector<1x128xf32> to vector<128xf32>
    %1081 = vector.shape_cast %1080 : vector<128xf32> to vector<1x1x128xf32>
    %1082 = vector.broadcast %1081 : vector<1x1x128xf32> to vector<2x2x128xf32>
    %1083 = arith.mulf %1078, %1082 : vector<2x2x128xf32>
    %1084 = arith.addf %1077, %1083 : vector<2x2x128xf32>
    %c2_628 = arith.constant 2 : index
    %c1_629 = arith.constant 1 : index
    %c0_630 = arith.constant 0 : index
    %1085 = vector.load %arg57[%c2_628, %c1_629, %c0_630] : memref<4x4x128xf32, #tpu.memory_space<vmem>>, vector<2x2x128xf32>
    %1086 = vector.extract_strided_slice %1025 {offsets = [7, 0], sizes = [1, 128], strides = [1, 1]} : vector<9x128xf32> to vector<1x128xf32>
    %1087 = vector.shape_cast %1086 : vector<1x128xf32> to vector<128xf32>
    %1088 = vector.shape_cast %1087 : vector<128xf32> to vector<1x1x128xf32>
    %1089 = vector.broadcast %1088 : vector<1x1x128xf32> to vector<2x2x128xf32>
    %1090 = arith.mulf %1085, %1089 : vector<2x2x128xf32>
    %1091 = arith.addf %1084, %1090 : vector<2x2x128xf32>
    %c2_631 = arith.constant 2 : index
    %c2_632 = arith.constant 2 : index
    %c0_633 = arith.constant 0 : index
    %1092 = vector.load %arg57[%c2_631, %c2_632, %c0_633] : memref<4x4x128xf32, #tpu.memory_space<vmem>>, vector<2x2x128xf32>
    %1093 = vector.extract_strided_slice %1025 {offsets = [8, 0], sizes = [1, 128], strides = [1, 1]} : vector<9x128xf32> to vector<1x128xf32>
    %1094 = vector.shape_cast %1093 : vector<1x128xf32> to vector<128xf32>
    %1095 = vector.shape_cast %1094 : vector<128xf32> to vector<1x1x128xf32>
    %1096 = vector.broadcast %1095 : vector<1x1x128xf32> to vector<2x2x128xf32>
    %1097 = arith.mulf %1092, %1096 : vector<2x2x128xf32>
    %1098 = arith.addf %1091, %1097 : vector<2x2x128xf32>
    %1099 = vector.shape_cast %1098 : vector<2x2x128xf32> to vector<1x2x2x128xf32>
    %1100 = vector.extract_strided_slice %1099 {offsets = [0, 0, 0, 0], sizes = [1, 1, 2, 128], strides = [1, 1, 1, 1]} : vector<1x2x2x128xf32> to vector<1x1x2x128xf32>
    %1101 = vector.shape_cast %1100 : vector<1x1x2x128xf32> to vector<1x2x128xf32>
    %1102 = vector.shape_cast %1101 : vector<1x2x128xf32> to vector<1x1x2x128xf32>
    %1103 = vector.extract_strided_slice %1102 {offsets = [0, 0, 0, 0], sizes = [1, 1, 1, 128], strides = [1, 1, 1, 1]} : vector<1x1x2x128xf32> to vector<1x1x1x128xf32>
    %1104 = vector.shape_cast %1103 : vector<1x1x1x128xf32> to vector<1x1x128xf32>
    %1105 = vector.shape_cast %1104 : vector<1x1x128xf32> to vector<1x128xf32>
    %1106 = arith.truncf %1105 : vector<1x128xf32> to vector<1x128xbf16>
    %c0_634 = arith.constant 0 : index
    %c0_635 = arith.constant 0 : index
    %1107 = vector.load %arg38[%c0_634, %c0_635] : memref<128x256xbf16, #tpu.memory_space<vmem>>, vector<128x256xbf16>
    %cst_636 = arith.constant dense<0.000000e+00> : vector<1x256xf32>
    %1108 = tpu.matmul %1106, %1107, %cst_636 {dimension_numbers = #tpu.dot_dimension_numbers<[1], [0], [0], [1], [0, 0, 1, 1], [], []>} : vector<1x128xbf16>, vector<128x256xbf16>, vector<1x256xf32> -> vector<1x256xf32>
    %1109 = vector.shape_cast %1027 : vector<256xf32> to vector<1x256xf32>
    %1110 = arith.addf %1108, %1109 : vector<1x256xf32>
    %cst_637 = arith.constant 0.000000e+00 : f32
    %1111 = vector.broadcast %cst_637 : f32 to vector<1x256xf32>
    %1112 = arith.maximumf %1110, %1111 : vector<1x256xf32>
    %1113 = vector.shape_cast %1112 : vector<1x256xf32> to vector<1x1x256xf32>
    %c0_638 = arith.constant 0 : index
    %c0_639 = arith.constant 0 : index
    %1114 = vector.load %arg40[%c0_638, %c0_639] : memref<9x256xf32, #tpu.memory_space<vmem>>, vector<9x256xf32>
    %c0_640 = arith.constant 0 : index
    %c0_641 = arith.constant 0 : index
    %1115 = vector.load %arg42[%c0_640, %c0_641] : memref<1x256xf32, #tpu.memory_space<vmem>>, vector<1x256xf32>
    %1116 = vector.shape_cast %1115 : vector<1x256xf32> to vector<256xf32>
    %cst_642 = arith.constant 0.000000e+00 : f32
    %1117 = vector.broadcast %cst_642 : f32 to vector<1x3x256xf32>
    %cst_643 = arith.constant 0.000000e+00 : f32
    %1118 = vector.broadcast %cst_643 : f32 to vector<1x1x256xf32>
    %c0_644 = arith.constant 0 : index
    %c0_645 = arith.constant 0 : index
    %c0_646 = arith.constant 0 : index
    %1119 = vector.load %arg58[%c0_644, %c0_645, %c0_646] : memref<3x3x256xf32, #tpu.memory_space<vmem>>, vector<1x3x256xf32>
    tpu.vector_store %arg58[%c0_644, %c0_645, %c0_646], %1117 {strides = array<i32>} : memref<3x3x256xf32, #tpu.memory_space<vmem>>, vector<1x3x256xf32>,
    %c2_647 = arith.constant 2 : index
    %c0_648 = arith.constant 0 : index
    %c0_649 = arith.constant 0 : index
    %1120 = vector.load %arg58[%c2_647, %c0_648, %c0_649] : memref<3x3x256xf32, #tpu.memory_space<vmem>>, vector<1x3x256xf32>
    tpu.vector_store %arg58[%c2_647, %c0_648, %c0_649], %1117 {strides = array<i32>} : memref<3x3x256xf32, #tpu.memory_space<vmem>>, vector<1x3x256xf32>,
    %c1_650 = arith.constant 1 : index
    %c0_651 = arith.constant 0 : index
    %c0_652 = arith.constant 0 : index
    %1121 = vector.load %arg58[%c1_650, %c0_651, %c0_652] : memref<3x3x256xf32, #tpu.memory_space<vmem>>, vector<1x1x256xf32>
    tpu.vector_store %arg58[%c1_650, %c0_651, %c0_652], %1118 {strides = array<i32>} : memref<3x3x256xf32, #tpu.memory_space<vmem>>, vector<1x1x256xf32>,
    %c1_653 = arith.constant 1 : index
    %c2_654 = arith.constant 2 : index
    %c0_655 = arith.constant 0 : index
    %1122 = vector.load %arg58[%c1_653, %c2_654, %c0_655] : memref<3x3x256xf32, #tpu.memory_space<vmem>>, vector<1x1x256xf32>
    tpu.vector_store %arg58[%c1_653, %c2_654, %c0_655], %1118 {strides = array<i32>} : memref<3x3x256xf32, #tpu.memory_space<vmem>>, vector<1x1x256xf32>,
    %c1_656 = arith.constant 1 : index
    %c1_657 = arith.constant 1 : index
    %c0_658 = arith.constant 0 : index
    %1123 = vector.load %arg58[%c1_656, %c1_657, %c0_658] : memref<3x3x256xf32, #tpu.memory_space<vmem>>, vector<1x1x256xf32>
    tpu.vector_store %arg58[%c1_656, %c1_657, %c0_658], %1113 {strides = array<i32>} : memref<3x3x256xf32, #tpu.memory_space<vmem>>, vector<1x1x256xf32>,
    %cst_659 = arith.constant 0.000000e+00 : f32
    %1124 = vector.broadcast %cst_659 : f32 to vector<1x1x256xf32>
    %c0_660 = arith.constant 0 : index
    %c0_661 = arith.constant 0 : index
    %c0_662 = arith.constant 0 : index
    %1125 = vector.load %arg58[%c0_660, %c0_661, %c0_662] : memref<3x3x256xf32, #tpu.memory_space<vmem>>, vector<1x1x256xf32>
    %1126 = vector.extract_strided_slice %1114 {offsets = [0, 0], sizes = [1, 256], strides = [1, 1]} : vector<9x256xf32> to vector<1x256xf32>
    %1127 = vector.shape_cast %1126 : vector<1x256xf32> to vector<256xf32>
    %1128 = vector.shape_cast %1127 : vector<256xf32> to vector<1x1x256xf32>
    %1129 = arith.mulf %1125, %1128 : vector<1x1x256xf32>
    %1130 = arith.addf %1124, %1129 : vector<1x1x256xf32>
    %c0_663 = arith.constant 0 : index
    %c1_664 = arith.constant 1 : index
    %c0_665 = arith.constant 0 : index
    %1131 = vector.load %arg58[%c0_663, %c1_664, %c0_665] : memref<3x3x256xf32, #tpu.memory_space<vmem>>, vector<1x1x256xf32>
    %1132 = vector.extract_strided_slice %1114 {offsets = [1, 0], sizes = [1, 256], strides = [1, 1]} : vector<9x256xf32> to vector<1x256xf32>
    %1133 = vector.shape_cast %1132 : vector<1x256xf32> to vector<256xf32>
    %1134 = vector.shape_cast %1133 : vector<256xf32> to vector<1x1x256xf32>
    %1135 = arith.mulf %1131, %1134 : vector<1x1x256xf32>
    %1136 = arith.addf %1130, %1135 : vector<1x1x256xf32>
    %c0_666 = arith.constant 0 : index
    %c2_667 = arith.constant 2 : index
    %c0_668 = arith.constant 0 : index
    %1137 = vector.load %arg58[%c0_666, %c2_667, %c0_668] : memref<3x3x256xf32, #tpu.memory_space<vmem>>, vector<1x1x256xf32>
    %1138 = vector.extract_strided_slice %1114 {offsets = [2, 0], sizes = [1, 256], strides = [1, 1]} : vector<9x256xf32> to vector<1x256xf32>
    %1139 = vector.shape_cast %1138 : vector<1x256xf32> to vector<256xf32>
    %1140 = vector.shape_cast %1139 : vector<256xf32> to vector<1x1x256xf32>
    %1141 = arith.mulf %1137, %1140 : vector<1x1x256xf32>
    %1142 = arith.addf %1136, %1141 : vector<1x1x256xf32>
    %c1_669 = arith.constant 1 : index
    %c0_670 = arith.constant 0 : index
    %c0_671 = arith.constant 0 : index
    %1143 = vector.load %arg58[%c1_669, %c0_670, %c0_671] : memref<3x3x256xf32, #tpu.memory_space<vmem>>, vector<1x1x256xf32>
    %1144 = vector.extract_strided_slice %1114 {offsets = [3, 0], sizes = [1, 256], strides = [1, 1]} : vector<9x256xf32> to vector<1x256xf32>
    %1145 = vector.shape_cast %1144 : vector<1x256xf32> to vector<256xf32>
    %1146 = vector.shape_cast %1145 : vector<256xf32> to vector<1x1x256xf32>
    %1147 = arith.mulf %1143, %1146 : vector<1x1x256xf32>
    %1148 = arith.addf %1142, %1147 : vector<1x1x256xf32>
    %c1_672 = arith.constant 1 : index
    %c1_673 = arith.constant 1 : index
    %c0_674 = arith.constant 0 : index
    %1149 = vector.load %arg58[%c1_672, %c1_673, %c0_674] : memref<3x3x256xf32, #tpu.memory_space<vmem>>, vector<1x1x256xf32>
    %1150 = vector.extract_strided_slice %1114 {offsets = [4, 0], sizes = [1, 256], strides = [1, 1]} : vector<9x256xf32> to vector<1x256xf32>
    %1151 = vector.shape_cast %1150 : vector<1x256xf32> to vector<256xf32>
    %1152 = vector.shape_cast %1151 : vector<256xf32> to vector<1x1x256xf32>
    %1153 = arith.mulf %1149, %1152 : vector<1x1x256xf32>
    %1154 = arith.addf %1148, %1153 : vector<1x1x256xf32>
    %c1_675 = arith.constant 1 : index
    %c2_676 = arith.constant 2 : index
    %c0_677 = arith.constant 0 : index
    %1155 = vector.load %arg58[%c1_675, %c2_676, %c0_677] : memref<3x3x256xf32, #tpu.memory_space<vmem>>, vector<1x1x256xf32>
    %1156 = vector.extract_strided_slice %1114 {offsets = [5, 0], sizes = [1, 256], strides = [1, 1]} : vector<9x256xf32> to vector<1x256xf32>
    %1157 = vector.shape_cast %1156 : vector<1x256xf32> to vector<256xf32>
    %1158 = vector.shape_cast %1157 : vector<256xf32> to vector<1x1x256xf32>
    %1159 = arith.mulf %1155, %1158 : vector<1x1x256xf32>
    %1160 = arith.addf %1154, %1159 : vector<1x1x256xf32>
    %c2_678 = arith.constant 2 : index
    %c0_679 = arith.constant 0 : index
    %c0_680 = arith.constant 0 : index
    %1161 = vector.load %arg58[%c2_678, %c0_679, %c0_680] : memref<3x3x256xf32, #tpu.memory_space<vmem>>, vector<1x1x256xf32>
    %1162 = vector.extract_strided_slice %1114 {offsets = [6, 0], sizes = [1, 256], strides = [1, 1]} : vector<9x256xf32> to vector<1x256xf32>
    %1163 = vector.shape_cast %1162 : vector<1x256xf32> to vector<256xf32>
    %1164 = vector.shape_cast %1163 : vector<256xf32> to vector<1x1x256xf32>
    %1165 = arith.mulf %1161, %1164 : vector<1x1x256xf32>
    %1166 = arith.addf %1160, %1165 : vector<1x1x256xf32>
    %c2_681 = arith.constant 2 : index
    %c1_682 = arith.constant 1 : index
    %c0_683 = arith.constant 0 : index
    %1167 = vector.load %arg58[%c2_681, %c1_682, %c0_683] : memref<3x3x256xf32, #tpu.memory_space<vmem>>, vector<1x1x256xf32>
    %1168 = vector.extract_strided_slice %1114 {offsets = [7, 0], sizes = [1, 256], strides = [1, 1]} : vector<9x256xf32> to vector<1x256xf32>
    %1169 = vector.shape_cast %1168 : vector<1x256xf32> to vector<256xf32>
    %1170 = vector.shape_cast %1169 : vector<256xf32> to vector<1x1x256xf32>
    %1171 = arith.mulf %1167, %1170 : vector<1x1x256xf32>
    %1172 = arith.addf %1166, %1171 : vector<1x1x256xf32>
    %c2_684 = arith.constant 2 : index
    %c2_685 = arith.constant 2 : index
    %c0_686 = arith.constant 0 : index
    %1173 = vector.load %arg58[%c2_684, %c2_685, %c0_686] : memref<3x3x256xf32, #tpu.memory_space<vmem>>, vector<1x1x256xf32>
    %1174 = vector.extract_strided_slice %1114 {offsets = [8, 0], sizes = [1, 256], strides = [1, 1]} : vector<9x256xf32> to vector<1x256xf32>
    %1175 = vector.shape_cast %1174 : vector<1x256xf32> to vector<256xf32>
    %1176 = vector.shape_cast %1175 : vector<256xf32> to vector<1x1x256xf32>
    %1177 = arith.mulf %1173, %1176 : vector<1x1x256xf32>
    %1178 = arith.addf %1172, %1177 : vector<1x1x256xf32>
    %1179 = vector.shape_cast %1178 : vector<1x1x256xf32> to vector<1x256xf32>
    %1180 = arith.truncf %1179 : vector<1x256xf32> to vector<1x256xbf16>
    %c0_687 = arith.constant 0 : index
    %c0_688 = arith.constant 0 : index
    %1181 = vector.load %arg41[%c0_687, %c0_688] : memref<256x256xbf16, #tpu.memory_space<vmem>>, vector<256x256xbf16>
    %cst_689 = arith.constant dense<0.000000e+00> : vector<1x256xf32>
    %1182 = tpu.matmul %1180, %1181, %cst_689 {dimension_numbers = #tpu.dot_dimension_numbers<[1], [0], [0], [1], [0, 0, 1, 1], [], []>} : vector<1x256xbf16>, vector<256x256xbf16>, vector<1x256xf32> -> vector<1x256xf32>
    %1183 = vector.shape_cast %1116 : vector<256xf32> to vector<1x256xf32>
    %1184 = arith.addf %1182, %1183 : vector<1x256xf32>
    %cst_690 = arith.constant 0.000000e+00 : f32
    %1185 = vector.broadcast %cst_690 : f32 to vector<1x256xf32>
    %1186 = arith.maximumf %1184, %1185 : vector<1x256xf32>
    %1187 = vector.shape_cast %1186 : vector<1x256xf32> to vector<1x1x256xf32>
    %1188 = vector.shape_cast %1187 : vector<1x1x256xf32> to vector<1x256xf32>
    %cst_691 = arith.constant dense<0.000000e+00> : vector<256xf32>
    %1189 = vector.multi_reduction <add>, %1188, %cst_691 [0] : vector<1x256xf32> to vector<256xf32>
    %1190 = vector.shape_cast %1189 : vector<256xf32> to vector<1x256xf32>
    %cst_692 = arith.constant 1.000000e+00 : f32
    %1191 = vector.broadcast %cst_692 : f32 to vector<1x256xf32>
    %1192 = arith.divf %1190, %1191 : vector<1x256xf32>
    %1193 = arith.truncf %1192 : vector<1x256xf32> to vector<1x256xbf16>
    %c0_693 = arith.constant 0 : index
    %c0_694 = arith.constant 0 : index
    %1194 = vector.load %arg43[%c0_693, %c0_694] : memref<256x10xbf16, #tpu.memory_space<vmem>>, vector<256x10xbf16>
    %cst_695 = arith.constant dense<0.000000e+00> : vector<1x10xf32>
    %1195 = tpu.matmul %1193, %1194, %cst_695 {dimension_numbers = #tpu.dot_dimension_numbers<[1], [0], [0], [1], [0, 0, 1, 1], [], []>} : vector<1x256xbf16>, vector<256x10xbf16>, vector<1x10xf32> -> vector<1x10xf32>
    %c0_696 = arith.constant 0 : index
    %c0_697 = arith.constant 0 : index
    %1196 = vector.load %arg44[%c0_696, %c0_697] : memref<1x10xf32, #tpu.memory_space<vmem>>, vector<1x10xf32>
    %1197 = arith.addf %1195, %1196 : vector<1x10xf32>
    %1198 = vector.shape_cast %1197 : vector<1x10xf32> to vector<1x1x10xf32>
    %c0_698 = arith.constant 0 : index
    %c0_699 = arith.constant 0 : index
    %c0_700 = arith.constant 0 : index
    %1199 = vector.load %arg45[%c0_698, %c0_699, %c0_700] : memref<1x1x10xf32, #tpu.memory_space<vmem>>, vector<1x1x10xf32>
    tpu.vector_store %arg45[%c0_698, %c0_699, %c0_700], %1198 {strides = array<i32>} : memref<1x1x10xf32, #tpu.memory_space<vmem>>, vector<1x1x10xf32>,
    return
  }
  func.func @transform_0(%arg0: i32) -> (i32, i32, i32, i32) {
    %c0_i32 = arith.constant 0 : i32
    %c0_i32_0 = arith.constant 0 : i32
    %c0_i32_1 = arith.constant 0 : i32
    %c0_i32_2 = arith.constant 0 : i32
    return %arg0, %c0_i32, %c0_i32_0, %c0_i32_1 : i32, i32, i32, i32
  }
  func.func @transform_1(%arg0: i32) -> (i32, i32) {
    %c0_i32 = arith.constant 0 : i32
    %c0_i32_0 = arith.constant 0 : i32
    %c0_i32_1 = arith.constant 0 : i32
    return %c0_i32, %c0_i32_0 : i32, i32
  }
  func.func @transform_2(%arg0: i32) -> (i32, i32) {
    %c0_i32 = arith.constant 0 : i32
    %c0_i32_0 = arith.constant 0 : i32
    %c0_i32_1 = arith.constant 0 : i32
    return %c0_i32, %c0_i32_0 : i32, i32
  }
  func.func @transform_3(%arg0: i32) -> (i32, i32) {
    %c0_i32 = arith.constant 0 : i32
    %c0_i32_0 = arith.constant 0 : i32
    %c0_i32_1 = arith.constant 0 : i32
    return %c0_i32, %c0_i32_0 : i32, i32
  }
  func.func @transform_4(%arg0: i32) -> (i32, i32) {
    %c0_i32 = arith.constant 0 : i32
    %c0_i32_0 = arith.constant 0 : i32
    %c0_i32_1 = arith.constant 0 : i32
    return %c0_i32, %c0_i32_0 : i32, i32
  }
  func.func @transform_5(%arg0: i32) -> (i32, i32) {
    %c0_i32 = arith.constant 0 : i32
    %c0_i32_0 = arith.constant 0 : i32
    %c0_i32_1 = arith.constant 0 : i32
    return %c0_i32, %c0_i32_0 : i32, i32
  }
  func.func @transform_6(%arg0: i32) -> (i32, i32) {
    %c0_i32 = arith.constant 0 : i32
    %c0_i32_0 = arith.constant 0 : i32
    %c0_i32_1 = arith.constant 0 : i32
    return %c0_i32, %c0_i32_0 : i32, i32
  }
  func.func @transform_7(%arg0: i32) -> (i32, i32) {
    %c0_i32 = arith.constant 0 : i32
    %c0_i32_0 = arith.constant 0 : i32
    %c0_i32_1 = arith.constant 0 : i32
    return %c0_i32, %c0_i32_0 : i32, i32
  }
  func.func @transform_8(%arg0: i32) -> (i32, i32) {
    %c0_i32 = arith.constant 0 : i32
    %c0_i32_0 = arith.constant 0 : i32
    %c0_i32_1 = arith.constant 0 : i32
    return %c0_i32, %c0_i32_0 : i32, i32
  }
  func.func @transform_9(%arg0: i32) -> (i32, i32) {
    %c0_i32 = arith.constant 0 : i32
    %c0_i32_0 = arith.constant 0 : i32
    %c0_i32_1 = arith.constant 0 : i32
    return %c0_i32, %c0_i32_0 : i32, i32
  }
  func.func @transform_10(%arg0: i32) -> (i32, i32) {
    %c0_i32 = arith.constant 0 : i32
    %c0_i32_0 = arith.constant 0 : i32
    %c0_i32_1 = arith.constant 0 : i32
    return %c0_i32, %c0_i32_0 : i32, i32
  }
  func.func @transform_11(%arg0: i32) -> (i32, i32) {
    %c0_i32 = arith.constant 0 : i32
    %c0_i32_0 = arith.constant 0 : i32
    %c0_i32_1 = arith.constant 0 : i32
    return %c0_i32, %c0_i32_0 : i32, i32
  }
  func.func @transform_12(%arg0: i32) -> (i32, i32) {
    %c0_i32 = arith.constant 0 : i32
    %c0_i32_0 = arith.constant 0 : i32
    %c0_i32_1 = arith.constant 0 : i32
    return %c0_i32, %c0_i32_0 : i32, i32
  }
  func.func @transform_13(%arg0: i32) -> (i32, i32) {
    %c0_i32 = arith.constant 0 : i32
    %c0_i32_0 = arith.constant 0 : i32
    %c0_i32_1 = arith.constant 0 : i32
    return %c0_i32, %c0_i32_0 : i32, i32
  }
  func.func @transform_14(%arg0: i32) -> (i32, i32) {
    %c0_i32 = arith.constant 0 : i32
    %c0_i32_0 = arith.constant 0 : i32
    %c0_i32_1 = arith.constant 0 : i32
    return %c0_i32, %c0_i32_0 : i32, i32
  }
  func.func @transform_15(%arg0: i32) -> (i32, i32) {
    %c0_i32 = arith.constant 0 : i32
    %c0_i32_0 = arith.constant 0 : i32
    %c0_i32_1 = arith.constant 0 : i32
    return %c0_i32, %c0_i32_0 : i32, i32
  }
  func.func @transform_16(%arg0: i32) -> (i32, i32) {
    %c0_i32 = arith.constant 0 : i32
    %c0_i32_0 = arith.constant 0 : i32
    %c0_i32_1 = arith.constant 0 : i32
    return %c0_i32, %c0_i32_0 : i32, i32
  }
  func.func @transform_17(%arg0: i32) -> (i32, i32) {
    %c0_i32 = arith.constant 0 : i32
    %c0_i32_0 = arith.constant 0 : i32
    %c0_i32_1 = arith.constant 0 : i32
    return %c0_i32, %c0_i32_0 : i32, i32
  }
  func.func @transform_18(%arg0: i32) -> (i32, i32) {
    %c0_i32 = arith.constant 0 : i32
    %c0_i32_0 = arith.constant 0 : i32
    %c0_i32_1 = arith.constant 0 : i32
    return %c0_i32, %c0_i32_0 : i32, i32
  }
  func.func @transform_19(%arg0: i32) -> (i32, i32) {
    %c0_i32 = arith.constant 0 : i32
    %c0_i32_0 = arith.constant 0 : i32
    %c0_i32_1 = arith.constant 0 : i32
    return %c0_i32, %c0_i32_0 : i32, i32
  }
  func.func @transform_20(%arg0: i32) -> (i32, i32) {
    %c0_i32 = arith.constant 0 : i32
    %c0_i32_0 = arith.constant 0 : i32
    %c0_i32_1 = arith.constant 0 : i32
    return %c0_i32, %c0_i32_0 : i32, i32
  }
  func.func @transform_21(%arg0: i32) -> (i32, i32) {
    %c0_i32 = arith.constant 0 : i32
    %c0_i32_0 = arith.constant 0 : i32
    %c0_i32_1 = arith.constant 0 : i32
    return %c0_i32, %c0_i32_0 : i32, i32
  }
  func.func @transform_22(%arg0: i32) -> (i32, i32) {
    %c0_i32 = arith.constant 0 : i32
    %c0_i32_0 = arith.constant 0 : i32
    %c0_i32_1 = arith.constant 0 : i32
    return %c0_i32, %c0_i32_0 : i32, i32
  }
  func.func @transform_23(%arg0: i32) -> (i32, i32) {
    %c0_i32 = arith.constant 0 : i32
    %c0_i32_0 = arith.constant 0 : i32
    %c0_i32_1 = arith.constant 0 : i32
    return %c0_i32, %c0_i32_0 : i32, i32
  }
  func.func @transform_24(%arg0: i32) -> (i32, i32) {
    %c0_i32 = arith.constant 0 : i32
    %c0_i32_0 = arith.constant 0 : i32
    %c0_i32_1 = arith.constant 0 : i32
    return %c0_i32, %c0_i32_0 : i32, i32
  }
  func.func @transform_25(%arg0: i32) -> (i32, i32) {
    %c0_i32 = arith.constant 0 : i32
    %c0_i32_0 = arith.constant 0 : i32
    %c0_i32_1 = arith.constant 0 : i32
    return %c0_i32, %c0_i32_0 : i32, i32
  }
  func.func @transform_26(%arg0: i32) -> (i32, i32) {
    %c0_i32 = arith.constant 0 : i32
    %c0_i32_0 = arith.constant 0 : i32
    %c0_i32_1 = arith.constant 0 : i32
    return %c0_i32, %c0_i32_0 : i32, i32
  }
  func.func @transform_27(%arg0: i32) -> (i32, i32) {
    %c0_i32 = arith.constant 0 : i32
    %c0_i32_0 = arith.constant 0 : i32
    %c0_i32_1 = arith.constant 0 : i32
    return %c0_i32, %c0_i32_0 : i32, i32
  }
  func.func @transform_28(%arg0: i32) -> (i32, i32) {
    %c0_i32 = arith.constant 0 : i32
    %c0_i32_0 = arith.constant 0 : i32
    %c0_i32_1 = arith.constant 0 : i32
    return %c0_i32, %c0_i32_0 : i32, i32
  }
  func.func @transform_29(%arg0: i32) -> (i32, i32) {
    %c0_i32 = arith.constant 0 : i32
    %c0_i32_0 = arith.constant 0 : i32
    %c0_i32_1 = arith.constant 0 : i32
    return %c0_i32, %c0_i32_0 : i32, i32
  }
  func.func @transform_30(%arg0: i32) -> (i32, i32) {
    %c0_i32 = arith.constant 0 : i32
    %c0_i32_0 = arith.constant 0 : i32
    %c0_i32_1 = arith.constant 0 : i32
    return %c0_i32, %c0_i32_0 : i32, i32
  }
  func.func @transform_31(%arg0: i32) -> (i32, i32) {
    %c0_i32 = arith.constant 0 : i32
    %c0_i32_0 = arith.constant 0 : i32
    %c0_i32_1 = arith.constant 0 : i32
    return %c0_i32, %c0_i32_0 : i32, i32
  }
  func.func @transform_32(%arg0: i32) -> (i32, i32) {
    %c0_i32 = arith.constant 0 : i32
    %c0_i32_0 = arith.constant 0 : i32
    %c0_i32_1 = arith.constant 0 : i32
    return %c0_i32, %c0_i32_0 : i32, i32
  }
  func.func @transform_33(%arg0: i32) -> (i32, i32) {
    %c0_i32 = arith.constant 0 : i32
    %c0_i32_0 = arith.constant 0 : i32
    %c0_i32_1 = arith.constant 0 : i32
    return %c0_i32, %c0_i32_0 : i32, i32
  }
  func.func @transform_34(%arg0: i32) -> (i32, i32) {
    %c0_i32 = arith.constant 0 : i32
    %c0_i32_0 = arith.constant 0 : i32
    %c0_i32_1 = arith.constant 0 : i32
    return %c0_i32, %c0_i32_0 : i32, i32
  }
  func.func @transform_35(%arg0: i32) -> (i32, i32) {
    %c0_i32 = arith.constant 0 : i32
    %c0_i32_0 = arith.constant 0 : i32
    %c0_i32_1 = arith.constant 0 : i32
    return %c0_i32, %c0_i32_0 : i32, i32
  }
  func.func @transform_36(%arg0: i32) -> (i32, i32) {
    %c0_i32 = arith.constant 0 : i32
    %c0_i32_0 = arith.constant 0 : i32
    %c0_i32_1 = arith.constant 0 : i32
    return %c0_i32, %c0_i32_0 : i32, i32
  }
  func.func @transform_37(%arg0: i32) -> (i32, i32) {
    %c0_i32 = arith.constant 0 : i32
    %c0_i32_0 = arith.constant 0 : i32
    %c0_i32_1 = arith.constant 0 : i32
    return %c0_i32, %c0_i32_0 : i32, i32
  }
  func.func @transform_38(%arg0: i32) -> (i32, i32) {
    %c0_i32 = arith.constant 0 : i32
    %c0_i32_0 = arith.constant 0 : i32
    %c0_i32_1 = arith.constant 0 : i32
    return %c0_i32, %c0_i32_0 : i32, i32
  }
  func.func @transform_39(%arg0: i32) -> (i32, i32) {
    %c0_i32 = arith.constant 0 : i32
    %c0_i32_0 = arith.constant 0 : i32
    %c0_i32_1 = arith.constant 0 : i32
    return %c0_i32, %c0_i32_0 : i32, i32
  }
  func.func @transform_40(%arg0: i32) -> (i32, i32) {
    %c0_i32 = arith.constant 0 : i32
    %c0_i32_0 = arith.constant 0 : i32
    %c0_i32_1 = arith.constant 0 : i32
    return %c0_i32, %c0_i32_0 : i32, i32
  }
  func.func @transform_41(%arg0: i32) -> (i32, i32) {
    %c0_i32 = arith.constant 0 : i32
    %c0_i32_0 = arith.constant 0 : i32
    %c0_i32_1 = arith.constant 0 : i32
    return %c0_i32, %c0_i32_0 : i32, i32
  }
  func.func @transform_42(%arg0: i32) -> (i32, i32) {
    %c0_i32 = arith.constant 0 : i32
    %c0_i32_0 = arith.constant 0 : i32
    %c0_i32_1 = arith.constant 0 : i32
    return %c0_i32, %c0_i32_0 : i32, i32
  }
  func.func @transform_43(%arg0: i32) -> (i32, i32) {
    %c0_i32 = arith.constant 0 : i32
    %c0_i32_0 = arith.constant 0 : i32
    %c0_i32_1 = arith.constant 0 : i32
    return %c0_i32, %c0_i32_0 : i32, i32
  }
  func.func @transform_44(%arg0: i32) -> (i32, i32, i32) {
    %c0_i32 = arith.constant 0 : i32
    %c0_i32_0 = arith.constant 0 : i32
    %c0_i32_1 = arith.constant 0 : i32
    return %arg0, %c0_i32, %c0_i32_0 : i32, i32, i32
  }
}

</mosaic_0001>

<llo_original>
// kernel: tpu_custom_call.1
$region0: #{tpu_custom_call.1}
  #allocation0 [shape = 'u32[]', space=smem, size = 0x4, offset = 0x4, fixed_abs, tag = 'smem constant byte address 0x4 - core index']
  #allocation1 [shape = 'u32[72,128]{1,0:T(1,128)}', space=vmem, size = 0x9000, scoped, tag = 'internal scratch']
  #allocation2 [shape = 'f32[18,18,8]{2,1,0:T(8,128)}', space=vmem, size = 0x36000, scoped, tag = 'scratch operand']
  #allocation3 [shape = 'f32[18,18,16]{2,1,0:T(8,128)}', space=vmem, size = 0x36000, scoped, tag = 'scratch operand']
  #allocation4 [shape = 'f32[10,10,32]{2,1,0:T(8,128)}', space=vmem, size = 0x14000, scoped, tag = 'scratch operand']
  #allocation5 [shape = 'f32[10,10,32]{2,1,0:T(8,128)}', space=vmem, size = 0x14000, scoped, tag = 'scratch operand']
  #allocation6 [shape = 'f32[6,6,64]{2,1,0:T(8,128)}', space=vmem, size = 0x6000, scoped, tag = 'scratch operand']
  #allocation7 [shape = 'f32[6,6,64]{2,1,0:T(8,128)}', space=vmem, size = 0x6000, scoped, tag = 'scratch operand']
  #allocation8 [shape = 'f32[4,4,128]{2,1,0:T(4,128)}', space=vmem, size = 0x2000, scoped, tag = 'scratch operand']
  #allocation9 [shape = 'f32[4,4,128]{2,1,0:T(4,128)}', space=vmem, size = 0x2000, scoped, tag = 'scratch operand']
  #allocation10 [shape = 'f32[4,4,128]{2,1,0:T(4,128)}', space=vmem, size = 0x2000, scoped, tag = 'scratch operand']
  #allocation11 [shape = 'f32[4,4,128]{2,1,0:T(4,128)}', space=vmem, size = 0x2000, scoped, tag = 'scratch operand']
  #allocation12 [shape = 'f32[4,4,128]{2,1,0:T(4,128)}', space=vmem, size = 0x2000, scoped, tag = 'scratch operand']
  #allocation13 [shape = 'f32[4,4,128]{2,1,0:T(4,128)}', space=vmem, size = 0x2000, scoped, tag = 'scratch operand']
  #allocation14 [shape = 'f32[3,3,256]{2,1,0:T(4,128)}', space=vmem, size = 0x3000, scoped, tag = 'scratch operand']
  %s0 = inlined_call_operand.smem [shape: u32[45], index: -1, kind: input, shape index: {}]
  %s1 = sld [smem:[%s0]]
  %s2 = scalar_lea.smem %s0, 1
  %s3 = sld [smem:[%s2]]
  %s4 = scalar_lea.smem %s0, 2
  %s5 = sld [smem:[%s4]]
  %s6 = scalar_lea.smem %s0, 3
  %s7 = sld [smem:[%s6]]
  %s8 = scalar_lea.smem %s0, 4
  %s9 = sld [smem:[%s8]]
  %s10 = scalar_lea.smem %s0, 5
  %s11 = sld [smem:[%s10]]
  %s12 = scalar_lea.smem %s0, 6
  %s13 = sld [smem:[%s12]]
  %s14 = scalar_lea.smem %s0, 7
  %s15 = sld [smem:[%s14]]
  %s16 = scalar_lea.smem %s0, 8
  %s17 = sld [smem:[%s16]]
  %s18 = scalar_lea.smem %s0, 9
  %s19 = sld [smem:[%s18]]
  %s20 = scalar_lea.smem %s0, 10
  %s21 = sld [smem:[%s20]]
  %s22 = scalar_lea.smem %s0, 11
  %s23 = sld [smem:[%s22]]
  %s24 = scalar_lea.smem %s0, 12
  %s25 = sld [smem:[%s24]]
  %s26 = scalar_lea.smem %s0, 13
  %s27 = sld [smem:[%s26]]
  %s28 = scalar_lea.smem %s0, 14
  %s29 = sld [smem:[%s28]]
  %s30 = scalar_lea.smem %s0, 15
  %s31 = sld [smem:[%s30]]
  %s32 = scalar_lea.smem %s0, 16
  %s33 = sld [smem:[%s32]]
  %s34 = scalar_lea.smem %s0, 17
  %s35 = sld [smem:[%s34]]
  %s36 = scalar_lea.smem %s0, 18
  %s37 = sld [smem:[%s36]]
  %s38 = scalar_lea.smem %s0, 19
  %s39 = sld [smem:[%s38]]
  %s40 = scalar_lea.smem %s0, 20
  %s41 = sld [smem:[%s40]]
  %s42 = scalar_lea.smem %s0, 21
  %s43 = sld [smem:[%s42]]
  %s44 = scalar_lea.smem %s0, 22
  %s45 = sld [smem:[%s44]]
  %s46 = scalar_lea.smem %s0, 23
  %s47 = sld [smem:[%s46]]
  %s48 = scalar_lea.smem %s0, 24
  %s49 = sld [smem:[%s48]]
  %s50 = scalar_lea.smem %s0, 25
  %s51 = sld [smem:[%s50]]
  %s52 = scalar_lea.smem %s0, 26
  %s53 = sld [smem:[%s52]]
  %s54 = scalar_lea.smem %s0, 27
  %s55 = sld [smem:[%s54]]
  %s56 = scalar_lea.smem %s0, 28
  %s57 = sld [smem:[%s56]]
  %s58 = scalar_lea.smem %s0, 29
  %s59 = sld [smem:[%s58]]
  %s60 = scalar_lea.smem %s0, 30
  %s61 = sld [smem:[%s60]]
  %s62 = scalar_lea.smem %s0, 31
  %s63 = sld [smem:[%s62]]
  %s64 = scalar_lea.smem %s0, 32
  %s65 = sld [smem:[%s64]]
  %s66 = scalar_lea.smem %s0, 33
  %s67 = sld [smem:[%s66]]
  %s68 = scalar_lea.smem %s0, 34
  %s69 = sld [smem:[%s68]]
  %s70 = scalar_lea.smem %s0, 35
  %s71 = sld [smem:[%s70]]
  %s72 = scalar_lea.smem %s0, 36
  %s73 = sld [smem:[%s72]]
  %s74 = scalar_lea.smem %s0, 37
  %s75 = sld [smem:[%s74]]
  %s76 = scalar_lea.smem %s0, 38
  %s77 = sld [smem:[%s76]]
  %s78 = scalar_lea.smem %s0, 39
  %s79 = sld [smem:[%s78]]
  %s80 = scalar_lea.smem %s0, 40
  %s81 = sld [smem:[%s80]]
  %s82 = scalar_lea.smem %s0, 41
  %s83 = sld [smem:[%s82]]
  %s84 = scalar_lea.smem %s0, 42
  %s85 = sld [smem:[%s84]]
  %s86 = scalar_lea.smem %s0, 43
  %s87 = sld [smem:[%s86]]
  %s88 = scalar_lea.smem %s0, 44
  %s89 = sld [smem:[%s88]]
  %s90 = sld [smem:[#allocation0]]
  $region221: #{tpu_custom_call.1} parent=0
    _
  %s92 = ssub.s32 1, %s90
  %s93 = scalar_select 0, %s92, %s90
  $region1: #{tpu_custom_call.1} parent=0
    #allocation15 [shape = 'u8[512]{0}', space=vmem, size = 0x400, scoped, tag = 'input window, operand 32, single buffered']
    #allocation16 [shape = 's32[2]{0}', space=sflag, size = 0x8, scoped, tag = 'scoped memory for tpu_custom_call.1']
    #allocation17 [shape = 's32[2]{0}', space=sflag, size = 0x8, scoped, tag = 'scoped memory for tpu_custom_call.1']
    #allocation18 [shape = 'u8[512]{0}', space=vmem, size = 0x400, scoped, tag = 'input window, operand 35, single buffered']
    #allocation19 [shape = 's32[1]{0}', space=sflag, size = 0x4, scoped, tag = 'scoped memory for tpu_custom_call.1']
    #allocation20 [shape = 'u8[512]{0}', space=vmem, size = 0x400, scoped, tag = 'input window, operand 43, single buffered']
    #allocation21 [shape = 'u8[1024]{0}', space=vmem, size = 0x400, scoped, tag = 'output window, operand 0']
    %94 = vsyncpa [#allocation16], 0
    %95 = vsyncpa [#allocation19], 0
    %96 = vsyncpa [#allocation17], 0
    %s97 = scalar_lea.sflag [#allocation17], 1
    %98 = vsyncpa %s97, 0
    loop: start=0, step=1, limit=4
    $region2: #{tpu_custom_call.1} parent=1 // loop_pre_header
      _
    $region3: #{tpu_custom_call.1} parent=1 // loop_header
      %s100 = sphi 0, %s104
      %p101 = scmp.ge.s32.totalorder %s100, 4
      %s110 = sphi 0, %s112
      %s113 = sphi 0, %s110
      %s114 = sphi 0, %s113
      %s130 = sphi 0, %s114
      %s134 = sphi 0, %s134
      %s136 = sphi 0, %s134
      %s137 = sphi 0, %s136
      %s151 = sphi 0, %s137
      %s155 = sphi 0, %s155
      %s157 = sphi 0, %s155
      %s158 = sphi 0, %s157
      %s172 = sphi 0, %s158
      %s176 = sphi 0, %s176
      %s178 = sphi 0, %s176
      %s179 = sphi 0, %s178
      %s193 = sphi 0, %s179
      %s197 = sphi 0, %s197
      %s199 = sphi 0, %s197
      %s200 = sphi 0, %s199
      %s214 = sphi 0, %s200
      %s218 = sphi 0, %s218
      %s220 = sphi 0, %s218
      %s221 = sphi 0, %s220
      %s235 = sphi 0, %s221
      %s239 = sphi 0, %s239
      %s241 = sphi 0, %s239
      %s242 = sphi 0, %s241
      %s256 = sphi 0, %s242
      %s260 = sphi 0, %s260
      %s262 = sphi 0, %s260
      %s263 = sphi 0, %s262
      %s277 = sphi 0, %s263
      %s281 = sphi 0, %s281
      %s283 = sphi 0, %s281
      %s284 = sphi 0, %s283
      %s298 = sphi 0, %s284
      %s302 = sphi 0, %s302
      %s304 = sphi 0, %s302
      %s305 = sphi 0, %s304
      %s319 = sphi 0, %s305
      %s323 = sphi 0, %s323
      %s325 = sphi 0, %s323
      %s326 = sphi 0, %s325
      %s340 = sphi 0, %s326
      %s344 = sphi 0, %s344
      %s346 = sphi 0, %s344
      %s347 = sphi 0, %s346
      %s361 = sphi 0, %s347
      %s365 = sphi 0, %s365
      %s367 = sphi 0, %s365
      %s368 = sphi 0, %s367
      %s382 = sphi 0, %s368
      %s386 = sphi 0, %s386
      %s388 = sphi 0, %s386
      %s389 = sphi 0, %s388
      %s403 = sphi 0, %s389
      %s407 = sphi 0, %s407
      %s409 = sphi 0, %s407
      %s410 = sphi 0, %s409
      %s424 = sphi 0, %s410
      %s428 = sphi 0, %s428
      %s430 = sphi 0, %s428
      %s431 = sphi 0, %s430
      %s445 = sphi 0, %s431
      %s449 = sphi 0, %s449
      %s451 = sphi 0, %s449
      %s452 = sphi 0, %s451
      %s466 = sphi 0, %s452
      %s470 = sphi 0, %s470
      %s472 = sphi 0, %s470
      %s473 = sphi 0, %s472
      %s487 = sphi 0, %s473
      %s491 = sphi 0, %s491
      %s493 = sphi 0, %s491
      %s494 = sphi 0, %s493
      %s508 = sphi 0, %s494
      %s512 = sphi 0, %s512
      %s514 = sphi 0, %s512
      %s515 = sphi 0, %s514
      %s529 = sphi 0, %s515
      %s533 = sphi 0, %s533
      %s535 = sphi 0, %s533
      %s536 = sphi 0, %s535
      %s550 = sphi 0, %s536
      %s554 = sphi 0, %s554
      %s556 = sphi 0, %s554
      %s557 = sphi 0, %s556
      %s571 = sphi 0, %s557
      %s575 = sphi 0, %s575
      %s577 = sphi 0, %s575
      %s578 = sphi 0, %s577
      %s592 = sphi 0, %s578
      %s596 = sphi 0, %s596
      %s598 = sphi 0, %s596
      %s599 = sphi 0, %s598
      %s613 = sphi 0, %s599
      %s617 = sphi 0, %s617
      %s619 = sphi 0, %s617
      %s620 = sphi 0, %s619
      %s634 = sphi 0, %s620
      %s638 = sphi 0, %s638
      %s640 = sphi 0, %s638
      %s641 = sphi 0, %s640
      %s655 = sphi 0, %s641
      %s659 = sphi 0, %s659
      %s661 = sphi 0, %s659
      %s662 = sphi 0, %s661
      %s676 = sphi 0, %s662
      %s680 = sphi 0, %s680
      %s682 = sphi 0, %s680
      %s683 = sphi 0, %s682
      %s697 = sphi 0, %s683
      %s701 = sphi 0, %s701
      %s703 = sphi 0, %s701
      %s704 = sphi 0, %s703
      %s718 = sphi 0, %s704
      %s722 = sphi 0, %s722
      %s724 = sphi 0, %s722
      %s725 = sphi 0, %s724
      %s739 = sphi 0, %s725
      %s743 = sphi 0, %s743
      %s745 = sphi 0, %s743
      %s746 = sphi 0, %s745
      %s760 = sphi 0, %s746
      %s764 = sphi 0, %s764
      %s766 = sphi 0, %s764
      %s767 = sphi 0, %s766
      %s781 = sphi 0, %s767
      %s785 = sphi 0, %s785
      %s787 = sphi 0, %s785
      %s788 = sphi 0, %s787
      %s802 = sphi 0, %s788
      %s806 = sphi 0, %s806
      %s808 = sphi 0, %s806
      %s809 = sphi 0, %s808
      %s823 = sphi 0, %s809
      %s827 = sphi 0, %s827
      %s829 = sphi 0, %s827
      %s830 = sphi 0, %s829
      %s844 = sphi 0, %s830
      %s848 = sphi 0, %s848
      %s850 = sphi 0, %s848
      %s851 = sphi 0, %s850
      %s865 = sphi 0, %s851
      %s869 = sphi 0, %s869
      %s871 = sphi 0, %s869
      %s872 = sphi 0, %s871
      %s886 = sphi 0, %s872
      %s890 = sphi 0, %s890
      %s892 = sphi 0, %s890
      %s893 = sphi 0, %s892
      %s907 = sphi 0, %s893
      %s911 = sphi 0, %s911
      %s913 = sphi 0, %s911
      %s914 = sphi 0, %s913
      %s928 = sphi 0, %s914
      %s932 = sphi 0, %s932
      %s934 = sphi 0, %s932
      %s935 = sphi 0, %s934
      %s949 = sphi 0, %s935
      %s953 = sphi 0, %s953
      %s955 = sphi 0, %s953
      %s956 = sphi 0, %s955
      %s970 = sphi 0, %s956
      %s974 = sphi 0, %s974
      %s976 = sphi 0, %s974
      %s977 = sphi 0, %s976
      %s991 = sphi 0, %s977
      %s995 = sphi 0, %s995
      %s997 = sphi 0, %s995
      %s998 = sphi 0, %s997
      %s1012 = sphi 0, %s998
      %s1016 = sphi 0, %s1016
      %s1018 = sphi 0, %s1016
      %s1019 = sphi 0, %s1018
      %s1033 = sphi 0, %s1019
      %s1039 = sphi 0, %s1041
      %s1042 = sphi 0, %s1039
      %s1043 = sphi 0, %s1042
      %s1059 = sphi 0, %s1043
    $region4: #{tpu_custom_call.1} parent=1 // loop_header_branch
      %103 = sbr.rel (%p101) target = $region8
    $region5: #{tpu_custom_call.1} parent=1 // loop_body
      %s105 = ssub.s32 %s100, 1
      %s106 = ssub.s32 %s100, 2
      %s107 = sadd.s32 %s100, 1
      %s108 = ssub.s32 %s100, %s107
      %p109 = scmp.eq.s32.totalorder %s108, 0
      %s111 = sadd.s32 %s110, 1
      %s112 = scalar_select %p109, %s110, %s111
      %p115 = pneg %p109
      %p116 = scmp.eq.s32.totalorder %s100, 1
      %p117 = por %p115, %p116
      %p118 = scmp.ne.s32.totalorder %s110, %s113
      %p119 = scmp.eq.s32.totalorder %s100, 0
      %p120 = por %p118, %p119
      %p121 = scmp.ne.s32.totalorder %s110, %s113
      %p122 = scmp.eq.s32.totalorder %s105, 1
      %p123 = por %p121, %p122
      %p124 = scmp.ne.s32.totalorder %s113, %s114
      %p125 = scmp.eq.s32.totalorder %s105, 0
      %p126 = por %p124, %p125
      %p127 = scmp.ne.s32.totalorder %s113, %s114
      %p128 = scmp.eq.s32.totalorder %s106, 1
      %p129 = por %p127, %p128
      %p131 = scmp.ne.s32.totalorder %s114, %s130
      %p132 = scmp.eq.s32.totalorder %s106, 0
      %p133 = por %p131, %p132
      %s135 = sadd.s32 %s134, 1
      %p138 = scmp.eq.s32.totalorder %s100, 1
      %p139 = scmp.ne.s32.totalorder %s134, %s136
      %p140 = scmp.eq.s32.totalorder %s100, 0
      %p141 = por %p139, %p140
      %p142 = scmp.ne.s32.totalorder %s134, %s136
      %p143 = scmp.eq.s32.totalorder %s105, 1
      %p144 = por %p142, %p143
      %p145 = scmp.ne.s32.totalorder %s136, %s137
      %p146 = scmp.eq.s32.totalorder %s105, 0
      %p147 = por %p145, %p146
      %p148 = scmp.ne.s32.totalorder %s136, %s137
      %p149 = scmp.eq.s32.totalorder %s106, 1
      %p150 = por %p148, %p149
      %p152 = scmp.ne.s32.totalorder %s137, %s151
      %p153 = scmp.eq.s32.totalorder %s106, 0
      %p154 = por %p152, %p153
      %s156 = sadd.s32 %s155, 1
      %p159 = scmp.eq.s32.totalorder %s100, 1
      %p160 = scmp.ne.s32.totalorder %s155, %s157
      %p161 = scmp.eq.s32.totalorder %s100, 0
      %p162 = por %p160, %p161
      %p163 = scmp.ne.s32.totalorder %s155, %s157
      %p164 = scmp.eq.s32.totalorder %s105, 1
      %p165 = por %p163, %p164
      %p166 = scmp.ne.s32.totalorder %s157, %s158
      %p167 = scmp.eq.s32.totalorder %s105, 0
      %p168 = por %p166, %p167
      %p169 = scmp.ne.s32.totalorder %s157, %s158
      %p170 = scmp.eq.s32.totalorder %s106, 1
      %p171 = por %p169, %p170
      %p173 = scmp.ne.s32.totalorder %s158, %s172
      %p174 = scmp.eq.s32.totalorder %s106, 0
      %p175 = por %p173, %p174
      %s177 = sadd.s32 %s176, 1
      %p180 = scmp.eq.s32.totalorder %s100, 1
      %p181 = scmp.ne.s32.totalorder %s176, %s178
      %p182 = scmp.eq.s32.totalorder %s100, 0
      %p183 = por %p181, %p182
      %p184 = scmp.ne.s32.totalorder %s176, %s178
      %p185 = scmp.eq.s32.totalorder %s105, 1
      %p186 = por %p184, %p185
      %p187 = scmp.ne.s32.totalorder %s178, %s179
      %p188 = scmp.eq.s32.totalorder %s105, 0
      %p189 = por %p187, %p188
      %p190 = scmp.ne.s32.totalorder %s178, %s179
      %p191 = scmp.eq.s32.totalorder %s106, 1
      %p192 = por %p190, %p191
      %p194 = scmp.ne.s32.totalorder %s179, %s193
      %p195 = scmp.eq.s32.totalorder %s106, 0
      %p196 = por %p194, %p195
      %s198 = sadd.s32 %s197, 1
      %p201 = scmp.eq.s32.totalorder %s100, 1
      %p202 = scmp.ne.s32.totalorder %s197, %s199
      %p203 = scmp.eq.s32.totalorder %s100, 0
      %p204 = por %p202, %p203
      %p205 = scmp.ne.s32.totalorder %s197, %s199
      %p206 = scmp.eq.s32.totalorder %s105, 1
      %p207 = por %p205, %p206
      %p208 = scmp.ne.s32.totalorder %s199, %s200
      %p209 = scmp.eq.s32.totalorder %s105, 0
      %p210 = por %p208, %p209
      %p211 = scmp.ne.s32.totalorder %s199, %s200
      %p212 = scmp.eq.s32.totalorder %s106, 1
      %p213 = por %p211, %p212
      %p215 = scmp.ne.s32.totalorder %s200, %s214
      %p216 = scmp.eq.s32.totalorder %s106, 0
      %p217 = por %p215, %p216
      %s219 = sadd.s32 %s218, 1
      %p222 = scmp.eq.s32.totalorder %s100, 1
      %p223 = scmp.ne.s32.totalorder %s218, %s220
      %p224 = scmp.eq.s32.totalorder %s100, 0
      %p225 = por %p223, %p224
      %p226 = scmp.ne.s32.totalorder %s218, %s220
      %p227 = scmp.eq.s32.totalorder %s105, 1
      %p228 = por %p226, %p227
      %p229 = scmp.ne.s32.totalorder %s220, %s221
      %p230 = scmp.eq.s32.totalorder %s105, 0
      %p231 = por %p229, %p230
      %p232 = scmp.ne.s32.totalorder %s220, %s221
      %p233 = scmp.eq.s32.totalorder %s106, 1
      %p234 = por %p232, %p233
      %p236 = scmp.ne.s32.totalorder %s221, %s235
      %p237 = scmp.eq.s32.totalorder %s106, 0
      %p238 = por %p236, %p237
      %s240 = sadd.s32 %s239, 1
      %p243 = scmp.eq.s32.totalorder %s100, 1
      %p244 = scmp.ne.s32.totalorder %s239, %s241
      %p245 = scmp.eq.s32.totalorder %s100, 0
      %p246 = por %p244, %p245
      %p247 = scmp.ne.s32.totalorder %s239, %s241
      %p248 = scmp.eq.s32.totalorder %s105, 1
      %p249 = por %p247, %p248
      %p250 = scmp.ne.s32.totalorder %s241, %s242
      %p251 = scmp.eq.s32.totalorder %s105, 0
      %p252 = por %p250, %p251
      %p253 = scmp.ne.s32.totalorder %s241, %s242
      %p254 = scmp.eq.s32.totalorder %s106, 1
      %p255 = por %p253, %p254
      %p257 = scmp.ne.s32.totalorder %s242, %s256
      %p258 = scmp.eq.s32.totalorder %s106, 0
      %p259 = por %p257, %p258
      %s261 = sadd.s32 %s260, 1
      %p264 = scmp.eq.s32.totalorder %s100, 1
      %p265 = scmp.ne.s32.totalorder %s260, %s262
      %p266 = scmp.eq.s32.totalorder %s100, 0
      %p267 = por %p265, %p266
      %p268 = scmp.ne.s32.totalorder %s260, %s262
      %p269 = scmp.eq.s32.totalorder %s105, 1
      %p270 = por %p268, %p269
      %p271 = scmp.ne.s32.totalorder %s262, %s263
      %p272 = scmp.eq.s32.totalorder %s105, 0
      %p273 = por %p271, %p272
      %p274 = scmp.ne.s32.totalorder %s262, %s263
      %p275 = scmp.eq.s32.totalorder %s106, 1
      %p276 = por %p274, %p275
      %p278 = scmp.ne.s32.totalorder %s263, %s277
      %p279 = scmp.eq.s32.totalorder %s106, 0
      %p280 = por %p278, %p279
      %s282 = sadd.s32 %s281, 1
      %p285 = scmp.eq.s32.totalorder %s100, 1
      %p286 = scmp.ne.s32.totalorder %s281, %s283
      %p287 = scmp.eq.s32.totalorder %s100, 0
      %p288 = por %p286, %p287
      %p289 = scmp.ne.s32.totalorder %s281, %s283
      %p290 = scmp.eq.s32.totalorder %s105, 1
      %p291 = por %p289, %p290
      %p292 = scmp.ne.s32.totalorder %s283, %s284
      %p293 = scmp.eq.s32.totalorder %s105, 0
      %p294 = por %p292, %p293
      %p295 = scmp.ne.s32.totalorder %s283, %s284
      %p296 = scmp.eq.s32.totalorder %s106, 1
      %p297 = por %p295, %p296
      %p299 = scmp.ne.s32.totalorder %s284, %s298
      %p300 = scmp.eq.s32.totalorder %s106, 0
      %p301 = por %p299, %p300
      %s303 = sadd.s32 %s302, 1
      %p306 = scmp.eq.s32.totalorder %s100, 1
      %p307 = scmp.ne.s32.totalorder %s302, %s304
      %p308 = scmp.eq.s32.totalorder %s100, 0
      %p309 = por %p307, %p308
      %p310 = scmp.ne.s32.totalorder %s302, %s304
      %p311 = scmp.eq.s32.totalorder %s105, 1
      %p312 = por %p310, %p311
      %p313 = scmp.ne.s32.totalorder %s304, %s305
      %p314 = scmp.eq.s32.totalorder %s105, 0
      %p315 = por %p313, %p314
      %p316 = scmp.ne.s32.totalorder %s304, %s305
      %p317 = scmp.eq.s32.totalorder %s106, 1
      %p318 = por %p316, %p317
      %p320 = scmp.ne.s32.totalorder %s305, %s319
      %p321 = scmp.eq.s32.totalorder %s106, 0
      %p322 = por %p320, %p321
      %s324 = sadd.s32 %s323, 1
      %p327 = scmp.eq.s32.totalorder %s100, 1
      %p328 = scmp.ne.s32.totalorder %s323, %s325
      %p329 = scmp.eq.s32.totalorder %s100, 0
      %p330 = por %p328, %p329
      %p331 = scmp.ne.s32.totalorder %s323, %s325
      %p332 = scmp.eq.s32.totalorder %s105, 1
      %p333 = por %p331, %p332
      %p334 = scmp.ne.s32.totalorder %s325, %s326
      %p335 = scmp.eq.s32.totalorder %s105, 0
      %p336 = por %p334, %p335
      %p337 = scmp.ne.s32.totalorder %s325, %s326
      %p338 = scmp.eq.s32.totalorder %s106, 1
      %p339 = por %p337, %p338
      %p341 = scmp.ne.s32.totalorder %s326, %s340
      %p342 = scmp.eq.s32.totalorder %s106, 0
      %p343 = por %p341, %p342
      %s345 = sadd.s32 %s344, 1
      %p348 = scmp.eq.s32.totalorder %s100, 1
      %p349 = scmp.ne.s32.totalorder %s344, %s346
      %p350 = scmp.eq.s32.totalorder %s100, 0
      %p351 = por %p349, %p350
      %p352 = scmp.ne.s32.totalorder %s344, %s346
      %p353 = scmp.eq.s32.totalorder %s105, 1
      %p354 = por %p352, %p353
      %p355 = scmp.ne.s32.totalorder %s346, %s347
      %p356 = scmp.eq.s32.totalorder %s105, 0
      %p357 = por %p355, %p356
      %p358 = scmp.ne.s32.totalorder %s346, %s347
      %p359 = scmp.eq.s32.totalorder %s106, 1
      %p360 = por %p358, %p359
      %p362 = scmp.ne.s32.totalorder %s347, %s361
      %p363 = scmp.eq.s32.totalorder %s106, 0
      %p364 = por %p362, %p363
      %s366 = sadd.s32 %s365, 1
      %p369 = scmp.eq.s32.totalorder %s100, 1
      %p370 = scmp.ne.s32.totalorder %s365, %s367
      %p371 = scmp.eq.s32.totalorder %s100, 0
      %p372 = por %p370, %p371
      %p373 = scmp.ne.s32.totalorder %s365, %s367
      %p374 = scmp.eq.s32.totalorder %s105, 1
      %p375 = por %p373, %p374
      %p376 = scmp.ne.s32.totalorder %s367, %s368
      %p377 = scmp.eq.s32.totalorder %s105, 0
      %p378 = por %p376, %p377
      %p379 = scmp.ne.s32.totalorder %s367, %s368
      %p380 = scmp.eq.s32.totalorder %s106, 1
      %p381 = por %p379, %p380
      %p383 = scmp.ne.s32.totalorder %s368, %s382
      %p384 = scmp.eq.s32.totalorder %s106, 0
      %p385 = por %p383, %p384
      %s387 = sadd.s32 %s386, 1
      %p390 = scmp.eq.s32.totalorder %s100, 1
      %p391 = scmp.ne.s32.totalorder %s386, %s388
      %p392 = scmp.eq.s32.totalorder %s100, 0
      %p393 = por %p391, %p392
      %p394 = scmp.ne.s32.totalorder %s386, %s388
      %p395 = scmp.eq.s32.totalorder %s105, 1
      %p396 = por %p394, %p395
      %p397 = scmp.ne.s32.totalorder %s388, %s389
      %p398 = scmp.eq.s32.totalorder %s105, 0
      %p399 = por %p397, %p398
      %p400 = scmp.ne.s32.totalorder %s388, %s389
      %p401 = scmp.eq.s32.totalorder %s106, 1
      %p402 = por %p400, %p401
      %p404 = scmp.ne.s32.totalorder %s389, %s403
      %p405 = scmp.eq.s32.totalorder %s106, 0
      %p406 = por %p404, %p405
      %s408 = sadd.s32 %s407, 1
      %p411 = scmp.eq.s32.totalorder %s100, 1
      %p412 = scmp.ne.s32.totalorder %s407, %s409
      %p413 = scmp.eq.s32.totalorder %s100, 0
      %p414 = por %p412, %p413
      %p415 = scmp.ne.s32.totalorder %s407, %s409
      %p416 = scmp.eq.s32.totalorder %s105, 1
      %p417 = por %p415, %p416
      %p418 = scmp.ne.s32.totalorder %s409, %s410
      %p419 = scmp.eq.s32.totalorder %s105, 0
      %p420 = por %p418, %p419
      %p421 = scmp.ne.s32.totalorder %s409, %s410
      %p422 = scmp.eq.s32.totalorder %s106, 1
      %p423 = por %p421, %p422
      %p425 = scmp.ne.s32.totalorder %s410, %s424
      %p426 = scmp.eq.s32.totalorder %s106, 0
      %p427 = por %p425, %p426
      %s429 = sadd.s32 %s428, 1
      %p432 = scmp.eq.s32.totalorder %s100, 1
      %p433 = scmp.ne.s32.totalorder %s428, %s430
      %p434 = scmp.eq.s32.totalorder %s100, 0
      %p435 = por %p433, %p434
      %p436 = scmp.ne.s32.totalorder %s428, %s430
      %p437 = scmp.eq.s32.totalorder %s105, 1
      %p438 = por %p436, %p437
      %p439 = scmp.ne.s32.totalorder %s430, %s431
      %p440 = scmp.eq.s32.totalorder %s105, 0
      %p441 = por %p439, %p440
      %p442 = scmp.ne.s32.totalorder %s430, %s431
      %p443 = scmp.eq.s32.totalorder %s106, 1
      %p444 = por %p442, %p443
      %p446 = scmp.ne.s32.totalorder %s431, %s445
      %p447 = scmp.eq.s32.totalorder %s106, 0
      %p448 = por %p446, %p447
      %s450 = sadd.s32 %s449, 1
      %p453 = scmp.eq.s32.totalorder %s100, 1
      %p454 = scmp.ne.s32.totalorder %s449, %s451
      %p455 = scmp.eq.s32.totalorder %s100, 0
      %p456 = por %p454, %p455
      %p457 = scmp.ne.s32.totalorder %s449, %s451
      %p458 = scmp.eq.s32.totalorder %s105, 1
      %p459 = por %p457, %p458
      %p460 = scmp.ne.s32.totalorder %s451, %s452
      %p461 = scmp.eq.s32.totalorder %s105, 0
      %p462 = por %p460, %p461
      %p463 = scmp.ne.s32.totalorder %s451, %s452
      %p464 = scmp.eq.s32.totalorder %s106, 1
      %p465 = por %p463, %p464
      %p467 = scmp.ne.s32.totalorder %s452, %s466
      %p468 = scmp.eq.s32.totalorder %s106, 0
      %p469 = por %p467, %p468
      %s471 = sadd.s32 %s470, 1
      %p474 = scmp.eq.s32.totalorder %s100, 1
      %p475 = scmp.ne.s32.totalorder %s470, %s472
      %p476 = scmp.eq.s32.totalorder %s100, 0
      %p477 = por %p475, %p476
      %p478 = scmp.ne.s32.totalorder %s470, %s472
      %p479 = scmp.eq.s32.totalorder %s105, 1
      %p480 = por %p478, %p479
      %p481 = scmp.ne.s32.totalorder %s472, %s473
      %p482 = scmp.eq.s32.totalorder %s105, 0
      %p483 = por %p481, %p482
      %p484 = scmp.ne.s32.totalorder %s472, %s473
      %p485 = scmp.eq.s32.totalorder %s106, 1
      %p486 = por %p484, %p485
      %p488 = scmp.ne.s32.totalorder %s473, %s487
      %p489 = scmp.eq.s32.totalorder %s106, 0
      %p490 = por %p488, %p489
      %s492 = sadd.s32 %s491, 1
      %p495 = scmp.eq.s32.totalorder %s100, 1
      %p496 = scmp.ne.s32.totalorder %s491, %s493
      %p497 = scmp.eq.s32.totalorder %s100, 0
      %p498 = por %p496, %p497
      %p499 = scmp.ne.s32.totalorder %s491, %s493
      %p500 = scmp.eq.s32.totalorder %s105, 1
      %p501 = por %p499, %p500
      %p502 = scmp.ne.s32.totalorder %s493, %s494
      %p503 = scmp.eq.s32.totalorder %s105, 0
      %p504 = por %p502, %p503
      %p505 = scmp.ne.s32.totalorder %s493, %s494
      %p506 = scmp.eq.s32.totalorder %s106, 1
      %p507 = por %p505, %p506
      %p509 = scmp.ne.s32.totalorder %s494, %s508
      %p510 = scmp.eq.s32.totalorder %s106, 0
      %p511 = por %p509, %p510
      %s513 = sadd.s32 %s512, 1
      %p516 = scmp.eq.s32.totalorder %s100, 1
      %p517 = scmp.ne.s32.totalorder %s512, %s514
      %p518 = scmp.eq.s32.totalorder %s100, 0
      %p519 = por %p517, %p518
      %p520 = scmp.ne.s32.totalorder %s512, %s514
      %p521 = scmp.eq.s32.totalorder %s105, 1
      %p522 = por %p520, %p521
      %p523 = scmp.ne.s32.totalorder %s514, %s515
      %p524 = scmp.eq.s32.totalorder %s105, 0
      %p525 = por %p523, %p524
      %p526 = scmp.ne.s32.totalorder %s514, %s515
      %p527 = scmp.eq.s32.totalorder %s106, 1
      %p528 = por %p526, %p527
      %p530 = scmp.ne.s32.totalorder %s515, %s529
      %p531 = scmp.eq.s32.totalorder %s106, 0
      %p532 = por %p530, %p531
      %s534 = sadd.s32 %s533, 1
      %p537 = scmp.eq.s32.totalorder %s100, 1
      %p538 = scmp.ne.s32.totalorder %s533, %s535
      %p539 = scmp.eq.s32.totalorder %s100, 0
      %p540 = por %p538, %p539
      %p541 = scmp.ne.s32.totalorder %s533, %s535
      %p542 = scmp.eq.s32.totalorder %s105, 1
      %p543 = por %p541, %p542
      %p544 = scmp.ne.s32.totalorder %s535, %s536
      %p545 = scmp.eq.s32.totalorder %s105, 0
      %p546 = por %p544, %p545
      %p547 = scmp.ne.s32.totalorder %s535, %s536
      %p548 = scmp.eq.s32.totalorder %s106, 1
      %p549 = por %p547, %p548
      %p551 = scmp.ne.s32.totalorder %s536, %s550
      %p552 = scmp.eq.s32.totalorder %s106, 0
      %p553 = por %p551, %p552
      %s555 = sadd.s32 %s554, 1
      %p558 = scmp.eq.s32.totalorder %s100, 1
      %p559 = scmp.ne.s32.totalorder %s554, %s556
      %p560 = scmp.eq.s32.totalorder %s100, 0
      %p561 = por %p559, %p560
      %p562 = scmp.ne.s32.totalorder %s554, %s556
      %p563 = scmp.eq.s32.totalorder %s105, 1
      %p564 = por %p562, %p563
      %p565 = scmp.ne.s32.totalorder %s556, %s557
      %p566 = scmp.eq.s32.totalorder %s105, 0
      %p567 = por %p565, %p566
      %p568 = scmp.ne.s32.totalorder %s556, %s557
      %p569 = scmp.eq.s32.totalorder %s106, 1
      %p570 = por %p568, %p569
      %p572 = scmp.ne.s32.totalorder %s557, %s571
      %p573 = scmp.eq.s32.totalorder %s106, 0
      %p574 = por %p572, %p573
      %s576 = sadd.s32 %s575, 1
      %p579 = scmp.eq.s32.totalorder %s100, 1
      %p580 = scmp.ne.s32.totalorder %s575, %s577
      %p581 = scmp.eq.s32.totalorder %s100, 0
      %p582 = por %p580, %p581
      %p583 = scmp.ne.s32.totalorder %s575, %s577
      %p584 = scmp.eq.s32.totalorder %s105, 1
      %p585 = por %p583, %p584
      %p586 = scmp.ne.s32.totalorder %s577, %s578
      %p587 = scmp.eq.s32.totalorder %s105, 0
      %p588 = por %p586, %p587
      %p589 = scmp.ne.s32.totalorder %s577, %s578
      %p590 = scmp.eq.s32.totalorder %s106, 1
      %p591 = por %p589, %p590
      %p593 = scmp.ne.s32.totalorder %s578, %s592
      %p594 = scmp.eq.s32.totalorder %s106, 0
      %p595 = por %p593, %p594
      %s597 = sadd.s32 %s596, 1
      %p600 = scmp.eq.s32.totalorder %s100, 1
      %p601 = scmp.ne.s32.totalorder %s596, %s598
      %p602 = scmp.eq.s32.totalorder %s100, 0
      %p603 = por %p601, %p602
      %p604 = scmp.ne.s32.totalorder %s596, %s598
      %p605 = scmp.eq.s32.totalorder %s105, 1
      %p606 = por %p604, %p605
      %p607 = scmp.ne.s32.totalorder %s598, %s599
      %p608 = scmp.eq.s32.totalorder %s105, 0
      %p609 = por %p607, %p608
      %p610 = scmp.ne.s32.totalorder %s598, %s599
      %p611 = scmp.eq.s32.totalorder %s106, 1
      %p612 = por %p610, %p611
      %p614 = scmp.ne.s32.totalorder %s599, %s613
      %p615 = scmp.eq.s32.totalorder %s106, 0
      %p616 = por %p614, %p615
      %s618 = sadd.s32 %s617, 1
      %p621 = scmp.eq.s32.totalorder %s100, 1
      %p622 = scmp.ne.s32.totalorder %s617, %s619
      %p623 = scmp.eq.s32.totalorder %s100, 0
      %p624 = por %p622, %p623
      %p625 = scmp.ne.s32.totalorder %s617, %s619
      %p626 = scmp.eq.s32.totalorder %s105, 1
      %p627 = por %p625, %p626
      %p628 = scmp.ne.s32.totalorder %s619, %s620
      %p629 = scmp.eq.s32.totalorder %s105, 0
      %p630 = por %p628, %p629
      %p631 = scmp.ne.s32.totalorder %s619, %s620
      %p632 = scmp.eq.s32.totalorder %s106, 1
      %p633 = por %p631, %p632
      %p635 = scmp.ne.s32.totalorder %s620, %s634
      %p636 = scmp.eq.s32.totalorder %s106, 0
      %p637 = por %p635, %p636
      %s639 = sadd.s32 %s638, 1
      %p642 = scmp.eq.s32.totalorder %s100, 1
      %p643 = scmp.ne.s32.totalorder %s638, %s640
      %p644 = scmp.eq.s32.totalorder %s100, 0
      %p645 = por %p643, %p644
      %p646 = scmp.ne.s32.totalorder %s638, %s640
      %p647 = scmp.eq.s32.totalorder %s105, 1
      %p648 = por %p646, %p647
      %p649 = scmp.ne.s32.totalorder %s640, %s641
      %p650 = scmp.eq.s32.totalorder %s105, 0
      %p651 = por %p649, %p650
      %p652 = scmp.ne.s32.totalorder %s640, %s641
      %p653 = scmp.eq.s32.totalorder %s106, 1
      %p654 = por %p652, %p653
      %p656 = scmp.ne.s32.totalorder %s641, %s655
      %p657 = scmp.eq.s32.totalorder %s106, 0
      %p658 = por %p656, %p657
      %s660 = sadd.s32 %s659, 1
      %p663 = scmp.eq.s32.totalorder %s100, 1
      %p664 = scmp.ne.s32.totalorder %s659, %s661
      %p665 = scmp.eq.s32.totalorder %s100, 0
      %p666 = por %p664, %p665
      %p667 = scmp.ne.s32.totalorder %s659, %s661
      %p668 = scmp.eq.s32.totalorder %s105, 1
      %p669 = por %p667, %p668
      %p670 = scmp.ne.s32.totalorder %s661, %s662
      %p671 = scmp.eq.s32.totalorder %s105, 0
      %p672 = por %p670, %p671
      %p673 = scmp.ne.s32.totalorder %s661, %s662
      %p674 = scmp.eq.s32.totalorder %s106, 1
      %p675 = por %p673, %p674
      %p677 = scmp.ne.s32.totalorder %s662, %s676
      %p678 = scmp.eq.s32.totalorder %s106, 0
      %p679 = por %p677, %p678
      %s681 = sadd.s32 %s680, 1
      %p684 = scmp.eq.s32.totalorder %s100, 1
      %p685 = scmp.ne.s32.totalorder %s680, %s682
      %p686 = scmp.eq.s32.totalorder %s100, 0
      %p687 = por %p685, %p686
      %p688 = scmp.ne.s32.totalorder %s680, %s682
      %p689 = scmp.eq.s32.totalorder %s105, 1
      %p690 = por %p688, %p689
      %p691 = scmp.ne.s32.totalorder %s682, %s683
      %p692 = scmp.eq.s32.totalorder %s105, 0
      %p693 = por %p691, %p692
      %p694 = scmp.ne.s32.totalorder %s682, %s683
      %p695 = scmp.eq.s32.totalorder %s106, 1
      %p696 = por %p694, %p695
      %p698 = scmp.ne.s32.totalorder %s683, %s697
      %p699 = scmp.eq.s32.totalorder %s106, 0
      %p700 = por %p698, %p699
      %s702 = sadd.s32 %s701, 1
      %p705 = scmp.eq.s32.totalorder %s100, 1
      %p706 = scmp.ne.s32.totalorder %s701, %s703
      %p707 = scmp.eq.s32.totalorder %s100, 0
      %p708 = por %p706, %p707
      %p709 = scmp.ne.s32.totalorder %s701, %s703
      %p710 = scmp.eq.s32.totalorder %s105, 1
      %p711 = por %p709, %p710
      %p712 = scmp.ne.s32.totalorder %s703, %s704
      %p713 = scmp.eq.s32.totalorder %s105, 0
      %p714 = por %p712, %p713
      %p715 = scmp.ne.s32.totalorder %s703, %s704
      %p716 = scmp.eq.s32.totalorder %s106, 1
      %p717 = por %p715, %p716
      %p719 = scmp.ne.s32.totalorder %s704, %s718
      %p720 = scmp.eq.s32.totalorder %s106, 0
      %p721 = por %p719, %p720
      %s723 = sadd.s32 %s722, 1
      %p726 = scmp.eq.s32.totalorder %s100, 1
      %p727 = scmp.ne.s32.totalorder %s722, %s724
      %p728 = scmp.eq.s32.totalorder %s100, 0
      %p729 = por %p727, %p728
      %p730 = scmp.ne.s32.totalorder %s722, %s724
      %p731 = scmp.eq.s32.totalorder %s105, 1
      %p732 = por %p730, %p731
      %p733 = scmp.ne.s32.totalorder %s724, %s725
      %p734 = scmp.eq.s32.totalorder %s105, 0
      %p735 = por %p733, %p734
      %p736 = scmp.ne.s32.totalorder %s724, %s725
      %p737 = scmp.eq.s32.totalorder %s106, 1
      %p738 = por %p736, %p737
      %p740 = scmp.ne.s32.totalorder %s725, %s739
      %p741 = scmp.eq.s32.totalorder %s106, 0
      %p742 = por %p740, %p741
      %s744 = sadd.s32 %s743, 1
      %p747 = scmp.eq.s32.totalorder %s100, 1
      %p748 = scmp.ne.s32.totalorder %s743, %s745
      %p749 = scmp.eq.s32.totalorder %s100, 0
      %p750 = por %p748, %p749
      %p751 = scmp.ne.s32.totalorder %s743, %s745
      %p752 = scmp.eq.s32.totalorder %s105, 1
      %p753 = por %p751, %p752
      %p754 = scmp.ne.s32.totalorder %s745, %s746
      %p755 = scmp.eq.s32.totalorder %s105, 0
      %p756 = por %p754, %p755
      %p757 = scmp.ne.s32.totalorder %s745, %s746
      %p758 = scmp.eq.s32.totalorder %s106, 1
      %p759 = por %p757, %p758
      %p761 = scmp.ne.s32.totalorder %s746, %s760
      %p762 = scmp.eq.s32.totalorder %s106, 0
      %p763 = por %p761, %p762
      %s765 = sadd.s32 %s764, 1
      %p768 = scmp.eq.s32.totalorder %s100, 1
      %p769 = scmp.ne.s32.totalorder %s764, %s766
      %p770 = scmp.eq.s32.totalorder %s100, 0
      %p771 = por %p769, %p770
      %p772 = scmp.ne.s32.totalorder %s764, %s766
      %p773 = scmp.eq.s32.totalorder %s105, 1
      %p774 = por %p772, %p773
      %p775 = scmp.ne.s32.totalorder %s766, %s767
      %p776 = scmp.eq.s32.totalorder %s105, 0
      %p777 = por %p775, %p776
      %p778 = scmp.ne.s32.totalorder %s766, %s767
      %p779 = scmp.eq.s32.totalorder %s106, 1
      %p780 = por %p778, %p779
      %p782 = scmp.ne.s32.totalorder %s767, %s781
      %p783 = scmp.eq.s32.totalorder %s106, 0
      %p784 = por %p782, %p783
      %s786 = sadd.s32 %s785, 1
      %p789 = scmp.eq.s32.totalorder %s100, 1
      %p790 = scmp.ne.s32.totalorder %s785, %s787
      %p791 = scmp.eq.s32.totalorder %s100, 0
      %p792 = por %p790, %p791
      %p793 = scmp.ne.s32.totalorder %s785, %s787
      %p794 = scmp.eq.s32.totalorder %s105, 1
      %p795 = por %p793, %p794
      %p796 = scmp.ne.s32.totalorder %s787, %s788
      %p797 = scmp.eq.s32.totalorder %s105, 0
      %p798 = por %p796, %p797
      %p799 = scmp.ne.s32.totalorder %s787, %s788
      %p800 = scmp.eq.s32.totalorder %s106, 1
      %p801 = por %p799, %p800
      %p803 = scmp.ne.s32.totalorder %s788, %s802
      %p804 = scmp.eq.s32.totalorder %s106, 0
      %p805 = por %p803, %p804
      %s807 = sadd.s32 %s806, 1
      %p810 = scmp.eq.s32.totalorder %s100, 1
      %p811 = scmp.ne.s32.totalorder %s806, %s808
      %p812 = scmp.eq.s32.totalorder %s100, 0
      %p813 = por %p811, %p812
      %p814 = scmp.ne.s32.totalorder %s806, %s808
      %p815 = scmp.eq.s32.totalorder %s105, 1
      %p816 = por %p814, %p815
      %p817 = scmp.ne.s32.totalorder %s808, %s809
      %p818 = scmp.eq.s32.totalorder %s105, 0
      %p819 = por %p817, %p818
      %p820 = scmp.ne.s32.totalorder %s808, %s809
      %p821 = scmp.eq.s32.totalorder %s106, 1
      %p822 = por %p820, %p821
      %p824 = scmp.ne.s32.totalorder %s809, %s823
      %p825 = scmp.eq.s32.totalorder %s106, 0
      %p826 = por %p824, %p825
      %s828 = sadd.s32 %s827, 1
      %p831 = scmp.eq.s32.totalorder %s100, 1
      %p832 = scmp.ne.s32.totalorder %s827, %s829
      %p833 = scmp.eq.s32.totalorder %s100, 0
      %p834 = por %p832, %p833
      %p835 = scmp.ne.s32.totalorder %s827, %s829
      %p836 = scmp.eq.s32.totalorder %s105, 1
      %p837 = por %p835, %p836
      %p838 = scmp.ne.s32.totalorder %s829, %s830
      %p839 = scmp.eq.s32.totalorder %s105, 0
      %p840 = por %p838, %p839
      %p841 = scmp.ne.s32.totalorder %s829, %s830
      %p842 = scmp.eq.s32.totalorder %s106, 1
      %p843 = por %p841, %p842
      %p845 = scmp.ne.s32.totalorder %s830, %s844
      %p846 = scmp.eq.s32.totalorder %s106, 0
      %p847 = por %p845, %p846
      %s849 = sadd.s32 %s848, 1
      %p852 = scmp.eq.s32.totalorder %s100, 1
      %p853 = scmp.ne.s32.totalorder %s848, %s850
      %p854 = scmp.eq.s32.totalorder %s100, 0
      %p855 = por %p853, %p854
      %p856 = scmp.ne.s32.totalorder %s848, %s850
      %p857 = scmp.eq.s32.totalorder %s105, 1
      %p858 = por %p856, %p857
      %p859 = scmp.ne.s32.totalorder %s850, %s851
      %p860 = scmp.eq.s32.totalorder %s105, 0
      %p861 = por %p859, %p860
      %p862 = scmp.ne.s32.totalorder %s850, %s851
      %p863 = scmp.eq.s32.totalorder %s106, 1
      %p864 = por %p862, %p863
      %p866 = scmp.ne.s32.totalorder %s851, %s865
      %p867 = scmp.eq.s32.totalorder %s106, 0
      %p868 = por %p866, %p867
      %s870 = sadd.s32 %s869, 1
      %p873 = scmp.eq.s32.totalorder %s100, 1
      %p874 = scmp.ne.s32.totalorder %s869, %s871
      %p875 = scmp.eq.s32.totalorder %s100, 0
      %p876 = por %p874, %p875
      %p877 = scmp.ne.s32.totalorder %s869, %s871
      %p878 = scmp.eq.s32.totalorder %s105, 1
      %p879 = por %p877, %p878
      %p880 = scmp.ne.s32.totalorder %s871, %s872
      %p881 = scmp.eq.s32.totalorder %s105, 0
      %p882 = por %p880, %p881
      %p883 = scmp.ne.s32.totalorder %s871, %s872
      %p884 = scmp.eq.s32.totalorder %s106, 1
      %p885 = por %p883, %p884
      %p887 = scmp.ne.s32.totalorder %s872, %s886
      %p888 = scmp.eq.s32.totalorder %s106, 0
      %p889 = por %p887, %p888
      %s891 = sadd.s32 %s890, 1
      %p894 = scmp.eq.s32.totalorder %s100, 1
      %p895 = scmp.ne.s32.totalorder %s890, %s892
      %p896 = scmp.eq.s32.totalorder %s100, 0
      %p897 = por %p895, %p896
      %p898 = scmp.ne.s32.totalorder %s890, %s892
      %p899 = scmp.eq.s32.totalorder %s105, 1
      %p900 = por %p898, %p899
      %p901 = scmp.ne.s32.totalorder %s892, %s893
      %p902 = scmp.eq.s32.totalorder %s105, 0
      %p903 = por %p901, %p902
      %p904 = scmp.ne.s32.totalorder %s892, %s893
      %p905 = scmp.eq.s32.totalorder %s106, 1
      %p906 = por %p904, %p905
      %p908 = scmp.ne.s32.totalorder %s893, %s907
      %p909 = scmp.eq.s32.totalorder %s106, 0
      %p910 = por %p908, %p909
      %s912 = sadd.s32 %s911, 1
      %p915 = scmp.eq.s32.totalorder %s100, 1
      %p916 = scmp.ne.s32.totalorder %s911, %s913
      %p917 = scmp.eq.s32.totalorder %s100, 0
      %p918 = por %p916, %p917
      %p919 = scmp.ne.s32.totalorder %s911, %s913
      %p920 = scmp.eq.s32.totalorder %s105, 1
      %p921 = por %p919, %p920
      %p922 = scmp.ne.s32.totalorder %s913, %s914
      %p923 = scmp.eq.s32.totalorder %s105, 0
      %p924 = por %p922, %p923
      %p925 = scmp.ne.s32.totalorder %s913, %s914
      %p926 = scmp.eq.s32.totalorder %s106, 1
      %p927 = por %p925, %p926
      %p929 = scmp.ne.s32.totalorder %s914, %s928
      %p930 = scmp.eq.s32.totalorder %s106, 0
      %p931 = por %p929, %p930
      %s933 = sadd.s32 %s932, 1
      %p936 = scmp.eq.s32.totalorder %s100, 1
      %p937 = scmp.ne.s32.totalorder %s932, %s934
      %p938 = scmp.eq.s32.totalorder %s100, 0
      %p939 = por %p937, %p938
      %p940 = scmp.ne.s32.totalorder %s932, %s934
      %p941 = scmp.eq.s32.totalorder %s105, 1
      %p942 = por %p940, %p941
      %p943 = scmp.ne.s32.totalorder %s934, %s935
      %p944 = scmp.eq.s32.totalorder %s105, 0
      %p945 = por %p943, %p944
      %p946 = scmp.ne.s32.totalorder %s934, %s935
      %p947 = scmp.eq.s32.totalorder %s106, 1
      %p948 = por %p946, %p947
      %p950 = scmp.ne.s32.totalorder %s935, %s949
      %p951 = scmp.eq.s32.totalorder %s106, 0
      %p952 = por %p950, %p951
      %s954 = sadd.s32 %s953, 1
      %p957 = scmp.eq.s32.totalorder %s100, 1
      %p958 = scmp.ne.s32.totalorder %s953, %s955
      %p959 = scmp.eq.s32.totalorder %s100, 0
      %p960 = por %p958, %p959
      %p961 = scmp.ne.s32.totalorder %s953, %s955
      %p962 = scmp.eq.s32.totalorder %s105, 1
      %p963 = por %p961, %p962
      %p964 = scmp.ne.s32.totalorder %s955, %s956
      %p965 = scmp.eq.s32.totalorder %s105, 0
      %p966 = por %p964, %p965
      %p967 = scmp.ne.s32.totalorder %s955, %s956
      %p968 = scmp.eq.s32.totalorder %s106, 1
      %p969 = por %p967, %p968
      %p971 = scmp.ne.s32.totalorder %s956, %s970
      %p972 = scmp.eq.s32.totalorder %s106, 0
      %p973 = por %p971, %p972
      %s975 = sadd.s32 %s974, 1
      %p978 = scmp.eq.s32.totalorder %s100, 1
      %p979 = scmp.ne.s32.totalorder %s974, %s976
      %p980 = scmp.eq.s32.totalorder %s100, 0
      %p981 = por %p979, %p980
      %p982 = scmp.ne.s32.totalorder %s974, %s976
      %p983 = scmp.eq.s32.totalorder %s105, 1
      %p984 = por %p982, %p983
      %p985 = scmp.ne.s32.totalorder %s976, %s977
      %p986 = scmp.eq.s32.totalorder %s105, 0
      %p987 = por %p985, %p986
      %p988 = scmp.ne.s32.totalorder %s976, %s977
      %p989 = scmp.eq.s32.totalorder %s106, 1
      %p990 = por %p988, %p989
      %p992 = scmp.ne.s32.totalorder %s977, %s991
      %p993 = scmp.eq.s32.totalorder %s106, 0
      %p994 = por %p992, %p993
      %s996 = sadd.s32 %s995, 1
      %p999 = scmp.eq.s32.totalorder %s100, 1
      %p1000 = scmp.ne.s32.totalorder %s995, %s997
      %p1001 = scmp.eq.s32.totalorder %s100, 0
      %p1002 = por %p1000, %p1001
      %p1003 = scmp.ne.s32.totalorder %s995, %s997
      %p1004 = scmp.eq.s32.totalorder %s105, 1
      %p1005 = por %p1003, %p1004
      %p1006 = scmp.ne.s32.totalorder %s997, %s998
      %p1007 = scmp.eq.s32.totalorder %s105, 0
      %p1008 = por %p1006, %p1007
      %p1009 = scmp.ne.s32.totalorder %s997, %s998
      %p1010 = scmp.eq.s32.totalorder %s106, 1
      %p1011 = por %p1009, %p1010
      %p1013 = scmp.ne.s32.totalorder %s998, %s1012
      %p1014 = scmp.eq.s32.totalorder %s106, 0
      %p1015 = por %p1013, %p1014
      %s1017 = sadd.s32 %s1016, 1
      %p1020 = scmp.eq.s32.totalorder %s100, 1
      %p1021 = scmp.ne.s32.totalorder %s1016, %s1018
      %p1022 = scmp.eq.s32.totalorder %s100, 0
      %p1023 = por %p1021, %p1022
      %p1024 = scmp.ne.s32.totalorder %s1016, %s1018
      %p1025 = scmp.eq.s32.totalorder %s105, 1
      %p1026 = por %p1024, %p1025
      %p1027 = scmp.ne.s32.totalorder %s1018, %s1019
      %p1028 = scmp.eq.s32.totalorder %s105, 0
      %p1029 = por %p1027, %p1028
      %p1030 = scmp.ne.s32.totalorder %s1018, %s1019
      %p1031 = scmp.eq.s32.totalorder %s106, 1
      %p1032 = por %p1030, %p1031
      %p1034 = scmp.ne.s32.totalorder %s1019, %s1033
      %p1035 = scmp.eq.s32.totalorder %s106, 0
      %p1036 = por %p1034, %p1035
      %s1037 = ssub.s32 %s100, %s107
      %p1038 = scmp.eq.s32.totalorder %s1037, 0
      %s1040 = sadd.s32 %s1039, 1
      %s1041 = scalar_select %p1038, %s1039, %s1040
      %p1044 = pneg %p1038
      %p1045 = scmp.eq.s32.totalorder %s100, 1
      %p1046 = por %p1044, %p1045
      %p1047 = scmp.ne.s32.totalorder %s1039, %s1042
      %p1048 = scmp.eq.s32.totalorder %s100, 0
      %p1049 = por %p1047, %p1048
      %p1050 = scmp.ne.s32.totalorder %s1039, %s1042
      %p1051 = scmp.eq.s32.totalorder %s105, 1
      %p1052 = por %p1050, %p1051
      %p1053 = scmp.ne.s32.totalorder %s1042, %s1043
      %p1054 = scmp.eq.s32.totalorder %s105, 0
      %p1055 = por %p1053, %p1054
      %p1056 = scmp.ne.s32.totalorder %s1042, %s1043
      %p1057 = scmp.eq.s32.totalorder %s106, 1
      %p1058 = por %p1056, %p1057
      %p1060 = scmp.ne.s32.totalorder %s1043, %s1059
      %p1061 = scmp.eq.s32.totalorder %s106, 0
      %p1062 = por %p1060, %p1061
      %p1063 = scmp.le.s32.totalorder 1, %s100
      %p1064 = scmp.lt.s32.totalorder %s100, 3
      %p1065 = pnand %p1063, %p1064
      %p1066 = pneg %p1065
      // Predicated region
      $region9: #{tpu_custom_call.1} parent=5 // pred_check
        _
      $region10: #{tpu_custom_call.1} parent=5 // pred_check_branch
        %1068 = sbr.rel (%p1065) target = $region12
      $region11: #{tpu_custom_call.1} parent=5 // pred_region
        %s1069 = ssub.s32 %s100, 1
        // Predicated region
        $region13: #{tpu_custom_call.1} parent=11 // pred_check
          %p1070 = pneg %p147
        $region14: #{tpu_custom_call.1} parent=11 // pred_check_branch
          %1072 = sbr.rel (%p1070) target = $region16
        $region15: #{tpu_custom_call.1} parent=11 // pred_region
          _
        $region16: #{tpu_custom_call.1} parent=11 // pred_fallthru
          _
        // Predicated region
        $region17: #{tpu_custom_call.1} parent=11 // pred_check
          %p1073 = pneg %p168
        $region18: #{tpu_custom_call.1} parent=11 // pred_check_branch
          %1075 = sbr.rel (%p1073) target = $region20
        $region19: #{tpu_custom_call.1} parent=11 // pred_region
          _
        $region20: #{tpu_custom_call.1} parent=11 // pred_fallthru
          _
        // Predicated region
        $region21: #{tpu_custom_call.1} parent=11 // pred_check
          %p1076 = pneg %p189
        $region22: #{tpu_custom_call.1} parent=11 // pred_check_branch
          %1078 = sbr.rel (%p1076) target = $region24
        $region23: #{tpu_custom_call.1} parent=11 // pred_region
          _
        $region24: #{tpu_custom_call.1} parent=11 // pred_fallthru
          _
        // Predicated region
        $region25: #{tpu_custom_call.1} parent=11 // pred_check
          %p1079 = pneg %p210
        $region26: #{tpu_custom_call.1} parent=11 // pred_check_branch
          %1081 = sbr.rel (%p1079) target = $region28
        $region27: #{tpu_custom_call.1} parent=11 // pred_region
          _
        $region28: #{tpu_custom_call.1} parent=11 // pred_fallthru
          _
        // Predicated region
        $region29: #{tpu_custom_call.1} parent=11 // pred_check
          %p1082 = pneg %p231
        $region30: #{tpu_custom_call.1} parent=11 // pred_check_branch
          %1084 = sbr.rel (%p1082) target = $region32
        $region31: #{tpu_custom_call.1} parent=11 // pred_region
          _
        $region32: #{tpu_custom_call.1} parent=11 // pred_fallthru
          _
        // Predicated region
        $region33: #{tpu_custom_call.1} parent=11 // pred_check
          %p1085 = pneg %p252
        $region34: #{tpu_custom_call.1} parent=11 // pred_check_branch
          %1087 = sbr.rel (%p1085) target = $region36
        $region35: #{tpu_custom_call.1} parent=11 // pred_region
          _
        $region36: #{tpu_custom_call.1} parent=11 // pred_fallthru
          _
        // Predicated region
        $region37: #{tpu_custom_call.1} parent=11 // pred_check
          %p1088 = pneg %p273
        $region38: #{tpu_custom_call.1} parent=11 // pred_check_branch
          %1090 = sbr.rel (%p1088) target = $region40
        $region39: #{tpu_custom_call.1} parent=11 // pred_region
          _
        $region40: #{tpu_custom_call.1} parent=11 // pred_fallthru
          _
        // Predicated region
        $region41: #{tpu_custom_call.1} parent=11 // pred_check
          %p1091 = pneg %p294
        $region42: #{tpu_custom_call.1} parent=11 // pred_check_branch
          %1093 = sbr.rel (%p1091) target = $region44
        $region43: #{tpu_custom_call.1} parent=11 // pred_region
          _
        $region44: #{tpu_custom_call.1} parent=11 // pred_fallthru
          _
        // Predicated region
        $region45: #{tpu_custom_call.1} parent=11 // pred_check
          %p1094 = pneg %p315
        $region46: #{tpu_custom_call.1} parent=11 // pred_check_branch
          %1096 = sbr.rel (%p1094) target = $region48
        $region47: #{tpu_custom_call.1} parent=11 // pred_region
          _
        $region48: #{tpu_custom_call.1} parent=11 // pred_fallthru
          _
        // Predicated region
        $region49: #{tpu_custom_call.1} parent=11 // pred_check
          %p1097 = pneg %p336
        $region50: #{tpu_custom_call.1} parent=11 // pred_check_branch
          %1099 = sbr.rel (%p1097) target = $region52
        $region51: #{tpu_custom_call.1} parent=11 // pred_region
          _
        $region52: #{tpu_custom_call.1} parent=11 // pred_fallthru
          _
        // Predicated region
        $region53: #{tpu_custom_call.1} parent=11 // pred_check
          %p1100 = pneg %p357
        $region54: #{tpu_custom_call.1} parent=11 // pred_check_branch
          %1102 = sbr.rel (%p1100) target = $region56
        $region55: #{tpu_custom_call.1} parent=11 // pred_region
          _
        $region56: #{tpu_custom_call.1} parent=11 // pred_fallthru
          _
        // Predicated region
        $region57: #{tpu_custom_call.1} parent=11 // pred_check
          %p1103 = pneg %p378
        $region58: #{tpu_custom_call.1} parent=11 // pred_check_branch
          %1105 = sbr.rel (%p1103) target = $region60
        $region59: #{tpu_custom_call.1} parent=11 // pred_region
          _
        $region60: #{tpu_custom_call.1} parent=11 // pred_fallthru
          _
        // Predicated region
        $region61: #{tpu_custom_call.1} parent=11 // pred_check
          %p1106 = pneg %p399
        $region62: #{tpu_custom_call.1} parent=11 // pred_check_branch
          %1108 = sbr.rel (%p1106) target = $region64
        $region63: #{tpu_custom_call.1} parent=11 // pred_region
          _
        $region64: #{tpu_custom_call.1} parent=11 // pred_fallthru
          _
        // Predicated region
        $region65: #{tpu_custom_call.1} parent=11 // pred_check
          %p1109 = pneg %p420
        $region66: #{tpu_custom_call.1} parent=11 // pred_check_branch
          %1111 = sbr.rel (%p1109) target = $region68
        $region67: #{tpu_custom_call.1} parent=11 // pred_region
          _
        $region68: #{tpu_custom_call.1} parent=11 // pred_fallthru
          _
        // Predicated region
        $region69: #{tpu_custom_call.1} parent=11 // pred_check
          %p1112 = pneg %p441
        $region70: #{tpu_custom_call.1} parent=11 // pred_check_branch
          %1114 = sbr.rel (%p1112) target = $region72
        $region71: #{tpu_custom_call.1} parent=11 // pred_region
          _
        $region72: #{tpu_custom_call.1} parent=11 // pred_fallthru
          _
        // Predicated region
        $region73: #{tpu_custom_call.1} parent=11 // pred_check
          %p1115 = pneg %p462
        $region74: #{tpu_custom_call.1} parent=11 // pred_check_branch
          %1117 = sbr.rel (%p1115) target = $region76
        $region75: #{tpu_custom_call.1} parent=11 // pred_region
          _
        $region76: #{tpu_custom_call.1} parent=11 // pred_fallthru
          _
        // Predicated region
        $region77: #{tpu_custom_call.1} parent=11 // pred_check
          %p1118 = pneg %p483
        $region78: #{tpu_custom_call.1} parent=11 // pred_check_branch
          %1120 = sbr.rel (%p1118) target = $region80
        $region79: #{tpu_custom_call.1} parent=11 // pred_region
          _
        $region80: #{tpu_custom_call.1} parent=11 // pred_fallthru
          _
        // Predicated region
        $region81: #{tpu_custom_call.1} parent=11 // pred_check
          %p1121 = pneg %p504
        $region82: #{tpu_custom_call.1} parent=11 // pred_check_branch
          %1123 = sbr.rel (%p1121) target = $region84
        $region83: #{tpu_custom_call.1} parent=11 // pred_region
          _
        $region84: #{tpu_custom_call.1} parent=11 // pred_fallthru
          _
        // Predicated region
        $region85: #{tpu_custom_call.1} parent=11 // pred_check
          %p1124 = pneg %p525
        $region86: #{tpu_custom_call.1} parent=11 // pred_check_branch
          %1126 = sbr.rel (%p1124) target = $region88
        $region87: #{tpu_custom_call.1} parent=11 // pred_region
          _
        $region88: #{tpu_custom_call.1} parent=11 // pred_fallthru
          _
        // Predicated region
        $region89: #{tpu_custom_call.1} parent=11 // pred_check
          %p1127 = pneg %p546
        $region90: #{tpu_custom_call.1} parent=11 // pred_check_branch
          %1129 = sbr.rel (%p1127) target = $region92
        $region91: #{tpu_custom_call.1} parent=11 // pred_region
          _
        $region92: #{tpu_custom_call.1} parent=11 // pred_fallthru
          _
        // Predicated region
        $region93: #{tpu_custom_call.1} parent=11 // pred_check
          %p1130 = pneg %p567
        $region94: #{tpu_custom_call.1} parent=11 // pred_check_branch
          %1132 = sbr.rel (%p1130) target = $region96
        $region95: #{tpu_custom_call.1} parent=11 // pred_region
          _
        $region96: #{tpu_custom_call.1} parent=11 // pred_fallthru
          _
        // Predicated region
        $region97: #{tpu_custom_call.1} parent=11 // pred_check
          %p1133 = pneg %p588
        $region98: #{tpu_custom_call.1} parent=11 // pred_check_branch
          %1135 = sbr.rel (%p1133) target = $region100
        $region99: #{tpu_custom_call.1} parent=11 // pred_region
          _
        $region100: #{tpu_custom_call.1} parent=11 // pred_fallthru
          _
        // Predicated region
        $region101: #{tpu_custom_call.1} parent=11 // pred_check
          %p1136 = pneg %p609
        $region102: #{tpu_custom_call.1} parent=11 // pred_check_branch
          %1138 = sbr.rel (%p1136) target = $region104
        $region103: #{tpu_custom_call.1} parent=11 // pred_region
          _
        $region104: #{tpu_custom_call.1} parent=11 // pred_fallthru
          _
        // Predicated region
        $region105: #{tpu_custom_call.1} parent=11 // pred_check
          %p1139 = pneg %p630
        $region106: #{tpu_custom_call.1} parent=11 // pred_check_branch
          %1141 = sbr.rel (%p1139) target = $region108
        $region107: #{tpu_custom_call.1} parent=11 // pred_region
          _
        $region108: #{tpu_custom_call.1} parent=11 // pred_fallthru
          _
        // Predicated region
        $region109: #{tpu_custom_call.1} parent=11 // pred_check
          %p1142 = pneg %p651
        $region110: #{tpu_custom_call.1} parent=11 // pred_check_branch
          %1144 = sbr.rel (%p1142) target = $region112
        $region111: #{tpu_custom_call.1} parent=11 // pred_region
          _
        $region112: #{tpu_custom_call.1} parent=11 // pred_fallthru
          _
        // Predicated region
        $region113: #{tpu_custom_call.1} parent=11 // pred_check
          %p1145 = pneg %p672
        $region114: #{tpu_custom_call.1} parent=11 // pred_check_branch
          %1147 = sbr.rel (%p1145) target = $region116
        $region115: #{tpu_custom_call.1} parent=11 // pred_region
          _
        $region116: #{tpu_custom_call.1} parent=11 // pred_fallthru
          _
        // Predicated region
        $region117: #{tpu_custom_call.1} parent=11 // pred_check
          %p1148 = pneg %p693
        $region118: #{tpu_custom_call.1} parent=11 // pred_check_branch
          %1150 = sbr.rel (%p1148) target = $region120
        $region119: #{tpu_custom_call.1} parent=11 // pred_region
          _
        $region120: #{tpu_custom_call.1} parent=11 // pred_fallthru
          _
        // Predicated region
        $region121: #{tpu_custom_call.1} parent=11 // pred_check
          %p1151 = pneg %p714
        $region122: #{tpu_custom_call.1} parent=11 // pred_check_branch
          %1153 = sbr.rel (%p1151) target = $region124
        $region123: #{tpu_custom_call.1} parent=11 // pred_region
          _
        $region124: #{tpu_custom_call.1} parent=11 // pred_fallthru
          _
        // Predicated region
        $region125: #{tpu_custom_call.1} parent=11 // pred_check
          %p1154 = pneg %p735
        $region126: #{tpu_custom_call.1} parent=11 // pred_check_branch
          %1156 = sbr.rel (%p1154) target = $region128
        $region127: #{tpu_custom_call.1} parent=11 // pred_region
          _
        $region128: #{tpu_custom_call.1} parent=11 // pred_fallthru
          _
        // Predicated region
        $region129: #{tpu_custom_call.1} parent=11 // pred_check
          %p1157 = pneg %p756
        $region130: #{tpu_custom_call.1} parent=11 // pred_check_branch
          %1159 = sbr.rel (%p1157) target = $region132
        $region131: #{tpu_custom_call.1} parent=11 // pred_region
          _
        $region132: #{tpu_custom_call.1} parent=11 // pred_fallthru
          _
        // Predicated region
        $region133: #{tpu_custom_call.1} parent=11 // pred_check
          %p1160 = pneg %p777
        $region134: #{tpu_custom_call.1} parent=11 // pred_check_branch
          %1162 = sbr.rel (%p1160) target = $region136
        $region135: #{tpu_custom_call.1} parent=11 // pred_region
          _
        $region136: #{tpu_custom_call.1} parent=11 // pred_fallthru
          _
        // Predicated region
        $region137: #{tpu_custom_call.1} parent=11 // pred_check
          %p1163 = pneg %p798
        $region138: #{tpu_custom_call.1} parent=11 // pred_check_branch
          %1165 = sbr.rel (%p1163) target = $region140
        $region139: #{tpu_custom_call.1} parent=11 // pred_region
          %1167 = vsyncadd [#allocation16], 0
          %s1169 = sshll.u32 %s65, 4
          %s1170 = int_to_ptr.hbm [resolvable:$true] %s1169
          %s1171 = sshll.u32 [#allocation15], 4
          %s1172 = int_to_ptr.vmem [resolvable:$true] %s1171
          %1174 = dma.hbm_to_vmem [thread:$0]  %s1170, 16, %s1172, [#allocation16]
        $region140: #{tpu_custom_call.1} parent=11 // pred_fallthru
          _
        // Predicated region
        $region141: #{tpu_custom_call.1} parent=11 // pred_check
          %p1175 = pneg %p819
        $region142: #{tpu_custom_call.1} parent=11 // pred_check_branch
          %1177 = sbr.rel (%p1175) target = $region144
        $region143: #{tpu_custom_call.1} parent=11 // pred_region
          _
        $region144: #{tpu_custom_call.1} parent=11 // pred_fallthru
          _
        // Predicated region
        $region145: #{tpu_custom_call.1} parent=11 // pred_check
          %p1178 = pneg %p840
        $region146: #{tpu_custom_call.1} parent=11 // pred_check_branch
          %1180 = sbr.rel (%p1178) target = $region148
        $region147: #{tpu_custom_call.1} parent=11 // pred_region
          _
        $region148: #{tpu_custom_call.1} parent=11 // pred_fallthru
          _
        // Predicated region
        $region149: #{tpu_custom_call.1} parent=11 // pred_check
          %p1181 = pneg %p861
        $region150: #{tpu_custom_call.1} parent=11 // pred_check_branch
          %1183 = sbr.rel (%p1181) target = $region152
        $region151: #{tpu_custom_call.1} parent=11 // pred_region
          %1185 = vsyncadd [#allocation19], 0
          %s1187 = sshll.u32 %s71, 4
          %s1188 = int_to_ptr.hbm [resolvable:$true] %s1187
          %s1189 = sshll.u32 [#allocation18], 4
          %s1190 = int_to_ptr.vmem [resolvable:$true] %s1189
          %1192 = dma.hbm_to_vmem [thread:$0]  %s1188, 16, %s1190, [#allocation19]
        $region152: #{tpu_custom_call.1} parent=11 // pred_fallthru
          _
        // Predicated region
        $region153: #{tpu_custom_call.1} parent=11 // pred_check
          %p1193 = pneg %p882
        $region154: #{tpu_custom_call.1} parent=11 // pred_check_branch
          %1195 = sbr.rel (%p1193) target = $region156
        $region155: #{tpu_custom_call.1} parent=11 // pred_region
          _
        $region156: #{tpu_custom_call.1} parent=11 // pred_fallthru
          _
        // Predicated region
        $region157: #{tpu_custom_call.1} parent=11 // pred_check
          %p1196 = pneg %p903
        $region158: #{tpu_custom_call.1} parent=11 // pred_check_branch
          %1198 = sbr.rel (%p1196) target = $region160
        $region159: #{tpu_custom_call.1} parent=11 // pred_region
          _
        $region160: #{tpu_custom_call.1} parent=11 // pred_fallthru
          _
        // Predicated region
        $region161: #{tpu_custom_call.1} parent=11 // pred_check
          %p1199 = pneg %p924
        $region162: #{tpu_custom_call.1} parent=11 // pred_check_branch
          %1201 = sbr.rel (%p1199) target = $region164
        $region163: #{tpu_custom_call.1} parent=11 // pred_region
          _
        $region164: #{tpu_custom_call.1} parent=11 // pred_fallthru
          _
        // Predicated region
        $region165: #{tpu_custom_call.1} parent=11 // pred_check
          %p1202 = pneg %p945
        $region166: #{tpu_custom_call.1} parent=11 // pred_check_branch
          %1204 = sbr.rel (%p1202) target = $region168
        $region167: #{tpu_custom_call.1} parent=11 // pred_region
          _
        $region168: #{tpu_custom_call.1} parent=11 // pred_fallthru
          _
        // Predicated region
        $region169: #{tpu_custom_call.1} parent=11 // pred_check
          %p1205 = pneg %p966
        $region170: #{tpu_custom_call.1} parent=11 // pred_check_branch
          %1207 = sbr.rel (%p1205) target = $region172
        $region171: #{tpu_custom_call.1} parent=11 // pred_region
          _
        $region172: #{tpu_custom_call.1} parent=11 // pred_fallthru
          _
        // Predicated region
        $region173: #{tpu_custom_call.1} parent=11 // pred_check
          %p1208 = pneg %p987
        $region174: #{tpu_custom_call.1} parent=11 // pred_check_branch
          %1210 = sbr.rel (%p1208) target = $region176
        $region175: #{tpu_custom_call.1} parent=11 // pred_region
          _
        $region176: #{tpu_custom_call.1} parent=11 // pred_fallthru
          _
        // Predicated region
        $region177: #{tpu_custom_call.1} parent=11 // pred_check
          %p1211 = pneg %p1008
        $region178: #{tpu_custom_call.1} parent=11 // pred_check_branch
          %1213 = sbr.rel (%p1211) target = $region180
        $region179: #{tpu_custom_call.1} parent=11 // pred_region
          _
        $region180: #{tpu_custom_call.1} parent=11 // pred_fallthru
          _
        // Predicated region
        $region181: #{tpu_custom_call.1} parent=11 // pred_check
          %p1214 = pneg %p1029
        $region182: #{tpu_custom_call.1} parent=11 // pred_check_branch
          %1216 = sbr.rel (%p1214) target = $region184
        $region183: #{tpu_custom_call.1} parent=11 // pred_region
          %1218 = vsyncadd [#allocation19], 0
          %s1220 = sshll.u32 %s87, 4
          %s1221 = int_to_ptr.hbm [resolvable:$true] %s1220
          %s1222 = sshll.u32 [#allocation20], 4
          %s1223 = int_to_ptr.vmem [resolvable:$true] %s1222
          %1225 = dma.hbm_to_vmem [thread:$0]  %s1221, 16, %s1223, [#allocation19]
        $region184: #{tpu_custom_call.1} parent=11 // pred_fallthru
          _
      $region12: #{tpu_custom_call.1} parent=5 // pred_fallthru
        _
      %p1226 = scmp.lt.s32.totalorder %s100, 2
      // Predicated region
      $region185: #{tpu_custom_call.1} parent=5 // pred_check
        %p1227 = pneg %p1226
      $region186: #{tpu_custom_call.1} parent=5 // pred_check_branch
        %1229 = sbr.rel (%p1227) target = $region188
      $region187: #{tpu_custom_call.1} parent=5 // pred_region
        // Predicated region
        $region189: #{tpu_custom_call.1} parent=187 // pred_check
          %p1230 = pneg %p120
        $region190: #{tpu_custom_call.1} parent=187 // pred_check_branch
          %1232 = sbr.rel (%p1230) target = $region192
        $region191: #{tpu_custom_call.1} parent=187 // pred_region
          %p1233 = scmp.lt.s32.totalorder %s100, 1
          %s1234 = scalar_select %p1233, %s100, 1
          %s1235 = smul.addr %s1234, 54
          %s1236 = smul.addr %s1235, 8
          %s1237 = scalar_lea.vmem %s1, %s1236
        $region192: #{tpu_custom_call.1} parent=187 // pred_fallthru
          _
      $region188: #{tpu_custom_call.1} parent=5 // pred_fallthru
        _
      %p1238 = scmp.le.s32.totalorder 1, %s100
      %p1239 = scmp.lt.s32.totalorder %s100, 3
      %p1240 = pnand %p1238, %p1239
      %p1241 = pneg %p1240
      // Predicated region
      $region193: #{tpu_custom_call.1} parent=5 // pred_check
        _
      $region194: #{tpu_custom_call.1} parent=5 // pred_check_branch
        %1243 = sbr.rel (%p1240) target = $region196
      $region195: #{tpu_custom_call.1} parent=5 // pred_region
        %s1244 = ssub.s32 %s100, 1
        // Predicated region
        $region197: #{tpu_custom_call.1} parent=195 // pred_check
          %p1245 = pneg %p798
        $region198: #{tpu_custom_call.1} parent=195 // pred_check_branch
          %1247 = sbr.rel (%p1245) target = $region200
        $region199: #{tpu_custom_call.1} parent=195 // pred_region
          %1249 = dma.done [#allocation16], 16
        $region200: #{tpu_custom_call.1} parent=195 // pred_fallthru
          _
        // Predicated region
        $region201: #{tpu_custom_call.1} parent=195 // pred_check
          %p1250 = pneg %p861
        $region202: #{tpu_custom_call.1} parent=195 // pred_check_branch
          %1252 = sbr.rel (%p1250) target = $region204
        $region203: #{tpu_custom_call.1} parent=195 // pred_region
          %1254 = dma.done [#allocation19], 16
        $region204: #{tpu_custom_call.1} parent=195 // pred_fallthru
          _
        // Predicated region
        $region205: #{tpu_custom_call.1} parent=195 // pred_check
          %p1255 = pneg %p1029
        $region206: #{tpu_custom_call.1} parent=195 // pred_check_branch
          %1257 = sbr.rel (%p1255) target = $region208
        $region207: #{tpu_custom_call.1} parent=195 // pred_region
          %1259 = dma.done [#allocation19], 16
        $region208: #{tpu_custom_call.1} parent=195 // pred_fallthru
          _
        %p1260 = scmp.lt.s32.totalorder %s105, 1
        %s1261 = scalar_select %p1260, %s105, 1
        %s1262 = smul.addr %s1261, 54
        %s1263 = smul.addr %s1262, 8
        %s1264 = scalar_lea.vmem %s1, %s1263
        %p1265 = pneg %p126
        %p1266 = pneg %p123
        %p1267 = pneg %p147
        %p1268 = pneg %p144
        %p1269 = pneg %p168
        %p1270 = pneg %p165
        %p1271 = pneg %p189
        %p1272 = pneg %p186
        %p1273 = pneg %p210
        %p1274 = pneg %p207
        %p1275 = pneg %p231
        %p1276 = pneg %p228
        %p1277 = pneg %p252
        %p1278 = pneg %p249
        %p1279 = pneg %p273
        %p1280 = pneg %p270
        %p1281 = pneg %p294
        %p1282 = pneg %p291
        %p1283 = pneg %p315
        %p1284 = pneg %p312
        %p1285 = pneg %p336
        %p1286 = pneg %p333
        %p1287 = pneg %p357
        %p1288 = pneg %p354
        %p1289 = pneg %p378
        %p1290 = pneg %p375
        %p1291 = pneg %p399
        %p1292 = pneg %p396
        %p1293 = pneg %p420
        %p1294 = pneg %p417
        %p1295 = pneg %p441
        %p1296 = pneg %p438
        %p1297 = pneg %p462
        %p1298 = pneg %p459
        %p1299 = pneg %p483
        %p1300 = pneg %p480
        %p1301 = pneg %p504
        %p1302 = pneg %p501
        %p1303 = pneg %p525
        %p1304 = pneg %p522
        %p1305 = pneg %p546
        %p1306 = pneg %p543
        %p1307 = pneg %p567
        %p1308 = pneg %p564
        %p1309 = pneg %p588
        %p1310 = pneg %p585
        %p1311 = pneg %p609
        %p1312 = pneg %p606
        %p1313 = pneg %p630
        %p1314 = pneg %p627
        %p1315 = pneg %p651
        %p1316 = pneg %p648
        %p1317 = pneg %p672
        %p1318 = pneg %p669
        %p1319 = pneg %p693
        %p1320 = pneg %p690
        %p1321 = pneg %p714
        %p1322 = pneg %p711
        %p1323 = pneg %p735
        %p1324 = pneg %p732
        %p1325 = pneg %p756
        %p1326 = pneg %p753
        %p1327 = pneg %p777
        %p1328 = pneg %p774
        %p1329 = pneg %p798
        %p1330 = pneg %p795
        %p1331 = pneg %p819
        %p1332 = pneg %p816
        %p1333 = pneg %p840
        %p1334 = pneg %p837
        %p1335 = pneg %p861
        %p1336 = pneg %p858
        %p1337 = pneg %p882
        %p1338 = pneg %p879
        %p1339 = pneg %p903
        %p1340 = pneg %p900
        %p1341 = pneg %p924
        %p1342 = pneg %p921
        %p1343 = pneg %p945
        %p1344 = pneg %p942
        %p1345 = pneg %p966
        %p1346 = pneg %p963
        %p1347 = pneg %p987
        %p1348 = pneg %p984
        %p1349 = pneg %p1008
        %p1350 = pneg %p1005
        %p1351 = pneg %p1029
        %p1352 = pneg %p1026
        %p1353 = pneg %p1055
        %p1354 = pneg %p1052
        %s1355 = sand.u32 %s1042, 1
        %s1356 = scalar_lea.sflag [#allocation17], %s1355
        %s1357 = sand.u32 %s1042, 1
        %s1358 = scalar_lea.vmem [#allocation21], %s1357
        %p1359 = scmp.lt.s32.totalorder %s105, 1
        %s1360 = scalar_select %p1359, %s105, 1
        %s1361 = smul.addr %s1360, 54
        %s1362 = smul.addr %s1361, 8
        %s1363 = scalar_lea.vmem %s1, %s1362
        %v1365 = vld [vmem:[%s1363] sm:$0xff]
        %v1366 = vld [vmem:[%s1363 + $0x8] sm:$0xff]
        %v1367 = vld [vmem:[%s1363 + $0x10] sm:$0x3]
        %v1368 = vld [vmem:[%s1363 + $0x18] sm:$0xff]
        %v1369 = vld [vmem:[%s1363 + $0x20] sm:$0xff]
        %v1370 = vld [vmem:[%s1363 + $0x28] sm:$0x3]
        %v1371 = vld [vmem:[%s1363 + $0x30] sm:$0xff]
        %v1372 = vld [vmem:[%s1363 + $0x38] sm:$0xff]
        %v1373 = vld [vmem:[%s1363 + $0x40] sm:$0x3]
        %v1374 = vld [vmem:[%s1363 + $0x48] sm:$0xff]
        %v1375 = vld [vmem:[%s1363 + $0x50] sm:$0xff]
        %v1376 = vld [vmem:[%s1363 + $0x58] sm:$0x3]
        %v1377 = vld [vmem:[%s1363 + $0x60] sm:$0xff]
        %v1378 = vld [vmem:[%s1363 + $0x68] sm:$0xff]
        %v1379 = vld [vmem:[%s1363 + $0x70] sm:$0x3]
        %v1380 = vld [vmem:[%s1363 + $0x78] sm:$0xff]
        %v1381 = vld [vmem:[%s1363 + $0x80] sm:$0xff]
        %v1382 = vld [vmem:[%s1363 + $0x88] sm:$0x3]
        %v1383 = vld [vmem:[%s1363 + $0x90] sm:$0xff]
        %v1384 = vld [vmem:[%s1363 + $0x98] sm:$0xff]
        %v1385 = vld [vmem:[%s1363 + $0xa0] sm:$0x3]
        %v1386 = vld [vmem:[%s1363 + $0xa8] sm:$0xff]
        %v1387 = vld [vmem:[%s1363 + $0xb0] sm:$0xff]
        %v1388 = vld [vmem:[%s1363 + $0xb8] sm:$0x3]
        %v1389 = vld [vmem:[%s1363 + $0xc0] sm:$0xff]
        %v1390 = vld [vmem:[%s1363 + $0xc8] sm:$0xff]
        %v1391 = vld [vmem:[%s1363 + $0xd0] sm:$0x3]
        %v1392 = vld [vmem:[%s1363 + $0xd8] sm:$0xff]
        %v1393 = vld [vmem:[%s1363 + $0xe0] sm:$0xff]
        %v1394 = vld [vmem:[%s1363 + $0xe8] sm:$0x3]
        %v1395 = vld [vmem:[%s1363 + $0xf0] sm:$0xff]
        %v1396 = vld [vmem:[%s1363 + $0xf8] sm:$0xff]
        %v1397 = vld [vmem:[%s1363 + $0x100] sm:$0x3]
        %v1398 = vld [vmem:[%s1363 + $0x108] sm:$0xff]
        %v1399 = vld [vmem:[%s1363 + $0x110] sm:$0xff]
        %v1400 = vld [vmem:[%s1363 + $0x118] sm:$0x3]
        %v1401 = vld [vmem:[%s1363 + $0x120] sm:$0xff]
        %v1402 = vld [vmem:[%s1363 + $0x128] sm:$0xff]
        %v1403 = vld [vmem:[%s1363 + $0x130] sm:$0x3]
        %v1404 = vld [vmem:[%s1363 + $0x138] sm:$0xff]
        %v1405 = vld [vmem:[%s1363 + $0x140] sm:$0xff]
        %v1406 = vld [vmem:[%s1363 + $0x148] sm:$0x3]
        %v1407 = vld [vmem:[%s1363 + $0x150] sm:$0xff]
        %v1408 = vld [vmem:[%s1363 + $0x158] sm:$0xff]
        %v1409 = vld [vmem:[%s1363 + $0x160] sm:$0x3]
        %v1410 = vld [vmem:[%s1363 + $0x168] sm:$0xff]
        %v1411 = vld [vmem:[%s1363 + $0x170] sm:$0xff]
        %v1412 = vld [vmem:[%s1363 + $0x178] sm:$0x3]
        %v1413 = vld [vmem:[%s1363 + $0x180] sm:$0xff]
        %v1414 = vld [vmem:[%s1363 + $0x188] sm:$0xff]
        %v1415 = vld [vmem:[%s1363 + $0x190] sm:$0x3]
        %v1416 = vld [vmem:[%s1363 + $0x198] sm:$0xff]
        %v1417 = vld [vmem:[%s1363 + $0x1a0] sm:$0xff]
        %v1418 = vld [vmem:[%s1363 + $0x1a8] sm:$0x3]
        %v1419 = vld [vmem:[%s3] sm:$0xff]
        %v1420 = vld [vmem:[%s3 + $0x8] sm:$0x1]
        %1422 = vset.pattern.permute.xlu0 0
        %1423 = vperm.xlu0 %1422, %v1365
        %v1424 = vpop.permute.xlu0 %1423
        %1427 = vset.pattern.permute.xlu0 0
        %1428 = vperm.xlu0 %1427, %v1366
        %v1429 = vpop.permute.xlu0 %1428
        %1432 = vset.pattern.permute.xlu0 0
        %1433 = vperm.xlu0 %1432, %v1368
        %v1434 = vpop.permute.xlu0 %1433
        %1437 = vset.pattern.permute.xlu0 0
        %1438 = vperm.xlu0 %1437, %v1369
        %v1439 = vpop.permute.xlu0 %1438
        %1442 = vset.pattern.permute.xlu0 0
        %1443 = vperm.xlu0 %1442, %v1371
        %v1444 = vpop.permute.xlu0 %1443
        %1447 = vset.pattern.permute.xlu0 0
        %1448 = vperm.xlu0 %1447, %v1372
        %v1449 = vpop.permute.xlu0 %1448
        %1452 = vset.pattern.permute.xlu0 0
        %1453 = vperm.xlu0 %1452, %v1374
        %v1454 = vpop.permute.xlu0 %1453
        %1457 = vset.pattern.permute.xlu0 0
        %1458 = vperm.xlu0 %1457, %v1375
        %v1459 = vpop.permute.xlu0 %1458
        %1462 = vset.pattern.permute.xlu0 0
        %1463 = vperm.xlu0 %1462, %v1377
        %v1464 = vpop.permute.xlu0 %1463
        %1467 = vset.pattern.permute.xlu0 0
        %1468 = vperm.xlu0 %1467, %v1378
        %v1469 = vpop.permute.xlu0 %1468
        %1472 = vset.pattern.permute.xlu0 0
        %1473 = vperm.xlu0 %1472, %v1380
        %v1474 = vpop.permute.xlu0 %1473
        %1477 = vset.pattern.permute.xlu0 0
        %1478 = vperm.xlu0 %1477, %v1381
        %v1479 = vpop.permute.xlu0 %1478
        %1482 = vset.pattern.permute.xlu0 0
        %1483 = vperm.xlu0 %1482, %v1383
        %v1484 = vpop.permute.xlu0 %1483
        %1487 = vset.pattern.permute.xlu0 0
        %1488 = vperm.xlu0 %1487, %v1384
        %v1489 = vpop.permute.xlu0 %1488
        %1492 = vset.pattern.permute.xlu0 0
        %1493 = vperm.xlu0 %1492, %v1386
        %v1494 = vpop.permute.xlu0 %1493
        %1497 = vset.pattern.permute.xlu0 0
        %1498 = vperm.xlu0 %1497, %v1387
        %v1499 = vpop.permute.xlu0 %1498
        %1502 = vset.pattern.permute.xlu0 0
        %1503 = vperm.xlu0 %1502, %v1389
        %v1504 = vpop.permute.xlu0 %1503
        %1507 = vset.pattern.permute.xlu0 0
        %1508 = vperm.xlu0 %1507, %v1390
        %v1509 = vpop.permute.xlu0 %1508
        %1512 = vset.pattern.permute.xlu0 0
        %1513 = vperm.xlu0 %1512, %v1392
        %v1514 = vpop.permute.xlu0 %1513
        %1517 = vset.pattern.permute.xlu0 0
        %1518 = vperm.xlu0 %1517, %v1393
        %v1519 = vpop.permute.xlu0 %1518
        %1522 = vset.pattern.permute.xlu0 0
        %1523 = vperm.xlu0 %1522, %v1395
        %v1524 = vpop.permute.xlu0 %1523
        %1527 = vset.pattern.permute.xlu0 0
        %1528 = vperm.xlu0 %1527, %v1396
        %v1529 = vpop.permute.xlu0 %1528
        %1532 = vset.pattern.permute.xlu0 0
        %1533 = vperm.xlu0 %1532, %v1398
        %v1534 = vpop.permute.xlu0 %1533
        %1537 = vset.pattern.permute.xlu0 0
        %1538 = vperm.xlu0 %1537, %v1399
        %v1539 = vpop.permute.xlu0 %1538
        %1542 = vset.pattern.permute.xlu0 0
        %1543 = vperm.xlu0 %1542, %v1401
        %v1544 = vpop.permute.xlu0 %1543
        %1547 = vset.pattern.permute.xlu0 0
        %1548 = vperm.xlu0 %1547, %v1402
        %v1549 = vpop.permute.xlu0 %1548
        %1552 = vset.pattern.permute.xlu0 0
        %1553 = vperm.xlu0 %1552, %v1404
        %v1554 = vpop.permute.xlu0 %1553
        %1557 = vset.pattern.permute.xlu0 0
        %1558 = vperm.xlu0 %1557, %v1405
        %v1559 = vpop.permute.xlu0 %1558
        %1562 = vset.pattern.permute.xlu0 0
        %1563 = vperm.xlu0 %1562, %v1407
        %v1564 = vpop.permute.xlu0 %1563
        %1567 = vset.pattern.permute.xlu0 0
        %1568 = vperm.xlu0 %1567, %v1408
        %v1569 = vpop.permute.xlu0 %1568
        %1572 = vset.pattern.permute.xlu0 0
        %1573 = vperm.xlu0 %1572, %v1410
        %v1574 = vpop.permute.xlu0 %1573
        %1577 = vset.pattern.permute.xlu0 0
        %1578 = vperm.xlu0 %1577, %v1411
        %v1579 = vpop.permute.xlu0 %1578
        %v1581 = vperm.slane %v1419, 0
        %v1582 = vmul.f32 %v1424, %v1581
        %v1583 = vmul.f32 %v1429, %v1581
        %v1584 = vmul.f32 %v1434, %v1581
        %v1585 = vmul.f32 %v1439, %v1581
        %v1586 = vmul.f32 %v1444, %v1581
        %v1587 = vmul.f32 %v1449, %v1581
        %v1588 = vmul.f32 %v1454, %v1581
        %v1589 = vmul.f32 %v1459, %v1581
        %v1590 = vmul.f32 %v1464, %v1581
        %v1591 = vmul.f32 %v1469, %v1581
        %v1592 = vmul.f32 %v1474, %v1581
        %v1593 = vmul.f32 %v1479, %v1581
        %v1594 = vmul.f32 %v1484, %v1581
        %v1595 = vmul.f32 %v1489, %v1581
        %v1596 = vmul.f32 %v1494, %v1581
        %v1597 = vmul.f32 %v1499, %v1581
        %v1598 = vmul.f32 %v1504, %v1581
        %v1599 = vmul.f32 %v1509, %v1581
        %v1600 = vmul.f32 %v1514, %v1581
        %v1601 = vmul.f32 %v1519, %v1581
        %v1602 = vmul.f32 %v1524, %v1581
        %v1603 = vmul.f32 %v1529, %v1581
        %v1604 = vmul.f32 %v1534, %v1581
        %v1605 = vmul.f32 %v1539, %v1581
        %v1606 = vmul.f32 %v1544, %v1581
        %v1607 = vmul.f32 %v1549, %v1581
        %v1608 = vmul.f32 %v1554, %v1581
        %v1609 = vmul.f32 %v1559, %v1581
        %v1610 = vmul.f32 %v1564, %v1581
        %v1611 = vmul.f32 %v1569, %v1581
        %v1612 = vmul.f32 %v1574, %v1581
        %v1613 = vmul.f32 %v1579, %v1581
        %v1614 = vadd.f32 %v1582, 0.0
        %v1615 = vadd.f32 %v1583, 0.0
        %v1616 = vadd.f32 %v1584, 0.0
        %v1617 = vadd.f32 %v1585, 0.0
        %v1618 = vadd.f32 %v1586, 0.0
        %v1619 = vadd.f32 %v1587, 0.0
        %v1620 = vadd.f32 %v1588, 0.0
        %v1621 = vadd.f32 %v1589, 0.0
        %v1622 = vadd.f32 %v1590, 0.0
        %v1623 = vadd.f32 %v1591, 0.0
        %v1624 = vadd.f32 %v1592, 0.0
        %v1625 = vadd.f32 %v1593, 0.0
        %v1626 = vadd.f32 %v1594, 0.0
        %v1627 = vadd.f32 %v1595, 0.0
        %v1628 = vadd.f32 %v1596, 0.0
        %v1629 = vadd.f32 %v1597, 0.0
        %v1630 = vadd.f32 %v1598, 0.0
        %v1631 = vadd.f32 %v1599, 0.0
        %v1632 = vadd.f32 %v1600, 0.0
        %v1633 = vadd.f32 %v1601, 0.0
        %v1634 = vadd.f32 %v1602, 0.0
        %v1635 = vadd.f32 %v1603, 0.0
        %v1636 = vadd.f32 %v1604, 0.0
        %v1637 = vadd.f32 %v1605, 0.0
        %v1638 = vadd.f32 %v1606, 0.0
        %v1639 = vadd.f32 %v1607, 0.0
        %v1640 = vadd.f32 %v1608, 0.0
        %v1641 = vadd.f32 %v1609, 0.0
        %v1642 = vadd.f32 %v1610, 0.0
        %v1643 = vadd.f32 %v1611, 0.0
        %v1644 = vadd.f32 %v1612, 0.0
        %v1645 = vadd.f32 %v1613, 0.0
        %1647 = vset.pattern.permute.xlu0 0
        %1648 = vperm.xlu0 %1647, %v1367
        %v1649 = vpop.permute.xlu0 %1648
        %1652 = vset.pattern.permute.xlu0 0
        %1653 = vperm.xlu0 %1652, %v1370
        %v1654 = vpop.permute.xlu0 %1653
        %1657 = vset.pattern.permute.xlu0 0
        %1658 = vperm.xlu0 %1657, %v1373
        %v1659 = vpop.permute.xlu0 %1658
        %1662 = vset.pattern.permute.xlu0 0
        %1663 = vperm.xlu0 %1662, %v1376
        %v1664 = vpop.permute.xlu0 %1663
        %1667 = vset.pattern.permute.xlu0 0
        %1668 = vperm.xlu0 %1667, %v1379
        %v1669 = vpop.permute.xlu0 %1668
        %1672 = vset.pattern.permute.xlu0 0
        %1673 = vperm.xlu0 %1672, %v1382
        %v1674 = vpop.permute.xlu0 %1673
        %1677 = vset.pattern.permute.xlu0 0
        %1678 = vperm.xlu0 %1677, %v1385
        %v1679 = vpop.permute.xlu0 %1678
        %1682 = vset.pattern.permute.xlu0 0
        %1683 = vperm.xlu0 %1682, %v1388
        %v1684 = vpop.permute.xlu0 %1683
        %1687 = vset.pattern.permute.xlu0 0
        %1688 = vperm.xlu0 %1687, %v1391
        %v1689 = vpop.permute.xlu0 %1688
        %1692 = vset.pattern.permute.xlu0 0
        %1693 = vperm.xlu0 %1692, %v1394
        %v1694 = vpop.permute.xlu0 %1693
        %1697 = vset.pattern.permute.xlu0 0
        %1698 = vperm.xlu0 %1697, %v1397
        %v1699 = vpop.permute.xlu0 %1698
        %1702 = vset.pattern.permute.xlu0 0
        %1703 = vperm.xlu0 %1702, %v1400
        %v1704 = vpop.permute.xlu0 %1703
        %1707 = vset.pattern.permute.xlu0 0
        %1708 = vperm.xlu0 %1707, %v1403
        %v1709 = vpop.permute.xlu0 %1708
        %1712 = vset.pattern.permute.xlu0 0
        %1713 = vperm.xlu0 %1712, %v1406
        %v1714 = vpop.permute.xlu0 %1713
        %1717 = vset.pattern.permute.xlu0 0
        %1718 = vperm.xlu0 %1717, %v1409
        %v1719 = vpop.permute.xlu0 %1718
        %1722 = vset.pattern.permute.xlu0 0
        %1723 = vperm.xlu0 %1722, %v1412
        %v1724 = vpop.permute.xlu0 %1723
        %v1726 = vperm.slane %v1419, 1
        %v1727 = vmul.f32 %v1424, %v1726
        %v1728 = vmul.f32 %v1429, %v1726
        %v1729 = vmul.f32 %v1649, %v1726
        %v1730 = vmul.f32 %v1434, %v1726
        %v1731 = vmul.f32 %v1439, %v1726
        %v1732 = vmul.f32 %v1654, %v1726
        %v1733 = vmul.f32 %v1444, %v1726
        %v1734 = vmul.f32 %v1449, %v1726
        %v1735 = vmul.f32 %v1659, %v1726
        %v1736 = vmul.f32 %v1454, %v1726
        %v1737 = vmul.f32 %v1459, %v1726
        %v1738 = vmul.f32 %v1664, %v1726
        %v1739 = vmul.f32 %v1464, %v1726
        %v1740 = vmul.f32 %v1469, %v1726
        %v1741 = vmul.f32 %v1669, %v1726
        %v1742 = vmul.f32 %v1474, %v1726
        %v1743 = vmul.f32 %v1479, %v1726
        %v1744 = vmul.f32 %v1674, %v1726
        %v1745 = vmul.f32 %v1484, %v1726
        %v1746 = vmul.f32 %v1489, %v1726
        %v1747 = vmul.f32 %v1679, %v1726
        %v1748 = vmul.f32 %v1494, %v1726
        %v1749 = vmul.f32 %v1499, %v1726
        %v1750 = vmul.f32 %v1684, %v1726
        %v1751 = vmul.f32 %v1504, %v1726
        %v1752 = vmul.f32 %v1509, %v1726
        %v1753 = vmul.f32 %v1689, %v1726
        %v1754 = vmul.f32 %v1514, %v1726
        %v1755 = vmul.f32 %v1519, %v1726
        %v1756 = vmul.f32 %v1694, %v1726
        %v1757 = vmul.f32 %v1524, %v1726
        %v1758 = vmul.f32 %v1529, %v1726
        %v1759 = vmul.f32 %v1699, %v1726
        %v1760 = vmul.f32 %v1534, %v1726
        %v1761 = vmul.f32 %v1539, %v1726
        %v1762 = vmul.f32 %v1704, %v1726
        %v1763 = vmul.f32 %v1544, %v1726
        %v1764 = vmul.f32 %v1549, %v1726
        %v1765 = vmul.f32 %v1709, %v1726
        %v1766 = vmul.f32 %v1554, %v1726
        %v1767 = vmul.f32 %v1559, %v1726
        %v1768 = vmul.f32 %v1714, %v1726
        %v1769 = vmul.f32 %v1564, %v1726
        %v1770 = vmul.f32 %v1569, %v1726
        %v1771 = vmul.f32 %v1719, %v1726
        %v1772 = vmul.f32 %v1574, %v1726
        %v1773 = vmul.f32 %v1579, %v1726
        %v1774 = vmul.f32 %v1724, %v1726
        %vm1823 = vcmask 1046528
        %v1824 = vrot.slane %v1727, 1
        %v1825 = vrot.slane %v1728, 1
        %v1826 = vsel %vm1823, %v1824, %v1825
        %v1827 = vrot.slane %v1729, 1
        %v1828 = vsel %vm1823, %v1825, %v1827
        %v1829 = vrot.slane %v1730, 1
        %v1830 = vrot.slane %v1731, 1
        %v1831 = vsel %vm1823, %v1829, %v1830
        %v1832 = vrot.slane %v1732, 1
        %v1833 = vsel %vm1823, %v1830, %v1832
        %v1834 = vrot.slane %v1733, 1
        %v1835 = vrot.slane %v1734, 1
        %v1836 = vsel %vm1823, %v1834, %v1835
        %v1837 = vrot.slane %v1735, 1
        %v1838 = vsel %vm1823, %v1835, %v1837
        %v1839 = vrot.slane %v1736, 1
        %v1840 = vrot.slane %v1737, 1
        %v1841 = vsel %vm1823, %v1839, %v1840
        %v1842 = vrot.slane %v1738, 1
        %v1843 = vsel %vm1823, %v1840, %v1842
        %v1844 = vrot.slane %v1739, 1
        %v1845 = vrot.slane %v1740, 1
        %v1846 = vsel %vm1823, %v1844, %v1845
        %v1847 = vrot.slane %v1741, 1
        %v1848 = vsel %vm1823, %v1845, %v1847
        %v1849 = vrot.slane %v1742, 1
        %v1850 = vrot.slane %v1743, 1
        %v1851 = vsel %vm1823, %v1849, %v1850
        %v1852 = vrot.slane %v1744, 1
        %v1853 = vsel %vm1823, %v1850, %v1852
        %v1854 = vrot.slane %v1745, 1
        %v1855 = vrot.slane %v1746, 1
        %v1856 = vsel %vm1823, %v1854, %v1855
        %v1857 = vrot.slane %v1747, 1
        %v1858 = vsel %vm1823, %v1855, %v1857
        %v1859 = vrot.slane %v1748, 1
        %v1860 = vrot.slane %v1749, 1
        %v1861 = vsel %vm1823, %v1859, %v1860
        %v1862 = vrot.slane %v1750, 1
        %v1863 = vsel %vm1823, %v1860, %v1862
        %v1864 = vrot.slane %v1751, 1
        %v1865 = vrot.slane %v1752, 1
        %v1866 = vsel %vm1823, %v1864, %v1865
        %v1867 = vrot.slane %v1753, 1
        %v1868 = vsel %vm1823, %v1865, %v1867
        %v1869 = vrot.slane %v1754, 1
        %v1870 = vrot.slane %v1755, 1
        %v1871 = vsel %vm1823, %v1869, %v1870
        %v1872 = vrot.slane %v1756, 1
        %v1873 = vsel %vm1823, %v1870, %v1872
        %v1874 = vrot.slane %v1757, 1
        %v1875 = vrot.slane %v1758, 1
        %v1876 = vsel %vm1823, %v1874, %v1875
        %v1877 = vrot.slane %v1759, 1
        %v1878 = vsel %vm1823, %v1875, %v1877
        %v1879 = vrot.slane %v1760, 1
        %v1880 = vrot.slane %v1761, 1
        %v1881 = vsel %vm1823, %v1879, %v1880
        %v1882 = vrot.slane %v1762, 1
        %v1883 = vsel %vm1823, %v1880, %v1882
        %v1884 = vrot.slane %v1763, 1
        %v1885 = vrot.slane %v1764, 1
        %v1886 = vsel %vm1823, %v1884, %v1885
        %v1887 = vrot.slane %v1765, 1
        %v1888 = vsel %vm1823, %v1885, %v1887
        %v1889 = vrot.slane %v1766, 1
        %v1890 = vrot.slane %v1767, 1
        %v1891 = vsel %vm1823, %v1889, %v1890
        %v1892 = vrot.slane %v1768, 1
        %v1893 = vsel %vm1823, %v1890, %v1892
        %v1894 = vrot.slane %v1769, 1
        %v1895 = vrot.slane %v1770, 1
        %v1896 = vsel %vm1823, %v1894, %v1895
        %v1897 = vrot.slane %v1771, 1
        %v1898 = vsel %vm1823, %v1895, %v1897
        %v1899 = vrot.slane %v1772, 1
        %v1900 = vrot.slane %v1773, 1
        %v1901 = vsel %vm1823, %v1899, %v1900
        %v1902 = vrot.slane %v1774, 1
        %v1903 = vsel %vm1823, %v1900, %v1902
        %v1936 = vadd.f32 %v1614, %v1826
        %v1937 = vadd.f32 %v1615, %v1828
        %v1938 = vadd.f32 %v1616, %v1831
        %v1939 = vadd.f32 %v1617, %v1833
        %v1940 = vadd.f32 %v1618, %v1836
        %v1941 = vadd.f32 %v1619, %v1838
        %v1942 = vadd.f32 %v1620, %v1841
        %v1943 = vadd.f32 %v1621, %v1843
        %v1944 = vadd.f32 %v1622, %v1846
        %v1945 = vadd.f32 %v1623, %v1848
        %v1946 = vadd.f32 %v1624, %v1851
        %v1947 = vadd.f32 %v1625, %v1853
        %v1948 = vadd.f32 %v1626, %v1856
        %v1949 = vadd.f32 %v1627, %v1858
        %v1950 = vadd.f32 %v1628, %v1861
        %v1951 = vadd.f32 %v1629, %v1863
        %v1952 = vadd.f32 %v1630, %v1866
        %v1953 = vadd.f32 %v1631, %v1868
        %v1954 = vadd.f32 %v1632, %v1871
        %v1955 = vadd.f32 %v1633, %v1873
        %v1956 = vadd.f32 %v1634, %v1876
        %v1957 = vadd.f32 %v1635, %v1878
        %v1958 = vadd.f32 %v1636, %v1881
        %v1959 = vadd.f32 %v1637, %v1883
        %v1960 = vadd.f32 %v1638, %v1886
        %v1961 = vadd.f32 %v1639, %v1888
        %v1962 = vadd.f32 %v1640, %v1891
        %v1963 = vadd.f32 %v1641, %v1893
        %v1964 = vadd.f32 %v1642, %v1896
        %v1965 = vadd.f32 %v1643, %v1898
        %v1966 = vadd.f32 %v1644, %v1901
        %v1967 = vadd.f32 %v1645, %v1903
        %v1968 = vperm.slane %v1419, 2
        %v1969 = vmul.f32 %v1424, %v1968
        %v1970 = vmul.f32 %v1429, %v1968
        %v1971 = vmul.f32 %v1649, %v1968
        %v1972 = vmul.f32 %v1434, %v1968
        %v1973 = vmul.f32 %v1439, %v1968
        %v1974 = vmul.f32 %v1654, %v1968
        %v1975 = vmul.f32 %v1444, %v1968
        %v1976 = vmul.f32 %v1449, %v1968
        %v1977 = vmul.f32 %v1659, %v1968
        %v1978 = vmul.f32 %v1454, %v1968
        %v1979 = vmul.f32 %v1459, %v1968
        %v1980 = vmul.f32 %v1664, %v1968
        %v1981 = vmul.f32 %v1464, %v1968
        %v1982 = vmul.f32 %v1469, %v1968
        %v1983 = vmul.f32 %v1669, %v1968
        %v1984 = vmul.f32 %v1474, %v1968
        %v1985 = vmul.f32 %v1479, %v1968
        %v1986 = vmul.f32 %v1674, %v1968
        %v1987 = vmul.f32 %v1484, %v1968
        %v1988 = vmul.f32 %v1489, %v1968
        %v1989 = vmul.f32 %v1679, %v1968
        %v1990 = vmul.f32 %v1494, %v1968
        %v1991 = vmul.f32 %v1499, %v1968
        %v1992 = vmul.f32 %v1684, %v1968
        %v1993 = vmul.f32 %v1504, %v1968
        %v1994 = vmul.f32 %v1509, %v1968
        %v1995 = vmul.f32 %v1689, %v1968
        %v1996 = vmul.f32 %v1514, %v1968
        %v1997 = vmul.f32 %v1519, %v1968
        %v1998 = vmul.f32 %v1694, %v1968
        %v1999 = vmul.f32 %v1524, %v1968
        %v2000 = vmul.f32 %v1529, %v1968
        %v2001 = vmul.f32 %v1699, %v1968
        %v2002 = vmul.f32 %v1534, %v1968
        %v2003 = vmul.f32 %v1539, %v1968
        %v2004 = vmul.f32 %v1704, %v1968
        %v2005 = vmul.f32 %v1544, %v1968
        %v2006 = vmul.f32 %v1549, %v1968
        %v2007 = vmul.f32 %v1709, %v1968
        %v2008 = vmul.f32 %v1554, %v1968
        %v2009 = vmul.f32 %v1559, %v1968
        %v2010 = vmul.f32 %v1714, %v1968
        %v2011 = vmul.f32 %v1564, %v1968
        %v2012 = vmul.f32 %v1569, %v1968
        %v2013 = vmul.f32 %v1719, %v1968
        %v2014 = vmul.f32 %v1574, %v1968
        %v2015 = vmul.f32 %v1579, %v1968
        %v2016 = vmul.f32 %v1724, %v1968
        %vm2065 = vcmask 1045504
        %v2066 = vrot.slane %v1969, 2
        %v2067 = vrot.slane %v1970, 2
        %v2068 = vsel %vm2065, %v2066, %v2067
        %v2069 = vrot.slane %v1971, 2
        %v2070 = vsel %vm2065, %v2067, %v2069
        %v2071 = vrot.slane %v1972, 2
        %v2072 = vrot.slane %v1973, 2
        %v2073 = vsel %vm2065, %v2071, %v2072
        %v2074 = vrot.slane %v1974, 2
        %v2075 = vsel %vm2065, %v2072, %v2074
        %v2076 = vrot.slane %v1975, 2
        %v2077 = vrot.slane %v1976, 2
        %v2078 = vsel %vm2065, %v2076, %v2077
        %v2079 = vrot.slane %v1977, 2
        %v2080 = vsel %vm2065, %v2077, %v2079
        %v2081 = vrot.slane %v1978, 2
        %v2082 = vrot.slane %v1979, 2
        %v2083 = vsel %vm2065, %v2081, %v2082
        %v2084 = vrot.slane %v1980, 2
        %v2085 = vsel %vm2065, %v2082, %v2084
        %v2086 = vrot.slane %v1981, 2
        %v2087 = vrot.slane %v1982, 2
        %v2088 = vsel %vm2065, %v2086, %v2087
        %v2089 = vrot.slane %v1983, 2
        %v2090 = vsel %vm2065, %v2087, %v2089
        %v2091 = vrot.slane %v1984, 2
        %v2092 = vrot.slane %v1985, 2
        %v2093 = vsel %vm2065, %v2091, %v2092
        %v2094 = vrot.slane %v1986, 2
        %v2095 = vsel %vm2065, %v2092, %v2094
        %v2096 = vrot.slane %v1987, 2
        %v2097 = vrot.slane %v1988, 2
        %v2098 = vsel %vm2065, %v2096, %v2097
        %v2099 = vrot.slane %v1989, 2
        %v2100 = vsel %vm2065, %v2097, %v2099
        %v2101 = vrot.slane %v1990, 2
        %v2102 = vrot.slane %v1991, 2
        %v2103 = vsel %vm2065, %v2101, %v2102
        %v2104 = vrot.slane %v1992, 2
        %v2105 = vsel %vm2065, %v2102, %v2104
        %v2106 = vrot.slane %v1993, 2
        %v2107 = vrot.slane %v1994, 2
        %v2108 = vsel %vm2065, %v2106, %v2107
        %v2109 = vrot.slane %v1995, 2
        %v2110 = vsel %vm2065, %v2107, %v2109
        %v2111 = vrot.slane %v1996, 2
        %v2112 = vrot.slane %v1997, 2
        %v2113 = vsel %vm2065, %v2111, %v2112
        %v2114 = vrot.slane %v1998, 2
        %v2115 = vsel %vm2065, %v2112, %v2114
        %v2116 = vrot.slane %v1999, 2
        %v2117 = vrot.slane %v2000, 2
        %v2118 = vsel %vm2065, %v2116, %v2117
        %v2119 = vrot.slane %v2001, 2
        %v2120 = vsel %vm2065, %v2117, %v2119
        %v2121 = vrot.slane %v2002, 2
        %v2122 = vrot.slane %v2003, 2
        %v2123 = vsel %vm2065, %v2121, %v2122
        %v2124 = vrot.slane %v2004, 2
        %v2125 = vsel %vm2065, %v2122, %v2124
        %v2126 = vrot.slane %v2005, 2
        %v2127 = vrot.slane %v2006, 2
        %v2128 = vsel %vm2065, %v2126, %v2127
        %v2129 = vrot.slane %v2007, 2
        %v2130 = vsel %vm2065, %v2127, %v2129
        %v2131 = vrot.slane %v2008, 2
        %v2132 = vrot.slane %v2009, 2
        %v2133 = vsel %vm2065, %v2131, %v2132
        %v2134 = vrot.slane %v2010, 2
        %v2135 = vsel %vm2065, %v2132, %v2134
        %v2136 = vrot.slane %v2011, 2
        %v2137 = vrot.slane %v2012, 2
        %v2138 = vsel %vm2065, %v2136, %v2137
        %v2139 = vrot.slane %v2013, 2
        %v2140 = vsel %vm2065, %v2137, %v2139
        %v2141 = vrot.slane %v2014, 2
        %v2142 = vrot.slane %v2015, 2
        %v2143 = vsel %vm2065, %v2141, %v2142
        %v2144 = vrot.slane %v2016, 2
        %v2145 = vsel %vm2065, %v2142, %v2144
        %v2178 = vadd.f32 %v1936, %v2068
        %v2179 = vadd.f32 %v1937, %v2070
        %v2180 = vadd.f32 %v1938, %v2073
        %v2181 = vadd.f32 %v1939, %v2075
        %v2182 = vadd.f32 %v1940, %v2078
        %v2183 = vadd.f32 %v1941, %v2080
        %v2184 = vadd.f32 %v1942, %v2083
        %v2185 = vadd.f32 %v1943, %v2085
        %v2186 = vadd.f32 %v1944, %v2088
        %v2187 = vadd.f32 %v1945, %v2090
        %v2188 = vadd.f32 %v1946, %v2093
        %v2189 = vadd.f32 %v1947, %v2095
        %v2190 = vadd.f32 %v1948, %v2098
        %v2191 = vadd.f32 %v1949, %v2100
        %v2192 = vadd.f32 %v1950, %v2103
        %v2193 = vadd.f32 %v1951, %v2105
        %v2194 = vadd.f32 %v1952, %v2108
        %v2195 = vadd.f32 %v1953, %v2110
        %v2196 = vadd.f32 %v1954, %v2113
        %v2197 = vadd.f32 %v1955, %v2115
        %v2198 = vadd.f32 %v1956, %v2118
        %v2199 = vadd.f32 %v1957, %v2120
        %v2200 = vadd.f32 %v1958, %v2123
        %v2201 = vadd.f32 %v1959, %v2125
        %v2202 = vadd.f32 %v1960, %v2128
        %v2203 = vadd.f32 %v1961, %v2130
        %v2204 = vadd.f32 %v1962, %v2133
        %v2205 = vadd.f32 %v1963, %v2135
        %v2206 = vadd.f32 %v1964, %v2138
        %v2207 = vadd.f32 %v1965, %v2140
        %v2208 = vadd.f32 %v1966, %v2143
        %v2209 = vadd.f32 %v1967, %v2145
        %2211 = vset.pattern.permute.xlu0 0
        %2212 = vperm.xlu0 %2211, %v1413
        %v2213 = vpop.permute.xlu0 %2212
        %2216 = vset.pattern.permute.xlu0 0
        %2217 = vperm.xlu0 %2216, %v1414
        %v2218 = vpop.permute.xlu0 %2217
        %v2220 = vperm.slane %v1419, 3
        %v2221 = vmul.f32 %v1434, %v2220
        %v2222 = vmul.f32 %v1439, %v2220
        %v2223 = vmul.f32 %v1444, %v2220
        %v2224 = vmul.f32 %v1449, %v2220
        %v2225 = vmul.f32 %v1454, %v2220
        %v2226 = vmul.f32 %v1459, %v2220
        %v2227 = vmul.f32 %v1464, %v2220
        %v2228 = vmul.f32 %v1469, %v2220
        %v2229 = vmul.f32 %v1474, %v2220
        %v2230 = vmul.f32 %v1479, %v2220
        %v2231 = vmul.f32 %v1484, %v2220
        %v2232 = vmul.f32 %v1489, %v2220
        %v2233 = vmul.f32 %v1494, %v2220
        %v2234 = vmul.f32 %v1499, %v2220
        %v2235 = vmul.f32 %v1504, %v2220
        %v2236 = vmul.f32 %v1509, %v2220
        %v2237 = vmul.f32 %v1514, %v2220
        %v2238 = vmul.f32 %v1519, %v2220
        %v2239 = vmul.f32 %v1524, %v2220
        %v2240 = vmul.f32 %v1529, %v2220
        %v2241 = vmul.f32 %v1534, %v2220
        %v2242 = vmul.f32 %v1539, %v2220
        %v2243 = vmul.f32 %v1544, %v2220
        %v2244 = vmul.f32 %v1549, %v2220
        %v2245 = vmul.f32 %v1554, %v2220
        %v2246 = vmul.f32 %v1559, %v2220
        %v2247 = vmul.f32 %v1564, %v2220
        %v2248 = vmul.f32 %v1569, %v2220
        %v2249 = vmul.f32 %v1574, %v2220
        %v2250 = vmul.f32 %v1579, %v2220
        %v2251 = vmul.f32 %v2213, %v2220
        %v2252 = vmul.f32 %v2218, %v2220
        %v2253 = vadd.f32 %v2178, %v2221
        %v2254 = vadd.f32 %v2179, %v2222
        %v2255 = vadd.f32 %v2180, %v2223
        %v2256 = vadd.f32 %v2181, %v2224
        %v2257 = vadd.f32 %v2182, %v2225
        %v2258 = vadd.f32 %v2183, %v2226
        %v2259 = vadd.f32 %v2184, %v2227
        %v2260 = vadd.f32 %v2185, %v2228
        %v2261 = vadd.f32 %v2186, %v2229
        %v2262 = vadd.f32 %v2187, %v2230
        %v2263 = vadd.f32 %v2188, %v2231
        %v2264 = vadd.f32 %v2189, %v2232
        %v2265 = vadd.f32 %v2190, %v2233
        %v2266 = vadd.f32 %v2191, %v2234
        %v2267 = vadd.f32 %v2192, %v2235
        %v2268 = vadd.f32 %v2193, %v2236
        %v2269 = vadd.f32 %v2194, %v2237
        %v2270 = vadd.f32 %v2195, %v2238
        %v2271 = vadd.f32 %v2196, %v2239
        %v2272 = vadd.f32 %v2197, %v2240
        %v2273 = vadd.f32 %v2198, %v2241
        %v2274 = vadd.f32 %v2199, %v2242
        %v2275 = vadd.f32 %v2200, %v2243
        %v2276 = vadd.f32 %v2201, %v2244
        %v2277 = vadd.f32 %v2202, %v2245
        %v2278 = vadd.f32 %v2203, %v2246
        %v2279 = vadd.f32 %v2204, %v2247
        %v2280 = vadd.f32 %v2205, %v2248
        %v2281 = vadd.f32 %v2206, %v2249
        %v2282 = vadd.f32 %v2207, %v2250
        %v2283 = vadd.f32 %v2208, %v2251
        %v2284 = vadd.f32 %v2209, %v2252
        %2286 = vset.pattern.permute.xlu0 0
        %2287 = vperm.xlu0 %2286, %v1415
        %v2288 = vpop.permute.xlu0 %2287
        %v2290 = vperm.slane %v1419, 4
        %v2291 = vmul.f32 %v1434, %v2290
        %v2292 = vmul.f32 %v1439, %v2290
        %v2293 = vmul.f32 %v1654, %v2290
        %v2294 = vmul.f32 %v1444, %v2290
        %v2295 = vmul.f32 %v1449, %v2290
        %v2296 = vmul.f32 %v1659, %v2290
        %v2297 = vmul.f32 %v1454, %v2290
        %v2298 = vmul.f32 %v1459, %v2290
        %v2299 = vmul.f32 %v1664, %v2290
        %v2300 = vmul.f32 %v1464, %v2290
        %v2301 = vmul.f32 %v1469, %v2290
        %v2302 = vmul.f32 %v1669, %v2290
        %v2303 = vmul.f32 %v1474, %v2290
        %v2304 = vmul.f32 %v1479, %v2290
        %v2305 = vmul.f32 %v1674, %v2290
        %v2306 = vmul.f32 %v1484, %v2290
        %v2307 = vmul.f32 %v1489, %v2290
        %v2308 = vmul.f32 %v1679, %v2290
        %v2309 = vmul.f32 %v1494, %v2290
        %v2310 = vmul.f32 %v1499, %v2290
        %v2311 = vmul.f32 %v1684, %v2290
        %v2312 = vmul.f32 %v1504, %v2290
        %v2313 = vmul.f32 %v1509, %v2290
        %v2314 = vmul.f32 %v1689, %v2290
        %v2315 = vmul.f32 %v1514, %v2290
        %v2316 = vmul.f32 %v1519, %v2290
        %v2317 = vmul.f32 %v1694, %v2290
        %v2318 = vmul.f32 %v1524, %v2290
        %v2319 = vmul.f32 %v1529, %v2290
        %v2320 = vmul.f32 %v1699, %v2290
        %v2321 = vmul.f32 %v1534, %v2290
        %v2322 = vmul.f32 %v1539, %v2290
        %v2323 = vmul.f32 %v1704, %v2290
        %v2324 = vmul.f32 %v1544, %v2290
        %v2325 = vmul.f32 %v1549, %v2290
        %v2326 = vmul.f32 %v1709, %v2290
        %v2327 = vmul.f32 %v1554, %v2290
        %v2328 = vmul.f32 %v1559, %v2290
        %v2329 = vmul.f32 %v1714, %v2290
        %v2330 = vmul.f32 %v1564, %v2290
        %v2331 = vmul.f32 %v1569, %v2290
        %v2332 = vmul.f32 %v1719, %v2290
        %v2333 = vmul.f32 %v1574, %v2290
        %v2334 = vmul.f32 %v1579, %v2290
        %v2335 = vmul.f32 %v1724, %v2290
        %v2336 = vmul.f32 %v2213, %v2290
        %v2337 = vmul.f32 %v2218, %v2290
        %v2338 = vmul.f32 %v2288, %v2290
        %v2387 = vrot.slane %v2291, 1
        %v2388 = vrot.slane %v2292, 1
        %v2389 = vsel %vm1823, %v2387, %v2388
        %v2390 = vrot.slane %v2293, 1
        %v2391 = vsel %vm1823, %v2388, %v2390
        %v2392 = vrot.slane %v2294, 1
        %v2393 = vrot.slane %v2295, 1
        %v2394 = vsel %vm1823, %v2392, %v2393
        %v2395 = vrot.slane %v2296, 1
        %v2396 = vsel %vm1823, %v2393, %v2395
        %v2397 = vrot.slane %v2297, 1
        %v2398 = vrot.slane %v2298, 1
        %v2399 = vsel %vm1823, %v2397, %v2398
        %v2400 = vrot.slane %v2299, 1
        %v2401 = vsel %vm1823, %v2398, %v2400
        %v2402 = vrot.slane %v2300, 1
        %v2403 = vrot.slane %v2301, 1
        %v2404 = vsel %vm1823, %v2402, %v2403
        %v2405 = vrot.slane %v2302, 1
        %v2406 = vsel %vm1823, %v2403, %v2405
        %v2407 = vrot.slane %v2303, 1
        %v2408 = vrot.slane %v2304, 1
        %v2409 = vsel %vm1823, %v2407, %v2408
        %v2410 = vrot.slane %v2305, 1
        %v2411 = vsel %vm1823, %v2408, %v2410
        %v2412 = vrot.slane %v2306, 1
        %v2413 = vrot.slane %v2307, 1
        %v2414 = vsel %vm1823, %v2412, %v2413
        %v2415 = vrot.slane %v2308, 1
        %v2416 = vsel %vm1823, %v2413, %v2415
        %v2417 = vrot.slane %v2309, 1
        %v2418 = vrot.slane %v2310, 1
        %v2419 = vsel %vm1823, %v2417, %v2418
        %v2420 = vrot.slane %v2311, 1
        %v2421 = vsel %vm1823, %v2418, %v2420
        %v2422 = vrot.slane %v2312, 1
        %v2423 = vrot.slane %v2313, 1
        %v2424 = vsel %vm1823, %v2422, %v2423
        %v2425 = vrot.slane %v2314, 1
        %v2426 = vsel %vm1823, %v2423, %v2425
        %v2427 = vrot.slane %v2315, 1
        %v2428 = vrot.slane %v2316, 1
        %v2429 = vsel %vm1823, %v2427, %v2428
        %v2430 = vrot.slane %v2317, 1
        %v2431 = vsel %vm1823, %v2428, %v2430
        %v2432 = vrot.slane %v2318, 1
        %v2433 = vrot.slane %v2319, 1
        %v2434 = vsel %vm1823, %v2432, %v2433
        %v2435 = vrot.slane %v2320, 1
        %v2436 = vsel %vm1823, %v2433, %v2435
        %v2437 = vrot.slane %v2321, 1
        %v2438 = vrot.slane %v2322, 1
        %v2439 = vsel %vm1823, %v2437, %v2438
        %v2440 = vrot.slane %v2323, 1
        %v2441 = vsel %vm1823, %v2438, %v2440
        %v2442 = vrot.slane %v2324, 1
        %v2443 = vrot.slane %v2325, 1
        %v2444 = vsel %vm1823, %v2442, %v2443
        %v2445 = vrot.slane %v2326, 1
        %v2446 = vsel %vm1823, %v2443, %v2445
        %v2447 = vrot.slane %v2327, 1
        %v2448 = vrot.slane %v2328, 1
        %v2449 = vsel %vm1823, %v2447, %v2448
        %v2450 = vrot.slane %v2329, 1
        %v2451 = vsel %vm1823, %v2448, %v2450
        %v2452 = vrot.slane %v2330, 1
        %v2453 = vrot.slane %v2331, 1
        %v2454 = vsel %vm1823, %v2452, %v2453
        %v2455 = vrot.slane %v2332, 1
        %v2456 = vsel %vm1823, %v2453, %v2455
        %v2457 = vrot.slane %v2333, 1
        %v2458 = vrot.slane %v2334, 1
        %v2459 = vsel %vm1823, %v2457, %v2458
        %v2460 = vrot.slane %v2335, 1
        %v2461 = vsel %vm1823, %v2458, %v2460
        %v2462 = vrot.slane %v2336, 1
        %v2463 = vrot.slane %v2337, 1
        %v2464 = vsel %vm1823, %v2462, %v2463
        %v2465 = vrot.slane %v2338, 1
        %v2466 = vsel %vm1823, %v2463, %v2465
        %v2499 = vadd.f32 %v2253, %v2389
        %v2500 = vadd.f32 %v2254, %v2391
        %v2501 = vadd.f32 %v2255, %v2394
        %v2502 = vadd.f32 %v2256, %v2396
        %v2503 = vadd.f32 %v2257, %v2399
        %v2504 = vadd.f32 %v2258, %v2401
        %v2505 = vadd.f32 %v2259, %v2404
        %v2506 = vadd.f32 %v2260, %v2406
        %v2507 = vadd.f32 %v2261, %v2409
        %v2508 = vadd.f32 %v2262, %v2411
        %v2509 = vadd.f32 %v2263, %v2414
        %v2510 = vadd.f32 %v2264, %v2416
        %v2511 = vadd.f32 %v2265, %v2419
        %v2512 = vadd.f32 %v2266, %v2421
        %v2513 = vadd.f32 %v2267, %v2424
        %v2514 = vadd.f32 %v2268, %v2426
        %v2515 = vadd.f32 %v2269, %v2429
        %v2516 = vadd.f32 %v2270, %v2431
        %v2517 = vadd.f32 %v2271, %v2434
        %v2518 = vadd.f32 %v2272, %v2436
        %v2519 = vadd.f32 %v2273, %v2439
        %v2520 = vadd.f32 %v2274, %v2441
        %v2521 = vadd.f32 %v2275, %v2444
        %v2522 = vadd.f32 %v2276, %v2446
        %v2523 = vadd.f32 %v2277, %v2449
        %v2524 = vadd.f32 %v2278, %v2451
        %v2525 = vadd.f32 %v2279, %v2454
        %v2526 = vadd.f32 %v2280, %v2456
        %v2527 = vadd.f32 %v2281, %v2459
        %v2528 = vadd.f32 %v2282, %v2461
        %v2529 = vadd.f32 %v2283, %v2464
        %v2530 = vadd.f32 %v2284, %v2466
        %v2531 = vperm.slane %v1419, 5
        %v2532 = vmul.f32 %v1434, %v2531
        %v2533 = vmul.f32 %v1439, %v2531
        %v2534 = vmul.f32 %v1654, %v2531
        %v2535 = vmul.f32 %v1444, %v2531
        %v2536 = vmul.f32 %v1449, %v2531
        %v2537 = vmul.f32 %v1659, %v2531
        %v2538 = vmul.f32 %v1454, %v2531
        %v2539 = vmul.f32 %v1459, %v2531
        %v2540 = vmul.f32 %v1664, %v2531
        %v2541 = vmul.f32 %v1464, %v2531
        %v2542 = vmul.f32 %v1469, %v2531
        %v2543 = vmul.f32 %v1669, %v2531
        %v2544 = vmul.f32 %v1474, %v2531
        %v2545 = vmul.f32 %v1479, %v2531
        %v2546 = vmul.f32 %v1674, %v2531
        %v2547 = vmul.f32 %v1484, %v2531
        %v2548 = vmul.f32 %v1489, %v2531
        %v2549 = vmul.f32 %v1679, %v2531
        %v2550 = vmul.f32 %v1494, %v2531
        %v2551 = vmul.f32 %v1499, %v2531
        %v2552 = vmul.f32 %v1684, %v2531
        %v2553 = vmul.f32 %v1504, %v2531
        %v2554 = vmul.f32 %v1509, %v2531
        %v2555 = vmul.f32 %v1689, %v2531
        %v2556 = vmul.f32 %v1514, %v2531
        %v2557 = vmul.f32 %v1519, %v2531
        %v2558 = vmul.f32 %v1694, %v2531
        %v2559 = vmul.f32 %v1524, %v2531
        %v2560 = vmul.f32 %v1529, %v2531
        %v2561 = vmul.f32 %v1699, %v2531
        %v2562 = vmul.f32 %v1534, %v2531
        %v2563 = vmul.f32 %v1539, %v2531
        %v2564 = vmul.f32 %v1704, %v2531
        %v2565 = vmul.f32 %v1544, %v2531
        %v2566 = vmul.f32 %v1549, %v2531
        %v2567 = vmul.f32 %v1709, %v2531
        %v2568 = vmul.f32 %v1554, %v2531
        %v2569 = vmul.f32 %v1559, %v2531
        %v2570 = vmul.f32 %v1714, %v2531
        %v2571 = vmul.f32 %v1564, %v2531
        %v2572 = vmul.f32 %v1569, %v2531
        %v2573 = vmul.f32 %v1719, %v2531
        %v2574 = vmul.f32 %v1574, %v2531
        %v2575 = vmul.f32 %v1579, %v2531
        %v2576 = vmul.f32 %v1724, %v2531
        %v2577 = vmul.f32 %v2213, %v2531
        %v2578 = vmul.f32 %v2218, %v2531
        %v2579 = vmul.f32 %v2288, %v2531
        %v2628 = vrot.slane %v2532, 2
        %v2629 = vrot.slane %v2533, 2
        %v2630 = vsel %vm2065, %v2628, %v2629
        %v2631 = vrot.slane %v2534, 2
        %v2632 = vsel %vm2065, %v2629, %v2631
        %v2633 = vrot.slane %v2535, 2
        %v2634 = vrot.slane %v2536, 2
        %v2635 = vsel %vm2065, %v2633, %v2634
        %v2636 = vrot.slane %v2537, 2
        %v2637 = vsel %vm2065, %v2634, %v2636
        %v2638 = vrot.slane %v2538, 2
        %v2639 = vrot.slane %v2539, 2
        %v2640 = vsel %vm2065, %v2638, %v2639
        %v2641 = vrot.slane %v2540, 2
        %v2642 = vsel %vm2065, %v2639, %v2641
        %v2643 = vrot.slane %v2541, 2
        %v2644 = vrot.slane %v2542, 2
        %v2645 = vsel %vm2065, %v2643, %v2644
        %v2646 = vrot.slane %v2543, 2
        %v2647 = vsel %vm2065, %v2644, %v2646
        %v2648 = vrot.slane %v2544, 2
        %v2649 = vrot.slane %v2545, 2
        %v2650 = vsel %vm2065, %v2648, %v2649
        %v2651 = vrot.slane %v2546, 2
        %v2652 = vsel %vm2065, %v2649, %v2651
        %v2653 = vrot.slane %v2547, 2
        %v2654 = vrot.slane %v2548, 2
        %v2655 = vsel %vm2065, %v2653, %v2654
        %v2656 = vrot.slane %v2549, 2
        %v2657 = vsel %vm2065, %v2654, %v2656
        %v2658 = vrot.slane %v2550, 2
        %v2659 = vrot.slane %v2551, 2
        %v2660 = vsel %vm2065, %v2658, %v2659
        %v2661 = vrot.slane %v2552, 2
        %v2662 = vsel %vm2065, %v2659, %v2661
        %v2663 = vrot.slane %v2553, 2
        %v2664 = vrot.slane %v2554, 2
        %v2665 = vsel %vm2065, %v2663, %v2664
        %v2666 = vrot.slane %v2555, 2
        %v2667 = vsel %vm2065, %v2664, %v2666
        %v2668 = vrot.slane %v2556, 2
        %v2669 = vrot.slane %v2557, 2
        %v2670 = vsel %vm2065, %v2668, %v2669
        %v2671 = vrot.slane %v2558, 2
        %v2672 = vsel %vm2065, %v2669, %v2671
        %v2673 = vrot.slane %v2559, 2
        %v2674 = vrot.slane %v2560, 2
        %v2675 = vsel %vm2065, %v2673, %v2674
        %v2676 = vrot.slane %v2561, 2
        %v2677 = vsel %vm2065, %v2674, %v2676
        %v2678 = vrot.slane %v2562, 2
        %v2679 = vrot.slane %v2563, 2
        %v2680 = vsel %vm2065, %v2678, %v2679
        %v2681 = vrot.slane %v2564, 2
        %v2682 = vsel %vm2065, %v2679, %v2681
        %v2683 = vrot.slane %v2565, 2
        %v2684 = vrot.slane %v2566, 2
        %v2685 = vsel %vm2065, %v2683, %v2684
        %v2686 = vrot.slane %v2567, 2
        %v2687 = vsel %vm2065, %v2684, %v2686
        %v2688 = vrot.slane %v2568, 2
        %v2689 = vrot.slane %v2569, 2
        %v2690 = vsel %vm2065, %v2688, %v2689
        %v2691 = vrot.slane %v2570, 2
        %v2692 = vsel %vm2065, %v2689, %v2691
        %v2693 = vrot.slane %v2571, 2
        %v2694 = vrot.slane %v2572, 2
        %v2695 = vsel %vm2065, %v2693, %v2694
        %v2696 = vrot.slane %v2573, 2
        %v2697 = vsel %vm2065, %v2694, %v2696
        %v2698 = vrot.slane %v2574, 2
        %v2699 = vrot.slane %v2575, 2
        %v2700 = vsel %vm2065, %v2698, %v2699
        %v2701 = vrot.slane %v2576, 2
        %v2702 = vsel %vm2065, %v2699, %v2701
        %v2703 = vrot.slane %v2577, 2
        %v2704 = vrot.slane %v2578, 2
        %v2705 = vsel %vm2065, %v2703, %v2704
        %v2706 = vrot.slane %v2579, 2
        %v2707 = vsel %vm2065, %v2704, %v2706
        %v2740 = vadd.f32 %v2499, %v2630
        %v2741 = vadd.f32 %v2500, %v2632
        %v2742 = vadd.f32 %v2501, %v2635
        %v2743 = vadd.f32 %v2502, %v2637
        %v2744 = vadd.f32 %v2503, %v2640
        %v2745 = vadd.f32 %v2504, %v2642
        %v2746 = vadd.f32 %v2505, %v2645
        %v2747 = vadd.f32 %v2506, %v2647
        %v2748 = vadd.f32 %v2507, %v2650
        %v2749 = vadd.f32 %v2508, %v2652
        %v2750 = vadd.f32 %v2509, %v2655
        %v2751 = vadd.f32 %v2510, %v2657
        %v2752 = vadd.f32 %v2511, %v2660
        %v2753 = vadd.f32 %v2512, %v2662
        %v2754 = vadd.f32 %v2513, %v2665
        %v2755 = vadd.f32 %v2514, %v2667
        %v2756 = vadd.f32 %v2515, %v2670
        %v2757 = vadd.f32 %v2516, %v2672
        %v2758 = vadd.f32 %v2517, %v2675
        %v2759 = vadd.f32 %v2518, %v2677
        %v2760 = vadd.f32 %v2519, %v2680
        %v2761 = vadd.f32 %v2520, %v2682
        %v2762 = vadd.f32 %v2521, %v2685
        %v2763 = vadd.f32 %v2522, %v2687
        %v2764 = vadd.f32 %v2523, %v2690
        %v2765 = vadd.f32 %v2524, %v2692
        %v2766 = vadd.f32 %v2525, %v2695
        %v2767 = vadd.f32 %v2526, %v2697
        %v2768 = vadd.f32 %v2527, %v2700
        %v2769 = vadd.f32 %v2528, %v2702
        %v2770 = vadd.f32 %v2529, %v2705
        %v2771 = vadd.f32 %v2530, %v2707
        %2773 = vset.pattern.permute.xlu0 0
        %2774 = vperm.xlu0 %2773, %v1416
        %v2775 = vpop.permute.xlu0 %2774
        %2778 = vset.pattern.permute.xlu0 0
        %2779 = vperm.xlu0 %2778, %v1417
        %v2780 = vpop.permute.xlu0 %2779
        %v2782 = vperm.slane %v1419, 6
        %v2783 = vmul.f32 %v1444, %v2782
        %v2784 = vmul.f32 %v1449, %v2782
        %v2785 = vmul.f32 %v1454, %v2782
        %v2786 = vmul.f32 %v1459, %v2782
        %v2787 = vmul.f32 %v1464, %v2782
        %v2788 = vmul.f32 %v1469, %v2782
        %v2789 = vmul.f32 %v1474, %v2782
        %v2790 = vmul.f32 %v1479, %v2782
        %v2791 = vmul.f32 %v1484, %v2782
        %v2792 = vmul.f32 %v1489, %v2782
        %v2793 = vmul.f32 %v1494, %v2782
        %v2794 = vmul.f32 %v1499, %v2782
        %v2795 = vmul.f32 %v1504, %v2782
        %v2796 = vmul.f32 %v1509, %v2782
        %v2797 = vmul.f32 %v1514, %v2782
        %v2798 = vmul.f32 %v1519, %v2782
        %v2799 = vmul.f32 %v1524, %v2782
        %v2800 = vmul.f32 %v1529, %v2782
        %v2801 = vmul.f32 %v1534, %v2782
        %v2802 = vmul.f32 %v1539, %v2782
        %v2803 = vmul.f32 %v1544, %v2782
        %v2804 = vmul.f32 %v1549, %v2782
        %v2805 = vmul.f32 %v1554, %v2782
        %v2806 = vmul.f32 %v1559, %v2782
        %v2807 = vmul.f32 %v1564, %v2782
        %v2808 = vmul.f32 %v1569, %v2782
        %v2809 = vmul.f32 %v1574, %v2782
        %v2810 = vmul.f32 %v1579, %v2782
        %v2811 = vmul.f32 %v2213, %v2782
        %v2812 = vmul.f32 %v2218, %v2782
        %v2813 = vmul.f32 %v2775, %v2782
        %v2814 = vmul.f32 %v2780, %v2782
        %v2815 = vadd.f32 %v2740, %v2783
        %v2816 = vadd.f32 %v2741, %v2784
        %v2817 = vadd.f32 %v2742, %v2785
        %v2818 = vadd.f32 %v2743, %v2786
        %v2819 = vadd.f32 %v2744, %v2787
        %v2820 = vadd.f32 %v2745, %v2788
        %v2821 = vadd.f32 %v2746, %v2789
        %v2822 = vadd.f32 %v2747, %v2790
        %v2823 = vadd.f32 %v2748, %v2791
        %v2824 = vadd.f32 %v2749, %v2792
        %v2825 = vadd.f32 %v2750, %v2793
        %v2826 = vadd.f32 %v2751, %v2794
        %v2827 = vadd.f32 %v2752, %v2795
        %v2828 = vadd.f32 %v2753, %v2796
        %v2829 = vadd.f32 %v2754, %v2797
        %v2830 = vadd.f32 %v2755, %v2798
        %v2831 = vadd.f32 %v2756, %v2799
        %v2832 = vadd.f32 %v2757, %v2800
        %v2833 = vadd.f32 %v2758, %v2801
        %v2834 = vadd.f32 %v2759, %v2802
        %v2835 = vadd.f32 %v2760, %v2803
        %v2836 = vadd.f32 %v2761, %v2804
        %v2837 = vadd.f32 %v2762, %v2805
        %v2838 = vadd.f32 %v2763, %v2806
        %v2839 = vadd.f32 %v2764, %v2807
        %v2840 = vadd.f32 %v2765, %v2808
        %v2841 = vadd.f32 %v2766, %v2809
        %v2842 = vadd.f32 %v2767, %v2810
        %v2843 = vadd.f32 %v2768, %v2811
        %v2844 = vadd.f32 %v2769, %v2812
        %v2845 = vadd.f32 %v2770, %v2813
        %v2846 = vadd.f32 %v2771, %v2814
        %2848 = vset.pattern.permute.xlu0 0
        %2849 = vperm.xlu0 %2848, %v1418
        %v2850 = vpop.permute.xlu0 %2849
        %v2852 = vperm.slane %v1419, 7
        %v2853 = vmul.f32 %v1444, %v2852
        %v2854 = vmul.f32 %v1449, %v2852
        %v2855 = vmul.f32 %v1659, %v2852
        %v2856 = vmul.f32 %v1454, %v2852
        %v2857 = vmul.f32 %v1459, %v2852
        %v2858 = vmul.f32 %v1664, %v2852
        %v2859 = vmul.f32 %v1464, %v2852
        %v2860 = vmul.f32 %v1469, %v2852
        %v2861 = vmul.f32 %v1669, %v2852
        %v2862 = vmul.f32 %v1474, %v2852
        %v2863 = vmul.f32 %v1479, %v2852
        %v2864 = vmul.f32 %v1674, %v2852
        %v2865 = vmul.f32 %v1484, %v2852
        %v2866 = vmul.f32 %v1489, %v2852
        %v2867 = vmul.f32 %v1679, %v2852
        %v2868 = vmul.f32 %v1494, %v2852
        %v2869 = vmul.f32 %v1499, %v2852
        %v2870 = vmul.f32 %v1684, %v2852
        %v2871 = vmul.f32 %v1504, %v2852
        %v2872 = vmul.f32 %v1509, %v2852
        %v2873 = vmul.f32 %v1689, %v2852
        %v2874 = vmul.f32 %v1514, %v2852
        %v2875 = vmul.f32 %v1519, %v2852
        %v2876 = vmul.f32 %v1694, %v2852
        %v2877 = vmul.f32 %v1524, %v2852
        %v2878 = vmul.f32 %v1529, %v2852
        %v2879 = vmul.f32 %v1699, %v2852
        %v2880 = vmul.f32 %v1534, %v2852
        %v2881 = vmul.f32 %v1539, %v2852
        %v2882 = vmul.f32 %v1704, %v2852
        %v2883 = vmul.f32 %v1544, %v2852
        %v2884 = vmul.f32 %v1549, %v2852
        %v2885 = vmul.f32 %v1709, %v2852
        %v2886 = vmul.f32 %v1554, %v2852
        %v2887 = vmul.f32 %v1559, %v2852
        %v2888 = vmul.f32 %v1714, %v2852
        %v2889 = vmul.f32 %v1564, %v2852
        %v2890 = vmul.f32 %v1569, %v2852
        %v2891 = vmul.f32 %v1719, %v2852
        %v2892 = vmul.f32 %v1574, %v2852
        %v2893 = vmul.f32 %v1579, %v2852
        %v2894 = vmul.f32 %v1724, %v2852
        %v2895 = vmul.f32 %v2213, %v2852
        %v2896 = vmul.f32 %v2218, %v2852
        %v2897 = vmul.f32 %v2288, %v2852
        %v2898 = vmul.f32 %v2775, %v2852
        %v2899 = vmul.f32 %v2780, %v2852
        %v2900 = vmul.f32 %v2850, %v2852
        %v2949 = vrot.slane %v2853, 1
        %v2950 = vrot.slane %v2854, 1
        %v2951 = vsel %vm1823, %v2949, %v2950
        %v2952 = vrot.slane %v2855, 1
        %v2953 = vsel %vm1823, %v2950, %v2952
        %v2954 = vrot.slane %v2856, 1
        %v2955 = vrot.slane %v2857, 1
        %v2956 = vsel %vm1823, %v2954, %v2955
        %v2957 = vrot.slane %v2858, 1
        %v2958 = vsel %vm1823, %v2955, %v2957
        %v2959 = vrot.slane %v2859, 1
        %v2960 = vrot.slane %v2860, 1
        %v2961 = vsel %vm1823, %v2959, %v2960
        %v2962 = vrot.slane %v2861, 1
        %v2963 = vsel %vm1823, %v2960, %v2962
        %v2964 = vrot.slane %v2862, 1
        %v2965 = vrot.slane %v2863, 1
        %v2966 = vsel %vm1823, %v2964, %v2965
        %v2967 = vrot.slane %v2864, 1
        %v2968 = vsel %vm1823, %v2965, %v2967
        %v2969 = vrot.slane %v2865, 1
        %v2970 = vrot.slane %v2866, 1
        %v2971 = vsel %vm1823, %v2969, %v2970
        %v2972 = vrot.slane %v2867, 1
        %v2973 = vsel %vm1823, %v2970, %v2972
        %v2974 = vrot.slane %v2868, 1
        %v2975 = vrot.slane %v2869, 1
        %v2976 = vsel %vm1823, %v2974, %v2975
        %v2977 = vrot.slane %v2870, 1
        %v2978 = vsel %vm1823, %v2975, %v2977
        %v2979 = vrot.slane %v2871, 1
        %v2980 = vrot.slane %v2872, 1
        %v2981 = vsel %vm1823, %v2979, %v2980
        %v2982 = vrot.slane %v2873, 1
        %v2983 = vsel %vm1823, %v2980, %v2982
        %v2984 = vrot.slane %v2874, 1
        %v2985 = vrot.slane %v2875, 1
        %v2986 = vsel %vm1823, %v2984, %v2985
        %v2987 = vrot.slane %v2876, 1
        %v2988 = vsel %vm1823, %v2985, %v2987
        %v2989 = vrot.slane %v2877, 1
        %v2990 = vrot.slane %v2878, 1
        %v2991 = vsel %vm1823, %v2989, %v2990
        %v2992 = vrot.slane %v2879, 1
        %v2993 = vsel %vm1823, %v2990, %v2992
        %v2994 = vrot.slane %v2880, 1
        %v2995 = vrot.slane %v2881, 1
        %v2996 = vsel %vm1823, %v2994, %v2995
        %v2997 = vrot.slane %v2882, 1
        %v2998 = vsel %vm1823, %v2995, %v2997
        %v2999 = vrot.slane %v2883, 1
        %v3000 = vrot.slane %v2884, 1
        %v3001 = vsel %vm1823, %v2999, %v3000
        %v3002 = vrot.slane %v2885, 1
        %v3003 = vsel %vm1823, %v3000, %v3002
        %v3004 = vrot.slane %v2886, 1
        %v3005 = vrot.slane %v2887, 1
        %v3006 = vsel %vm1823, %v3004, %v3005
        %v3007 = vrot.slane %v2888, 1
        %v3008 = vsel %vm1823, %v3005, %v3007
        %v3009 = vrot.slane %v2889, 1
        %v3010 = vrot.slane %v2890, 1
        %v3011 = vsel %vm1823, %v3009, %v3010
        %v3012 = vrot.slane %v2891, 1
        %v3013 = vsel %vm1823, %v3010, %v3012
        %v3014 = vrot.slane %v2892, 1
        %v3015 = vrot.slane %v2893, 1
        %v3016 = vsel %vm1823, %v3014, %v3015
        %v3017 = vrot.slane %v2894, 1
        %v3018 = vsel %vm1823, %v3015, %v3017
        %v3019 = vrot.slane %v2895, 1
        %v3020 = vrot.slane %v2896, 1
        %v3021 = vsel %vm1823, %v3019, %v3020
        %v3022 = vrot.slane %v2897, 1
        %v3023 = vsel %vm1823, %v3020, %v3022
        %v3024 = vrot.slane %v2898, 1
        %v3025 = vrot.slane %v2899, 1
        %v3026 = vsel %vm1823, %v3024, %v3025
        %v3027 = vrot.slane %v2900, 1
        %v3028 = vsel %vm1823, %v3025, %v3027
        %v3061 = vadd.f32 %v2815, %v2951
        %v3062 = vadd.f32 %v2816, %v2953
        %v3063 = vadd.f32 %v2817, %v2956
        %v3064 = vadd.f32 %v2818, %v2958
        %v3065 = vadd.f32 %v2819, %v2961
        %v3066 = vadd.f32 %v2820, %v2963
        %v3067 = vadd.f32 %v2821, %v2966
        %v3068 = vadd.f32 %v2822, %v2968
        %v3069 = vadd.f32 %v2823, %v2971
        %v3070 = vadd.f32 %v2824, %v2973
        %v3071 = vadd.f32 %v2825, %v2976
        %v3072 = vadd.f32 %v2826, %v2978
        %v3073 = vadd.f32 %v2827, %v2981
        %v3074 = vadd.f32 %v2828, %v2983
        %v3075 = vadd.f32 %v2829, %v2986
        %v3076 = vadd.f32 %v2830, %v2988
        %v3077 = vadd.f32 %v2831, %v2991
        %v3078 = vadd.f32 %v2832, %v2993
        %v3079 = vadd.f32 %v2833, %v2996
        %v3080 = vadd.f32 %v2834, %v2998
        %v3081 = vadd.f32 %v2835, %v3001
        %v3082 = vadd.f32 %v2836, %v3003
        %v3083 = vadd.f32 %v2837, %v3006
        %v3084 = vadd.f32 %v2838, %v3008
        %v3085 = vadd.f32 %v2839, %v3011
        %v3086 = vadd.f32 %v2840, %v3013
        %v3087 = vadd.f32 %v2841, %v3016
        %v3088 = vadd.f32 %v2842, %v3018
        %v3089 = vadd.f32 %v2843, %v3021
        %v3090 = vadd.f32 %v2844, %v3023
        %v3091 = vadd.f32 %v2845, %v3026
        %v3092 = vadd.f32 %v2846, %v3028
        %v3093 = vperm.slane %v1420, 0
        %v3094 = vmul.f32 %v1444, %v3093
        %v3095 = vmul.f32 %v1449, %v3093
        %v3096 = vmul.f32 %v1659, %v3093
        %v3097 = vmul.f32 %v1454, %v3093
        %v3098 = vmul.f32 %v1459, %v3093
        %v3099 = vmul.f32 %v1664, %v3093
        %v3100 = vmul.f32 %v1464, %v3093
        %v3101 = vmul.f32 %v1469, %v3093
        %v3102 = vmul.f32 %v1669, %v3093
        %v3103 = vmul.f32 %v1474, %v3093
        %v3104 = vmul.f32 %v1479, %v3093
        %v3105 = vmul.f32 %v1674, %v3093
        %v3106 = vmul.f32 %v1484, %v3093
        %v3107 = vmul.f32 %v1489, %v3093
        %v3108 = vmul.f32 %v1679, %v3093
        %v3109 = vmul.f32 %v1494, %v3093
        %v3110 = vmul.f32 %v1499, %v3093
        %v3111 = vmul.f32 %v1684, %v3093
        %v3112 = vmul.f32 %v1504, %v3093
        %v3113 = vmul.f32 %v1509, %v3093
        %v3114 = vmul.f32 %v1689, %v3093
        %v3115 = vmul.f32 %v1514, %v3093
        %v3116 = vmul.f32 %v1519, %v3093
        %v3117 = vmul.f32 %v1694, %v3093
        %v3118 = vmul.f32 %v1524, %v3093
        %v3119 = vmul.f32 %v1529, %v3093
        %v3120 = vmul.f32 %v1699, %v3093
        %v3121 = vmul.f32 %v1534, %v3093
        %v3122 = vmul.f32 %v1539, %v3093
        %v3123 = vmul.f32 %v1704, %v3093
        %v3124 = vmul.f32 %v1544, %v3093
        %v3125 = vmul.f32 %v1549, %v3093
        %v3126 = vmul.f32 %v1709, %v3093
        %v3127 = vmul.f32 %v1554, %v3093
        %v3128 = vmul.f32 %v1559, %v3093
        %v3129 = vmul.f32 %v1714, %v3093
        %v3130 = vmul.f32 %v1564, %v3093
        %v3131 = vmul.f32 %v1569, %v3093
        %v3132 = vmul.f32 %v1719, %v3093
        %v3133 = vmul.f32 %v1574, %v3093
        %v3134 = vmul.f32 %v1579, %v3093
        %v3135 = vmul.f32 %v1724, %v3093
        %v3136 = vmul.f32 %v2213, %v3093
        %v3137 = vmul.f32 %v2218, %v3093
        %v3138 = vmul.f32 %v2288, %v3093
        %v3139 = vmul.f32 %v2775, %v3093
        %v3140 = vmul.f32 %v2780, %v3093
        %v3141 = vmul.f32 %v2850, %v3093
        %v3190 = vrot.slane %v3094, 2
        %v3191 = vrot.slane %v3095, 2
        %v3192 = vsel %vm2065, %v3190, %v3191
        %v3193 = vrot.slane %v3096, 2
        %v3194 = vsel %vm2065, %v3191, %v3193
        %v3195 = vrot.slane %v3097, 2
        %v3196 = vrot.slane %v3098, 2
        %v3197 = vsel %vm2065, %v3195, %v3196
        %v3198 = vrot.slane %v3099, 2
        %v3199 = vsel %vm2065, %v3196, %v3198
        %v3200 = vrot.slane %v3100, 2
        %v3201 = vrot.slane %v3101, 2
        %v3202 = vsel %vm2065, %v3200, %v3201
        %v3203 = vrot.slane %v3102, 2
        %v3204 = vsel %vm2065, %v3201, %v3203
        %v3205 = vrot.slane %v3103, 2
        %v3206 = vrot.slane %v3104, 2
        %v3207 = vsel %vm2065, %v3205, %v3206
        %v3208 = vrot.slane %v3105, 2
        %v3209 = vsel %vm2065, %v3206, %v3208
        %v3210 = vrot.slane %v3106, 2
        %v3211 = vrot.slane %v3107, 2
        %v3212 = vsel %vm2065, %v3210, %v3211
        %v3213 = vrot.slane %v3108, 2
        %v3214 = vsel %vm2065, %v3211, %v3213
        %v3215 = vrot.slane %v3109, 2
        %v3216 = vrot.slane %v3110, 2
        %v3217 = vsel %vm2065, %v3215, %v3216
        %v3218 = vrot.slane %v3111, 2
        %v3219 = vsel %vm2065, %v3216, %v3218
        %v3220 = vrot.slane %v3112, 2
        %v3221 = vrot.slane %v3113, 2
        %v3222 = vsel %vm2065, %v3220, %v3221
        %v3223 = vrot.slane %v3114, 2
        %v3224 = vsel %vm2065, %v3221, %v3223
        %v3225 = vrot.slane %v3115, 2
        %v3226 = vrot.slane %v3116, 2
        %v3227 = vsel %vm2065, %v3225, %v3226
        %v3228 = vrot.slane %v3117, 2
        %v3229 = vsel %vm2065, %v3226, %v3228
        %v3230 = vrot.slane %v3118, 2
        %v3231 = vrot.slane %v3119, 2
        %v3232 = vsel %vm2065, %v3230, %v3231
        %v3233 = vrot.slane %v3120, 2
        %v3234 = vsel %vm2065, %v3231, %v3233
        %v3235 = vrot.slane %v3121, 2
        %v3236 = vrot.slane %v3122, 2
        %v3237 = vsel %vm2065, %v3235, %v3236
        %v3238 = vrot.slane %v3123, 2
        %v3239 = vsel %vm2065, %v3236, %v3238
        %v3240 = vrot.slane %v3124, 2
        %v3241 = vrot.slane %v3125, 2
        %v3242 = vsel %vm2065, %v3240, %v3241
        %v3243 = vrot.slane %v3126, 2
        %v3244 = vsel %vm2065, %v3241, %v3243
        %v3245 = vrot.slane %v3127, 2
        %v3246 = vrot.slane %v3128, 2
        %v3247 = vsel %vm2065, %v3245, %v3246
        %v3248 = vrot.slane %v3129, 2
        %v3249 = vsel %vm2065, %v3246, %v3248
        %v3250 = vrot.slane %v3130, 2
        %v3251 = vrot.slane %v3131, 2
        %v3252 = vsel %vm2065, %v3250, %v3251
        %v3253 = vrot.slane %v3132, 2
        %v3254 = vsel %vm2065, %v3251, %v3253
        %v3255 = vrot.slane %v3133, 2
        %v3256 = vrot.slane %v3134, 2
        %v3257 = vsel %vm2065, %v3255, %v3256
        %v3258 = vrot.slane %v3135, 2
        %v3259 = vsel %vm2065, %v3256, %v3258
        %v3260 = vrot.slane %v3136, 2
        %v3261 = vrot.slane %v3137, 2
        %v3262 = vsel %vm2065, %v3260, %v3261
        %v3263 = vrot.slane %v3138, 2
        %v3264 = vsel %vm2065, %v3261, %v3263
        %v3265 = vrot.slane %v3139, 2
        %v3266 = vrot.slane %v3140, 2
        %v3267 = vsel %vm2065, %v3265, %v3266
        %v3268 = vrot.slane %v3141, 2
        %v3269 = vsel %vm2065, %v3266, %v3268
        %v3302 = vadd.f32 %v3061, %v3192
        %v3303 = vadd.f32 %v3062, %v3194
        %v3304 = vadd.f32 %v3063, %v3197
        %v3305 = vadd.f32 %v3064, %v3199
        %v3306 = vadd.f32 %v3065, %v3202
        %v3307 = vadd.f32 %v3066, %v3204
        %v3308 = vadd.f32 %v3067, %v3207
        %v3309 = vadd.f32 %v3068, %v3209
        %v3310 = vadd.f32 %v3069, %v3212
        %v3311 = vadd.f32 %v3070, %v3214
        %v3312 = vadd.f32 %v3071, %v3217
        %v3313 = vadd.f32 %v3072, %v3219
        %v3314 = vadd.f32 %v3073, %v3222
        %v3315 = vadd.f32 %v3074, %v3224
        %v3316 = vadd.f32 %v3075, %v3227
        %v3317 = vadd.f32 %v3076, %v3229
        %v3318 = vadd.f32 %v3077, %v3232
        %v3319 = vadd.f32 %v3078, %v3234
        %v3320 = vadd.f32 %v3079, %v3237
        %v3321 = vadd.f32 %v3080, %v3239
        %v3322 = vadd.f32 %v3081, %v3242
        %v3323 = vadd.f32 %v3082, %v3244
        %v3324 = vadd.f32 %v3083, %v3247
        %v3325 = vadd.f32 %v3084, %v3249
        %v3326 = vadd.f32 %v3085, %v3252
        %v3327 = vadd.f32 %v3086, %v3254
        %v3328 = vadd.f32 %v3087, %v3257
        %v3329 = vadd.f32 %v3088, %v3259
        %v3330 = vadd.f32 %v3089, %v3262
        %v3331 = vadd.f32 %v3090, %v3264
        %v3332 = vadd.f32 %v3091, %v3267
        %v3333 = vadd.f32 %v3092, %v3269
        %v3334 = vld [vmem:[%s5] sm:$0x1]
        %v3336 = vperm.slane %v3334, 0
        %v3338 = vadd.f32 %v3302, %v3336
        %v3339 = vadd.f32 %v3303, %v3336
        %v3340 = vadd.f32 %v3304, %v3336
        %v3341 = vadd.f32 %v3305, %v3336
        %v3342 = vadd.f32 %v3306, %v3336
        %v3343 = vadd.f32 %v3307, %v3336
        %v3344 = vadd.f32 %v3308, %v3336
        %v3345 = vadd.f32 %v3309, %v3336
        %v3346 = vadd.f32 %v3310, %v3336
        %v3347 = vadd.f32 %v3311, %v3336
        %v3348 = vadd.f32 %v3312, %v3336
        %v3349 = vadd.f32 %v3313, %v3336
        %v3350 = vadd.f32 %v3314, %v3336
        %v3351 = vadd.f32 %v3315, %v3336
        %v3352 = vadd.f32 %v3316, %v3336
        %v3353 = vadd.f32 %v3317, %v3336
        %v3354 = vadd.f32 %v3318, %v3336
        %v3355 = vadd.f32 %v3319, %v3336
        %v3356 = vadd.f32 %v3320, %v3336
        %v3357 = vadd.f32 %v3321, %v3336
        %v3358 = vadd.f32 %v3322, %v3336
        %v3359 = vadd.f32 %v3323, %v3336
        %v3360 = vadd.f32 %v3324, %v3336
        %v3361 = vadd.f32 %v3325, %v3336
        %v3362 = vadd.f32 %v3326, %v3336
        %v3363 = vadd.f32 %v3327, %v3336
        %v3364 = vadd.f32 %v3328, %v3336
        %v3365 = vadd.f32 %v3329, %v3336
        %v3366 = vadd.f32 %v3330, %v3336
        %v3367 = vadd.f32 %v3331, %v3336
        %v3368 = vadd.f32 %v3332, %v3336
        %v3369 = vadd.f32 %v3333, %v3336
        %v3370 = vmax.f32 %v3338, 0.0
        %v3371 = vmax.f32 %v3339, 0.0
        %v3372 = vmax.f32 %v3340, 0.0
        %v3373 = vmax.f32 %v3341, 0.0
        %v3374 = vmax.f32 %v3342, 0.0
        %v3375 = vmax.f32 %v3343, 0.0
        %v3376 = vmax.f32 %v3344, 0.0
        %v3377 = vmax.f32 %v3345, 0.0
        %v3378 = vmax.f32 %v3346, 0.0
        %v3379 = vmax.f32 %v3347, 0.0
        %v3380 = vmax.f32 %v3348, 0.0
        %v3381 = vmax.f32 %v3349, 0.0
        %v3382 = vmax.f32 %v3350, 0.0
        %v3383 = vmax.f32 %v3351, 0.0
        %v3384 = vmax.f32 %v3352, 0.0
        %v3385 = vmax.f32 %v3353, 0.0
        %v3386 = vmax.f32 %v3354, 0.0
        %v3387 = vmax.f32 %v3355, 0.0
        %v3388 = vmax.f32 %v3356, 0.0
        %v3389 = vmax.f32 %v3357, 0.0
        %v3390 = vmax.f32 %v3358, 0.0
        %v3391 = vmax.f32 %v3359, 0.0
        %v3392 = vmax.f32 %v3360, 0.0
        %v3393 = vmax.f32 %v3361, 0.0
        %v3394 = vmax.f32 %v3362, 0.0
        %v3395 = vmax.f32 %v3363, 0.0
        %v3396 = vmax.f32 %v3364, 0.0
        %v3397 = vmax.f32 %v3365, 0.0
        %v3398 = vmax.f32 %v3366, 0.0
        %v3399 = vmax.f32 %v3367, 0.0
        %v3400 = vmax.f32 %v3368, 0.0
        %v3401 = vmax.f32 %v3369, 0.0
        %v3402 = vld [vmem:[%s7] sm:$0xff]
        %v3403 = vld [vmem:[%s7 + $0x8] sm:$0x1]
        %v3404 = vld [vmem:[%s11] sm:$0x1]
        %vm3405 = vcmask 64512
        %3406 = vst.msk [vmem:[#allocation2] sm:$0xff] %vm3405, 0.0
        %3407 = vst.msk [vmem:[#allocation2 + $0x8] sm:$0xff] %vm3405, 0.0
        %vm3408 = vcmask 58368
        %3409 = vst.msk [vmem:[#allocation2 + $0x10] sm:$0x3] %vm3408, 0.0
        %s3410 = scalar_lea.vmem [#allocation2], 408
        %3411 = vst.msk [vmem:[%s3410] sm:$0xff] %vm3405, 0.0
        %3412 = vst.msk [vmem:[%s3410 + $0x8] sm:$0xff] %vm3405, 0.0
        %3413 = vst.msk [vmem:[%s3410 + $0x10] sm:$0x3] %vm3408, 0.0
        %s3414 = scalar_lea.vmem [#allocation2], 24
        %vm3415 = vcmask 57344
        %3416 = vst.msk [vmem:[%s3414] sm:$0x1] %vm3415, 0.0
        %3417 = vst.msk [vmem:[%s3414 + $0x18] sm:$0x1] %vm3415, 0.0
        %3418 = vst.msk [vmem:[%s3414 + $0x30] sm:$0x1] %vm3415, 0.0
        %3419 = vst.msk [vmem:[%s3414 + $0x48] sm:$0x1] %vm3415, 0.0
        %3420 = vst.msk [vmem:[%s3414 + $0x60] sm:$0x1] %vm3415, 0.0
        %3421 = vst.msk [vmem:[%s3414 + $0x78] sm:$0x1] %vm3415, 0.0
        %3422 = vst.msk [vmem:[%s3414 + $0x90] sm:$0x1] %vm3415, 0.0
        %3423 = vst.msk [vmem:[%s3414 + $0xa8] sm:$0x1] %vm3415, 0.0
        %3424 = vst.msk [vmem:[%s3414 + $0xc0] sm:$0x1] %vm3415, 0.0
        %3425 = vst.msk [vmem:[%s3414 + $0xd8] sm:$0x1] %vm3415, 0.0
        %3426 = vst.msk [vmem:[%s3414 + $0xf0] sm:$0x1] %vm3415, 0.0
        %3427 = vst.msk [vmem:[%s3414 + $0x108] sm:$0x1] %vm3415, 0.0
        %3428 = vst.msk [vmem:[%s3414 + $0x120] sm:$0x1] %vm3415, 0.0
        %3429 = vst.msk [vmem:[%s3414 + $0x138] sm:$0x1] %vm3415, 0.0
        %3430 = vst.msk [vmem:[%s3414 + $0x150] sm:$0x1] %vm3415, 0.0
        %3431 = vst.msk [vmem:[%s3414 + $0x168] sm:$0x1] %vm3415, 0.0
        %3432 = vst.msk [vmem:[%s3414 + $0x11] sm:$0x1] %vm3415, 0.0
        %3433 = vst.msk [vmem:[%s3414 + $0x29] sm:$0x1] %vm3415, 0.0
        %3434 = vst.msk [vmem:[%s3414 + $0x41] sm:$0x1] %vm3415, 0.0
        %3435 = vst.msk [vmem:[%s3414 + $0x59] sm:$0x1] %vm3415, 0.0
        %3436 = vst.msk [vmem:[%s3414 + $0x71] sm:$0x1] %vm3415, 0.0
        %3437 = vst.msk [vmem:[%s3414 + $0x89] sm:$0x1] %vm3415, 0.0
        %3438 = vst.msk [vmem:[%s3414 + $0xa1] sm:$0x1] %vm3415, 0.0
        %3439 = vst.msk [vmem:[%s3414 + $0xb9] sm:$0x1] %vm3415, 0.0
        %3440 = vst.msk [vmem:[%s3414 + $0xd1] sm:$0x1] %vm3415, 0.0
        %3441 = vst.msk [vmem:[%s3414 + $0xe9] sm:$0x1] %vm3415, 0.0
        %3442 = vst.msk [vmem:[%s3414 + $0x101] sm:$0x1] %vm3415, 0.0
        %3443 = vst.msk [vmem:[%s3414 + $0x119] sm:$0x1] %vm3415, 0.0
        %3444 = vst.msk [vmem:[%s3414 + $0x131] sm:$0x1] %vm3415, 0.0
        %3445 = vst.msk [vmem:[%s3414 + $0x149] sm:$0x1] %vm3415, 0.0
        %3446 = vst.msk [vmem:[%s3414 + $0x161] sm:$0x1] %vm3415, 0.0
        %3447 = vst.msk [vmem:[%s3414 + $0x179] sm:$0x1] %vm3415, 0.0
        %3448 = vst.msk [vmem:[%s3414 + $0x1] sm:$0xff] %vm3405, %v3370
        %3449 = vst.msk [vmem:[%s3414 + $0x9] sm:$0xff] %vm3405, %v3371
        %3450 = vst.msk [vmem:[%s3414 + $0x19] sm:$0xff] %vm3405, %v3372
        %3451 = vst.msk [vmem:[%s3414 + $0x21] sm:$0xff] %vm3405, %v3373
        %3452 = vst.msk [vmem:[%s3414 + $0x31] sm:$0xff] %vm3405, %v3374
        %3453 = vst.msk [vmem:[%s3414 + $0x39] sm:$0xff] %vm3405, %v3375
        %3454 = vst.msk [vmem:[%s3414 + $0x49] sm:$0xff] %vm3405, %v3376
        %3455 = vst.msk [vmem:[%s3414 + $0x51] sm:$0xff] %vm3405, %v3377
        %3456 = vst.msk [vmem:[%s3414 + $0x61] sm:$0xff] %vm3405, %v3378
        %3457 = vst.msk [vmem:[%s3414 + $0x69] sm:$0xff] %vm3405, %v3379
        %3458 = vst.msk [vmem:[%s3414 + $0x79] sm:$0xff] %vm3405, %v3380
        %3459 = vst.msk [vmem:[%s3414 + $0x81] sm:$0xff] %vm3405, %v3381
        %3460 = vst.msk [vmem:[%s3414 + $0x91] sm:$0xff] %vm3405, %v3382
        %3461 = vst.msk [vmem:[%s3414 + $0x99] sm:$0xff] %vm3405, %v3383
        %3462 = vst.msk [vmem:[%s3414 + $0xa9] sm:$0xff] %vm3405, %v3384
        %3463 = vst.msk [vmem:[%s3414 + $0xb1] sm:$0xff] %vm3405, %v3385
        %3464 = vst.msk [vmem:[%s3414 + $0xc1] sm:$0xff] %vm3405, %v3386
        %3465 = vst.msk [vmem:[%s3414 + $0xc9] sm:$0xff] %vm3405, %v3387
        %3466 = vst.msk [vmem:[%s3414 + $0xd9] sm:$0xff] %vm3405, %v3388
        %3467 = vst.msk [vmem:[%s3414 + $0xe1] sm:$0xff] %vm3405, %v3389
        %3468 = vst.msk [vmem:[%s3414 + $0xf1] sm:$0xff] %vm3405, %v3390
        %3469 = vst.msk [vmem:[%s3414 + $0xf9] sm:$0xff] %vm3405, %v3391
        %3470 = vst.msk [vmem:[%s3414 + $0x109] sm:$0xff] %vm3405, %v3392
        %3471 = vst.msk [vmem:[%s3414 + $0x111] sm:$0xff] %vm3405, %v3393
        %3472 = vst.msk [vmem:[%s3414 + $0x121] sm:$0xff] %vm3405, %v3394
        %3473 = vst.msk [vmem:[%s3414 + $0x129] sm:$0xff] %vm3405, %v3395
        %3474 = vst.msk [vmem:[%s3414 + $0x139] sm:$0xff] %vm3405, %v3396
        %3475 = vst.msk [vmem:[%s3414 + $0x141] sm:$0xff] %vm3405, %v3397
        %3476 = vst.msk [vmem:[%s3414 + $0x151] sm:$0xff] %vm3405, %v3398
        %3477 = vst.msk [vmem:[%s3414 + $0x159] sm:$0xff] %vm3405, %v3399
        %3478 = vst.msk [vmem:[%s3414 + $0x169] sm:$0xff] %vm3405, %v3400
        %3479 = vst.msk [vmem:[%s3414 + $0x171] sm:$0xff] %vm3405, %v3401
        %v3480 = vld [vmem:[#allocation2] sm:$0xff]
        %v3481 = vld [vmem:[#allocation2 + $0x8] sm:$0xff]
        %v3482 = vld [vmem:[#allocation2 + $0x18] sm:$0xff]
        %v3483 = vld [vmem:[#allocation2 + $0x20] sm:$0xff]
        %v3484 = vld [vmem:[#allocation2 + $0x30] sm:$0xff]
        %v3485 = vld [vmem:[#allocation2 + $0x38] sm:$0xff]
        %v3486 = vld [vmem:[#allocation2 + $0x48] sm:$0xff]
        %v3487 = vld [vmem:[#allocation2 + $0x50] sm:$0xff]
        %v3488 = vld [vmem:[#allocation2 + $0x60] sm:$0xff]
        %v3489 = vld [vmem:[#allocation2 + $0x68] sm:$0xff]
        %v3490 = vld [vmem:[#allocation2 + $0x78] sm:$0xff]
        %v3491 = vld [vmem:[#allocation2 + $0x80] sm:$0xff]
        %v3492 = vld [vmem:[#allocation2 + $0x90] sm:$0xff]
        %v3493 = vld [vmem:[#allocation2 + $0x98] sm:$0xff]
        %v3494 = vld [vmem:[#allocation2 + $0xa8] sm:$0xff]
        %v3495 = vld [vmem:[#allocation2 + $0xb0] sm:$0xff]
        %v3496 = vld [vmem:[#allocation2 + $0xc0] sm:$0xff]
        %v3497 = vld [vmem:[#allocation2 + $0xc8] sm:$0xff]
        %v3498 = vld [vmem:[#allocation2 + $0xd8] sm:$0xff]
        %v3499 = vld [vmem:[#allocation2 + $0xe0] sm:$0xff]
        %v3500 = vld [vmem:[#allocation2 + $0xf0] sm:$0xff]
        %v3501 = vld [vmem:[#allocation2 + $0xf8] sm:$0xff]
        %v3502 = vld [vmem:[#allocation2 + $0x108] sm:$0xff]
        %v3503 = vld [vmem:[#allocation2 + $0x110] sm:$0xff]
        %v3504 = vld [vmem:[#allocation2 + $0x120] sm:$0xff]
        %v3505 = vld [vmem:[#allocation2 + $0x128] sm:$0xff]
        %v3506 = vld [vmem:[#allocation2 + $0x138] sm:$0xff]
        %v3507 = vld [vmem:[#allocation2 + $0x140] sm:$0xff]
        %v3508 = vld [vmem:[#allocation2 + $0x150] sm:$0xff]
        %v3509 = vld [vmem:[#allocation2 + $0x158] sm:$0xff]
        %v3510 = vld [vmem:[#allocation2 + $0x168] sm:$0xff]
        %v3511 = vld [vmem:[#allocation2 + $0x170] sm:$0xff]
        %v3512 = vperm.slane %v3402, 0
        %v3513 = vmul.f32 %v3480, %v3512
        %v3514 = vmul.f32 %v3481, %v3512
        %v3515 = vmul.f32 %v3482, %v3512
        %v3516 = vmul.f32 %v3483, %v3512
        %v3517 = vmul.f32 %v3484, %v3512
        %v3518 = vmul.f32 %v3485, %v3512
        %v3519 = vmul.f32 %v3486, %v3512
        %v3520 = vmul.f32 %v3487, %v3512
        %v3521 = vmul.f32 %v3488, %v3512
        %v3522 = vmul.f32 %v3489, %v3512
        %v3523 = vmul.f32 %v3490, %v3512
        %v3524 = vmul.f32 %v3491, %v3512
        %v3525 = vmul.f32 %v3492, %v3512
        %v3526 = vmul.f32 %v3493, %v3512
        %v3527 = vmul.f32 %v3494, %v3512
        %v3528 = vmul.f32 %v3495, %v3512
        %v3529 = vmul.f32 %v3496, %v3512
        %v3530 = vmul.f32 %v3497, %v3512
        %v3531 = vmul.f32 %v3498, %v3512
        %v3532 = vmul.f32 %v3499, %v3512
        %v3533 = vmul.f32 %v3500, %v3512
        %v3534 = vmul.f32 %v3501, %v3512
        %v3535 = vmul.f32 %v3502, %v3512
        %v3536 = vmul.f32 %v3503, %v3512
        %v3537 = vmul.f32 %v3504, %v3512
        %v3538 = vmul.f32 %v3505, %v3512
        %v3539 = vmul.f32 %v3506, %v3512
        %v3540 = vmul.f32 %v3507, %v3512
        %v3541 = vmul.f32 %v3508, %v3512
        %v3542 = vmul.f32 %v3509, %v3512
        %v3543 = vmul.f32 %v3510, %v3512
        %v3544 = vmul.f32 %v3511, %v3512
        %v3545 = vadd.f32 %v3513, 0.0
        %v3546 = vadd.f32 %v3514, 0.0
        %v3547 = vadd.f32 %v3515, 0.0
        %v3548 = vadd.f32 %v3516, 0.0
        %v3549 = vadd.f32 %v3517, 0.0
        %v3550 = vadd.f32 %v3518, 0.0
        %v3551 = vadd.f32 %v3519, 0.0
        %v3552 = vadd.f32 %v3520, 0.0
        %v3553 = vadd.f32 %v3521, 0.0
        %v3554 = vadd.f32 %v3522, 0.0
        %v3555 = vadd.f32 %v3523, 0.0
        %v3556 = vadd.f32 %v3524, 0.0
        %v3557 = vadd.f32 %v3525, 0.0
        %v3558 = vadd.f32 %v3526, 0.0
        %v3559 = vadd.f32 %v3527, 0.0
        %v3560 = vadd.f32 %v3528, 0.0
        %v3561 = vadd.f32 %v3529, 0.0
        %v3562 = vadd.f32 %v3530, 0.0
        %v3563 = vadd.f32 %v3531, 0.0
        %v3564 = vadd.f32 %v3532, 0.0
        %v3565 = vadd.f32 %v3533, 0.0
        %v3566 = vadd.f32 %v3534, 0.0
        %v3567 = vadd.f32 %v3535, 0.0
        %v3568 = vadd.f32 %v3536, 0.0
        %v3569 = vadd.f32 %v3537, 0.0
        %v3570 = vadd.f32 %v3538, 0.0
        %v3571 = vadd.f32 %v3539, 0.0
        %v3572 = vadd.f32 %v3540, 0.0
        %v3573 = vadd.f32 %v3541, 0.0
        %v3574 = vadd.f32 %v3542, 0.0
        %v3575 = vadd.f32 %v3543, 0.0
        %v3576 = vadd.f32 %v3544, 0.0
        %v3577 = vld [vmem:[#allocation2 + $0x1] sm:$0xff]
        %v3578 = vld [vmem:[#allocation2 + $0x9] sm:$0xff]
        %v3579 = vld [vmem:[#allocation2 + $0x19] sm:$0xff]
        %v3580 = vld [vmem:[#allocation2 + $0x21] sm:$0xff]
        %v3581 = vld [vmem:[#allocation2 + $0x31] sm:$0xff]
        %v3582 = vld [vmem:[#allocation2 + $0x39] sm:$0xff]
        %v3583 = vld [vmem:[#allocation2 + $0x49] sm:$0xff]
        %v3584 = vld [vmem:[#allocation2 + $0x51] sm:$0xff]
        %v3585 = vld [vmem:[#allocation2 + $0x61] sm:$0xff]
        %v3586 = vld [vmem:[#allocation2 + $0x69] sm:$0xff]
        %v3587 = vld [vmem:[#allocation2 + $0x79] sm:$0xff]
        %v3588 = vld [vmem:[#allocation2 + $0x81] sm:$0xff]
        %v3589 = vld [vmem:[#allocation2 + $0x91] sm:$0xff]
        %v3590 = vld [vmem:[#allocation2 + $0x99] sm:$0xff]
        %v3591 = vld [vmem:[#allocation2 + $0xa9] sm:$0xff]
        %v3592 = vld [vmem:[#allocation2 + $0xb1] sm:$0xff]
        %v3593 = vld [vmem:[#allocation2 + $0xc1] sm:$0xff]
        %v3594 = vld [vmem:[#allocation2 + $0xc9] sm:$0xff]
        %v3595 = vld [vmem:[#allocation2 + $0xd9] sm:$0xff]
        %v3596 = vld [vmem:[#allocation2 + $0xe1] sm:$0xff]
        %v3597 = vld [vmem:[#allocation2 + $0xf1] sm:$0xff]
        %v3598 = vld [vmem:[#allocation2 + $0xf9] sm:$0xff]
        %v3599 = vld [vmem:[#allocation2 + $0x109] sm:$0xff]
        %v3600 = vld [vmem:[#allocation2 + $0x111] sm:$0xff]
        %v3601 = vld [vmem:[#allocation2 + $0x121] sm:$0xff]
        %v3602 = vld [vmem:[#allocation2 + $0x129] sm:$0xff]
        %v3603 = vld [vmem:[#allocation2 + $0x139] sm:$0xff]
        %v3604 = vld [vmem:[#allocation2 + $0x141] sm:$0xff]
        %v3605 = vld [vmem:[#allocation2 + $0x151] sm:$0xff]
        %v3606 = vld [vmem:[#allocation2 + $0x159] sm:$0xff]
        %v3607 = vld [vmem:[#allocation2 + $0x169] sm:$0xff]
        %v3608 = vld [vmem:[#allocation2 + $0x171] sm:$0xff]
        %v3609 = vperm.slane %v3402, 1
        %v3610 = vmul.f32 %v3577, %v3609
        %v3611 = vmul.f32 %v3578, %v3609
        %v3612 = vmul.f32 %v3579, %v3609
        %v3613 = vmul.f32 %v3580, %v3609
        %v3614 = vmul.f32 %v3581, %v3609
        %v3615 = vmul.f32 %v3582, %v3609
        %v3616 = vmul.f32 %v3583, %v3609
        %v3617 = vmul.f32 %v3584, %v3609
        %v3618 = vmul.f32 %v3585, %v3609
        %v3619 = vmul.f32 %v3586, %v3609
        %v3620 = vmul.f32 %v3587, %v3609
        %v3621 = vmul.f32 %v3588, %v3609
        %v3622 = vmul.f32 %v3589, %v3609
        %v3623 = vmul.f32 %v3590, %v3609
        %v3624 = vmul.f32 %v3591, %v3609
        %v3625 = vmul.f32 %v3592, %v3609
        %v3626 = vmul.f32 %v3593, %v3609
        %v3627 = vmul.f32 %v3594, %v3609
        %v3628 = vmul.f32 %v3595, %v3609
        %v3629 = vmul.f32 %v3596, %v3609
        %v3630 = vmul.f32 %v3597, %v3609
        %v3631 = vmul.f32 %v3598, %v3609
        %v3632 = vmul.f32 %v3599, %v3609
        %v3633 = vmul.f32 %v3600, %v3609
        %v3634 = vmul.f32 %v3601, %v3609
        %v3635 = vmul.f32 %v3602, %v3609
        %v3636 = vmul.f32 %v3603, %v3609
        %v3637 = vmul.f32 %v3604, %v3609
        %v3638 = vmul.f32 %v3605, %v3609
        %v3639 = vmul.f32 %v3606, %v3609
        %v3640 = vmul.f32 %v3607, %v3609
        %v3641 = vmul.f32 %v3608, %v3609
        %v3642 = vadd.f32 %v3545, %v3610
        %v3643 = vadd.f32 %v3546, %v3611
        %v3644 = vadd.f32 %v3547, %v3612
        %v3645 = vadd.f32 %v3548, %v3613
        %v3646 = vadd.f32 %v3549, %v3614
        %v3647 = vadd.f32 %v3550, %v3615
        %v3648 = vadd.f32 %v3551, %v3616
        %v3649 = vadd.f32 %v3552, %v3617
        %v3650 = vadd.f32 %v3553, %v3618
        %v3651 = vadd.f32 %v3554, %v3619
        %v3652 = vadd.f32 %v3555, %v3620
        %v3653 = vadd.f32 %v3556, %v3621
        %v3654 = vadd.f32 %v3557, %v3622
        %v3655 = vadd.f32 %v3558, %v3623
        %v3656 = vadd.f32 %v3559, %v3624
        %v3657 = vadd.f32 %v3560, %v3625
        %v3658 = vadd.f32 %v3561, %v3626
        %v3659 = vadd.f32 %v3562, %v3627
        %v3660 = vadd.f32 %v3563, %v3628
        %v3661 = vadd.f32 %v3564, %v3629
        %v3662 = vadd.f32 %v3565, %v3630
        %v3663 = vadd.f32 %v3566, %v3631
        %v3664 = vadd.f32 %v3567, %v3632
        %v3665 = vadd.f32 %v3568, %v3633
        %v3666 = vadd.f32 %v3569, %v3634
        %v3667 = vadd.f32 %v3570, %v3635
        %v3668 = vadd.f32 %v3571, %v3636
        %v3669 = vadd.f32 %v3572, %v3637
        %v3670 = vadd.f32 %v3573, %v3638
        %v3671 = vadd.f32 %v3574, %v3639
        %v3672 = vadd.f32 %v3575, %v3640
        %v3673 = vadd.f32 %v3576, %v3641
        %v3674 = vld [vmem:[#allocation2 + $0x2] sm:$0xff]
        %v3675 = vld [vmem:[#allocation2 + $0xa] sm:$0xff]
        %v3676 = vld [vmem:[#allocation2 + $0x1a] sm:$0xff]
        %v3677 = vld [vmem:[#allocation2 + $0x22] sm:$0xff]
        %v3678 = vld [vmem:[#allocation2 + $0x32] sm:$0xff]
        %v3679 = vld [vmem:[#allocation2 + $0x3a] sm:$0xff]
        %v3680 = vld [vmem:[#allocation2 + $0x4a] sm:$0xff]
        %v3681 = vld [vmem:[#allocation2 + $0x52] sm:$0xff]
        %v3682 = vld [vmem:[#allocation2 + $0x62] sm:$0xff]
        %v3683 = vld [vmem:[#allocation2 + $0x6a] sm:$0xff]
        %v3684 = vld [vmem:[#allocation2 + $0x7a] sm:$0xff]
        %v3685 = vld [vmem:[#allocation2 + $0x82] sm:$0xff]
        %v3686 = vld [vmem:[#allocation2 + $0x92] sm:$0xff]
        %v3687 = vld [vmem:[#allocation2 + $0x9a] sm:$0xff]
        %v3688 = vld [vmem:[#allocation2 + $0xaa] sm:$0xff]
        %v3689 = vld [vmem:[#allocation2 + $0xb2] sm:$0xff]
        %v3690 = vld [vmem:[#allocation2 + $0xc2] sm:$0xff]
        %v3691 = vld [vmem:[#allocation2 + $0xca] sm:$0xff]
        %v3692 = vld [vmem:[#allocation2 + $0xda] sm:$0xff]
        %v3693 = vld [vmem:[#allocation2 + $0xe2] sm:$0xff]
        %v3694 = vld [vmem:[#allocation2 + $0xf2] sm:$0xff]
        %v3695 = vld [vmem:[#allocation2 + $0xfa] sm:$0xff]
        %v3696 = vld [vmem:[#allocation2 + $0x10a] sm:$0xff]
        %v3697 = vld [vmem:[#allocation2 + $0x112] sm:$0xff]
        %v3698 = vld [vmem:[#allocation2 + $0x122] sm:$0xff]
        %v3699 = vld [vmem:[#allocation2 + $0x12a] sm:$0xff]
        %v3700 = vld [vmem:[#allocation2 + $0x13a] sm:$0xff]
        %v3701 = vld [vmem:[#allocation2 + $0x142] sm:$0xff]
        %v3702 = vld [vmem:[#allocation2 + $0x152] sm:$0xff]
        %v3703 = vld [vmem:[#allocation2 + $0x15a] sm:$0xff]
        %v3704 = vld [vmem:[#allocation2 + $0x16a] sm:$0xff]
        %v3705 = vld [vmem:[#allocation2 + $0x172] sm:$0xff]
        %v3706 = vperm.slane %v3402, 2
        %v3707 = vmul.f32 %v3674, %v3706
        %v3708 = vmul.f32 %v3675, %v3706
        %v3709 = vmul.f32 %v3676, %v3706
        %v3710 = vmul.f32 %v3677, %v3706
        %v3711 = vmul.f32 %v3678, %v3706
        %v3712 = vmul.f32 %v3679, %v3706
        %v3713 = vmul.f32 %v3680, %v3706
        %v3714 = vmul.f32 %v3681, %v3706
        %v3715 = vmul.f32 %v3682, %v3706
        %v3716 = vmul.f32 %v3683, %v3706
        %v3717 = vmul.f32 %v3684, %v3706
        %v3718 = vmul.f32 %v3685, %v3706
        %v3719 = vmul.f32 %v3686, %v3706
        %v3720 = vmul.f32 %v3687, %v3706
        %v3721 = vmul.f32 %v3688, %v3706
        %v3722 = vmul.f32 %v3689, %v3706
        %v3723 = vmul.f32 %v3690, %v3706
        %v3724 = vmul.f32 %v3691, %v3706
        %v3725 = vmul.f32 %v3692, %v3706
        %v3726 = vmul.f32 %v3693, %v3706
        %v3727 = vmul.f32 %v3694, %v3706
        %v3728 = vmul.f32 %v3695, %v3706
        %v3729 = vmul.f32 %v3696, %v3706
        %v3730 = vmul.f32 %v3697, %v3706
        %v3731 = vmul.f32 %v3698, %v3706
        %v3732 = vmul.f32 %v3699, %v3706
        %v3733 = vmul.f32 %v3700, %v3706
        %v3734 = vmul.f32 %v3701, %v3706
        %v3735 = vmul.f32 %v3702, %v3706
        %v3736 = vmul.f32 %v3703, %v3706
        %v3737 = vmul.f32 %v3704, %v3706
        %v3738 = vmul.f32 %v3705, %v3706
        %v3739 = vadd.f32 %v3642, %v3707
        %v3740 = vadd.f32 %v3643, %v3708
        %v3741 = vadd.f32 %v3644, %v3709
        %v3742 = vadd.f32 %v3645, %v3710
        %v3743 = vadd.f32 %v3646, %v3711
        %v3744 = vadd.f32 %v3647, %v3712
        %v3745 = vadd.f32 %v3648, %v3713
        %v3746 = vadd.f32 %v3649, %v3714
        %v3747 = vadd.f32 %v3650, %v3715
        %v3748 = vadd.f32 %v3651, %v3716
        %v3749 = vadd.f32 %v3652, %v3717
        %v3750 = vadd.f32 %v3653, %v3718
        %v3751 = vadd.f32 %v3654, %v3719
        %v3752 = vadd.f32 %v3655, %v3720
        %v3753 = vadd.f32 %v3656, %v3721
        %v3754 = vadd.f32 %v3657, %v3722
        %v3755 = vadd.f32 %v3658, %v3723
        %v3756 = vadd.f32 %v3659, %v3724
        %v3757 = vadd.f32 %v3660, %v3725
        %v3758 = vadd.f32 %v3661, %v3726
        %v3759 = vadd.f32 %v3662, %v3727
        %v3760 = vadd.f32 %v3663, %v3728
        %v3761 = vadd.f32 %v3664, %v3729
        %v3762 = vadd.f32 %v3665, %v3730
        %v3763 = vadd.f32 %v3666, %v3731
        %v3764 = vadd.f32 %v3667, %v3732
        %v3765 = vadd.f32 %v3668, %v3733
        %v3766 = vadd.f32 %v3669, %v3734
        %v3767 = vadd.f32 %v3670, %v3735
        %v3768 = vadd.f32 %v3671, %v3736
        %v3769 = vadd.f32 %v3672, %v3737
        %v3770 = vadd.f32 %v3673, %v3738
        %v3771 = vld [vmem:[%s3414] sm:$0xff]
        %v3772 = vld [vmem:[%s3414 + $0x8] sm:$0xff]
        %v3773 = vld [vmem:[%s3414 + $0x18] sm:$0xff]
        %v3774 = vld [vmem:[%s3414 + $0x20] sm:$0xff]
        %v3775 = vld [vmem:[%s3414 + $0x30] sm:$0xff]
        %v3776 = vld [vmem:[%s3414 + $0x38] sm:$0xff]
        %v3777 = vld [vmem:[%s3414 + $0x48] sm:$0xff]
        %v3778 = vld [vmem:[%s3414 + $0x50] sm:$0xff]
        %v3779 = vld [vmem:[%s3414 + $0x60] sm:$0xff]
        %v3780 = vld [vmem:[%s3414 + $0x68] sm:$0xff]
        %v3781 = vld [vmem:[%s3414 + $0x78] sm:$0xff]
        %v3782 = vld [vmem:[%s3414 + $0x80] sm:$0xff]
        %v3783 = vld [vmem:[%s3414 + $0x90] sm:$0xff]
        %v3784 = vld [vmem:[%s3414 + $0x98] sm:$0xff]
        %v3785 = vld [vmem:[%s3414 + $0xa8] sm:$0xff]
        %v3786 = vld [vmem:[%s3414 + $0xb0] sm:$0xff]
        %v3787 = vld [vmem:[%s3414 + $0xc0] sm:$0xff]
        %v3788 = vld [vmem:[%s3414 + $0xc8] sm:$0xff]
        %v3789 = vld [vmem:[%s3414 + $0xd8] sm:$0xff]
        %v3790 = vld [vmem:[%s3414 + $0xe0] sm:$0xff]
        %v3791 = vld [vmem:[%s3414 + $0xf0] sm:$0xff]
        %v3792 = vld [vmem:[%s3414 + $0xf8] sm:$0xff]
        %v3793 = vld [vmem:[%s3414 + $0x108] sm:$0xff]
        %v3794 = vld [vmem:[%s3414 + $0x110] sm:$0xff]
        %v3795 = vld [vmem:[%s3414 + $0x120] sm:$0xff]
        %v3796 = vld [vmem:[%s3414 + $0x128] sm:$0xff]
        %v3797 = vld [vmem:[%s3414 + $0x138] sm:$0xff]
        %v3798 = vld [vmem:[%s3414 + $0x140] sm:$0xff]
        %v3799 = vld [vmem:[%s3414 + $0x150] sm:$0xff]
        %v3800 = vld [vmem:[%s3414 + $0x158] sm:$0xff]
        %v3801 = vld [vmem:[%s3414 + $0x168] sm:$0xff]
        %v3802 = vld [vmem:[%s3414 + $0x170] sm:$0xff]
        %v3803 = vperm.slane %v3402, 3
        %v3804 = vmul.f32 %v3771, %v3803
        %v3805 = vmul.f32 %v3772, %v3803
        %v3806 = vmul.f32 %v3773, %v3803
        %v3807 = vmul.f32 %v3774, %v3803
        %v3808 = vmul.f32 %v3775, %v3803
        %v3809 = vmul.f32 %v3776, %v3803
        %v3810 = vmul.f32 %v3777, %v3803
        %v3811 = vmul.f32 %v3778, %v3803
        %v3812 = vmul.f32 %v3779, %v3803
        %v3813 = vmul.f32 %v3780, %v3803
        %v3814 = vmul.f32 %v3781, %v3803
        %v3815 = vmul.f32 %v3782, %v3803
        %v3816 = vmul.f32 %v3783, %v3803
        %v3817 = vmul.f32 %v3784, %v3803
        %v3818 = vmul.f32 %v3785, %v3803
        %v3819 = vmul.f32 %v3786, %v3803
        %v3820 = vmul.f32 %v3787, %v3803
        %v3821 = vmul.f32 %v3788, %v3803
        %v3822 = vmul.f32 %v3789, %v3803
        %v3823 = vmul.f32 %v3790, %v3803
        %v3824 = vmul.f32 %v3791, %v3803
        %v3825 = vmul.f32 %v3792, %v3803
        %v3826 = vmul.f32 %v3793, %v3803
        %v3827 = vmul.f32 %v3794, %v3803
        %v3828 = vmul.f32 %v3795, %v3803
        %v3829 = vmul.f32 %v3796, %v3803
        %v3830 = vmul.f32 %v3797, %v3803
        %v3831 = vmul.f32 %v3798, %v3803
        %v3832 = vmul.f32 %v3799, %v3803
        %v3833 = vmul.f32 %v3800, %v3803
        %v3834 = vmul.f32 %v3801, %v3803
        %v3835 = vmul.f32 %v3802, %v3803
        %v3836 = vadd.f32 %v3739, %v3804
        %v3837 = vadd.f32 %v3740, %v3805
        %v3838 = vadd.f32 %v3741, %v3806
        %v3839 = vadd.f32 %v3742, %v3807
        %v3840 = vadd.f32 %v3743, %v3808
        %v3841 = vadd.f32 %v3744, %v3809
        %v3842 = vadd.f32 %v3745, %v3810
        %v3843 = vadd.f32 %v3746, %v3811
        %v3844 = vadd.f32 %v3747, %v3812
        %v3845 = vadd.f32 %v3748, %v3813
        %v3846 = vadd.f32 %v3749, %v3814
        %v3847 = vadd.f32 %v3750, %v3815
        %v3848 = vadd.f32 %v3751, %v3816
        %v3849 = vadd.f32 %v3752, %v3817
        %v3850 = vadd.f32 %v3753, %v3818
        %v3851 = vadd.f32 %v3754, %v3819
        %v3852 = vadd.f32 %v3755, %v3820
        %v3853 = vadd.f32 %v3756, %v3821
        %v3854 = vadd.f32 %v3757, %v3822
        %v3855 = vadd.f32 %v3758, %v3823
        %v3856 = vadd.f32 %v3759, %v3824
        %v3857 = vadd.f32 %v3760, %v3825
        %v3858 = vadd.f32 %v3761, %v3826
        %v3859 = vadd.f32 %v3762, %v3827
        %v3860 = vadd.f32 %v3763, %v3828
        %v3861 = vadd.f32 %v3764, %v3829
        %v3862 = vadd.f32 %v3765, %v3830
        %v3863 = vadd.f32 %v3766, %v3831
        %v3864 = vadd.f32 %v3767, %v3832
        %v3865 = vadd.f32 %v3768, %v3833
        %v3866 = vadd.f32 %v3769, %v3834
        %v3867 = vadd.f32 %v3770, %v3835
        %v3868 = vld [vmem:[%s3414 + $0x1] sm:$0xff]
        %v3869 = vld [vmem:[%s3414 + $0x9] sm:$0xff]
        %v3870 = vld [vmem:[%s3414 + $0x19] sm:$0xff]
        %v3871 = vld [vmem:[%s3414 + $0x21] sm:$0xff]
        %v3872 = vld [vmem:[%s3414 + $0x31] sm:$0xff]
        %v3873 = vld [vmem:[%s3414 + $0x39] sm:$0xff]
        %v3874 = vld [vmem:[%s3414 + $0x49] sm:$0xff]
        %v3875 = vld [vmem:[%s3414 + $0x51] sm:$0xff]
        %v3876 = vld [vmem:[%s3414 + $0x61] sm:$0xff]
        %v3877 = vld [vmem:[%s3414 + $0x69] sm:$0xff]
        %v3878 = vld [vmem:[%s3414 + $0x79] sm:$0xff]
        %v3879 = vld [vmem:[%s3414 + $0x81] sm:$0xff]
        %v3880 = vld [vmem:[%s3414 + $0x91] sm:$0xff]
        %v3881 = vld [vmem:[%s3414 + $0x99] sm:$0xff]
        %v3882 = vld [vmem:[%s3414 + $0xa9] sm:$0xff]
        %v3883 = vld [vmem:[%s3414 + $0xb1] sm:$0xff]
        %v3884 = vld [vmem:[%s3414 + $0xc1] sm:$0xff]
        %v3885 = vld [vmem:[%s3414 + $0xc9] sm:$0xff]
        %v3886 = vld [vmem:[%s3414 + $0xd9] sm:$0xff]
        %v3887 = vld [vmem:[%s3414 + $0xe1] sm:$0xff]
        %v3888 = vld [vmem:[%s3414 + $0xf1] sm:$0xff]
        %v3889 = vld [vmem:[%s3414 + $0xf9] sm:$0xff]
        %v3890 = vld [vmem:[%s3414 + $0x109] sm:$0xff]
        %v3891 = vld [vmem:[%s3414 + $0x111] sm:$0xff]
        %v3892 = vld [vmem:[%s3414 + $0x121] sm:$0xff]
        %v3893 = vld [vmem:[%s3414 + $0x129] sm:$0xff]
        %v3894 = vld [vmem:[%s3414 + $0x139] sm:$0xff]
        %v3895 = vld [vmem:[%s3414 + $0x141] sm:$0xff]
        %v3896 = vld [vmem:[%s3414 + $0x151] sm:$0xff]
        %v3897 = vld [vmem:[%s3414 + $0x159] sm:$0xff]
        %v3898 = vld [vmem:[%s3414 + $0x169] sm:$0xff]
        %v3899 = vld [vmem:[%s3414 + $0x171] sm:$0xff]
        %v3900 = vperm.slane %v3402, 4
        %v3901 = vmul.f32 %v3868, %v3900
        %v3902 = vmul.f32 %v3869, %v3900
        %v3903 = vmul.f32 %v3870, %v3900
        %v3904 = vmul.f32 %v3871, %v3900
        %v3905 = vmul.f32 %v3872, %v3900
        %v3906 = vmul.f32 %v3873, %v3900
        %v3907 = vmul.f32 %v3874, %v3900
        %v3908 = vmul.f32 %v3875, %v3900
        %v3909 = vmul.f32 %v3876, %v3900
        %v3910 = vmul.f32 %v3877, %v3900
        %v3911 = vmul.f32 %v3878, %v3900
        %v3912 = vmul.f32 %v3879, %v3900
        %v3913 = vmul.f32 %v3880, %v3900
        %v3914 = vmul.f32 %v3881, %v3900
        %v3915 = vmul.f32 %v3882, %v3900
        %v3916 = vmul.f32 %v3883, %v3900
        %v3917 = vmul.f32 %v3884, %v3900
        %v3918 = vmul.f32 %v3885, %v3900
        %v3919 = vmul.f32 %v3886, %v3900
        %v3920 = vmul.f32 %v3887, %v3900
        %v3921 = vmul.f32 %v3888, %v3900
        %v3922 = vmul.f32 %v3889, %v3900
        %v3923 = vmul.f32 %v3890, %v3900
        %v3924 = vmul.f32 %v3891, %v3900
        %v3925 = vmul.f32 %v3892, %v3900
        %v3926 = vmul.f32 %v3893, %v3900
        %v3927 = vmul.f32 %v3894, %v3900
        %v3928 = vmul.f32 %v3895, %v3900
        %v3929 = vmul.f32 %v3896, %v3900
        %v3930 = vmul.f32 %v3897, %v3900
        %v3931 = vmul.f32 %v3898, %v3900
        %v3932 = vmul.f32 %v3899, %v3900
        %v3933 = vadd.f32 %v3836, %v3901
        %v3934 = vadd.f32 %v3837, %v3902
        %v3935 = vadd.f32 %v3838, %v3903
        %v3936 = vadd.f32 %v3839, %v3904
        %v3937 = vadd.f32 %v3840, %v3905
        %v3938 = vadd.f32 %v3841, %v3906
        %v3939 = vadd.f32 %v3842, %v3907
        %v3940 = vadd.f32 %v3843, %v3908
        %v3941 = vadd.f32 %v3844, %v3909
        %v3942 = vadd.f32 %v3845, %v3910
        %v3943 = vadd.f32 %v3846, %v3911
        %v3944 = vadd.f32 %v3847, %v3912
        %v3945 = vadd.f32 %v3848, %v3913
        %v3946 = vadd.f32 %v3849, %v3914
        %v3947 = vadd.f32 %v3850, %v3915
        %v3948 = vadd.f32 %v3851, %v3916
        %v3949 = vadd.f32 %v3852, %v3917
        %v3950 = vadd.f32 %v3853, %v3918
        %v3951 = vadd.f32 %v3854, %v3919
        %v3952 = vadd.f32 %v3855, %v3920
        %v3953 = vadd.f32 %v3856, %v3921
        %v3954 = vadd.f32 %v3857, %v3922
        %v3955 = vadd.f32 %v3858, %v3923
        %v3956 = vadd.f32 %v3859, %v3924
        %v3957 = vadd.f32 %v3860, %v3925
        %v3958 = vadd.f32 %v3861, %v3926
        %v3959 = vadd.f32 %v3862, %v3927
        %v3960 = vadd.f32 %v3863, %v3928
        %v3961 = vadd.f32 %v3864, %v3929
        %v3962 = vadd.f32 %v3865, %v3930
        %v3963 = vadd.f32 %v3866, %v3931
        %v3964 = vadd.f32 %v3867, %v3932
        %v3965 = vld [vmem:[%s3414 + $0x2] sm:$0xff]
        %v3966 = vld [vmem:[%s3414 + $0xa] sm:$0xff]
        %v3967 = vld [vmem:[%s3414 + $0x1a] sm:$0xff]
        %v3968 = vld [vmem:[%s3414 + $0x22] sm:$0xff]
        %v3969 = vld [vmem:[%s3414 + $0x32] sm:$0xff]
        %v3970 = vld [vmem:[%s3414 + $0x3a] sm:$0xff]
        %v3971 = vld [vmem:[%s3414 + $0x4a] sm:$0xff]
        %v3972 = vld [vmem:[%s3414 + $0x52] sm:$0xff]
        %v3973 = vld [vmem:[%s3414 + $0x62] sm:$0xff]
        %v3974 = vld [vmem:[%s3414 + $0x6a] sm:$0xff]
        %v3975 = vld [vmem:[%s3414 + $0x7a] sm:$0xff]
        %v3976 = vld [vmem:[%s3414 + $0x82] sm:$0xff]
        %v3977 = vld [vmem:[%s3414 + $0x92] sm:$0xff]
        %v3978 = vld [vmem:[%s3414 + $0x9a] sm:$0xff]
        %v3979 = vld [vmem:[%s3414 + $0xaa] sm:$0xff]
        %v3980 = vld [vmem:[%s3414 + $0xb2] sm:$0xff]
        %v3981 = vld [vmem:[%s3414 + $0xc2] sm:$0xff]
        %v3982 = vld [vmem:[%s3414 + $0xca] sm:$0xff]
        %v3983 = vld [vmem:[%s3414 + $0xda] sm:$0xff]
        %v3984 = vld [vmem:[%s3414 + $0xe2] sm:$0xff]
        %v3985 = vld [vmem:[%s3414 + $0xf2] sm:$0xff]
        %v3986 = vld [vmem:[%s3414 + $0xfa] sm:$0xff]
        %v3987 = vld [vmem:[%s3414 + $0x10a] sm:$0xff]
        %v3988 = vld [vmem:[%s3414 + $0x112] sm:$0xff]
        %v3989 = vld [vmem:[%s3414 + $0x122] sm:$0xff]
        %v3990 = vld [vmem:[%s3414 + $0x12a] sm:$0xff]
        %v3991 = vld [vmem:[%s3414 + $0x13a] sm:$0xff]
        %v3992 = vld [vmem:[%s3414 + $0x142] sm:$0xff]
        %v3993 = vld [vmem:[%s3414 + $0x152] sm:$0xff]
        %v3994 = vld [vmem:[%s3414 + $0x15a] sm:$0xff]
        %v3995 = vld [vmem:[%s3414 + $0x16a] sm:$0xff]
        %v3996 = vld [vmem:[%s3414 + $0x172] sm:$0xff]
        %v3997 = vperm.slane %v3402, 5
        %v3998 = vmul.f32 %v3965, %v3997
        %v3999 = vmul.f32 %v3966, %v3997
        %v4000 = vmul.f32 %v3967, %v3997
        %v4001 = vmul.f32 %v3968, %v3997
        %v4002 = vmul.f32 %v3969, %v3997
        %v4003 = vmul.f32 %v3970, %v3997
        %v4004 = vmul.f32 %v3971, %v3997
        %v4005 = vmul.f32 %v3972, %v3997
        %v4006 = vmul.f32 %v3973, %v3997
        %v4007 = vmul.f32 %v3974, %v3997
        %v4008 = vmul.f32 %v3975, %v3997
        %v4009 = vmul.f32 %v3976, %v3997
        %v4010 = vmul.f32 %v3977, %v3997
        %v4011 = vmul.f32 %v3978, %v3997
        %v4012 = vmul.f32 %v3979, %v3997
        %v4013 = vmul.f32 %v3980, %v3997
        %v4014 = vmul.f32 %v3981, %v3997
        %v4015 = vmul.f32 %v3982, %v3997
        %v4016 = vmul.f32 %v3983, %v3997
        %v4017 = vmul.f32 %v3984, %v3997
        %v4018 = vmul.f32 %v3985, %v3997
        %v4019 = vmul.f32 %v3986, %v3997
        %v4020 = vmul.f32 %v3987, %v3997
        %v4021 = vmul.f32 %v3988, %v3997
        %v4022 = vmul.f32 %v3989, %v3997
        %v4023 = vmul.f32 %v3990, %v3997
        %v4024 = vmul.f32 %v3991, %v3997
        %v4025 = vmul.f32 %v3992, %v3997
        %v4026 = vmul.f32 %v3993, %v3997
        %v4027 = vmul.f32 %v3994, %v3997
        %v4028 = vmul.f32 %v3995, %v3997
        %v4029 = vmul.f32 %v3996, %v3997
        %v4030 = vadd.f32 %v3933, %v3998
        %v4031 = vadd.f32 %v3934, %v3999
        %v4032 = vadd.f32 %v3935, %v4000
        %v4033 = vadd.f32 %v3936, %v4001
        %v4034 = vadd.f32 %v3937, %v4002
        %v4035 = vadd.f32 %v3938, %v4003
        %v4036 = vadd.f32 %v3939, %v4004
        %v4037 = vadd.f32 %v3940, %v4005
        %v4038 = vadd.f32 %v3941, %v4006
        %v4039 = vadd.f32 %v3942, %v4007
        %v4040 = vadd.f32 %v3943, %v4008
        %v4041 = vadd.f32 %v3944, %v4009
        %v4042 = vadd.f32 %v3945, %v4010
        %v4043 = vadd.f32 %v3946, %v4011
        %v4044 = vadd.f32 %v3947, %v4012
        %v4045 = vadd.f32 %v3948, %v4013
        %v4046 = vadd.f32 %v3949, %v4014
        %v4047 = vadd.f32 %v3950, %v4015
        %v4048 = vadd.f32 %v3951, %v4016
        %v4049 = vadd.f32 %v3952, %v4017
        %v4050 = vadd.f32 %v3953, %v4018
        %v4051 = vadd.f32 %v3954, %v4019
        %v4052 = vadd.f32 %v3955, %v4020
        %v4053 = vadd.f32 %v3956, %v4021
        %v4054 = vadd.f32 %v3957, %v4022
        %v4055 = vadd.f32 %v3958, %v4023
        %v4056 = vadd.f32 %v3959, %v4024
        %v4057 = vadd.f32 %v3960, %v4025
        %v4058 = vadd.f32 %v3961, %v4026
        %v4059 = vadd.f32 %v3962, %v4027
        %v4060 = vadd.f32 %v3963, %v4028
        %v4061 = vadd.f32 %v3964, %v4029
        %s4062 = scalar_lea.vmem [#allocation2], 48
        %v4063 = vld [vmem:[%s4062] sm:$0xff]
        %v4064 = vld [vmem:[%s4062 + $0x8] sm:$0xff]
        %v4065 = vld [vmem:[%s4062 + $0x18] sm:$0xff]
        %v4066 = vld [vmem:[%s4062 + $0x20] sm:$0xff]
        %v4067 = vld [vmem:[%s4062 + $0x30] sm:$0xff]
        %v4068 = vld [vmem:[%s4062 + $0x38] sm:$0xff]
        %v4069 = vld [vmem:[%s4062 + $0x48] sm:$0xff]
        %v4070 = vld [vmem:[%s4062 + $0x50] sm:$0xff]
        %v4071 = vld [vmem:[%s4062 + $0x60] sm:$0xff]
        %v4072 = vld [vmem:[%s4062 + $0x68] sm:$0xff]
        %v4073 = vld [vmem:[%s4062 + $0x78] sm:$0xff]
        %v4074 = vld [vmem:[%s4062 + $0x80] sm:$0xff]
        %v4075 = vld [vmem:[%s4062 + $0x90] sm:$0xff]
        %v4076 = vld [vmem:[%s4062 + $0x98] sm:$0xff]
        %v4077 = vld [vmem:[%s4062 + $0xa8] sm:$0xff]
        %v4078 = vld [vmem:[%s4062 + $0xb0] sm:$0xff]
        %v4079 = vld [vmem:[%s4062 + $0xc0] sm:$0xff]
        %v4080 = vld [vmem:[%s4062 + $0xc8] sm:$0xff]
        %v4081 = vld [vmem:[%s4062 + $0xd8] sm:$0xff]
        %v4082 = vld [vmem:[%s4062 + $0xe0] sm:$0xff]
        %v4083 = vld [vmem:[%s4062 + $0xf0] sm:$0xff]
        %v4084 = vld [vmem:[%s4062 + $0xf8] sm:$0xff]
        %v4085 = vld [vmem:[%s4062 + $0x108] sm:$0xff]
        %v4086 = vld [vmem:[%s4062 + $0x110] sm:$0xff]
        %v4087 = vld [vmem:[%s4062 + $0x120] sm:$0xff]
        %v4088 = vld [vmem:[%s4062 + $0x128] sm:$0xff]
        %v4089 = vld [vmem:[%s4062 + $0x138] sm:$0xff]
        %v4090 = vld [vmem:[%s4062 + $0x140] sm:$0xff]
        %v4091 = vld [vmem:[%s4062 + $0x150] sm:$0xff]
        %v4092 = vld [vmem:[%s4062 + $0x158] sm:$0xff]
        %v4093 = vld [vmem:[%s4062 + $0x168] sm:$0xff]
        %v4094 = vld [vmem:[%s4062 + $0x170] sm:$0xff]
        %v4095 = vperm.slane %v3402, 6
        %v4096 = vmul.f32 %v4063, %v4095
        %v4097 = vmul.f32 %v4064, %v4095
        %v4098 = vmul.f32 %v4065, %v4095
        %v4099 = vmul.f32 %v4066, %v4095
        %v4100 = vmul.f32 %v4067, %v4095
        %v4101 = vmul.f32 %v4068, %v4095
        %v4102 = vmul.f32 %v4069, %v4095
        %v4103 = vmul.f32 %v4070, %v4095
        %v4104 = vmul.f32 %v4071, %v4095
        %v4105 = vmul.f32 %v4072, %v4095
        %v4106 = vmul.f32 %v4073, %v4095
        %v4107 = vmul.f32 %v4074, %v4095
        %v4108 = vmul.f32 %v4075, %v4095
        %v4109 = vmul.f32 %v4076, %v4095
        %v4110 = vmul.f32 %v4077, %v4095
        %v4111 = vmul.f32 %v4078, %v4095
        %v4112 = vmul.f32 %v4079, %v4095
        %v4113 = vmul.f32 %v4080, %v4095
        %v4114 = vmul.f32 %v4081, %v4095
        %v4115 = vmul.f32 %v4082, %v4095
        %v4116 = vmul.f32 %v4083, %v4095
        %v4117 = vmul.f32 %v4084, %v4095
        %v4118 = vmul.f32 %v4085, %v4095
        %v4119 = vmul.f32 %v4086, %v4095
        %v4120 = vmul.f32 %v4087, %v4095
        %v4121 = vmul.f32 %v4088, %v4095
        %v4122 = vmul.f32 %v4089, %v4095
        %v4123 = vmul.f32 %v4090, %v4095
        %v4124 = vmul.f32 %v4091, %v4095
        %v4125 = vmul.f32 %v4092, %v4095
        %v4126 = vmul.f32 %v4093, %v4095
        %v4127 = vmul.f32 %v4094, %v4095
        %v4128 = vadd.f32 %v4030, %v4096
        %v4129 = vadd.f32 %v4031, %v4097
        %v4130 = vadd.f32 %v4032, %v4098
        %v4131 = vadd.f32 %v4033, %v4099
        %v4132 = vadd.f32 %v4034, %v4100
        %v4133 = vadd.f32 %v4035, %v4101
        %v4134 = vadd.f32 %v4036, %v4102
        %v4135 = vadd.f32 %v4037, %v4103
        %v4136 = vadd.f32 %v4038, %v4104
        %v4137 = vadd.f32 %v4039, %v4105
        %v4138 = vadd.f32 %v4040, %v4106
        %v4139 = vadd.f32 %v4041, %v4107
        %v4140 = vadd.f32 %v4042, %v4108
        %v4141 = vadd.f32 %v4043, %v4109
        %v4142 = vadd.f32 %v4044, %v4110
        %v4143 = vadd.f32 %v4045, %v4111
        %v4144 = vadd.f32 %v4046, %v4112
        %v4145 = vadd.f32 %v4047, %v4113
        %v4146 = vadd.f32 %v4048, %v4114
        %v4147 = vadd.f32 %v4049, %v4115
        %v4148 = vadd.f32 %v4050, %v4116
        %v4149 = vadd.f32 %v4051, %v4117
        %v4150 = vadd.f32 %v4052, %v4118
        %v4151 = vadd.f32 %v4053, %v4119
        %v4152 = vadd.f32 %v4054, %v4120
        %v4153 = vadd.f32 %v4055, %v4121
        %v4154 = vadd.f32 %v4056, %v4122
        %v4155 = vadd.f32 %v4057, %v4123
        %v4156 = vadd.f32 %v4058, %v4124
        %v4157 = vadd.f32 %v4059, %v4125
        %v4158 = vadd.f32 %v4060, %v4126
        %v4159 = vadd.f32 %v4061, %v4127
        %v4160 = vld [vmem:[%s4062 + $0x1] sm:$0xff]
        %v4161 = vld [vmem:[%s4062 + $0x9] sm:$0xff]
        %v4162 = vld [vmem:[%s4062 + $0x19] sm:$0xff]
        %v4163 = vld [vmem:[%s4062 + $0x21] sm:$0xff]
        %v4164 = vld [vmem:[%s4062 + $0x31] sm:$0xff]
        %v4165 = vld [vmem:[%s4062 + $0x39] sm:$0xff]
        %v4166 = vld [vmem:[%s4062 + $0x49] sm:$0xff]
        %v4167 = vld [vmem:[%s4062 + $0x51] sm:$0xff]
        %v4168 = vld [vmem:[%s4062 + $0x61] sm:$0xff]
        %v4169 = vld [vmem:[%s4062 + $0x69] sm:$0xff]
        %v4170 = vld [vmem:[%s4062 + $0x79] sm:$0xff]
        %v4171 = vld [vmem:[%s4062 + $0x81] sm:$0xff]
        %v4172 = vld [vmem:[%s4062 + $0x91] sm:$0xff]
        %v4173 = vld [vmem:[%s4062 + $0x99] sm:$0xff]
        %v4174 = vld [vmem:[%s4062 + $0xa9] sm:$0xff]
        %v4175 = vld [vmem:[%s4062 + $0xb1] sm:$0xff]
        %v4176 = vld [vmem:[%s4062 + $0xc1] sm:$0xff]
        %v4177 = vld [vmem:[%s4062 + $0xc9] sm:$0xff]
        %v4178 = vld [vmem:[%s4062 + $0xd9] sm:$0xff]
        %v4179 = vld [vmem:[%s4062 + $0xe1] sm:$0xff]
        %v4180 = vld [vmem:[%s4062 + $0xf1] sm:$0xff]
        %v4181 = vld [vmem:[%s4062 + $0xf9] sm:$0xff]
        %v4182 = vld [vmem:[%s4062 + $0x109] sm:$0xff]
        %v4183 = vld [vmem:[%s4062 + $0x111] sm:$0xff]
        %v4184 = vld [vmem:[%s4062 + $0x121] sm:$0xff]
        %v4185 = vld [vmem:[%s4062 + $0x129] sm:$0xff]
        %v4186 = vld [vmem:[%s4062 + $0x139] sm:$0xff]
        %v4187 = vld [vmem:[%s4062 + $0x141] sm:$0xff]
        %v4188 = vld [vmem:[%s4062 + $0x151] sm:$0xff]
        %v4189 = vld [vmem:[%s4062 + $0x159] sm:$0xff]
        %v4190 = vld [vmem:[%s4062 + $0x169] sm:$0xff]
        %v4191 = vld [vmem:[%s4062 + $0x171] sm:$0xff]
        %v4192 = vperm.slane %v3402, 7
        %v4193 = vmul.f32 %v4160, %v4192
        %v4194 = vmul.f32 %v4161, %v4192
        %v4195 = vmul.f32 %v4162, %v4192
        %v4196 = vmul.f32 %v4163, %v4192
        %v4197 = vmul.f32 %v4164, %v4192
        %v4198 = vmul.f32 %v4165, %v4192
        %v4199 = vmul.f32 %v4166, %v4192
        %v4200 = vmul.f32 %v4167, %v4192
        %v4201 = vmul.f32 %v4168, %v4192
        %v4202 = vmul.f32 %v4169, %v4192
        %v4203 = vmul.f32 %v4170, %v4192
        %v4204 = vmul.f32 %v4171, %v4192
        %v4205 = vmul.f32 %v4172, %v4192
        %v4206 = vmul.f32 %v4173, %v4192
        %v4207 = vmul.f32 %v4174, %v4192
        %v4208 = vmul.f32 %v4175, %v4192
        %v4209 = vmul.f32 %v4176, %v4192
        %v4210 = vmul.f32 %v4177, %v4192
        %v4211 = vmul.f32 %v4178, %v4192
        %v4212 = vmul.f32 %v4179, %v4192
        %v4213 = vmul.f32 %v4180, %v4192
        %v4214 = vmul.f32 %v4181, %v4192
        %v4215 = vmul.f32 %v4182, %v4192
        %v4216 = vmul.f32 %v4183, %v4192
        %v4217 = vmul.f32 %v4184, %v4192
        %v4218 = vmul.f32 %v4185, %v4192
        %v4219 = vmul.f32 %v4186, %v4192
        %v4220 = vmul.f32 %v4187, %v4192
        %v4221 = vmul.f32 %v4188, %v4192
        %v4222 = vmul.f32 %v4189, %v4192
        %v4223 = vmul.f32 %v4190, %v4192
        %v4224 = vmul.f32 %v4191, %v4192
        %v4225 = vadd.f32 %v4128, %v4193
        %v4226 = vadd.f32 %v4129, %v4194
        %v4227 = vadd.f32 %v4130, %v4195
        %v4228 = vadd.f32 %v4131, %v4196
        %v4229 = vadd.f32 %v4132, %v4197
        %v4230 = vadd.f32 %v4133, %v4198
        %v4231 = vadd.f32 %v4134, %v4199
        %v4232 = vadd.f32 %v4135, %v4200
        %v4233 = vadd.f32 %v4136, %v4201
        %v4234 = vadd.f32 %v4137, %v4202
        %v4235 = vadd.f32 %v4138, %v4203
        %v4236 = vadd.f32 %v4139, %v4204
        %v4237 = vadd.f32 %v4140, %v4205
        %v4238 = vadd.f32 %v4141, %v4206
        %v4239 = vadd.f32 %v4142, %v4207
        %v4240 = vadd.f32 %v4143, %v4208
        %v4241 = vadd.f32 %v4144, %v4209
        %v4242 = vadd.f32 %v4145, %v4210
        %v4243 = vadd.f32 %v4146, %v4211
        %v4244 = vadd.f32 %v4147, %v4212
        %v4245 = vadd.f32 %v4148, %v4213
        %v4246 = vadd.f32 %v4149, %v4214
        %v4247 = vadd.f32 %v4150, %v4215
        %v4248 = vadd.f32 %v4151, %v4216
        %v4249 = vadd.f32 %v4152, %v4217
        %v4250 = vadd.f32 %v4153, %v4218
        %v4251 = vadd.f32 %v4154, %v4219
        %v4252 = vadd.f32 %v4155, %v4220
        %v4253 = vadd.f32 %v4156, %v4221
        %v4254 = vadd.f32 %v4157, %v4222
        %v4255 = vadd.f32 %v4158, %v4223
        %v4256 = vadd.f32 %v4159, %v4224
        %v4257 = vld [vmem:[%s4062 + $0x2] sm:$0xff]
        %v4258 = vld [vmem:[%s4062 + $0xa] sm:$0xff]
        %v4259 = vld [vmem:[%s4062 + $0x1a] sm:$0xff]
        %v4260 = vld [vmem:[%s4062 + $0x22] sm:$0xff]
        %v4261 = vld [vmem:[%s4062 + $0x32] sm:$0xff]
        %v4262 = vld [vmem:[%s4062 + $0x3a] sm:$0xff]
        %v4263 = vld [vmem:[%s4062 + $0x4a] sm:$0xff]
        %v4264 = vld [vmem:[%s4062 + $0x52] sm:$0xff]
        %v4265 = vld [vmem:[%s4062 + $0x62] sm:$0xff]
        %v4266 = vld [vmem:[%s4062 + $0x6a] sm:$0xff]
        %v4267 = vld [vmem:[%s4062 + $0x7a] sm:$0xff]
        %v4268 = vld [vmem:[%s4062 + $0x82] sm:$0xff]
        %v4269 = vld [vmem:[%s4062 + $0x92] sm:$0xff]
        %v4270 = vld [vmem:[%s4062 + $0x9a] sm:$0xff]
        %v4271 = vld [vmem:[%s4062 + $0xaa] sm:$0xff]
        %v4272 = vld [vmem:[%s4062 + $0xb2] sm:$0xff]
        %v4273 = vld [vmem:[%s4062 + $0xc2] sm:$0xff]
        %v4274 = vld [vmem:[%s4062 + $0xca] sm:$0xff]
        %v4275 = vld [vmem:[%s4062 + $0xda] sm:$0xff]
        %v4276 = vld [vmem:[%s4062 + $0xe2] sm:$0xff]
        %v4277 = vld [vmem:[%s4062 + $0xf2] sm:$0xff]
        %v4278 = vld [vmem:[%s4062 + $0xfa] sm:$0xff]
        %v4279 = vld [vmem:[%s4062 + $0x10a] sm:$0xff]
        %v4280 = vld [vmem:[%s4062 + $0x112] sm:$0xff]
        %v4281 = vld [vmem:[%s4062 + $0x122] sm:$0xff]
        %v4282 = vld [vmem:[%s4062 + $0x12a] sm:$0xff]
        %v4283 = vld [vmem:[%s4062 + $0x13a] sm:$0xff]
        %v4284 = vld [vmem:[%s4062 + $0x142] sm:$0xff]
        %v4285 = vld [vmem:[%s4062 + $0x152] sm:$0xff]
        %v4286 = vld [vmem:[%s4062 + $0x15a] sm:$0xff]
        %v4287 = vld [vmem:[%s4062 + $0x16a] sm:$0xff]
        %v4288 = vld [vmem:[%s4062 + $0x172] sm:$0xff]
        %v4289 = vperm.slane %v3403, 0
        %v4290 = vmul.f32 %v4257, %v4289
        %v4291 = vmul.f32 %v4258, %v4289
        %v4292 = vmul.f32 %v4259, %v4289
        %v4293 = vmul.f32 %v4260, %v4289
        %v4294 = vmul.f32 %v4261, %v4289
        %v4295 = vmul.f32 %v4262, %v4289
        %v4296 = vmul.f32 %v4263, %v4289
        %v4297 = vmul.f32 %v4264, %v4289
        %v4298 = vmul.f32 %v4265, %v4289
        %v4299 = vmul.f32 %v4266, %v4289
        %v4300 = vmul.f32 %v4267, %v4289
        %v4301 = vmul.f32 %v4268, %v4289
        %v4302 = vmul.f32 %v4269, %v4289
        %v4303 = vmul.f32 %v4270, %v4289
        %v4304 = vmul.f32 %v4271, %v4289
        %v4305 = vmul.f32 %v4272, %v4289
        %v4306 = vmul.f32 %v4273, %v4289
        %v4307 = vmul.f32 %v4274, %v4289
        %v4308 = vmul.f32 %v4275, %v4289
        %v4309 = vmul.f32 %v4276, %v4289
        %v4310 = vmul.f32 %v4277, %v4289
        %v4311 = vmul.f32 %v4278, %v4289
        %v4312 = vmul.f32 %v4279, %v4289
        %v4313 = vmul.f32 %v4280, %v4289
        %v4314 = vmul.f32 %v4281, %v4289
        %v4315 = vmul.f32 %v4282, %v4289
        %v4316 = vmul.f32 %v4283, %v4289
        %v4317 = vmul.f32 %v4284, %v4289
        %v4318 = vmul.f32 %v4285, %v4289
        %v4319 = vmul.f32 %v4286, %v4289
        %v4320 = vmul.f32 %v4287, %v4289
        %v4321 = vmul.f32 %v4288, %v4289
        %v4322 = vadd.f32 %v4225, %v4290
        %v4323 = vadd.f32 %v4226, %v4291
        %v4324 = vadd.f32 %v4227, %v4292
        %v4325 = vadd.f32 %v4228, %v4293
        %v4326 = vadd.f32 %v4229, %v4294
        %v4327 = vadd.f32 %v4230, %v4295
        %v4328 = vadd.f32 %v4231, %v4296
        %v4329 = vadd.f32 %v4232, %v4297
        %v4330 = vadd.f32 %v4233, %v4298
        %v4331 = vadd.f32 %v4234, %v4299
        %v4332 = vadd.f32 %v4235, %v4300
        %v4333 = vadd.f32 %v4236, %v4301
        %v4334 = vadd.f32 %v4237, %v4302
        %v4335 = vadd.f32 %v4238, %v4303
        %v4336 = vadd.f32 %v4239, %v4304
        %v4337 = vadd.f32 %v4240, %v4305
        %v4338 = vadd.f32 %v4241, %v4306
        %v4339 = vadd.f32 %v4242, %v4307
        %v4340 = vadd.f32 %v4243, %v4308
        %v4341 = vadd.f32 %v4244, %v4309
        %v4342 = vadd.f32 %v4245, %v4310
        %v4343 = vadd.f32 %v4246, %v4311
        %v4344 = vadd.f32 %v4247, %v4312
        %v4345 = vadd.f32 %v4248, %v4313
        %v4346 = vadd.f32 %v4249, %v4314
        %v4347 = vadd.f32 %v4250, %v4315
        %v4348 = vadd.f32 %v4251, %v4316
        %v4349 = vadd.f32 %v4252, %v4317
        %v4350 = vadd.f32 %v4253, %v4318
        %v4351 = vadd.f32 %v4254, %v4319
        %v4352 = vadd.f32 %v4255, %v4320
        %v4353 = vadd.f32 %v4256, %v4321
        %v4354 = vpack.c.bf16 %v4323, %v4322
        %v4355 = vpack.c.bf16 %v4325, %v4324
        %v4356 = vpack.c.bf16 %v4327, %v4326
        %v4357 = vpack.c.bf16 %v4329, %v4328
        %v4358 = vpack.c.bf16 %v4331, %v4330
        %v4359 = vpack.c.bf16 %v4333, %v4332
        %v4360 = vpack.c.bf16 %v4335, %v4334
        %v4361 = vpack.c.bf16 %v4337, %v4336
        %v4362 = vpack.c.bf16 %v4339, %v4338
        %v4363 = vpack.c.bf16 %v4341, %v4340
        %v4364 = vpack.c.bf16 %v4343, %v4342
        %v4365 = vpack.c.bf16 %v4345, %v4344
        %v4366 = vpack.c.bf16 %v4347, %v4346
        %v4367 = vpack.c.bf16 %v4349, %v4348
        %v4368 = vpack.c.bf16 %v4351, %v4350
        %v4369 = vpack.c.bf16 %v4353, %v4352
        %v4370 = vld [vmem:[%s9] sm:$0xf]
        %v4372 = vperm.slane %v3404, 0
        %v4375 = vsel %vm3405, %v4354, 0
        %v4378 = vsel %vm3405, %v4355, 0
        %v4381 = vsel %vm3405, %v4356, 0
        %v4384 = vsel %vm3405, %v4357, 0
        %v4387 = vsel %vm3405, %v4358, 0
        %v4390 = vsel %vm3405, %v4359, 0
        %v4393 = vsel %vm3405, %v4360, 0
        %v4396 = vsel %vm3405, %v4361, 0
        %v4399 = vsel %vm3405, %v4362, 0
        %v4402 = vsel %vm3405, %v4363, 0
        %v4405 = vsel %vm3405, %v4364, 0
        %v4408 = vsel %vm3405, %v4365, 0
        %v4411 = vsel %vm3405, %v4366, 0
        %v4414 = vsel %vm3405, %v4367, 0
        %v4417 = vsel %vm3405, %v4368, 0
        %v4420 = vsel %vm3405, %v4369, 0
        %vm4422 = vcmask 1043456
        %v4424 = vsel %vm4422, %v4370, 0
        %4426 = vmatpush.bf16.msra.mxu0 0
        %4427 = vmatpush.bf16.msra.mxu0 0
        %4428 = vmatpush.bf16.msra.mxu0 0
        %4429 = vmatpush.bf16.msra.mxu0 0
        %4430 = vmatpush.bf16.msra.mxu0 0
        %4431 = vmatpush.bf16.msra.mxu0 0
        %4432 = vmatpush.bf16.msra.mxu0 0
        %4433 = vmatpush.bf16.msra.mxu0 %v4424
        %4434 = vmatmul.bf16.gmra.mxu0 %v4375
        %v4435 = vpop.f32.mrf.mxu0
        %v4436 = vadd.f32 %v4372, %v4435
        %v4437 = vpop.f32.mrf.mxu0
        %v4438 = vadd.f32 %v4372, %v4437
        %4439 = vmatmul.bf16.gmra.mxu0 %v4378
        %v4440 = vpop.f32.mrf.mxu0
        %v4441 = vadd.f32 %v4372, %v4440
        %v4442 = vpop.f32.mrf.mxu0
        %v4443 = vadd.f32 %v4372, %v4442
        %4444 = vmatmul.bf16.gmra.mxu0 %v4381
        %v4445 = vpop.f32.mrf.mxu0
        %v4446 = vadd.f32 %v4372, %v4445
        %v4447 = vpop.f32.mrf.mxu0
        %v4448 = vadd.f32 %v4372, %v4447
        %4449 = vmatmul.bf16.gmra.mxu0 %v4384
        %v4450 = vpop.f32.mrf.mxu0
        %v4451 = vadd.f32 %v4372, %v4450
        %v4452 = vpop.f32.mrf.mxu0
        %v4453 = vadd.f32 %v4372, %v4452
        %4454 = vmatmul.bf16.gmra.mxu0 %v4387
        %v4455 = vpop.f32.mrf.mxu0
        %v4456 = vadd.f32 %v4372, %v4455
        %v4457 = vpop.f32.mrf.mxu0
        %v4458 = vadd.f32 %v4372, %v4457
        %4459 = vmatmul.bf16.gmra.mxu0 %v4390
        %v4460 = vpop.f32.mrf.mxu0
        %v4461 = vadd.f32 %v4372, %v4460
        %v4462 = vpop.f32.mrf.mxu0
        %v4463 = vadd.f32 %v4372, %v4462
        %4464 = vmatmul.bf16.gmra.mxu0 %v4393
        %v4465 = vpop.f32.mrf.mxu0
        %v4466 = vadd.f32 %v4372, %v4465
        %v4467 = vpop.f32.mrf.mxu0
        %v4468 = vadd.f32 %v4372, %v4467
        %4469 = vmatmul.bf16.gmra.mxu0 %v4396
        %v4470 = vpop.f32.mrf.mxu0
        %v4471 = vadd.f32 %v4372, %v4470
        %v4472 = vpop.f32.mrf.mxu0
        %v4473 = vadd.f32 %v4372, %v4472
        %4474 = vmatmul.bf16.gmra.mxu0 %v4399
        %v4475 = vpop.f32.mrf.mxu0
        %v4476 = vadd.f32 %v4372, %v4475
        %v4477 = vpop.f32.mrf.mxu0
        %v4478 = vadd.f32 %v4372, %v4477
        %4479 = vmatmul.bf16.gmra.mxu0 %v4402
        %v4480 = vpop.f32.mrf.mxu0
        %v4481 = vadd.f32 %v4372, %v4480
        %v4482 = vpop.f32.mrf.mxu0
        %v4483 = vadd.f32 %v4372, %v4482
        %4484 = vmatmul.bf16.gmra.mxu0 %v4405
        %v4485 = vpop.f32.mrf.mxu0
        %v4486 = vadd.f32 %v4372, %v4485
        %v4487 = vpop.f32.mrf.mxu0
        %v4488 = vadd.f32 %v4372, %v4487
        %4489 = vmatmul.bf16.gmra.mxu0 %v4408
        %v4490 = vpop.f32.mrf.mxu0
        %v4491 = vadd.f32 %v4372, %v4490
        %v4492 = vpop.f32.mrf.mxu0
        %v4493 = vadd.f32 %v4372, %v4492
        %4494 = vmatmul.bf16.gmra.mxu0 %v4411
        %v4495 = vpop.f32.mrf.mxu0
        %v4496 = vadd.f32 %v4372, %v4495
        %v4497 = vpop.f32.mrf.mxu0
        %v4498 = vadd.f32 %v4372, %v4497
        %4499 = vmatmul.bf16.gmra.mxu0 %v4414
        %v4500 = vpop.f32.mrf.mxu0
        %v4501 = vadd.f32 %v4372, %v4500
        %v4502 = vpop.f32.mrf.mxu0
        %v4503 = vadd.f32 %v4372, %v4502
        %4504 = vmatmul.bf16.gmra.mxu0 %v4417
        %v4505 = vpop.f32.mrf.mxu0
        %v4506 = vadd.f32 %v4372, %v4505
        %v4507 = vpop.f32.mrf.mxu0
        %v4508 = vadd.f32 %v4372, %v4507
        %4509 = vmatmul.bf16.gmra.mxu0 %v4420
        %v4510 = vpop.f32.mrf.mxu0
        %v4511 = vadd.f32 %v4372, %v4510
        %v4512 = vpop.f32.mrf.mxu0
        %v4513 = vadd.f32 %v4372, %v4512
        %4514 = vdwg.mxu0
        %v4515 = vmax.f32 %v4436, 0.0
        %v4516 = vmax.f32 %v4438, 0.0
        %v4517 = vmax.f32 %v4441, 0.0
        %v4518 = vmax.f32 %v4443, 0.0
        %v4519 = vmax.f32 %v4446, 0.0
        %v4520 = vmax.f32 %v4448, 0.0
        %v4521 = vmax.f32 %v4451, 0.0
        %v4522 = vmax.f32 %v4453, 0.0
        %v4523 = vmax.f32 %v4456, 0.0
        %v4524 = vmax.f32 %v4458, 0.0
        %v4525 = vmax.f32 %v4461, 0.0
        %v4526 = vmax.f32 %v4463, 0.0
        %v4527 = vmax.f32 %v4466, 0.0
        %v4528 = vmax.f32 %v4468, 0.0
        %v4529 = vmax.f32 %v4471, 0.0
        %v4530 = vmax.f32 %v4473, 0.0
        %v4531 = vmax.f32 %v4476, 0.0
        %v4532 = vmax.f32 %v4478, 0.0
        %v4533 = vmax.f32 %v4481, 0.0
        %v4534 = vmax.f32 %v4483, 0.0
        %v4535 = vmax.f32 %v4486, 0.0
        %v4536 = vmax.f32 %v4488, 0.0
        %v4537 = vmax.f32 %v4491, 0.0
        %v4538 = vmax.f32 %v4493, 0.0
        %v4539 = vmax.f32 %v4496, 0.0
        %v4540 = vmax.f32 %v4498, 0.0
        %v4541 = vmax.f32 %v4501, 0.0
        %v4542 = vmax.f32 %v4503, 0.0
        %v4543 = vmax.f32 %v4506, 0.0
        %v4544 = vmax.f32 %v4508, 0.0
        %v4545 = vmax.f32 %v4511, 0.0
        %v4546 = vmax.f32 %v4513, 0.0
        %v4547 = vld [vmem:[%s13] sm:$0xff]
        %v4548 = vld [vmem:[%s13 + $0x8] sm:$0x1]
        %v4549 = vld [vmem:[%s17] sm:$0x1]
        %vm4550 = vcmask 130048
        %4551 = vst.msk [vmem:[#allocation3] sm:$0xff] %vm4550, 0.0
        %4552 = vst.msk [vmem:[#allocation3 + $0x8] sm:$0xff] %vm4550, 0.0
        %vm4553 = vcmask 123904
        %4554 = vst.msk [vmem:[#allocation3 + $0x10] sm:$0x3] %vm4553, 0.0
        %s4555 = scalar_lea.vmem [#allocation3], 408
        %4556 = vst.msk [vmem:[%s4555] sm:$0xff] %vm4550, 0.0
        %4557 = vst.msk [vmem:[%s4555 + $0x8] sm:$0xff] %vm4550, 0.0
        %4558 = vst.msk [vmem:[%s4555 + $0x10] sm:$0x3] %vm4553, 0.0
        %s4559 = scalar_lea.vmem [#allocation3], 24
        %vm4560 = vcmask 122880
        %4561 = vst.msk [vmem:[%s4559] sm:$0x1] %vm4560, 0.0
        %4562 = vst.msk [vmem:[%s4559 + $0x18] sm:$0x1] %vm4560, 0.0
        %4563 = vst.msk [vmem:[%s4559 + $0x30] sm:$0x1] %vm4560, 0.0
        %4564 = vst.msk [vmem:[%s4559 + $0x48] sm:$0x1] %vm4560, 0.0
        %4565 = vst.msk [vmem:[%s4559 + $0x60] sm:$0x1] %vm4560, 0.0
        %4566 = vst.msk [vmem:[%s4559 + $0x78] sm:$0x1] %vm4560, 0.0
        %4567 = vst.msk [vmem:[%s4559 + $0x90] sm:$0x1] %vm4560, 0.0
        %4568 = vst.msk [vmem:[%s4559 + $0xa8] sm:$0x1] %vm4560, 0.0
        %4569 = vst.msk [vmem:[%s4559 + $0xc0] sm:$0x1] %vm4560, 0.0
        %4570 = vst.msk [vmem:[%s4559 + $0xd8] sm:$0x1] %vm4560, 0.0
        %4571 = vst.msk [vmem:[%s4559 + $0xf0] sm:$0x1] %vm4560, 0.0
        %4572 = vst.msk [vmem:[%s4559 + $0x108] sm:$0x1] %vm4560, 0.0
        %4573 = vst.msk [vmem:[%s4559 + $0x120] sm:$0x1] %vm4560, 0.0
        %4574 = vst.msk [vmem:[%s4559 + $0x138] sm:$0x1] %vm4560, 0.0
        %4575 = vst.msk [vmem:[%s4559 + $0x150] sm:$0x1] %vm4560, 0.0
        %4576 = vst.msk [vmem:[%s4559 + $0x168] sm:$0x1] %vm4560, 0.0
        %4577 = vst.msk [vmem:[%s4559 + $0x11] sm:$0x1] %vm4560, 0.0
        %4578 = vst.msk [vmem:[%s4559 + $0x29] sm:$0x1] %vm4560, 0.0
        %4579 = vst.msk [vmem:[%s4559 + $0x41] sm:$0x1] %vm4560, 0.0
        %4580 = vst.msk [vmem:[%s4559 + $0x59] sm:$0x1] %vm4560, 0.0
        %4581 = vst.msk [vmem:[%s4559 + $0x71] sm:$0x1] %vm4560, 0.0
        %4582 = vst.msk [vmem:[%s4559 + $0x89] sm:$0x1] %vm4560, 0.0
        %4583 = vst.msk [vmem:[%s4559 + $0xa1] sm:$0x1] %vm4560, 0.0
        %4584 = vst.msk [vmem:[%s4559 + $0xb9] sm:$0x1] %vm4560, 0.0
        %4585 = vst.msk [vmem:[%s4559 + $0xd1] sm:$0x1] %vm4560, 0.0
        %4586 = vst.msk [vmem:[%s4559 + $0xe9] sm:$0x1] %vm4560, 0.0
        %4587 = vst.msk [vmem:[%s4559 + $0x101] sm:$0x1] %vm4560, 0.0
        %4588 = vst.msk [vmem:[%s4559 + $0x119] sm:$0x1] %vm4560, 0.0
        %4589 = vst.msk [vmem:[%s4559 + $0x131] sm:$0x1] %vm4560, 0.0
        %4590 = vst.msk [vmem:[%s4559 + $0x149] sm:$0x1] %vm4560, 0.0
        %4591 = vst.msk [vmem:[%s4559 + $0x161] sm:$0x1] %vm4560, 0.0
        %4592 = vst.msk [vmem:[%s4559 + $0x179] sm:$0x1] %vm4560, 0.0
        %4593 = vst.msk [vmem:[%s4559 + $0x1] sm:$0xff] %vm4550, %v4515
        %4594 = vst.msk [vmem:[%s4559 + $0x9] sm:$0xff] %vm4550, %v4516
        %4595 = vst.msk [vmem:[%s4559 + $0x19] sm:$0xff] %vm4550, %v4517
        %4596 = vst.msk [vmem:[%s4559 + $0x21] sm:$0xff] %vm4550, %v4518
        %4597 = vst.msk [vmem:[%s4559 + $0x31] sm:$0xff] %vm4550, %v4519
        %4598 = vst.msk [vmem:[%s4559 + $0x39] sm:$0xff] %vm4550, %v4520
        %4599 = vst.msk [vmem:[%s4559 + $0x49] sm:$0xff] %vm4550, %v4521
        %4600 = vst.msk [vmem:[%s4559 + $0x51] sm:$0xff] %vm4550, %v4522
        %4601 = vst.msk [vmem:[%s4559 + $0x61] sm:$0xff] %vm4550, %v4523
        %4602 = vst.msk [vmem:[%s4559 + $0x69] sm:$0xff] %vm4550, %v4524
        %4603 = vst.msk [vmem:[%s4559 + $0x79] sm:$0xff] %vm4550, %v4525
        %4604 = vst.msk [vmem:[%s4559 + $0x81] sm:$0xff] %vm4550, %v4526
        %4605 = vst.msk [vmem:[%s4559 + $0x91] sm:$0xff] %vm4550, %v4527
        %4606 = vst.msk [vmem:[%s4559 + $0x99] sm:$0xff] %vm4550, %v4528
        %4607 = vst.msk [vmem:[%s4559 + $0xa9] sm:$0xff] %vm4550, %v4529
        %4608 = vst.msk [vmem:[%s4559 + $0xb1] sm:$0xff] %vm4550, %v4530
        %4609 = vst.msk [vmem:[%s4559 + $0xc1] sm:$0xff] %vm4550, %v4531
        %4610 = vst.msk [vmem:[%s4559 + $0xc9] sm:$0xff] %vm4550, %v4532
        %4611 = vst.msk [vmem:[%s4559 + $0xd9] sm:$0xff] %vm4550, %v4533
        %4612 = vst.msk [vmem:[%s4559 + $0xe1] sm:$0xff] %vm4550, %v4534
        %4613 = vst.msk [vmem:[%s4559 + $0xf1] sm:$0xff] %vm4550, %v4535
        %4614 = vst.msk [vmem:[%s4559 + $0xf9] sm:$0xff] %vm4550, %v4536
        %4615 = vst.msk [vmem:[%s4559 + $0x109] sm:$0xff] %vm4550, %v4537
        %4616 = vst.msk [vmem:[%s4559 + $0x111] sm:$0xff] %vm4550, %v4538
        %4617 = vst.msk [vmem:[%s4559 + $0x121] sm:$0xff] %vm4550, %v4539
        %4618 = vst.msk [vmem:[%s4559 + $0x129] sm:$0xff] %vm4550, %v4540
        %4619 = vst.msk [vmem:[%s4559 + $0x139] sm:$0xff] %vm4550, %v4541
        %4620 = vst.msk [vmem:[%s4559 + $0x141] sm:$0xff] %vm4550, %v4542
        %4621 = vst.msk [vmem:[%s4559 + $0x151] sm:$0xff] %vm4550, %v4543
        %4622 = vst.msk [vmem:[%s4559 + $0x159] sm:$0xff] %vm4550, %v4544
        %4623 = vst.msk [vmem:[%s4559 + $0x169] sm:$0xff] %vm4550, %v4545
        %4624 = vst.msk [vmem:[%s4559 + $0x171] sm:$0xff] %vm4550, %v4546
        %v4625 = vld [vmem:[#allocation3] sm:$0xff]
        %v4626 = vld [vmem:[#allocation3 + $0x8] sm:$0xff]
        %v4627 = vld [vmem:[#allocation3 + $0x30] sm:$0xff]
        %v4628 = vld [vmem:[#allocation3 + $0x38] sm:$0xff]
        %v4629 = vld [vmem:[#allocation3 + $0x60] sm:$0xff]
        %v4630 = vld [vmem:[#allocation3 + $0x68] sm:$0xff]
        %v4631 = vld [vmem:[#allocation3 + $0x90] sm:$0xff]
        %v4632 = vld [vmem:[#allocation3 + $0x98] sm:$0xff]
        %v4633 = vld [vmem:[#allocation3 + $0xc0] sm:$0xff]
        %v4634 = vld [vmem:[#allocation3 + $0xc8] sm:$0xff]
        %v4635 = vld [vmem:[#allocation3 + $0xf0] sm:$0xff]
        %v4636 = vld [vmem:[#allocation3 + $0xf8] sm:$0xff]
        %v4637 = vld [vmem:[#allocation3 + $0x120] sm:$0xff]
        %v4638 = vld [vmem:[#allocation3 + $0x128] sm:$0xff]
        %v4639 = vld [vmem:[#allocation3 + $0x150] sm:$0xff]
        %v4640 = vld [vmem:[#allocation3 + $0x158] sm:$0xff]
        %v4641 = vperm.slane %v4547, 0
        %v4642 = vmul.f32 %v4625, %v4641
        %v4643 = vmul.f32 %v4626, %v4641
        %v4644 = vmul.f32 %v4627, %v4641
        %v4645 = vmul.f32 %v4628, %v4641
        %v4646 = vmul.f32 %v4629, %v4641
        %v4647 = vmul.f32 %v4630, %v4641
        %v4648 = vmul.f32 %v4631, %v4641
        %v4649 = vmul.f32 %v4632, %v4641
        %v4650 = vmul.f32 %v4633, %v4641
        %v4651 = vmul.f32 %v4634, %v4641
        %v4652 = vmul.f32 %v4635, %v4641
        %v4653 = vmul.f32 %v4636, %v4641
        %v4654 = vmul.f32 %v4637, %v4641
        %v4655 = vmul.f32 %v4638, %v4641
        %v4656 = vmul.f32 %v4639, %v4641
        %v4657 = vmul.f32 %v4640, %v4641
        %v4658 = vadd.f32 %v4642, 0.0
        %v4659 = vadd.f32 %v4643, 0.0
        %v4660 = vadd.f32 %v4644, 0.0
        %v4661 = vadd.f32 %v4645, 0.0
        %v4662 = vadd.f32 %v4646, 0.0
        %v4663 = vadd.f32 %v4647, 0.0
        %v4664 = vadd.f32 %v4648, 0.0
        %v4665 = vadd.f32 %v4649, 0.0
        %v4666 = vadd.f32 %v4650, 0.0
        %v4667 = vadd.f32 %v4651, 0.0
        %v4668 = vadd.f32 %v4652, 0.0
        %v4669 = vadd.f32 %v4653, 0.0
        %v4670 = vadd.f32 %v4654, 0.0
        %v4671 = vadd.f32 %v4655, 0.0
        %v4672 = vadd.f32 %v4656, 0.0
        %v4673 = vadd.f32 %v4657, 0.0
        %v4674 = vld [vmem:[#allocation3 + $0x1] sm:$0xff]
        %v4675 = vld [vmem:[#allocation3 + $0x9] sm:$0xff]
        %v4676 = vld [vmem:[#allocation3 + $0x31] sm:$0xff]
        %v4677 = vld [vmem:[#allocation3 + $0x39] sm:$0xff]
        %v4678 = vld [vmem:[#allocation3 + $0x61] sm:$0xff]
        %v4679 = vld [vmem:[#allocation3 + $0x69] sm:$0xff]
        %v4680 = vld [vmem:[#allocation3 + $0x91] sm:$0xff]
        %v4681 = vld [vmem:[#allocation3 + $0x99] sm:$0xff]
        %v4682 = vld [vmem:[#allocation3 + $0xc1] sm:$0xff]
        %v4683 = vld [vmem:[#allocation3 + $0xc9] sm:$0xff]
        %v4684 = vld [vmem:[#allocation3 + $0xf1] sm:$0xff]
        %v4685 = vld [vmem:[#allocation3 + $0xf9] sm:$0xff]
        %v4686 = vld [vmem:[#allocation3 + $0x121] sm:$0xff]
        %v4687 = vld [vmem:[#allocation3 + $0x129] sm:$0xff]
        %v4688 = vld [vmem:[#allocation3 + $0x151] sm:$0xff]
        %v4689 = vld [vmem:[#allocation3 + $0x159] sm:$0xff]
        %v4690 = vperm.slane %v4547, 1
        %v4691 = vmul.f32 %v4674, %v4690
        %v4692 = vmul.f32 %v4675, %v4690
        %v4693 = vmul.f32 %v4676, %v4690
        %v4694 = vmul.f32 %v4677, %v4690
        %v4695 = vmul.f32 %v4678, %v4690
        %v4696 = vmul.f32 %v4679, %v4690
        %v4697 = vmul.f32 %v4680, %v4690
        %v4698 = vmul.f32 %v4681, %v4690
        %v4699 = vmul.f32 %v4682, %v4690
        %v4700 = vmul.f32 %v4683, %v4690
        %v4701 = vmul.f32 %v4684, %v4690
        %v4702 = vmul.f32 %v4685, %v4690
        %v4703 = vmul.f32 %v4686, %v4690
        %v4704 = vmul.f32 %v4687, %v4690
        %v4705 = vmul.f32 %v4688, %v4690
        %v4706 = vmul.f32 %v4689, %v4690
        %v4707 = vadd.f32 %v4658, %v4691
        %v4708 = vadd.f32 %v4659, %v4692
        %v4709 = vadd.f32 %v4660, %v4693
        %v4710 = vadd.f32 %v4661, %v4694
        %v4711 = vadd.f32 %v4662, %v4695
        %v4712 = vadd.f32 %v4663, %v4696
        %v4713 = vadd.f32 %v4664, %v4697
        %v4714 = vadd.f32 %v4665, %v4698
        %v4715 = vadd.f32 %v4666, %v4699
        %v4716 = vadd.f32 %v4667, %v4700
        %v4717 = vadd.f32 %v4668, %v4701
        %v4718 = vadd.f32 %v4669, %v4702
        %v4719 = vadd.f32 %v4670, %v4703
        %v4720 = vadd.f32 %v4671, %v4704
        %v4721 = vadd.f32 %v4672, %v4705
        %v4722 = vadd.f32 %v4673, %v4706
        %v4723 = vld [vmem:[#allocation3 + $0x2] sm:$0xff]
        %v4724 = vld [vmem:[#allocation3 + $0xa] sm:$0xff]
        %v4725 = vld [vmem:[#allocation3 + $0x32] sm:$0xff]
        %v4726 = vld [vmem:[#allocation3 + $0x3a] sm:$0xff]
        %v4727 = vld [vmem:[#allocation3 + $0x62] sm:$0xff]
        %v4728 = vld [vmem:[#allocation3 + $0x6a] sm:$0xff]
        %v4729 = vld [vmem:[#allocation3 + $0x92] sm:$0xff]
        %v4730 = vld [vmem:[#allocation3 + $0x9a] sm:$0xff]
        %v4731 = vld [vmem:[#allocation3 + $0xc2] sm:$0xff]
        %v4732 = vld [vmem:[#allocation3 + $0xca] sm:$0xff]
        %v4733 = vld [vmem:[#allocation3 + $0xf2] sm:$0xff]
        %v4734 = vld [vmem:[#allocation3 + $0xfa] sm:$0xff]
        %v4735 = vld [vmem:[#allocation3 + $0x122] sm:$0xff]
        %v4736 = vld [vmem:[#allocation3 + $0x12a] sm:$0xff]
        %v4737 = vld [vmem:[#allocation3 + $0x152] sm:$0xff]
        %v4738 = vld [vmem:[#allocation3 + $0x15a] sm:$0xff]
        %v4739 = vperm.slane %v4547, 2
        %v4740 = vmul.f32 %v4723, %v4739
        %v4741 = vmul.f32 %v4724, %v4739
        %v4742 = vmul.f32 %v4725, %v4739
        %v4743 = vmul.f32 %v4726, %v4739
        %v4744 = vmul.f32 %v4727, %v4739
        %v4745 = vmul.f32 %v4728, %v4739
        %v4746 = vmul.f32 %v4729, %v4739
        %v4747 = vmul.f32 %v4730, %v4739
        %v4748 = vmul.f32 %v4731, %v4739
        %v4749 = vmul.f32 %v4732, %v4739
        %v4750 = vmul.f32 %v4733, %v4739
        %v4751 = vmul.f32 %v4734, %v4739
        %v4752 = vmul.f32 %v4735, %v4739
        %v4753 = vmul.f32 %v4736, %v4739
        %v4754 = vmul.f32 %v4737, %v4739
        %v4755 = vmul.f32 %v4738, %v4739
        %v4756 = vadd.f32 %v4707, %v4740
        %v4757 = vadd.f32 %v4708, %v4741
        %v4758 = vadd.f32 %v4709, %v4742
        %v4759 = vadd.f32 %v4710, %v4743
        %v4760 = vadd.f32 %v4711, %v4744
        %v4761 = vadd.f32 %v4712, %v4745
        %v4762 = vadd.f32 %v4713, %v4746
        %v4763 = vadd.f32 %v4714, %v4747
        %v4764 = vadd.f32 %v4715, %v4748
        %v4765 = vadd.f32 %v4716, %v4749
        %v4766 = vadd.f32 %v4717, %v4750
        %v4767 = vadd.f32 %v4718, %v4751
        %v4768 = vadd.f32 %v4719, %v4752
        %v4769 = vadd.f32 %v4720, %v4753
        %v4770 = vadd.f32 %v4721, %v4754
        %v4771 = vadd.f32 %v4722, %v4755
        %v4772 = vld [vmem:[%s4559] sm:$0xff]
        %v4773 = vld [vmem:[%s4559 + $0x8] sm:$0xff]
        %v4774 = vld [vmem:[%s4559 + $0x30] sm:$0xff]
        %v4775 = vld [vmem:[%s4559 + $0x38] sm:$0xff]
        %v4776 = vld [vmem:[%s4559 + $0x60] sm:$0xff]
        %v4777 = vld [vmem:[%s4559 + $0x68] sm:$0xff]
        %v4778 = vld [vmem:[%s4559 + $0x90] sm:$0xff]
        %v4779 = vld [vmem:[%s4559 + $0x98] sm:$0xff]
        %v4780 = vld [vmem:[%s4559 + $0xc0] sm:$0xff]
        %v4781 = vld [vmem:[%s4559 + $0xc8] sm:$0xff]
        %v4782 = vld [vmem:[%s4559 + $0xf0] sm:$0xff]
        %v4783 = vld [vmem:[%s4559 + $0xf8] sm:$0xff]
        %v4784 = vld [vmem:[%s4559 + $0x120] sm:$0xff]
        %v4785 = vld [vmem:[%s4559 + $0x128] sm:$0xff]
        %v4786 = vld [vmem:[%s4559 + $0x150] sm:$0xff]
        %v4787 = vld [vmem:[%s4559 + $0x158] sm:$0xff]
        %v4788 = vperm.slane %v4547, 3
        %v4789 = vmul.f32 %v4772, %v4788
        %v4790 = vmul.f32 %v4773, %v4788
        %v4791 = vmul.f32 %v4774, %v4788
        %v4792 = vmul.f32 %v4775, %v4788
        %v4793 = vmul.f32 %v4776, %v4788
        %v4794 = vmul.f32 %v4777, %v4788
        %v4795 = vmul.f32 %v4778, %v4788
        %v4796 = vmul.f32 %v4779, %v4788
        %v4797 = vmul.f32 %v4780, %v4788
        %v4798 = vmul.f32 %v4781, %v4788
        %v4799 = vmul.f32 %v4782, %v4788
        %v4800 = vmul.f32 %v4783, %v4788
        %v4801 = vmul.f32 %v4784, %v4788
        %v4802 = vmul.f32 %v4785, %v4788
        %v4803 = vmul.f32 %v4786, %v4788
        %v4804 = vmul.f32 %v4787, %v4788
        %v4805 = vadd.f32 %v4756, %v4789
        %v4806 = vadd.f32 %v4757, %v4790
        %v4807 = vadd.f32 %v4758, %v4791
        %v4808 = vadd.f32 %v4759, %v4792
        %v4809 = vadd.f32 %v4760, %v4793
        %v4810 = vadd.f32 %v4761, %v4794
        %v4811 = vadd.f32 %v4762, %v4795
        %v4812 = vadd.f32 %v4763, %v4796
        %v4813 = vadd.f32 %v4764, %v4797
        %v4814 = vadd.f32 %v4765, %v4798
        %v4815 = vadd.f32 %v4766, %v4799
        %v4816 = vadd.f32 %v4767, %v4800
        %v4817 = vadd.f32 %v4768, %v4801
        %v4818 = vadd.f32 %v4769, %v4802
        %v4819 = vadd.f32 %v4770, %v4803
        %v4820 = vadd.f32 %v4771, %v4804
        %v4821 = vld [vmem:[%s4559 + $0x1] sm:$0xff]
        %v4822 = vld [vmem:[%s4559 + $0x9] sm:$0xff]
        %v4823 = vld [vmem:[%s4559 + $0x31] sm:$0xff]
        %v4824 = vld [vmem:[%s4559 + $0x39] sm:$0xff]
        %v4825 = vld [vmem:[%s4559 + $0x61] sm:$0xff]
        %v4826 = vld [vmem:[%s4559 + $0x69] sm:$0xff]
        %v4827 = vld [vmem:[%s4559 + $0x91] sm:$0xff]
        %v4828 = vld [vmem:[%s4559 + $0x99] sm:$0xff]
        %v4829 = vld [vmem:[%s4559 + $0xc1] sm:$0xff]
        %v4830 = vld [vmem:[%s4559 + $0xc9] sm:$0xff]
        %v4831 = vld [vmem:[%s4559 + $0xf1] sm:$0xff]
        %v4832 = vld [vmem:[%s4559 + $0xf9] sm:$0xff]
        %v4833 = vld [vmem:[%s4559 + $0x121] sm:$0xff]
        %v4834 = vld [vmem:[%s4559 + $0x129] sm:$0xff]
        %v4835 = vld [vmem:[%s4559 + $0x151] sm:$0xff]
        %v4836 = vld [vmem:[%s4559 + $0x159] sm:$0xff]
        %v4837 = vperm.slane %v4547, 4
        %v4838 = vmul.f32 %v4821, %v4837
        %v4839 = vmul.f32 %v4822, %v4837
        %v4840 = vmul.f32 %v4823, %v4837
        %v4841 = vmul.f32 %v4824, %v4837
        %v4842 = vmul.f32 %v4825, %v4837
        %v4843 = vmul.f32 %v4826, %v4837
        %v4844 = vmul.f32 %v4827, %v4837
        %v4845 = vmul.f32 %v4828, %v4837
        %v4846 = vmul.f32 %v4829, %v4837
        %v4847 = vmul.f32 %v4830, %v4837
        %v4848 = vmul.f32 %v4831, %v4837
        %v4849 = vmul.f32 %v4832, %v4837
        %v4850 = vmul.f32 %v4833, %v4837
        %v4851 = vmul.f32 %v4834, %v4837
        %v4852 = vmul.f32 %v4835, %v4837
        %v4853 = vmul.f32 %v4836, %v4837
        %v4854 = vadd.f32 %v4805, %v4838
        %v4855 = vadd.f32 %v4806, %v4839
        %v4856 = vadd.f32 %v4807, %v4840
        %v4857 = vadd.f32 %v4808, %v4841
        %v4858 = vadd.f32 %v4809, %v4842
        %v4859 = vadd.f32 %v4810, %v4843
        %v4860 = vadd.f32 %v4811, %v4844
        %v4861 = vadd.f32 %v4812, %v4845
        %v4862 = vadd.f32 %v4813, %v4846
        %v4863 = vadd.f32 %v4814, %v4847
        %v4864 = vadd.f32 %v4815, %v4848
        %v4865 = vadd.f32 %v4816, %v4849
        %v4866 = vadd.f32 %v4817, %v4850
        %v4867 = vadd.f32 %v4818, %v4851
        %v4868 = vadd.f32 %v4819, %v4852
        %v4869 = vadd.f32 %v4820, %v4853
        %v4870 = vld [vmem:[%s4559 + $0x2] sm:$0xff]
        %v4871 = vld [vmem:[%s4559 + $0xa] sm:$0xff]
        %v4872 = vld [vmem:[%s4559 + $0x32] sm:$0xff]
        %v4873 = vld [vmem:[%s4559 + $0x3a] sm:$0xff]
        %v4874 = vld [vmem:[%s4559 + $0x62] sm:$0xff]
        %v4875 = vld [vmem:[%s4559 + $0x6a] sm:$0xff]
        %v4876 = vld [vmem:[%s4559 + $0x92] sm:$0xff]
        %v4877 = vld [vmem:[%s4559 + $0x9a] sm:$0xff]
        %v4878 = vld [vmem:[%s4559 + $0xc2] sm:$0xff]
        %v4879 = vld [vmem:[%s4559 + $0xca] sm:$0xff]
        %v4880 = vld [vmem:[%s4559 + $0xf2] sm:$0xff]
        %v4881 = vld [vmem:[%s4559 + $0xfa] sm:$0xff]
        %v4882 = vld [vmem:[%s4559 + $0x122] sm:$0xff]
        %v4883 = vld [vmem:[%s4559 + $0x12a] sm:$0xff]
        %v4884 = vld [vmem:[%s4559 + $0x152] sm:$0xff]
        %v4885 = vld [vmem:[%s4559 + $0x15a] sm:$0xff]
        %v4886 = vperm.slane %v4547, 5
        %v4887 = vmul.f32 %v4870, %v4886
        %v4888 = vmul.f32 %v4871, %v4886
        %v4889 = vmul.f32 %v4872, %v4886
        %v4890 = vmul.f32 %v4873, %v4886
        %v4891 = vmul.f32 %v4874, %v4886
        %v4892 = vmul.f32 %v4875, %v4886
        %v4893 = vmul.f32 %v4876, %v4886
        %v4894 = vmul.f32 %v4877, %v4886
        %v4895 = vmul.f32 %v4878, %v4886
        %v4896 = vmul.f32 %v4879, %v4886
        %v4897 = vmul.f32 %v4880, %v4886
        %v4898 = vmul.f32 %v4881, %v4886
        %v4899 = vmul.f32 %v4882, %v4886
        %v4900 = vmul.f32 %v4883, %v4886
        %v4901 = vmul.f32 %v4884, %v4886
        %v4902 = vmul.f32 %v4885, %v4886
        %v4903 = vadd.f32 %v4854, %v4887
        %v4904 = vadd.f32 %v4855, %v4888
        %v4905 = vadd.f32 %v4856, %v4889
        %v4906 = vadd.f32 %v4857, %v4890
        %v4907 = vadd.f32 %v4858, %v4891
        %v4908 = vadd.f32 %v4859, %v4892
        %v4909 = vadd.f32 %v4860, %v4893
        %v4910 = vadd.f32 %v4861, %v4894
        %v4911 = vadd.f32 %v4862, %v4895
        %v4912 = vadd.f32 %v4863, %v4896
        %v4913 = vadd.f32 %v4864, %v4897
        %v4914 = vadd.f32 %v4865, %v4898
        %v4915 = vadd.f32 %v4866, %v4899
        %v4916 = vadd.f32 %v4867, %v4900
        %v4917 = vadd.f32 %v4868, %v4901
        %v4918 = vadd.f32 %v4869, %v4902
        %s4919 = scalar_lea.vmem [#allocation3], 48
        %v4920 = vld [vmem:[%s4919] sm:$0xff]
        %v4921 = vld [vmem:[%s4919 + $0x8] sm:$0xff]
        %v4922 = vld [vmem:[%s4919 + $0x30] sm:$0xff]
        %v4923 = vld [vmem:[%s4919 + $0x38] sm:$0xff]
        %v4924 = vld [vmem:[%s4919 + $0x60] sm:$0xff]
        %v4925 = vld [vmem:[%s4919 + $0x68] sm:$0xff]
        %v4926 = vld [vmem:[%s4919 + $0x90] sm:$0xff]
        %v4927 = vld [vmem:[%s4919 + $0x98] sm:$0xff]
        %v4928 = vld [vmem:[%s4919 + $0xc0] sm:$0xff]
        %v4929 = vld [vmem:[%s4919 + $0xc8] sm:$0xff]
        %v4930 = vld [vmem:[%s4919 + $0xf0] sm:$0xff]
        %v4931 = vld [vmem:[%s4919 + $0xf8] sm:$0xff]
        %v4932 = vld [vmem:[%s4919 + $0x120] sm:$0xff]
        %v4933 = vld [vmem:[%s4919 + $0x128] sm:$0xff]
        %v4934 = vld [vmem:[%s4919 + $0x150] sm:$0xff]
        %v4935 = vld [vmem:[%s4919 + $0x158] sm:$0xff]
        %v4936 = vperm.slane %v4547, 6
        %v4937 = vmul.f32 %v4920, %v4936
        %v4938 = vmul.f32 %v4921, %v4936
        %v4939 = vmul.f32 %v4922, %v4936
        %v4940 = vmul.f32 %v4923, %v4936
        %v4941 = vmul.f32 %v4924, %v4936
        %v4942 = vmul.f32 %v4925, %v4936
        %v4943 = vmul.f32 %v4926, %v4936
        %v4944 = vmul.f32 %v4927, %v4936
        %v4945 = vmul.f32 %v4928, %v4936
        %v4946 = vmul.f32 %v4929, %v4936
        %v4947 = vmul.f32 %v4930, %v4936
        %v4948 = vmul.f32 %v4931, %v4936
        %v4949 = vmul.f32 %v4932, %v4936
        %v4950 = vmul.f32 %v4933, %v4936
        %v4951 = vmul.f32 %v4934, %v4936
        %v4952 = vmul.f32 %v4935, %v4936
        %v4953 = vadd.f32 %v4903, %v4937
        %v4954 = vadd.f32 %v4904, %v4938
        %v4955 = vadd.f32 %v4905, %v4939
        %v4956 = vadd.f32 %v4906, %v4940
        %v4957 = vadd.f32 %v4907, %v4941
        %v4958 = vadd.f32 %v4908, %v4942
        %v4959 = vadd.f32 %v4909, %v4943
        %v4960 = vadd.f32 %v4910, %v4944
        %v4961 = vadd.f32 %v4911, %v4945
        %v4962 = vadd.f32 %v4912, %v4946
        %v4963 = vadd.f32 %v4913, %v4947
        %v4964 = vadd.f32 %v4914, %v4948
        %v4965 = vadd.f32 %v4915, %v4949
        %v4966 = vadd.f32 %v4916, %v4950
        %v4967 = vadd.f32 %v4917, %v4951
        %v4968 = vadd.f32 %v4918, %v4952
        %v4969 = vld [vmem:[%s4919 + $0x1] sm:$0xff]
        %v4970 = vld [vmem:[%s4919 + $0x9] sm:$0xff]
        %v4971 = vld [vmem:[%s4919 + $0x31] sm:$0xff]
        %v4972 = vld [vmem:[%s4919 + $0x39] sm:$0xff]
        %v4973 = vld [vmem:[%s4919 + $0x61] sm:$0xff]
        %v4974 = vld [vmem:[%s4919 + $0x69] sm:$0xff]
        %v4975 = vld [vmem:[%s4919 + $0x91] sm:$0xff]
        %v4976 = vld [vmem:[%s4919 + $0x99] sm:$0xff]
        %v4977 = vld [vmem:[%s4919 + $0xc1] sm:$0xff]
        %v4978 = vld [vmem:[%s4919 + $0xc9] sm:$0xff]
        %v4979 = vld [vmem:[%s4919 + $0xf1] sm:$0xff]
        %v4980 = vld [vmem:[%s4919 + $0xf9] sm:$0xff]
        %v4981 = vld [vmem:[%s4919 + $0x121] sm:$0xff]
        %v4982 = vld [vmem:[%s4919 + $0x129] sm:$0xff]
        %v4983 = vld [vmem:[%s4919 + $0x151] sm:$0xff]
        %v4984 = vld [vmem:[%s4919 + $0x159] sm:$0xff]
        %v4985 = vperm.slane %v4547, 7
        %v4986 = vmul.f32 %v4969, %v4985
        %v4987 = vmul.f32 %v4970, %v4985
        %v4988 = vmul.f32 %v4971, %v4985
        %v4989 = vmul.f32 %v4972, %v4985
        %v4990 = vmul.f32 %v4973, %v4985
        %v4991 = vmul.f32 %v4974, %v4985
        %v4992 = vmul.f32 %v4975, %v4985
        %v4993 = vmul.f32 %v4976, %v4985
        %v4994 = vmul.f32 %v4977, %v4985
        %v4995 = vmul.f32 %v4978, %v4985
        %v4996 = vmul.f32 %v4979, %v4985
        %v4997 = vmul.f32 %v4980, %v4985
        %v4998 = vmul.f32 %v4981, %v4985
        %v4999 = vmul.f32 %v4982, %v4985
        %v5000 = vmul.f32 %v4983, %v4985
        %v5001 = vmul.f32 %v4984, %v4985
        %v5002 = vadd.f32 %v4953, %v4986
        %v5003 = vadd.f32 %v4954, %v4987
        %v5004 = vadd.f32 %v4955, %v4988
        %v5005 = vadd.f32 %v4956, %v4989
        %v5006 = vadd.f32 %v4957, %v4990
        %v5007 = vadd.f32 %v4958, %v4991
        %v5008 = vadd.f32 %v4959, %v4992
        %v5009 = vadd.f32 %v4960, %v4993
        %v5010 = vadd.f32 %v4961, %v4994
        %v5011 = vadd.f32 %v4962, %v4995
        %v5012 = vadd.f32 %v4963, %v4996
        %v5013 = vadd.f32 %v4964, %v4997
        %v5014 = vadd.f32 %v4965, %v4998
        %v5015 = vadd.f32 %v4966, %v4999
        %v5016 = vadd.f32 %v4967, %v5000
        %v5017 = vadd.f32 %v4968, %v5001
        %v5018 = vld [vmem:[%s4919 + $0x2] sm:$0xff]
        %v5019 = vld [vmem:[%s4919 + $0xa] sm:$0xff]
        %v5020 = vld [vmem:[%s4919 + $0x32] sm:$0xff]
        %v5021 = vld [vmem:[%s4919 + $0x3a] sm:$0xff]
        %v5022 = vld [vmem:[%s4919 + $0x62] sm:$0xff]
        %v5023 = vld [vmem:[%s4919 + $0x6a] sm:$0xff]
        %v5024 = vld [vmem:[%s4919 + $0x92] sm:$0xff]
        %v5025 = vld [vmem:[%s4919 + $0x9a] sm:$0xff]
        %v5026 = vld [vmem:[%s4919 + $0xc2] sm:$0xff]
        %v5027 = vld [vmem:[%s4919 + $0xca] sm:$0xff]
        %v5028 = vld [vmem:[%s4919 + $0xf2] sm:$0xff]
        %v5029 = vld [vmem:[%s4919 + $0xfa] sm:$0xff]
        %v5030 = vld [vmem:[%s4919 + $0x122] sm:$0xff]
        %v5031 = vld [vmem:[%s4919 + $0x12a] sm:$0xff]
        %v5032 = vld [vmem:[%s4919 + $0x152] sm:$0xff]
        %v5033 = vld [vmem:[%s4919 + $0x15a] sm:$0xff]
        %v5034 = vperm.slane %v4548, 0
        %v5035 = vmul.f32 %v5018, %v5034
        %v5036 = vmul.f32 %v5019, %v5034
        %v5037 = vmul.f32 %v5020, %v5034
        %v5038 = vmul.f32 %v5021, %v5034
        %v5039 = vmul.f32 %v5022, %v5034
        %v5040 = vmul.f32 %v5023, %v5034
        %v5041 = vmul.f32 %v5024, %v5034
        %v5042 = vmul.f32 %v5025, %v5034
        %v5043 = vmul.f32 %v5026, %v5034
        %v5044 = vmul.f32 %v5027, %v5034
        %v5045 = vmul.f32 %v5028, %v5034
        %v5046 = vmul.f32 %v5029, %v5034
        %v5047 = vmul.f32 %v5030, %v5034
        %v5048 = vmul.f32 %v5031, %v5034
        %v5049 = vmul.f32 %v5032, %v5034
        %v5050 = vmul.f32 %v5033, %v5034
        %v5051 = vadd.f32 %v5002, %v5035
        %v5052 = vadd.f32 %v5003, %v5036
        %v5053 = vadd.f32 %v5004, %v5037
        %v5054 = vadd.f32 %v5005, %v5038
        %v5055 = vadd.f32 %v5006, %v5039
        %v5056 = vadd.f32 %v5007, %v5040
        %v5057 = vadd.f32 %v5008, %v5041
        %v5058 = vadd.f32 %v5009, %v5042
        %v5059 = vadd.f32 %v5010, %v5043
        %v5060 = vadd.f32 %v5011, %v5044
        %v5061 = vadd.f32 %v5012, %v5045
        %v5062 = vadd.f32 %v5013, %v5046
        %v5063 = vadd.f32 %v5014, %v5047
        %v5064 = vadd.f32 %v5015, %v5048
        %v5065 = vadd.f32 %v5016, %v5049
        %v5066 = vadd.f32 %v5017, %v5050
        %v5083 = vrot.slane %v5051, 2
        %v5084 = vrot.slane %v5051, 4
        %v5085 = vrot.slane %v5051, 6
        %v5086 = vrot.slane %v5052, 2
        %v5087 = vrot.slane %v5052, 4
        %v5088 = vrot.slane %v5052, 6
        %v5089 = vrot.slane %v5053, 2
        %v5090 = vrot.slane %v5053, 4
        %v5091 = vrot.slane %v5053, 6
        %v5092 = vrot.slane %v5054, 2
        %v5093 = vrot.slane %v5054, 4
        %v5094 = vrot.slane %v5054, 6
        %v5095 = vrot.slane %v5055, 2
        %v5096 = vrot.slane %v5055, 4
        %v5097 = vrot.slane %v5055, 6
        %v5098 = vrot.slane %v5056, 2
        %v5099 = vrot.slane %v5056, 4
        %v5100 = vrot.slane %v5056, 6
        %v5101 = vrot.slane %v5057, 2
        %v5102 = vrot.slane %v5057, 4
        %v5103 = vrot.slane %v5057, 6
        %v5104 = vrot.slane %v5058, 2
        %v5105 = vrot.slane %v5058, 4
        %v5106 = vrot.slane %v5058, 6
        %v5107 = vrot.slane %v5059, 2
        %v5108 = vrot.slane %v5059, 4
        %v5109 = vrot.slane %v5059, 6
        %v5110 = vrot.slane %v5060, 2
        %v5111 = vrot.slane %v5060, 4
        %v5112 = vrot.slane %v5060, 6
        %v5113 = vrot.slane %v5061, 2
        %v5114 = vrot.slane %v5061, 4
        %v5115 = vrot.slane %v5061, 6
        %v5116 = vrot.slane %v5062, 2
        %v5117 = vrot.slane %v5062, 4
        %v5118 = vrot.slane %v5062, 6
        %v5119 = vrot.slane %v5063, 2
        %v5120 = vrot.slane %v5063, 4
        %v5121 = vrot.slane %v5063, 6
        %v5122 = vrot.slane %v5064, 2
        %v5123 = vrot.slane %v5064, 4
        %v5124 = vrot.slane %v5064, 6
        %v5125 = vrot.slane %v5065, 2
        %v5126 = vrot.slane %v5065, 4
        %v5127 = vrot.slane %v5065, 6
        %v5128 = vrot.slane %v5066, 2
        %v5129 = vrot.slane %v5066, 4
        %v5130 = vrot.slane %v5066, 6
        %v5179 = vpack.c.bf16 %v5051, %v5051
        %v5180 = vpack.c.bf16 %v5083, %v5083
        %v5181 = vpack.c.bf16 %v5084, %v5084
        %v5182 = vpack.c.bf16 %v5085, %v5085
        %v5183 = vpack.c.bf16 %v5052, %v5052
        %v5184 = vpack.c.bf16 %v5086, %v5086
        %v5185 = vpack.c.bf16 %v5087, %v5087
        %v5186 = vpack.c.bf16 %v5088, %v5088
        %v5187 = vpack.c.bf16 %v5053, %v5053
        %v5188 = vpack.c.bf16 %v5089, %v5089
        %v5189 = vpack.c.bf16 %v5090, %v5090
        %v5190 = vpack.c.bf16 %v5091, %v5091
        %v5191 = vpack.c.bf16 %v5054, %v5054
        %v5192 = vpack.c.bf16 %v5092, %v5092
        %v5193 = vpack.c.bf16 %v5093, %v5093
        %v5194 = vpack.c.bf16 %v5094, %v5094
        %v5195 = vpack.c.bf16 %v5055, %v5055
        %v5196 = vpack.c.bf16 %v5095, %v5095
        %v5197 = vpack.c.bf16 %v5096, %v5096
        %v5198 = vpack.c.bf16 %v5097, %v5097
        %v5199 = vpack.c.bf16 %v5056, %v5056
        %v5200 = vpack.c.bf16 %v5098, %v5098
        %v5201 = vpack.c.bf16 %v5099, %v5099
        %v5202 = vpack.c.bf16 %v5100, %v5100
        %v5203 = vpack.c.bf16 %v5057, %v5057
        %v5204 = vpack.c.bf16 %v5101, %v5101
        %v5205 = vpack.c.bf16 %v5102, %v5102
        %v5206 = vpack.c.bf16 %v5103, %v5103
        %v5207 = vpack.c.bf16 %v5058, %v5058
        %v5208 = vpack.c.bf16 %v5104, %v5104
        %v5209 = vpack.c.bf16 %v5105, %v5105
        %v5210 = vpack.c.bf16 %v5106, %v5106
        %v5211 = vpack.c.bf16 %v5059, %v5059
        %v5212 = vpack.c.bf16 %v5107, %v5107
        %v5213 = vpack.c.bf16 %v5108, %v5108
        %v5214 = vpack.c.bf16 %v5109, %v5109
        %v5215 = vpack.c.bf16 %v5060, %v5060
        %v5216 = vpack.c.bf16 %v5110, %v5110
        %v5217 = vpack.c.bf16 %v5111, %v5111
        %v5218 = vpack.c.bf16 %v5112, %v5112
        %v5219 = vpack.c.bf16 %v5061, %v5061
        %v5220 = vpack.c.bf16 %v5113, %v5113
        %v5221 = vpack.c.bf16 %v5114, %v5114
        %v5222 = vpack.c.bf16 %v5115, %v5115
        %v5223 = vpack.c.bf16 %v5062, %v5062
        %v5224 = vpack.c.bf16 %v5116, %v5116
        %v5225 = vpack.c.bf16 %v5117, %v5117
        %v5226 = vpack.c.bf16 %v5118, %v5118
        %v5227 = vpack.c.bf16 %v5063, %v5063
        %v5228 = vpack.c.bf16 %v5119, %v5119
        %v5229 = vpack.c.bf16 %v5120, %v5120
        %v5230 = vpack.c.bf16 %v5121, %v5121
        %v5231 = vpack.c.bf16 %v5064, %v5064
        %v5232 = vpack.c.bf16 %v5122, %v5122
        %v5233 = vpack.c.bf16 %v5123, %v5123
        %v5234 = vpack.c.bf16 %v5124, %v5124
        %v5235 = vpack.c.bf16 %v5065, %v5065
        %v5236 = vpack.c.bf16 %v5125, %v5125
        %v5237 = vpack.c.bf16 %v5126, %v5126
        %v5238 = vpack.c.bf16 %v5127, %v5127
        %v5239 = vpack.c.bf16 %v5066, %v5066
        %v5240 = vpack.c.bf16 %v5128, %v5128
        %v5241 = vpack.c.bf16 %v5129, %v5129
        %v5242 = vpack.c.bf16 %v5130, %v5130
        %v5243 = vld [vmem:[%s15] sm:$0xf]
        %v5244 = vld [vmem:[%s15 + $0x4] sm:$0xf]
        %v5246 = vperm.slane %v4549, 0
        %v5312 = vunpack.c.l.b16 %v5179
        %v5313 = vunpack.c.l.b16 %v5180
        %v5314 = vunpack.c.l.b16 %v5181
        %v5315 = vunpack.c.l.b16 %v5182
        %v5316 = vunpack.c.l.b16 %v5183
        %v5317 = vunpack.c.l.b16 %v5184
        %v5318 = vunpack.c.l.b16 %v5185
        %v5319 = vunpack.c.l.b16 %v5186
        %v5320 = vunpack.c.l.b16 %v5187
        %v5321 = vunpack.c.l.b16 %v5188
        %v5322 = vunpack.c.l.b16 %v5189
        %v5323 = vunpack.c.l.b16 %v5190
        %v5324 = vunpack.c.l.b16 %v5191
        %v5325 = vunpack.c.l.b16 %v5192
        %v5326 = vunpack.c.l.b16 %v5193
        %v5327 = vunpack.c.l.b16 %v5194
        %v5328 = vunpack.c.l.b16 %v5195
        %v5329 = vunpack.c.l.b16 %v5196
        %v5330 = vunpack.c.l.b16 %v5197
        %v5331 = vunpack.c.l.b16 %v5198
        %v5332 = vunpack.c.l.b16 %v5199
        %v5333 = vunpack.c.l.b16 %v5200
        %v5334 = vunpack.c.l.b16 %v5201
        %v5335 = vunpack.c.l.b16 %v5202
        %v5336 = vunpack.c.l.b16 %v5203
        %v5337 = vunpack.c.l.b16 %v5204
        %v5338 = vunpack.c.l.b16 %v5205
        %v5339 = vunpack.c.l.b16 %v5206
        %v5340 = vunpack.c.l.b16 %v5207
        %v5341 = vunpack.c.l.b16 %v5208
        %v5342 = vunpack.c.l.b16 %v5209
        %v5343 = vunpack.c.l.b16 %v5210
        %v5344 = vunpack.c.l.b16 %v5211
        %v5345 = vunpack.c.l.b16 %v5212
        %v5346 = vunpack.c.l.b16 %v5213
        %v5347 = vunpack.c.l.b16 %v5214
        %v5348 = vunpack.c.l.b16 %v5215
        %v5349 = vunpack.c.l.b16 %v5216
        %v5350 = vunpack.c.l.b16 %v5217
        %v5351 = vunpack.c.l.b16 %v5218
        %v5352 = vunpack.c.l.b16 %v5219
        %v5353 = vunpack.c.l.b16 %v5220
        %v5354 = vunpack.c.l.b16 %v5221
        %v5355 = vunpack.c.l.b16 %v5222
        %v5356 = vunpack.c.l.b16 %v5223
        %v5357 = vunpack.c.l.b16 %v5224
        %v5358 = vunpack.c.l.b16 %v5225
        %v5359 = vunpack.c.l.b16 %v5226
        %v5360 = vunpack.c.l.b16 %v5227
        %v5361 = vunpack.c.l.b16 %v5228
        %v5362 = vunpack.c.l.b16 %v5229
        %v5363 = vunpack.c.l.b16 %v5230
        %v5364 = vunpack.c.l.b16 %v5231
        %v5365 = vunpack.c.l.b16 %v5232
        %v5366 = vunpack.c.l.b16 %v5233
        %v5367 = vunpack.c.l.b16 %v5234
        %v5368 = vunpack.c.l.b16 %v5235
        %v5369 = vunpack.c.l.b16 %v5236
        %v5370 = vunpack.c.l.b16 %v5237
        %v5371 = vunpack.c.l.b16 %v5238
        %v5372 = vunpack.c.l.b16 %v5239
        %v5373 = vunpack.c.l.b16 %v5240
        %v5374 = vunpack.c.l.b16 %v5241
        %v5375 = vunpack.c.l.b16 %v5242
        %v5376 = vrot.slane %v5313, 7
        %vm5377 = vcmask 1041409
        %v5378 = vsel %vm5377, %v5376, %v5312
        %v5379 = vrot.slane %v5314, 6
        %vm5380 = vcmask 1042434
        %v5381 = vsel %vm5380, %v5379, %v5378
        %v5382 = vrot.slane %v5315, 5
        %vm5383 = vcmask 1043459
        %v5384 = vsel %vm5383, %v5382, %v5381
        %v5385 = vrot.slane %v5316, 4
        %vm5386 = vcmask 1044484
        %v5387 = vsel %vm5386, %v5385, %v5384
        %v5388 = vrot.slane %v5317, 3
        %vm5389 = vcmask 1045509
        %v5390 = vsel %vm5389, %v5388, %v5387
        %v5391 = vrot.slane %v5318, 2
        %vm5392 = vcmask 1046534
        %v5393 = vsel %vm5392, %v5391, %v5390
        %v5394 = vrot.slane %v5319, 1
        %vm5395 = vcmask 1047559
        %v5396 = vsel %vm5395, %v5394, %v5393
        %v5397 = vrot.slane %v5321, 7
        %v5398 = vsel %vm5377, %v5397, %v5320
        %v5399 = vrot.slane %v5322, 6
        %v5400 = vsel %vm5380, %v5399, %v5398
        %v5401 = vrot.slane %v5323, 5
        %v5402 = vsel %vm5383, %v5401, %v5400
        %v5403 = vrot.slane %v5324, 4
        %v5404 = vsel %vm5386, %v5403, %v5402
        %v5405 = vrot.slane %v5325, 3
        %v5406 = vsel %vm5389, %v5405, %v5404
        %v5407 = vrot.slane %v5326, 2
        %v5408 = vsel %vm5392, %v5407, %v5406
        %v5409 = vrot.slane %v5327, 1
        %v5410 = vsel %vm5395, %v5409, %v5408
        %v5411 = vrot.slane %v5329, 7
        %v5412 = vsel %vm5377, %v5411, %v5328
        %v5413 = vrot.slane %v5330, 6
        %v5414 = vsel %vm5380, %v5413, %v5412
        %v5415 = vrot.slane %v5331, 5
        %v5416 = vsel %vm5383, %v5415, %v5414
        %v5417 = vrot.slane %v5332, 4
        %v5418 = vsel %vm5386, %v5417, %v5416
        %v5419 = vrot.slane %v5333, 3
        %v5420 = vsel %vm5389, %v5419, %v5418
        %v5421 = vrot.slane %v5334, 2
        %v5422 = vsel %vm5392, %v5421, %v5420
        %v5423 = vrot.slane %v5335, 1
        %v5424 = vsel %vm5395, %v5423, %v5422
        %v5425 = vrot.slane %v5337, 7
        %v5426 = vsel %vm5377, %v5425, %v5336
        %v5427 = vrot.slane %v5338, 6
        %v5428 = vsel %vm5380, %v5427, %v5426
        %v5429 = vrot.slane %v5339, 5
        %v5430 = vsel %vm5383, %v5429, %v5428
        %v5431 = vrot.slane %v5340, 4
        %v5432 = vsel %vm5386, %v5431, %v5430
        %v5433 = vrot.slane %v5341, 3
        %v5434 = vsel %vm5389, %v5433, %v5432
        %v5435 = vrot.slane %v5342, 2
        %v5436 = vsel %vm5392, %v5435, %v5434
        %v5437 = vrot.slane %v5343, 1
        %v5438 = vsel %vm5395, %v5437, %v5436
        %v5439 = vrot.slane %v5345, 7
        %v5440 = vsel %vm5377, %v5439, %v5344
        %v5441 = vrot.slane %v5346, 6
        %v5442 = vsel %vm5380, %v5441, %v5440
        %v5443 = vrot.slane %v5347, 5
        %v5444 = vsel %vm5383, %v5443, %v5442
        %v5445 = vrot.slane %v5348, 4
        %v5446 = vsel %vm5386, %v5445, %v5444
        %v5447 = vrot.slane %v5349, 3
        %v5448 = vsel %vm5389, %v5447, %v5446
        %v5449 = vrot.slane %v5350, 2
        %v5450 = vsel %vm5392, %v5449, %v5448
        %v5451 = vrot.slane %v5351, 1
        %v5452 = vsel %vm5395, %v5451, %v5450
        %v5453 = vrot.slane %v5353, 7
        %v5454 = vsel %vm5377, %v5453, %v5352
        %v5455 = vrot.slane %v5354, 6
        %v5456 = vsel %vm5380, %v5455, %v5454
        %v5457 = vrot.slane %v5355, 5
        %v5458 = vsel %vm5383, %v5457, %v5456
        %v5459 = vrot.slane %v5356, 4
        %v5460 = vsel %vm5386, %v5459, %v5458
        %v5461 = vrot.slane %v5357, 3
        %v5462 = vsel %vm5389, %v5461, %v5460
        %v5463 = vrot.slane %v5358, 2
        %v5464 = vsel %vm5392, %v5463, %v5462
        %v5465 = vrot.slane %v5359, 1
        %v5466 = vsel %vm5395, %v5465, %v5464
        %v5467 = vrot.slane %v5361, 7
        %v5468 = vsel %vm5377, %v5467, %v5360
        %v5469 = vrot.slane %v5362, 6
        %v5470 = vsel %vm5380, %v5469, %v5468
        %v5471 = vrot.slane %v5363, 5
        %v5472 = vsel %vm5383, %v5471, %v5470
        %v5473 = vrot.slane %v5364, 4
        %v5474 = vsel %vm5386, %v5473, %v5472
        %v5475 = vrot.slane %v5365, 3
        %v5476 = vsel %vm5389, %v5475, %v5474
        %v5477 = vrot.slane %v5366, 2
        %v5478 = vsel %vm5392, %v5477, %v5476
        %v5479 = vrot.slane %v5367, 1
        %v5480 = vsel %vm5395, %v5479, %v5478
        %v5481 = vrot.slane %v5369, 7
        %v5482 = vsel %vm5377, %v5481, %v5368
        %v5483 = vrot.slane %v5370, 6
        %v5484 = vsel %vm5380, %v5483, %v5482
        %v5485 = vrot.slane %v5371, 5
        %v5486 = vsel %vm5383, %v5485, %v5484
        %v5487 = vrot.slane %v5372, 4
        %v5488 = vsel %vm5386, %v5487, %v5486
        %v5489 = vrot.slane %v5373, 3
        %v5490 = vsel %vm5389, %v5489, %v5488
        %v5491 = vrot.slane %v5374, 2
        %v5492 = vsel %vm5392, %v5491, %v5490
        %v5493 = vrot.slane %v5375, 1
        %v5494 = vsel %vm5395, %v5493, %v5492
        %v5495 = vpack.c.b16 %v5410, %v5396
        %v5496 = vpack.c.b16 %v5438, %v5424
        %v5497 = vpack.c.b16 %v5466, %v5452
        %v5498 = vpack.c.b16 %v5494, %v5480
        %v5501 = vunpack.c.l.b16 %v5243
        %v5502 = vunpack.c.l.b16 %v5244
        %v5503 = vpack.c.b16 %v5502, %v5501
        %v5506 = vsel %vm4550, %v5495, 0
        %v5509 = vsel %vm4550, %v5496, 0
        %v5512 = vsel %vm4550, %v5497, 0
        %v5515 = vsel %vm4550, %v5498, 0
        %5517 = vmatpush.bf16.msra.mxu0 0
        %5518 = vmatpush.bf16.msra.mxu0 0
        %5519 = vmatpush.bf16.msra.mxu0 0
        %5520 = vmatpush.bf16.msra.mxu0 0
        %5521 = vmatpush.bf16.msra.mxu0 0
        %5522 = vmatpush.bf16.msra.mxu0 0
        %5523 = vmatpush.bf16.msra.mxu0 0
        %5524 = vmatpush.bf16.msra.mxu0 %v5503
        %5525 = vmatmul.bf16.gmra.mxu0 %v5506
        %v5526 = vpop.f32.mrf.mxu0
        %v5527 = vadd.f32 %v5246, %v5526
        %v5528 = vpop.f32.mrf.mxu0
        %v5529 = vadd.f32 %v5246, %v5528
        %5530 = vmatmul.bf16.gmra.mxu0 %v5509
        %v5531 = vpop.f32.mrf.mxu0
        %v5532 = vadd.f32 %v5246, %v5531
        %v5533 = vpop.f32.mrf.mxu0
        %v5534 = vadd.f32 %v5246, %v5533
        %5535 = vmatmul.bf16.gmra.mxu0 %v5512
        %v5536 = vpop.f32.mrf.mxu0
        %v5537 = vadd.f32 %v5246, %v5536
        %v5538 = vpop.f32.mrf.mxu0
        %v5539 = vadd.f32 %v5246, %v5538
        %5540 = vmatmul.bf16.gmra.mxu0 %v5515
        %v5541 = vpop.f32.mrf.mxu0
        %v5542 = vadd.f32 %v5246, %v5541
        %v5543 = vpop.f32.mrf.mxu0
        %v5544 = vadd.f32 %v5246, %v5543
        %5545 = vdwg.mxu0
        %v5546 = vmax.f32 %v5527, 0.0
        %v5547 = vmax.f32 %v5529, 0.0
        %v5548 = vmax.f32 %v5532, 0.0
        %v5549 = vmax.f32 %v5534, 0.0
        %v5550 = vmax.f32 %v5537, 0.0
        %v5551 = vmax.f32 %v5539, 0.0
        %v5552 = vmax.f32 %v5542, 0.0
        %v5553 = vmax.f32 %v5544, 0.0
        %v5554 = vld [vmem:[%s19] sm:$0xff]
        %v5555 = vld [vmem:[%s19 + $0x8] sm:$0x1]
        %v5556 = vld [vmem:[%s23] sm:$0x1]
        %vm5557 = vcmask 261120
        %5558 = vst.msk [vmem:[#allocation4] sm:$0xff] %vm5557, 0.0
        %vm5559 = vcmask 254976
        %5560 = vst.msk [vmem:[#allocation4 + $0x8] sm:$0x3] %vm5559, 0.0
        %s5561 = scalar_lea.vmem [#allocation4], 144
        %5562 = vst.msk [vmem:[%s5561] sm:$0xff] %vm5557, 0.0
        %5563 = vst.msk [vmem:[%s5561 + $0x8] sm:$0x3] %vm5559, 0.0
        %s5564 = scalar_lea.vmem [#allocation4], 16
        %vm5565 = vcmask 253952
        %5566 = vst.msk [vmem:[%s5564] sm:$0x1] %vm5565, 0.0
        %5567 = vst.msk [vmem:[%s5564 + $0x10] sm:$0x1] %vm5565, 0.0
        %5568 = vst.msk [vmem:[%s5564 + $0x20] sm:$0x1] %vm5565, 0.0
        %5569 = vst.msk [vmem:[%s5564 + $0x30] sm:$0x1] %vm5565, 0.0
        %5570 = vst.msk [vmem:[%s5564 + $0x40] sm:$0x1] %vm5565, 0.0
        %5571 = vst.msk [vmem:[%s5564 + $0x50] sm:$0x1] %vm5565, 0.0
        %5572 = vst.msk [vmem:[%s5564 + $0x60] sm:$0x1] %vm5565, 0.0
        %5573 = vst.msk [vmem:[%s5564 + $0x70] sm:$0x1] %vm5565, 0.0
        %5574 = vst.msk [vmem:[%s5564 + $0x9] sm:$0x1] %vm5565, 0.0
        %5575 = vst.msk [vmem:[%s5564 + $0x19] sm:$0x1] %vm5565, 0.0
        %5576 = vst.msk [vmem:[%s5564 + $0x29] sm:$0x1] %vm5565, 0.0
        %5577 = vst.msk [vmem:[%s5564 + $0x39] sm:$0x1] %vm5565, 0.0
        %5578 = vst.msk [vmem:[%s5564 + $0x49] sm:$0x1] %vm5565, 0.0
        %5579 = vst.msk [vmem:[%s5564 + $0x59] sm:$0x1] %vm5565, 0.0
        %5580 = vst.msk [vmem:[%s5564 + $0x69] sm:$0x1] %vm5565, 0.0
        %5581 = vst.msk [vmem:[%s5564 + $0x79] sm:$0x1] %vm5565, 0.0
        %5582 = vst.msk [vmem:[%s5564 + $0x1] sm:$0xff] %vm5557, %v5546
        %5583 = vst.msk [vmem:[%s5564 + $0x11] sm:$0xff] %vm5557, %v5547
        %5584 = vst.msk [vmem:[%s5564 + $0x21] sm:$0xff] %vm5557, %v5548
        %5585 = vst.msk [vmem:[%s5564 + $0x31] sm:$0xff] %vm5557, %v5549
        %5586 = vst.msk [vmem:[%s5564 + $0x41] sm:$0xff] %vm5557, %v5550
        %5587 = vst.msk [vmem:[%s5564 + $0x51] sm:$0xff] %vm5557, %v5551
        %5588 = vst.msk [vmem:[%s5564 + $0x61] sm:$0xff] %vm5557, %v5552
        %5589 = vst.msk [vmem:[%s5564 + $0x71] sm:$0xff] %vm5557, %v5553
        %v5590 = vld [vmem:[#allocation4] sm:$0xff]
        %v5591 = vld [vmem:[#allocation4 + $0x10] sm:$0xff]
        %v5592 = vld [vmem:[#allocation4 + $0x20] sm:$0xff]
        %v5593 = vld [vmem:[#allocation4 + $0x30] sm:$0xff]
        %v5594 = vld [vmem:[#allocation4 + $0x40] sm:$0xff]
        %v5595 = vld [vmem:[#allocation4 + $0x50] sm:$0xff]
        %v5596 = vld [vmem:[#allocation4 + $0x60] sm:$0xff]
        %v5597 = vld [vmem:[#allocation4 + $0x70] sm:$0xff]
        %v5598 = vperm.slane %v5554, 0
        %v5599 = vmul.f32 %v5590, %v5598
        %v5600 = vmul.f32 %v5591, %v5598
        %v5601 = vmul.f32 %v5592, %v5598
        %v5602 = vmul.f32 %v5593, %v5598
        %v5603 = vmul.f32 %v5594, %v5598
        %v5604 = vmul.f32 %v5595, %v5598
        %v5605 = vmul.f32 %v5596, %v5598
        %v5606 = vmul.f32 %v5597, %v5598
        %v5607 = vadd.f32 %v5599, 0.0
        %v5608 = vadd.f32 %v5600, 0.0
        %v5609 = vadd.f32 %v5601, 0.0
        %v5610 = vadd.f32 %v5602, 0.0
        %v5611 = vadd.f32 %v5603, 0.0
        %v5612 = vadd.f32 %v5604, 0.0
        %v5613 = vadd.f32 %v5605, 0.0
        %v5614 = vadd.f32 %v5606, 0.0
        %v5615 = vld [vmem:[#allocation4 + $0x1] sm:$0xff]
        %v5616 = vld [vmem:[#allocation4 + $0x11] sm:$0xff]
        %v5617 = vld [vmem:[#allocation4 + $0x21] sm:$0xff]
        %v5618 = vld [vmem:[#allocation4 + $0x31] sm:$0xff]
        %v5619 = vld [vmem:[#allocation4 + $0x41] sm:$0xff]
        %v5620 = vld [vmem:[#allocation4 + $0x51] sm:$0xff]
        %v5621 = vld [vmem:[#allocation4 + $0x61] sm:$0xff]
        %v5622 = vld [vmem:[#allocation4 + $0x71] sm:$0xff]
        %v5623 = vperm.slane %v5554, 1
        %v5624 = vmul.f32 %v5615, %v5623
        %v5625 = vmul.f32 %v5616, %v5623
        %v5626 = vmul.f32 %v5617, %v5623
        %v5627 = vmul.f32 %v5618, %v5623
        %v5628 = vmul.f32 %v5619, %v5623
        %v5629 = vmul.f32 %v5620, %v5623
        %v5630 = vmul.f32 %v5621, %v5623
        %v5631 = vmul.f32 %v5622, %v5623
        %v5632 = vadd.f32 %v5607, %v5624
        %v5633 = vadd.f32 %v5608, %v5625
        %v5634 = vadd.f32 %v5609, %v5626
        %v5635 = vadd.f32 %v5610, %v5627
        %v5636 = vadd.f32 %v5611, %v5628
        %v5637 = vadd.f32 %v5612, %v5629
        %v5638 = vadd.f32 %v5613, %v5630
        %v5639 = vadd.f32 %v5614, %v5631
        %v5640 = vld [vmem:[#allocation4 + $0x2] sm:$0xff]
        %v5641 = vld [vmem:[#allocation4 + $0x12] sm:$0xff]
        %v5642 = vld [vmem:[#allocation4 + $0x22] sm:$0xff]
        %v5643 = vld [vmem:[#allocation4 + $0x32] sm:$0xff]
        %v5644 = vld [vmem:[#allocation4 + $0x42] sm:$0xff]
        %v5645 = vld [vmem:[#allocation4 + $0x52] sm:$0xff]
        %v5646 = vld [vmem:[#allocation4 + $0x62] sm:$0xff]
        %v5647 = vld [vmem:[#allocation4 + $0x72] sm:$0xff]
        %v5648 = vperm.slane %v5554, 2
        %v5649 = vmul.f32 %v5640, %v5648
        %v5650 = vmul.f32 %v5641, %v5648
        %v5651 = vmul.f32 %v5642, %v5648
        %v5652 = vmul.f32 %v5643, %v5648
        %v5653 = vmul.f32 %v5644, %v5648
        %v5654 = vmul.f32 %v5645, %v5648
        %v5655 = vmul.f32 %v5646, %v5648
        %v5656 = vmul.f32 %v5647, %v5648
        %v5657 = vadd.f32 %v5632, %v5649
        %v5658 = vadd.f32 %v5633, %v5650
        %v5659 = vadd.f32 %v5634, %v5651
        %v5660 = vadd.f32 %v5635, %v5652
        %v5661 = vadd.f32 %v5636, %v5653
        %v5662 = vadd.f32 %v5637, %v5654
        %v5663 = vadd.f32 %v5638, %v5655
        %v5664 = vadd.f32 %v5639, %v5656
        %v5665 = vld [vmem:[%s5564] sm:$0xff]
        %v5666 = vld [vmem:[%s5564 + $0x10] sm:$0xff]
        %v5667 = vld [vmem:[%s5564 + $0x20] sm:$0xff]
        %v5668 = vld [vmem:[%s5564 + $0x30] sm:$0xff]
        %v5669 = vld [vmem:[%s5564 + $0x40] sm:$0xff]
        %v5670 = vld [vmem:[%s5564 + $0x50] sm:$0xff]
        %v5671 = vld [vmem:[%s5564 + $0x60] sm:$0xff]
        %v5672 = vld [vmem:[%s5564 + $0x70] sm:$0xff]
        %v5673 = vperm.slane %v5554, 3
        %v5674 = vmul.f32 %v5665, %v5673
        %v5675 = vmul.f32 %v5666, %v5673
        %v5676 = vmul.f32 %v5667, %v5673
        %v5677 = vmul.f32 %v5668, %v5673
        %v5678 = vmul.f32 %v5669, %v5673
        %v5679 = vmul.f32 %v5670, %v5673
        %v5680 = vmul.f32 %v5671, %v5673
        %v5681 = vmul.f32 %v5672, %v5673
        %v5682 = vadd.f32 %v5657, %v5674
        %v5683 = vadd.f32 %v5658, %v5675
        %v5684 = vadd.f32 %v5659, %v5676
        %v5685 = vadd.f32 %v5660, %v5677
        %v5686 = vadd.f32 %v5661, %v5678
        %v5687 = vadd.f32 %v5662, %v5679
        %v5688 = vadd.f32 %v5663, %v5680
        %v5689 = vadd.f32 %v5664, %v5681
        %v5690 = vld [vmem:[%s5564 + $0x1] sm:$0xff]
        %v5691 = vld [vmem:[%s5564 + $0x11] sm:$0xff]
        %v5692 = vld [vmem:[%s5564 + $0x21] sm:$0xff]
        %v5693 = vld [vmem:[%s5564 + $0x31] sm:$0xff]
        %v5694 = vld [vmem:[%s5564 + $0x41] sm:$0xff]
        %v5695 = vld [vmem:[%s5564 + $0x51] sm:$0xff]
        %v5696 = vld [vmem:[%s5564 + $0x61] sm:$0xff]
        %v5697 = vld [vmem:[%s5564 + $0x71] sm:$0xff]
        %v5698 = vperm.slane %v5554, 4
        %v5699 = vmul.f32 %v5690, %v5698
        %v5700 = vmul.f32 %v5691, %v5698
        %v5701 = vmul.f32 %v5692, %v5698
        %v5702 = vmul.f32 %v5693, %v5698
        %v5703 = vmul.f32 %v5694, %v5698
        %v5704 = vmul.f32 %v5695, %v5698
        %v5705 = vmul.f32 %v5696, %v5698
        %v5706 = vmul.f32 %v5697, %v5698
        %v5707 = vadd.f32 %v5682, %v5699
        %v5708 = vadd.f32 %v5683, %v5700
        %v5709 = vadd.f32 %v5684, %v5701
        %v5710 = vadd.f32 %v5685, %v5702
        %v5711 = vadd.f32 %v5686, %v5703
        %v5712 = vadd.f32 %v5687, %v5704
        %v5713 = vadd.f32 %v5688, %v5705
        %v5714 = vadd.f32 %v5689, %v5706
        %v5715 = vld [vmem:[%s5564 + $0x2] sm:$0xff]
        %v5716 = vld [vmem:[%s5564 + $0x12] sm:$0xff]
        %v5717 = vld [vmem:[%s5564 + $0x22] sm:$0xff]
        %v5718 = vld [vmem:[%s5564 + $0x32] sm:$0xff]
        %v5719 = vld [vmem:[%s5564 + $0x42] sm:$0xff]
        %v5720 = vld [vmem:[%s5564 + $0x52] sm:$0xff]
        %v5721 = vld [vmem:[%s5564 + $0x62] sm:$0xff]
        %v5722 = vld [vmem:[%s5564 + $0x72] sm:$0xff]
        %v5723 = vperm.slane %v5554, 5
        %v5724 = vmul.f32 %v5715, %v5723
        %v5725 = vmul.f32 %v5716, %v5723
        %v5726 = vmul.f32 %v5717, %v5723
        %v5727 = vmul.f32 %v5718, %v5723
        %v5728 = vmul.f32 %v5719, %v5723
        %v5729 = vmul.f32 %v5720, %v5723
        %v5730 = vmul.f32 %v5721, %v5723
        %v5731 = vmul.f32 %v5722, %v5723
        %v5732 = vadd.f32 %v5707, %v5724
        %v5733 = vadd.f32 %v5708, %v5725
        %v5734 = vadd.f32 %v5709, %v5726
        %v5735 = vadd.f32 %v5710, %v5727
        %v5736 = vadd.f32 %v5711, %v5728
        %v5737 = vadd.f32 %v5712, %v5729
        %v5738 = vadd.f32 %v5713, %v5730
        %v5739 = vadd.f32 %v5714, %v5731
        %s5740 = scalar_lea.vmem [#allocation4], 32
        %v5741 = vld [vmem:[%s5740] sm:$0xff]
        %v5742 = vld [vmem:[%s5740 + $0x10] sm:$0xff]
        %v5743 = vld [vmem:[%s5740 + $0x20] sm:$0xff]
        %v5744 = vld [vmem:[%s5740 + $0x30] sm:$0xff]
        %v5745 = vld [vmem:[%s5740 + $0x40] sm:$0xff]
        %v5746 = vld [vmem:[%s5740 + $0x50] sm:$0xff]
        %v5747 = vld [vmem:[%s5740 + $0x60] sm:$0xff]
        %v5748 = vld [vmem:[%s5740 + $0x70] sm:$0xff]
        %v5749 = vperm.slane %v5554, 6
        %v5750 = vmul.f32 %v5741, %v5749
        %v5751 = vmul.f32 %v5742, %v5749
        %v5752 = vmul.f32 %v5743, %v5749
        %v5753 = vmul.f32 %v5744, %v5749
        %v5754 = vmul.f32 %v5745, %v5749
        %v5755 = vmul.f32 %v5746, %v5749
        %v5756 = vmul.f32 %v5747, %v5749
        %v5757 = vmul.f32 %v5748, %v5749
        %v5758 = vadd.f32 %v5732, %v5750
        %v5759 = vadd.f32 %v5733, %v5751
        %v5760 = vadd.f32 %v5734, %v5752
        %v5761 = vadd.f32 %v5735, %v5753
        %v5762 = vadd.f32 %v5736, %v5754
        %v5763 = vadd.f32 %v5737, %v5755
        %v5764 = vadd.f32 %v5738, %v5756
        %v5765 = vadd.f32 %v5739, %v5757
        %v5766 = vld [vmem:[%s5740 + $0x1] sm:$0xff]
        %v5767 = vld [vmem:[%s5740 + $0x11] sm:$0xff]
        %v5768 = vld [vmem:[%s5740 + $0x21] sm:$0xff]
        %v5769 = vld [vmem:[%s5740 + $0x31] sm:$0xff]
        %v5770 = vld [vmem:[%s5740 + $0x41] sm:$0xff]
        %v5771 = vld [vmem:[%s5740 + $0x51] sm:$0xff]
        %v5772 = vld [vmem:[%s5740 + $0x61] sm:$0xff]
        %v5773 = vld [vmem:[%s5740 + $0x71] sm:$0xff]
        %v5774 = vperm.slane %v5554, 7
        %v5775 = vmul.f32 %v5766, %v5774
        %v5776 = vmul.f32 %v5767, %v5774
        %v5777 = vmul.f32 %v5768, %v5774
        %v5778 = vmul.f32 %v5769, %v5774
        %v5779 = vmul.f32 %v5770, %v5774
        %v5780 = vmul.f32 %v5771, %v5774
        %v5781 = vmul.f32 %v5772, %v5774
        %v5782 = vmul.f32 %v5773, %v5774
        %v5783 = vadd.f32 %v5758, %v5775
        %v5784 = vadd.f32 %v5759, %v5776
        %v5785 = vadd.f32 %v5760, %v5777
        %v5786 = vadd.f32 %v5761, %v5778
        %v5787 = vadd.f32 %v5762, %v5779
        %v5788 = vadd.f32 %v5763, %v5780
        %v5789 = vadd.f32 %v5764, %v5781
        %v5790 = vadd.f32 %v5765, %v5782
        %v5791 = vld [vmem:[%s5740 + $0x2] sm:$0xff]
        %v5792 = vld [vmem:[%s5740 + $0x12] sm:$0xff]
        %v5793 = vld [vmem:[%s5740 + $0x22] sm:$0xff]
        %v5794 = vld [vmem:[%s5740 + $0x32] sm:$0xff]
        %v5795 = vld [vmem:[%s5740 + $0x42] sm:$0xff]
        %v5796 = vld [vmem:[%s5740 + $0x52] sm:$0xff]
        %v5797 = vld [vmem:[%s5740 + $0x62] sm:$0xff]
        %v5798 = vld [vmem:[%s5740 + $0x72] sm:$0xff]
        %v5799 = vperm.slane %v5555, 0
        %v5800 = vmul.f32 %v5791, %v5799
        %v5801 = vmul.f32 %v5792, %v5799
        %v5802 = vmul.f32 %v5793, %v5799
        %v5803 = vmul.f32 %v5794, %v5799
        %v5804 = vmul.f32 %v5795, %v5799
        %v5805 = vmul.f32 %v5796, %v5799
        %v5806 = vmul.f32 %v5797, %v5799
        %v5807 = vmul.f32 %v5798, %v5799
        %v5808 = vadd.f32 %v5783, %v5800
        %v5809 = vadd.f32 %v5784, %v5801
        %v5810 = vadd.f32 %v5785, %v5802
        %v5811 = vadd.f32 %v5786, %v5803
        %v5812 = vadd.f32 %v5787, %v5804
        %v5813 = vadd.f32 %v5788, %v5805
        %v5814 = vadd.f32 %v5789, %v5806
        %v5815 = vadd.f32 %v5790, %v5807
        %v5816 = vpack.c.bf16 %v5809, %v5808
        %v5817 = vpack.c.bf16 %v5811, %v5810
        %v5818 = vpack.c.bf16 %v5813, %v5812
        %v5819 = vpack.c.bf16 %v5815, %v5814
        %v5820 = vld [vmem:[%s21] sm:$0xf]
        %v5821 = vld [vmem:[%s21 + $0x4] sm:$0xf]
        %v5822 = vld [vmem:[%s21 + $0x8] sm:$0xf]
        %v5823 = vld [vmem:[%s21 + $0xc] sm:$0xf]
        %v5825 = vperm.slane %v5556, 0
        %v5831 = vunpack.c.l.b16 %v5820
        %v5832 = vunpack.c.l.b16 %v5821
        %v5833 = vunpack.c.l.b16 %v5822
        %v5834 = vunpack.c.l.b16 %v5823
        %v5835 = vpack.c.b16 %v5832, %v5831
        %v5836 = vpack.c.b16 %v5834, %v5833
        %v5840 = vsel %vm5557, %v5816, 0
        %v5843 = vsel %vm5557, %v5817, 0
        %v5846 = vsel %vm5557, %v5818, 0
        %v5849 = vsel %vm5557, %v5819, 0
        %5851 = vmatpush.bf16.msra.mxu0 0
        %5852 = vmatpush.bf16.msra.mxu0 0
        %5853 = vmatpush.bf16.msra.mxu0 0
        %5854 = vmatpush.bf16.msra.mxu0 0
        %5855 = vmatpush.bf16.msra.mxu0 0
        %5856 = vmatpush.bf16.msra.mxu0 0
        %5857 = vmatpush.bf16.msra.mxu0 %v5836
        %5858 = vmatpush.bf16.msra.mxu0 %v5835
        %5859 = vmatmul.bf16.gmra.mxu0 %v5840
        %v5860 = vpop.f32.mrf.mxu0
        %v5861 = vadd.f32 %v5825, %v5860
        %v5862 = vpop.f32.mrf.mxu0
        %v5863 = vadd.f32 %v5825, %v5862
        %5864 = vmatmul.bf16.gmra.mxu0 %v5843
        %v5865 = vpop.f32.mrf.mxu0
        %v5866 = vadd.f32 %v5825, %v5865
        %v5867 = vpop.f32.mrf.mxu0
        %v5868 = vadd.f32 %v5825, %v5867
        %5869 = vmatmul.bf16.gmra.mxu0 %v5846
        %v5870 = vpop.f32.mrf.mxu0
        %v5871 = vadd.f32 %v5825, %v5870
        %v5872 = vpop.f32.mrf.mxu0
        %v5873 = vadd.f32 %v5825, %v5872
        %5874 = vmatmul.bf16.gmra.mxu0 %v5849
        %v5875 = vpop.f32.mrf.mxu0
        %v5876 = vadd.f32 %v5825, %v5875
        %v5877 = vpop.f32.mrf.mxu0
        %v5878 = vadd.f32 %v5825, %v5877
        %5879 = vdwg.mxu0
        %v5880 = vmax.f32 %v5861, 0.0
        %v5881 = vmax.f32 %v5863, 0.0
        %v5882 = vmax.f32 %v5866, 0.0
        %v5883 = vmax.f32 %v5868, 0.0
        %v5884 = vmax.f32 %v5871, 0.0
        %v5885 = vmax.f32 %v5873, 0.0
        %v5886 = vmax.f32 %v5876, 0.0
        %v5887 = vmax.f32 %v5878, 0.0
        %v5888 = vld [vmem:[%s25] sm:$0xff]
        %v5889 = vld [vmem:[%s25 + $0x8] sm:$0x1]
        %v5890 = vld [vmem:[%s29] sm:$0x1]
        %5891 = vst.msk [vmem:[#allocation5] sm:$0xff] %vm5557, 0.0
        %5892 = vst.msk [vmem:[#allocation5 + $0x8] sm:$0x3] %vm5559, 0.0
        %s5893 = scalar_lea.vmem [#allocation5], 144
        %5894 = vst.msk [vmem:[%s5893] sm:$0xff] %vm5557, 0.0
        %5895 = vst.msk [vmem:[%s5893 + $0x8] sm:$0x3] %vm5559, 0.0
        %s5896 = scalar_lea.vmem [#allocation5], 16
        %5897 = vst.msk [vmem:[%s5896] sm:$0x1] %vm5565, 0.0
        %5898 = vst.msk [vmem:[%s5896 + $0x10] sm:$0x1] %vm5565, 0.0
        %5899 = vst.msk [vmem:[%s5896 + $0x20] sm:$0x1] %vm5565, 0.0
        %5900 = vst.msk [vmem:[%s5896 + $0x30] sm:$0x1] %vm5565, 0.0
        %5901 = vst.msk [vmem:[%s5896 + $0x40] sm:$0x1] %vm5565, 0.0
        %5902 = vst.msk [vmem:[%s5896 + $0x50] sm:$0x1] %vm5565, 0.0
        %5903 = vst.msk [vmem:[%s5896 + $0x60] sm:$0x1] %vm5565, 0.0
        %5904 = vst.msk [vmem:[%s5896 + $0x70] sm:$0x1] %vm5565, 0.0
        %5905 = vst.msk [vmem:[%s5896 + $0x9] sm:$0x1] %vm5565, 0.0
        %5906 = vst.msk [vmem:[%s5896 + $0x19] sm:$0x1] %vm5565, 0.0
        %5907 = vst.msk [vmem:[%s5896 + $0x29] sm:$0x1] %vm5565, 0.0
        %5908 = vst.msk [vmem:[%s5896 + $0x39] sm:$0x1] %vm5565, 0.0
        %5909 = vst.msk [vmem:[%s5896 + $0x49] sm:$0x1] %vm5565, 0.0
        %5910 = vst.msk [vmem:[%s5896 + $0x59] sm:$0x1] %vm5565, 0.0
        %5911 = vst.msk [vmem:[%s5896 + $0x69] sm:$0x1] %vm5565, 0.0
        %5912 = vst.msk [vmem:[%s5896 + $0x79] sm:$0x1] %vm5565, 0.0
        %5913 = vst.msk [vmem:[%s5896 + $0x1] sm:$0xff] %vm5557, %v5880
        %5914 = vst.msk [vmem:[%s5896 + $0x11] sm:$0xff] %vm5557, %v5881
        %5915 = vst.msk [vmem:[%s5896 + $0x21] sm:$0xff] %vm5557, %v5882
        %5916 = vst.msk [vmem:[%s5896 + $0x31] sm:$0xff] %vm5557, %v5883
        %5917 = vst.msk [vmem:[%s5896 + $0x41] sm:$0xff] %vm5557, %v5884
        %5918 = vst.msk [vmem:[%s5896 + $0x51] sm:$0xff] %vm5557, %v5885
        %5919 = vst.msk [vmem:[%s5896 + $0x61] sm:$0xff] %vm5557, %v5886
        %5920 = vst.msk [vmem:[%s5896 + $0x71] sm:$0xff] %vm5557, %v5887
        %v5921 = vld [vmem:[#allocation5] sm:$0xff]
        %v5922 = vld [vmem:[#allocation5 + $0x20] sm:$0xff]
        %v5923 = vld [vmem:[#allocation5 + $0x40] sm:$0xff]
        %v5924 = vld [vmem:[#allocation5 + $0x60] sm:$0xff]
        %v5925 = vperm.slane %v5888, 0
        %v5926 = vmul.f32 %v5921, %v5925
        %v5927 = vmul.f32 %v5922, %v5925
        %v5928 = vmul.f32 %v5923, %v5925
        %v5929 = vmul.f32 %v5924, %v5925
        %v5930 = vadd.f32 %v5926, 0.0
        %v5931 = vadd.f32 %v5927, 0.0
        %v5932 = vadd.f32 %v5928, 0.0
        %v5933 = vadd.f32 %v5929, 0.0
        %v5934 = vld [vmem:[#allocation5 + $0x1] sm:$0xff]
        %v5935 = vld [vmem:[#allocation5 + $0x21] sm:$0xff]
        %v5936 = vld [vmem:[#allocation5 + $0x41] sm:$0xff]
        %v5937 = vld [vmem:[#allocation5 + $0x61] sm:$0xff]
        %v5938 = vperm.slane %v5888, 1
        %v5939 = vmul.f32 %v5934, %v5938
        %v5940 = vmul.f32 %v5935, %v5938
        %v5941 = vmul.f32 %v5936, %v5938
        %v5942 = vmul.f32 %v5937, %v5938
        %v5943 = vadd.f32 %v5930, %v5939
        %v5944 = vadd.f32 %v5931, %v5940
        %v5945 = vadd.f32 %v5932, %v5941
        %v5946 = vadd.f32 %v5933, %v5942
        %v5947 = vld [vmem:[#allocation5 + $0x2] sm:$0xff]
        %v5948 = vld [vmem:[#allocation5 + $0x22] sm:$0xff]
        %v5949 = vld [vmem:[#allocation5 + $0x42] sm:$0xff]
        %v5950 = vld [vmem:[#allocation5 + $0x62] sm:$0xff]
        %v5951 = vperm.slane %v5888, 2
        %v5952 = vmul.f32 %v5947, %v5951
        %v5953 = vmul.f32 %v5948, %v5951
        %v5954 = vmul.f32 %v5949, %v5951
        %v5955 = vmul.f32 %v5950, %v5951
        %v5956 = vadd.f32 %v5943, %v5952
        %v5957 = vadd.f32 %v5944, %v5953
        %v5958 = vadd.f32 %v5945, %v5954
        %v5959 = vadd.f32 %v5946, %v5955
        %v5960 = vld [vmem:[%s5896] sm:$0xff]
        %v5961 = vld [vmem:[%s5896 + $0x20] sm:$0xff]
        %v5962 = vld [vmem:[%s5896 + $0x40] sm:$0xff]
        %v5963 = vld [vmem:[%s5896 + $0x60] sm:$0xff]
        %v5964 = vperm.slane %v5888, 3
        %v5965 = vmul.f32 %v5960, %v5964
        %v5966 = vmul.f32 %v5961, %v5964
        %v5967 = vmul.f32 %v5962, %v5964
        %v5968 = vmul.f32 %v5963, %v5964
        %v5969 = vadd.f32 %v5956, %v5965
        %v5970 = vadd.f32 %v5957, %v5966
        %v5971 = vadd.f32 %v5958, %v5967
        %v5972 = vadd.f32 %v5959, %v5968
        %v5973 = vld [vmem:[%s5896 + $0x1] sm:$0xff]
        %v5974 = vld [vmem:[%s5896 + $0x21] sm:$0xff]
        %v5975 = vld [vmem:[%s5896 + $0x41] sm:$0xff]
        %v5976 = vld [vmem:[%s5896 + $0x61] sm:$0xff]
        %v5977 = vperm.slane %v5888, 4
        %v5978 = vmul.f32 %v5973, %v5977
        %v5979 = vmul.f32 %v5974, %v5977
        %v5980 = vmul.f32 %v5975, %v5977
        %v5981 = vmul.f32 %v5976, %v5977
        %v5982 = vadd.f32 %v5969, %v5978
        %v5983 = vadd.f32 %v5970, %v5979
        %v5984 = vadd.f32 %v5971, %v5980
        %v5985 = vadd.f32 %v5972, %v5981
        %v5986 = vld [vmem:[%s5896 + $0x2] sm:$0xff]
        %v5987 = vld [vmem:[%s5896 + $0x22] sm:$0xff]
        %v5988 = vld [vmem:[%s5896 + $0x42] sm:$0xff]
        %v5989 = vld [vmem:[%s5896 + $0x62] sm:$0xff]
        %v5990 = vperm.slane %v5888, 5
        %v5991 = vmul.f32 %v5986, %v5990
        %v5992 = vmul.f32 %v5987, %v5990
        %v5993 = vmul.f32 %v5988, %v5990
        %v5994 = vmul.f32 %v5989, %v5990
        %v5995 = vadd.f32 %v5982, %v5991
        %v5996 = vadd.f32 %v5983, %v5992
        %v5997 = vadd.f32 %v5984, %v5993
        %v5998 = vadd.f32 %v5985, %v5994
        %s5999 = scalar_lea.vmem [#allocation5], 32
        %v6000 = vld [vmem:[%s5999] sm:$0xff]
        %v6001 = vld [vmem:[%s5999 + $0x20] sm:$0xff]
        %v6002 = vld [vmem:[%s5999 + $0x40] sm:$0xff]
        %v6003 = vld [vmem:[%s5999 + $0x60] sm:$0xff]
        %v6004 = vperm.slane %v5888, 6
        %v6005 = vmul.f32 %v6000, %v6004
        %v6006 = vmul.f32 %v6001, %v6004
        %v6007 = vmul.f32 %v6002, %v6004
        %v6008 = vmul.f32 %v6003, %v6004
        %v6009 = vadd.f32 %v5995, %v6005
        %v6010 = vadd.f32 %v5996, %v6006
        %v6011 = vadd.f32 %v5997, %v6007
        %v6012 = vadd.f32 %v5998, %v6008
        %v6013 = vld [vmem:[%s5999 + $0x1] sm:$0xff]
        %v6014 = vld [vmem:[%s5999 + $0x21] sm:$0xff]
        %v6015 = vld [vmem:[%s5999 + $0x41] sm:$0xff]
        %v6016 = vld [vmem:[%s5999 + $0x61] sm:$0xff]
        %v6017 = vperm.slane %v5888, 7
        %v6018 = vmul.f32 %v6013, %v6017
        %v6019 = vmul.f32 %v6014, %v6017
        %v6020 = vmul.f32 %v6015, %v6017
        %v6021 = vmul.f32 %v6016, %v6017
        %v6022 = vadd.f32 %v6009, %v6018
        %v6023 = vadd.f32 %v6010, %v6019
        %v6024 = vadd.f32 %v6011, %v6020
        %v6025 = vadd.f32 %v6012, %v6021
        %v6026 = vld [vmem:[%s5999 + $0x2] sm:$0xff]
        %v6027 = vld [vmem:[%s5999 + $0x22] sm:$0xff]
        %v6028 = vld [vmem:[%s5999 + $0x42] sm:$0xff]
        %v6029 = vld [vmem:[%s5999 + $0x62] sm:$0xff]
        %v6030 = vperm.slane %v5889, 0
        %v6031 = vmul.f32 %v6026, %v6030
        %v6032 = vmul.f32 %v6027, %v6030
        %v6033 = vmul.f32 %v6028, %v6030
        %v6034 = vmul.f32 %v6029, %v6030
        %v6035 = vadd.f32 %v6022, %v6031
        %v6036 = vadd.f32 %v6023, %v6032
        %v6037 = vadd.f32 %v6024, %v6033
        %v6038 = vadd.f32 %v6025, %v6034
        %v6043 = vrot.slane %v6035, 2
        %v6044 = vrot.slane %v6035, 4
        %v6045 = vrot.slane %v6035, 6
        %v6046 = vrot.slane %v6036, 2
        %v6047 = vrot.slane %v6036, 4
        %v6048 = vrot.slane %v6036, 6
        %v6049 = vrot.slane %v6037, 2
        %v6050 = vrot.slane %v6037, 4
        %v6051 = vrot.slane %v6037, 6
        %v6052 = vrot.slane %v6038, 2
        %v6053 = vrot.slane %v6038, 4
        %v6054 = vrot.slane %v6038, 6
        %v6067 = vpack.c.bf16 %v6035, %v6035
        %v6068 = vpack.c.bf16 %v6043, %v6043
        %v6069 = vpack.c.bf16 %v6044, %v6044
        %v6070 = vpack.c.bf16 %v6045, %v6045
        %v6071 = vpack.c.bf16 %v6036, %v6036
        %v6072 = vpack.c.bf16 %v6046, %v6046
        %v6073 = vpack.c.bf16 %v6047, %v6047
        %v6074 = vpack.c.bf16 %v6048, %v6048
        %v6075 = vpack.c.bf16 %v6037, %v6037
        %v6076 = vpack.c.bf16 %v6049, %v6049
        %v6077 = vpack.c.bf16 %v6050, %v6050
        %v6078 = vpack.c.bf16 %v6051, %v6051
        %v6079 = vpack.c.bf16 %v6038, %v6038
        %v6080 = vpack.c.bf16 %v6052, %v6052
        %v6081 = vpack.c.bf16 %v6053, %v6053
        %v6082 = vpack.c.bf16 %v6054, %v6054
        %v6083 = vld [vmem:[%s27] sm:$0xf]
        %v6084 = vld [vmem:[%s27 + $0x4] sm:$0xf]
        %v6085 = vld [vmem:[%s27 + $0x8] sm:$0xf]
        %v6086 = vld [vmem:[%s27 + $0xc] sm:$0xf]
        %v6088 = vperm.slane %v5890, 0
        %v6106 = vunpack.c.l.b16 %v6067
        %v6107 = vunpack.c.l.b16 %v6068
        %v6108 = vunpack.c.l.b16 %v6069
        %v6109 = vunpack.c.l.b16 %v6070
        %v6110 = vunpack.c.l.b16 %v6071
        %v6111 = vunpack.c.l.b16 %v6072
        %v6112 = vunpack.c.l.b16 %v6073
        %v6113 = vunpack.c.l.b16 %v6074
        %v6114 = vunpack.c.l.b16 %v6075
        %v6115 = vunpack.c.l.b16 %v6076
        %v6116 = vunpack.c.l.b16 %v6077
        %v6117 = vunpack.c.l.b16 %v6078
        %v6118 = vunpack.c.l.b16 %v6079
        %v6119 = vunpack.c.l.b16 %v6080
        %v6120 = vunpack.c.l.b16 %v6081
        %v6121 = vunpack.c.l.b16 %v6082
        %v6122 = vrot.slane %v6107, 7
        %v6123 = vsel %vm5377, %v6122, %v6106
        %v6124 = vrot.slane %v6108, 6
        %v6125 = vsel %vm5380, %v6124, %v6123
        %v6126 = vrot.slane %v6109, 5
        %v6127 = vsel %vm5383, %v6126, %v6125
        %v6128 = vrot.slane %v6110, 4
        %v6129 = vsel %vm5386, %v6128, %v6127
        %v6130 = vrot.slane %v6111, 3
        %v6131 = vsel %vm5389, %v6130, %v6129
        %v6132 = vrot.slane %v6112, 2
        %v6133 = vsel %vm5392, %v6132, %v6131
        %v6134 = vrot.slane %v6113, 1
        %v6135 = vsel %vm5395, %v6134, %v6133
        %v6136 = vrot.slane %v6115, 7
        %v6137 = vsel %vm5377, %v6136, %v6114
        %v6138 = vrot.slane %v6116, 6
        %v6139 = vsel %vm5380, %v6138, %v6137
        %v6140 = vrot.slane %v6117, 5
        %v6141 = vsel %vm5383, %v6140, %v6139
        %v6142 = vrot.slane %v6118, 4
        %v6143 = vsel %vm5386, %v6142, %v6141
        %v6144 = vrot.slane %v6119, 3
        %v6145 = vsel %vm5389, %v6144, %v6143
        %v6146 = vrot.slane %v6120, 2
        %v6147 = vsel %vm5392, %v6146, %v6145
        %v6148 = vrot.slane %v6121, 1
        %v6149 = vsel %vm5395, %v6148, %v6147
        %v6150 = vpack.c.b16 %v6149, %v6135
        %v6155 = vunpack.c.l.b16 %v6083
        %v6156 = vunpack.c.l.b16 %v6084
        %v6157 = vunpack.c.l.b16 %v6085
        %v6158 = vunpack.c.l.b16 %v6086
        %v6159 = vpack.c.b16 %v6156, %v6155
        %v6160 = vpack.c.b16 %v6158, %v6157
        %v6164 = vsel %vm5557, %v6150, 0
        %6166 = vmatpush.bf16.msra.mxu0 0
        %6167 = vmatpush.bf16.msra.mxu0 0
        %6168 = vmatpush.bf16.msra.mxu0 0
        %6169 = vmatpush.bf16.msra.mxu0 0
        %6170 = vmatpush.bf16.msra.mxu0 0
        %6171 = vmatpush.bf16.msra.mxu0 0
        %6172 = vmatpush.bf16.msra.mxu0 %v6160
        %6173 = vmatpush.bf16.msra.mxu0 %v6159
        %6174 = vmatmul.bf16.gmra.mxu0 %v6164
        %v6175 = vpop.f32.mrf.mxu0
        %v6176 = vadd.f32 %v6088, %v6175
        %v6177 = vpop.f32.mrf.mxu0
        %v6178 = vadd.f32 %v6088, %v6177
        %6179 = vdwg.mxu0
        %v6180 = vmax.f32 %v6176, 0.0
        %v6181 = vmax.f32 %v6178, 0.0
        %v6184 = vrot.slane %v6180, 4
        %v6185 = vrot.slane %v6181, 4
        %v6188 = vld [vmem:[%s31] sm:$0xff]
        %v6189 = vld [vmem:[%s31 + $0x8] sm:$0x1]
        %v6190 = vld [vmem:[%s35] sm:$0x1]
        %vm6191 = vcmask 521216
        %6192 = vst.msk [vmem:[#allocation6] sm:$0x3f] %vm6191, 0.0
        %s6193 = scalar_lea.vmem [#allocation6], 40
        %6194 = vst.msk [vmem:[%s6193] sm:$0x3f] %vm6191, 0.0
        %s6195 = scalar_lea.vmem [#allocation6], 8
        %vm6196 = vcmask 516096
        %6197 = vst.msk [vmem:[%s6195] sm:$0x1] %vm6196, 0.0
        %6198 = vst.msk [vmem:[%s6195 + $0x8] sm:$0x1] %vm6196, 0.0
        %6199 = vst.msk [vmem:[%s6195 + $0x10] sm:$0x1] %vm6196, 0.0
        %6200 = vst.msk [vmem:[%s6195 + $0x18] sm:$0x1] %vm6196, 0.0
        %6201 = vst.msk [vmem:[%s6195 + $0x5] sm:$0x1] %vm6196, 0.0
        %6202 = vst.msk [vmem:[%s6195 + $0xd] sm:$0x1] %vm6196, 0.0
        %6203 = vst.msk [vmem:[%s6195 + $0x15] sm:$0x1] %vm6196, 0.0
        %6204 = vst.msk [vmem:[%s6195 + $0x1d] sm:$0x1] %vm6196, 0.0
        %vm6205 = vcmask 519168
        %6206 = vst.msk [vmem:[%s6195 + $0x1] sm:$0xf] %vm6205, %v6180
        %6207 = vst.msk [vmem:[%s6195 + $0x9] sm:$0xf] %vm6205, %v6184
        %6208 = vst.msk [vmem:[%s6195 + $0x11] sm:$0xf] %vm6205, %v6181
        %6209 = vst.msk [vmem:[%s6195 + $0x19] sm:$0xf] %vm6205, %v6185
        %v6210 = vld [vmem:[#allocation6] sm:$0xf]
        %v6211 = vld [vmem:[#allocation6 + $0x8] sm:$0xf]
        %v6212 = vld [vmem:[#allocation6 + $0x10] sm:$0xf]
        %v6213 = vld [vmem:[#allocation6 + $0x18] sm:$0xf]
        %v6214 = vperm.slane %v6188, 0
        %v6215 = vmul.f32 %v6210, %v6214
        %v6216 = vmul.f32 %v6211, %v6214
        %v6217 = vmul.f32 %v6212, %v6214
        %v6218 = vmul.f32 %v6213, %v6214
        %v6219 = vadd.f32 %v6215, 0.0
        %v6220 = vadd.f32 %v6216, 0.0
        %v6221 = vadd.f32 %v6217, 0.0
        %v6222 = vadd.f32 %v6218, 0.0
        %v6223 = vld [vmem:[#allocation6 + $0x1] sm:$0xf]
        %v6224 = vld [vmem:[#allocation6 + $0x9] sm:$0xf]
        %v6225 = vld [vmem:[#allocation6 + $0x11] sm:$0xf]
        %v6226 = vld [vmem:[#allocation6 + $0x19] sm:$0xf]
        %v6227 = vperm.slane %v6188, 1
        %v6228 = vmul.f32 %v6223, %v6227
        %v6229 = vmul.f32 %v6224, %v6227
        %v6230 = vmul.f32 %v6225, %v6227
        %v6231 = vmul.f32 %v6226, %v6227
        %v6232 = vadd.f32 %v6219, %v6228
        %v6233 = vadd.f32 %v6220, %v6229
        %v6234 = vadd.f32 %v6221, %v6230
        %v6235 = vadd.f32 %v6222, %v6231
        %v6236 = vld [vmem:[#allocation6 + $0x2] sm:$0xf]
        %v6237 = vld [vmem:[#allocation6 + $0xa] sm:$0xf]
        %v6238 = vld [vmem:[#allocation6 + $0x12] sm:$0xf]
        %v6239 = vld [vmem:[#allocation6 + $0x1a] sm:$0xf]
        %v6240 = vperm.slane %v6188, 2
        %v6241 = vmul.f32 %v6236, %v6240
        %v6242 = vmul.f32 %v6237, %v6240
        %v6243 = vmul.f32 %v6238, %v6240
        %v6244 = vmul.f32 %v6239, %v6240
        %v6245 = vadd.f32 %v6232, %v6241
        %v6246 = vadd.f32 %v6233, %v6242
        %v6247 = vadd.f32 %v6234, %v6243
        %v6248 = vadd.f32 %v6235, %v6244
        %v6249 = vld [vmem:[%s6195] sm:$0xf]
        %v6250 = vld [vmem:[%s6195 + $0x8] sm:$0xf]
        %v6251 = vld [vmem:[%s6195 + $0x10] sm:$0xf]
        %v6252 = vld [vmem:[%s6195 + $0x18] sm:$0xf]
        %v6253 = vperm.slane %v6188, 3
        %v6254 = vmul.f32 %v6249, %v6253
        %v6255 = vmul.f32 %v6250, %v6253
        %v6256 = vmul.f32 %v6251, %v6253
        %v6257 = vmul.f32 %v6252, %v6253
        %v6258 = vadd.f32 %v6245, %v6254
        %v6259 = vadd.f32 %v6246, %v6255
        %v6260 = vadd.f32 %v6247, %v6256
        %v6261 = vadd.f32 %v6248, %v6257
        %v6262 = vld [vmem:[%s6195 + $0x1] sm:$0xf]
        %v6263 = vld [vmem:[%s6195 + $0x9] sm:$0xf]
        %v6264 = vld [vmem:[%s6195 + $0x11] sm:$0xf]
        %v6265 = vld [vmem:[%s6195 + $0x19] sm:$0xf]
        %v6266 = vperm.slane %v6188, 4
        %v6267 = vmul.f32 %v6262, %v6266
        %v6268 = vmul.f32 %v6263, %v6266
        %v6269 = vmul.f32 %v6264, %v6266
        %v6270 = vmul.f32 %v6265, %v6266
        %v6271 = vadd.f32 %v6258, %v6267
        %v6272 = vadd.f32 %v6259, %v6268
        %v6273 = vadd.f32 %v6260, %v6269
        %v6274 = vadd.f32 %v6261, %v6270
        %v6275 = vld [vmem:[%s6195 + $0x2] sm:$0xf]
        %v6276 = vld [vmem:[%s6195 + $0xa] sm:$0xf]
        %v6277 = vld [vmem:[%s6195 + $0x12] sm:$0xf]
        %v6278 = vld [vmem:[%s6195 + $0x1a] sm:$0xf]
        %v6279 = vperm.slane %v6188, 5
        %v6280 = vmul.f32 %v6275, %v6279
        %v6281 = vmul.f32 %v6276, %v6279
        %v6282 = vmul.f32 %v6277, %v6279
        %v6283 = vmul.f32 %v6278, %v6279
        %v6284 = vadd.f32 %v6271, %v6280
        %v6285 = vadd.f32 %v6272, %v6281
        %v6286 = vadd.f32 %v6273, %v6282
        %v6287 = vadd.f32 %v6274, %v6283
        %s6288 = scalar_lea.vmem [#allocation6], 16
        %v6289 = vld [vmem:[%s6288] sm:$0xf]
        %v6290 = vld [vmem:[%s6288 + $0x8] sm:$0xf]
        %v6291 = vld [vmem:[%s6288 + $0x10] sm:$0xf]
        %v6292 = vld [vmem:[%s6288 + $0x18] sm:$0xf]
        %v6293 = vperm.slane %v6188, 6
        %v6294 = vmul.f32 %v6289, %v6293
        %v6295 = vmul.f32 %v6290, %v6293
        %v6296 = vmul.f32 %v6291, %v6293
        %v6297 = vmul.f32 %v6292, %v6293
        %v6298 = vadd.f32 %v6284, %v6294
        %v6299 = vadd.f32 %v6285, %v6295
        %v6300 = vadd.f32 %v6286, %v6296
        %v6301 = vadd.f32 %v6287, %v6297
        %v6302 = vld [vmem:[%s6288 + $0x1] sm:$0xf]
        %v6303 = vld [vmem:[%s6288 + $0x9] sm:$0xf]
        %v6304 = vld [vmem:[%s6288 + $0x11] sm:$0xf]
        %v6305 = vld [vmem:[%s6288 + $0x19] sm:$0xf]
        %v6306 = vperm.slane %v6188, 7
        %v6307 = vmul.f32 %v6302, %v6306
        %v6308 = vmul.f32 %v6303, %v6306
        %v6309 = vmul.f32 %v6304, %v6306
        %v6310 = vmul.f32 %v6305, %v6306
        %v6311 = vadd.f32 %v6298, %v6307
        %v6312 = vadd.f32 %v6299, %v6308
        %v6313 = vadd.f32 %v6300, %v6309
        %v6314 = vadd.f32 %v6301, %v6310
        %v6315 = vld [vmem:[%s6288 + $0x2] sm:$0xf]
        %v6316 = vld [vmem:[%s6288 + $0xa] sm:$0xf]
        %v6317 = vld [vmem:[%s6288 + $0x12] sm:$0xf]
        %v6318 = vld [vmem:[%s6288 + $0x1a] sm:$0xf]
        %v6319 = vperm.slane %v6189, 0
        %v6320 = vmul.f32 %v6315, %v6319
        %v6321 = vmul.f32 %v6316, %v6319
        %v6322 = vmul.f32 %v6317, %v6319
        %v6323 = vmul.f32 %v6318, %v6319
        %v6324 = vadd.f32 %v6311, %v6320
        %v6325 = vadd.f32 %v6312, %v6321
        %v6326 = vadd.f32 %v6313, %v6322
        %v6327 = vadd.f32 %v6314, %v6323
        %6332 = vst [vmem:[#allocation1] ss:$2 sm:$0xff] %v6324
        %s6333 = scalar_lea.vmem [#allocation1], 1
        %6334 = vst [vmem:[%s6333] ss:$2 sm:$0xff] %v6325
        %s6335 = scalar_lea.vmem [#allocation1], 16
        %6336 = vst [vmem:[%s6335] ss:$2 sm:$0xff] %v6326
        %s6337 = scalar_lea.vmem [#allocation1], 17
        %6338 = vst [vmem:[%s6337] ss:$2 sm:$0xff] %v6327
        %v6339 = vld.sshfl [vmem:[#allocation1] sm:$0xff pattern:$0x75316420]
        %v6340 = vld.sshfl [vmem:[#allocation1 + $0x10] sm:$0xff pattern:$0x75316420]
        %v6343 = vpack.c.bf16 %v6340, %v6339
        %v6344 = vld [vmem:[%s33] sm:$0xf]
        %v6345 = vld [vmem:[%s33 + $0x4] sm:$0xf]
        %v6346 = vld [vmem:[%s33 + $0x8] sm:$0xf]
        %v6347 = vld [vmem:[%s33 + $0xc] sm:$0xf]
        %v6348 = vld [vmem:[%s33 + $0x10] sm:$0xf]
        %v6349 = vld [vmem:[%s33 + $0x14] sm:$0xf]
        %v6350 = vld [vmem:[%s33 + $0x18] sm:$0xf]
        %v6351 = vld [vmem:[%s33 + $0x1c] sm:$0xf]
        %v6353 = vperm.slane %v6190, 0
        %v6363 = vunpack.c.l.b16 %v6344
        %v6364 = vunpack.c.l.b16 %v6345
        %v6365 = vunpack.c.l.b16 %v6346
        %v6366 = vunpack.c.l.b16 %v6347
        %v6367 = vunpack.c.l.b16 %v6348
        %v6368 = vunpack.c.l.b16 %v6349
        %v6369 = vunpack.c.l.b16 %v6350
        %v6370 = vunpack.c.l.b16 %v6351
        %v6371 = vpack.c.b16 %v6364, %v6363
        %v6372 = vpack.c.b16 %v6366, %v6365
        %v6373 = vpack.c.b16 %v6368, %v6367
        %v6374 = vpack.c.b16 %v6370, %v6369
        %vm6379 = vcmask 523264
        %v6381 = vsel %vm6379, %v6343, 0
        %6383 = vmatpush.bf16.msra.mxu0 0
        %6384 = vmatpush.bf16.msra.mxu0 0
        %6385 = vmatpush.bf16.msra.mxu0 0
        %6386 = vmatpush.bf16.msra.mxu0 0
        %6387 = vmatpush.bf16.msra.mxu0 %v6374
        %6388 = vmatpush.bf16.msra.mxu0 %v6373
        %6389 = vmatpush.bf16.msra.mxu0 %v6372
        %6390 = vmatpush.bf16.msra.mxu0 %v6371
        %6391 = vmatmul.bf16.gmra.mxu0 %v6381
        %v6392 = vpop.f32.mrf.mxu0
        %v6393 = vadd.f32 %v6353, %v6392
        %v6394 = vpop.f32.mrf.mxu0
        %v6395 = vadd.f32 %v6353, %v6394
        %6396 = vdwg.mxu0
        %v6397 = vmax.f32 %v6393, 0.0
        %v6398 = vmax.f32 %v6395, 0.0
        %v6401 = vrot.slane %v6397, 4
        %v6402 = vrot.slane %v6398, 4
        %v6405 = vld [vmem:[%s37] sm:$0xff]
        %v6406 = vld [vmem:[%s37 + $0x8] sm:$0x1]
        %v6407 = vld [vmem:[%s41] sm:$0x1]
        %6408 = vst.msk [vmem:[#allocation7] sm:$0x3f] %vm6191, 0.0
        %s6409 = scalar_lea.vmem [#allocation7], 40
        %6410 = vst.msk [vmem:[%s6409] sm:$0x3f] %vm6191, 0.0
        %s6411 = scalar_lea.vmem [#allocation7], 8
        %6412 = vst.msk [vmem:[%s6411] sm:$0x1] %vm6196, 0.0
        %6413 = vst.msk [vmem:[%s6411 + $0x8] sm:$0x1] %vm6196, 0.0
        %6414 = vst.msk [vmem:[%s6411 + $0x10] sm:$0x1] %vm6196, 0.0
        %6415 = vst.msk [vmem:[%s6411 + $0x18] sm:$0x1] %vm6196, 0.0
        %6416 = vst.msk [vmem:[%s6411 + $0x5] sm:$0x1] %vm6196, 0.0
        %6417 = vst.msk [vmem:[%s6411 + $0xd] sm:$0x1] %vm6196, 0.0
        %6418 = vst.msk [vmem:[%s6411 + $0x15] sm:$0x1] %vm6196, 0.0
        %6419 = vst.msk [vmem:[%s6411 + $0x1d] sm:$0x1] %vm6196, 0.0
        %6420 = vst.msk [vmem:[%s6411 + $0x1] sm:$0xf] %vm6205, %v6397
        %6421 = vst.msk [vmem:[%s6411 + $0x9] sm:$0xf] %vm6205, %v6401
        %6422 = vst.msk [vmem:[%s6411 + $0x11] sm:$0xf] %vm6205, %v6398
        %6423 = vst.msk [vmem:[%s6411 + $0x19] sm:$0xf] %vm6205, %v6402
        %v6424 = vld [vmem:[#allocation7] sm:$0xf]
        %v6425 = vld [vmem:[#allocation7 + $0x10] sm:$0xf]
        %v6426 = vperm.slane %v6405, 0
        %v6427 = vmul.f32 %v6424, %v6426
        %v6428 = vmul.f32 %v6425, %v6426
        %v6429 = vadd.f32 %v6427, 0.0
        %v6430 = vadd.f32 %v6428, 0.0
        %v6431 = vld [vmem:[#allocation7 + $0x1] sm:$0xf]
        %v6432 = vld [vmem:[#allocation7 + $0x11] sm:$0xf]
        %v6433 = vperm.slane %v6405, 1
        %v6434 = vmul.f32 %v6431, %v6433
        %v6435 = vmul.f32 %v6432, %v6433
        %v6436 = vadd.f32 %v6429, %v6434
        %v6437 = vadd.f32 %v6430, %v6435
        %v6438 = vld [vmem:[#allocation7 + $0x2] sm:$0xf]
        %v6439 = vld [vmem:[#allocation7 + $0x12] sm:$0xf]
        %v6440 = vperm.slane %v6405, 2
        %v6441 = vmul.f32 %v6438, %v6440
        %v6442 = vmul.f32 %v6439, %v6440
        %v6443 = vadd.f32 %v6436, %v6441
        %v6444 = vadd.f32 %v6437, %v6442
        %v6445 = vld [vmem:[%s6411] sm:$0xf]
        %v6446 = vld [vmem:[%s6411 + $0x10] sm:$0xf]
        %v6447 = vperm.slane %v6405, 3
        %v6448 = vmul.f32 %v6445, %v6447
        %v6449 = vmul.f32 %v6446, %v6447
        %v6450 = vadd.f32 %v6443, %v6448
        %v6451 = vadd.f32 %v6444, %v6449
        %v6452 = vld [vmem:[%s6411 + $0x1] sm:$0xf]
        %v6453 = vld [vmem:[%s6411 + $0x11] sm:$0xf]
        %v6454 = vperm.slane %v6405, 4
        %v6455 = vmul.f32 %v6452, %v6454
        %v6456 = vmul.f32 %v6453, %v6454
        %v6457 = vadd.f32 %v6450, %v6455
        %v6458 = vadd.f32 %v6451, %v6456
        %v6459 = vld [vmem:[%s6411 + $0x2] sm:$0xf]
        %v6460 = vld [vmem:[%s6411 + $0x12] sm:$0xf]
        %v6461 = vperm.slane %v6405, 5
        %v6462 = vmul.f32 %v6459, %v6461
        %v6463 = vmul.f32 %v6460, %v6461
        %v6464 = vadd.f32 %v6457, %v6462
        %v6465 = vadd.f32 %v6458, %v6463
        %s6466 = scalar_lea.vmem [#allocation7], 16
        %v6467 = vld [vmem:[%s6466] sm:$0xf]
        %v6468 = vld [vmem:[%s6466 + $0x10] sm:$0xf]
        %v6469 = vperm.slane %v6405, 6
        %v6470 = vmul.f32 %v6467, %v6469
        %v6471 = vmul.f32 %v6468, %v6469
        %v6472 = vadd.f32 %v6464, %v6470
        %v6473 = vadd.f32 %v6465, %v6471
        %v6474 = vld [vmem:[%s6466 + $0x1] sm:$0xf]
        %v6475 = vld [vmem:[%s6466 + $0x11] sm:$0xf]
        %v6476 = vperm.slane %v6405, 7
        %v6477 = vmul.f32 %v6474, %v6476
        %v6478 = vmul.f32 %v6475, %v6476
        %v6479 = vadd.f32 %v6472, %v6477
        %v6480 = vadd.f32 %v6473, %v6478
        %v6481 = vld [vmem:[%s6466 + $0x2] sm:$0xf]
        %v6482 = vld [vmem:[%s6466 + $0x12] sm:$0xf]
        %v6483 = vperm.slane %v6406, 0
        %v6484 = vmul.f32 %v6481, %v6483
        %v6485 = vmul.f32 %v6482, %v6483
        %v6486 = vadd.f32 %v6479, %v6484
        %v6487 = vadd.f32 %v6480, %v6485
        %v6490 = vrot.slane %v6486, 2
        %v6491 = vrot.slane %v6487, 2
        %v6494 = vpack.c.bf16 %v6486, %v6486
        %v6495 = vpack.c.bf16 %v6490, %v6490
        %v6496 = vpack.c.bf16 %v6487, %v6487
        %v6497 = vpack.c.bf16 %v6491, %v6491
        %v6498 = vld [vmem:[%s39] sm:$0xf]
        %v6499 = vld [vmem:[%s39 + $0x4] sm:$0xf]
        %v6500 = vld [vmem:[%s39 + $0x8] sm:$0xf]
        %v6501 = vld [vmem:[%s39 + $0xc] sm:$0xf]
        %v6502 = vld [vmem:[%s39 + $0x10] sm:$0xf]
        %v6503 = vld [vmem:[%s39 + $0x14] sm:$0xf]
        %v6504 = vld [vmem:[%s39 + $0x18] sm:$0xf]
        %v6505 = vld [vmem:[%s39 + $0x1c] sm:$0xf]
        %v6507 = vperm.slane %v6407, 0
        %v6513 = vunpack.c.l.b16 %v6494
        %v6514 = vunpack.c.l.b16 %v6495
        %v6515 = vunpack.c.l.b16 %v6496
        %v6516 = vunpack.c.l.b16 %v6497
        %v6517 = vrot.slane %v6514, 7
        %v6518 = vsel %vm5377, %v6517, %v6513
        %v6519 = vrot.slane %v6515, 6
        %v6520 = vsel %vm5380, %v6519, %v6518
        %v6521 = vrot.slane %v6516, 5
        %v6522 = vsel %vm5383, %v6521, %v6520
        %v6523 = vpack.c.b16 %v6522, %v6522
        %v6532 = vunpack.c.l.b16 %v6498
        %v6533 = vunpack.c.l.b16 %v6499
        %v6534 = vunpack.c.l.b16 %v6500
        %v6535 = vunpack.c.l.b16 %v6501
        %v6536 = vunpack.c.l.b16 %v6502
        %v6537 = vunpack.c.l.b16 %v6503
        %v6538 = vunpack.c.l.b16 %v6504
        %v6539 = vunpack.c.l.b16 %v6505
        %v6540 = vpack.c.b16 %v6533, %v6532
        %v6541 = vpack.c.b16 %v6535, %v6534
        %v6542 = vpack.c.b16 %v6537, %v6536
        %v6543 = vpack.c.b16 %v6539, %v6538
        %v6549 = vsel %vm6379, %v6523, 0
        %6551 = vmatpush.bf16.msra.mxu0 0
        %6552 = vmatpush.bf16.msra.mxu0 0
        %6553 = vmatpush.bf16.msra.mxu0 0
        %6554 = vmatpush.bf16.msra.mxu0 0
        %6555 = vmatpush.bf16.msra.mxu0 %v6543
        %6556 = vmatpush.bf16.msra.mxu0 %v6542
        %6557 = vmatpush.bf16.msra.mxu0 %v6541
        %6558 = vmatpush.bf16.msra.mxu0 %v6540
        %6559 = vmatmul.bf16.gmra.mxu0 %v6549
        %v6560 = vpop.f32.mrf.mxu0
        %v6561 = vadd.f32 %v6507, %v6560
        %v6562 = vpop.f32.mrf.mxu0
        %6563 = vdwg.mxu0
        %v6564 = vmax.f32 %v6561, 0.0
        %v6566 = vrot.slane %v6564, 2
        %v6568 = vld [vmem:[%s43] sm:$0xff]
        %v6569 = vld [vmem:[%s43 + $0x8] sm:$0x1]
        %v6570 = vld [vmem:[%s47] sm:$0x1]
        %6571 = vst [vmem:[#allocation8] sm:$0xf] 0.0
        %s6572 = scalar_lea.vmem [#allocation8], 12
        %6573 = vst [vmem:[%s6572] sm:$0xf] 0.0
        %s6574 = scalar_lea.vmem [#allocation8], 4
        %6575 = vst [vmem:[%s6574] sm:$0x1] 0.0
        %6576 = vst [vmem:[%s6574 + $0x4] sm:$0x1] 0.0
        %6577 = vst [vmem:[%s6574 + $0x3] sm:$0x1] 0.0
        %6578 = vst [vmem:[%s6574 + $0x7] sm:$0x1] 0.0
        %6579 = vst [vmem:[%s6574 + $0x1] sm:$0x3] %v6564
        %6580 = vst [vmem:[%s6574 + $0x5] sm:$0x3] %v6566
        %v6581 = vld [vmem:[#allocation8] sm:$0x3]
        %v6582 = vld [vmem:[#allocation8 + $0x4] sm:$0x3]
        %v6583 = vperm.slane %v6568, 0
        %v6584 = vmul.f32 %v6581, %v6583
        %v6585 = vmul.f32 %v6582, %v6583
        %v6586 = vadd.f32 %v6584, 0.0
        %v6587 = vadd.f32 %v6585, 0.0
        %v6588 = vld [vmem:[#allocation8 + $0x1] sm:$0x3]
        %v6589 = vld [vmem:[#allocation8 + $0x5] sm:$0x3]
        %v6590 = vperm.slane %v6568, 1
        %v6591 = vmul.f32 %v6588, %v6590
        %v6592 = vmul.f32 %v6589, %v6590
        %v6593 = vadd.f32 %v6586, %v6591
        %v6594 = vadd.f32 %v6587, %v6592
        %v6595 = vld [vmem:[#allocation8 + $0x2] sm:$0x3]
        %v6596 = vld [vmem:[#allocation8 + $0x6] sm:$0x3]
        %v6597 = vperm.slane %v6568, 2
        %v6598 = vmul.f32 %v6595, %v6597
        %v6599 = vmul.f32 %v6596, %v6597
        %v6600 = vadd.f32 %v6593, %v6598
        %v6601 = vadd.f32 %v6594, %v6599
        %v6602 = vld [vmem:[%s6574] sm:$0x3]
        %v6603 = vld [vmem:[%s6574 + $0x4] sm:$0x3]
        %v6604 = vperm.slane %v6568, 3
        %v6605 = vmul.f32 %v6602, %v6604
        %v6606 = vmul.f32 %v6603, %v6604
        %v6607 = vadd.f32 %v6600, %v6605
        %v6608 = vadd.f32 %v6601, %v6606
        %v6609 = vld [vmem:[%s6574 + $0x1] sm:$0x3]
        %v6610 = vld [vmem:[%s6574 + $0x5] sm:$0x3]
        %v6611 = vperm.slane %v6568, 4
        %v6612 = vmul.f32 %v6609, %v6611
        %v6613 = vmul.f32 %v6610, %v6611
        %v6614 = vadd.f32 %v6607, %v6612
        %v6615 = vadd.f32 %v6608, %v6613
        %v6616 = vld [vmem:[%s6574 + $0x2] sm:$0x3]
        %v6617 = vld [vmem:[%s6574 + $0x6] sm:$0x3]
        %v6618 = vperm.slane %v6568, 5
        %v6619 = vmul.f32 %v6616, %v6618
        %v6620 = vmul.f32 %v6617, %v6618
        %v6621 = vadd.f32 %v6614, %v6619
        %v6622 = vadd.f32 %v6615, %v6620
        %s6623 = scalar_lea.vmem [#allocation8], 8
        %v6624 = vld [vmem:[%s6623] sm:$0x3]
        %v6625 = vld [vmem:[%s6623 + $0x4] sm:$0x3]
        %v6626 = vperm.slane %v6568, 6
        %v6627 = vmul.f32 %v6624, %v6626
        %v6628 = vmul.f32 %v6625, %v6626
        %v6629 = vadd.f32 %v6621, %v6627
        %v6630 = vadd.f32 %v6622, %v6628
        %v6631 = vld [vmem:[%s6623 + $0x1] sm:$0x3]
        %v6632 = vld [vmem:[%s6623 + $0x5] sm:$0x3]
        %v6633 = vperm.slane %v6568, 7
        %v6634 = vmul.f32 %v6631, %v6633
        %v6635 = vmul.f32 %v6632, %v6633
        %v6636 = vadd.f32 %v6629, %v6634
        %v6637 = vadd.f32 %v6630, %v6635
        %v6638 = vld [vmem:[%s6623 + $0x2] sm:$0x3]
        %v6639 = vld [vmem:[%s6623 + $0x6] sm:$0x3]
        %v6640 = vperm.slane %v6569, 0
        %v6641 = vmul.f32 %v6638, %v6640
        %v6642 = vmul.f32 %v6639, %v6640
        %v6643 = vadd.f32 %v6636, %v6641
        %v6644 = vadd.f32 %v6637, %v6642
        %6647 = vst [vmem:[#allocation1] ss:$4 sm:$0xff] %v6643
        %s6648 = scalar_lea.vmem [#allocation1], 1
        %6649 = vst [vmem:[%s6648] ss:$4 sm:$0xff] %v6644
        %v6650 = vld.sshfl [vmem:[#allocation1] sm:$0xff pattern:$0x73625140]
        %v6652 = vpack.c.bf16 %v6650, %v6650
        %v6653 = vld [vmem:[%s45] sm:$0xf]
        %v6654 = vld [vmem:[%s45 + $0x4] sm:$0xf]
        %v6655 = vld [vmem:[%s45 + $0x8] sm:$0xf]
        %v6656 = vld [vmem:[%s45 + $0xc] sm:$0xf]
        %v6657 = vld [vmem:[%s45 + $0x10] sm:$0xf]
        %v6658 = vld [vmem:[%s45 + $0x14] sm:$0xf]
        %v6659 = vld [vmem:[%s45 + $0x18] sm:$0xf]
        %v6660 = vld [vmem:[%s45 + $0x1c] sm:$0xf]
        %v6661 = vld [vmem:[%s45 + $0x20] sm:$0xf]
        %v6662 = vld [vmem:[%s45 + $0x24] sm:$0xf]
        %v6663 = vld [vmem:[%s45 + $0x28] sm:$0xf]
        %v6664 = vld [vmem:[%s45 + $0x2c] sm:$0xf]
        %v6665 = vld [vmem:[%s45 + $0x30] sm:$0xf]
        %v6666 = vld [vmem:[%s45 + $0x34] sm:$0xf]
        %v6667 = vld [vmem:[%s45 + $0x38] sm:$0xf]
        %v6668 = vld [vmem:[%s45 + $0x3c] sm:$0xf]
        %v6670 = vperm.slane %v6570, 0
        %v6688 = vunpack.c.l.b16 %v6653
        %v6689 = vunpack.c.l.b16 %v6654
        %v6690 = vunpack.c.l.b16 %v6655
        %v6691 = vunpack.c.l.b16 %v6656
        %v6692 = vunpack.c.l.b16 %v6657
        %v6693 = vunpack.c.l.b16 %v6658
        %v6694 = vunpack.c.l.b16 %v6659
        %v6695 = vunpack.c.l.b16 %v6660
        %v6696 = vunpack.c.l.b16 %v6661
        %v6697 = vunpack.c.l.b16 %v6662
        %v6698 = vunpack.c.l.b16 %v6663
        %v6699 = vunpack.c.l.b16 %v6664
        %v6700 = vunpack.c.l.b16 %v6665
        %v6701 = vunpack.c.l.b16 %v6666
        %v6702 = vunpack.c.l.b16 %v6667
        %v6703 = vunpack.c.l.b16 %v6668
        %v6704 = vpack.c.b16 %v6689, %v6688
        %v6705 = vpack.c.b16 %v6691, %v6690
        %v6706 = vpack.c.b16 %v6693, %v6692
        %v6707 = vpack.c.b16 %v6695, %v6694
        %v6708 = vpack.c.b16 %v6697, %v6696
        %v6709 = vpack.c.b16 %v6699, %v6698
        %v6710 = vpack.c.b16 %v6701, %v6700
        %v6711 = vpack.c.b16 %v6703, %v6702
        %6720 = vmatpush.bf16.msra.mxu0 %v6711
        %6721 = vmatpush.bf16.msra.mxu0 %v6710
        %6722 = vmatpush.bf16.msra.mxu0 %v6709
        %6723 = vmatpush.bf16.msra.mxu0 %v6708
        %6724 = vmatpush.bf16.msra.mxu0 %v6707
        %6725 = vmatpush.bf16.msra.mxu0 %v6706
        %6726 = vmatpush.bf16.msra.mxu0 %v6705
        %6727 = vmatpush.bf16.msra.mxu0 %v6704
        %6728 = vmatmul.bf16.gmra.mxu0 %v6652
        %v6729 = vpop.f32.mrf.mxu0
        %v6730 = vadd.f32 %v6670, %v6729
        %v6731 = vpop.f32.mrf.mxu0
        %6732 = vdwg.mxu0
        %v6733 = vmax.f32 %v6730, 0.0
        %v6735 = vrot.slane %v6733, 2
        %v6737 = vld [vmem:[%s49] sm:$0xff]
        %v6738 = vld [vmem:[%s49 + $0x8] sm:$0x1]
        %v6739 = vld [vmem:[%s53] sm:$0x1]
        %6740 = vst [vmem:[#allocation9] sm:$0xf] 0.0
        %s6741 = scalar_lea.vmem [#allocation9], 12
        %6742 = vst [vmem:[%s6741] sm:$0xf] 0.0
        %s6743 = scalar_lea.vmem [#allocation9], 4
        %6744 = vst [vmem:[%s6743] sm:$0x1] 0.0
        %6745 = vst [vmem:[%s6743 + $0x4] sm:$0x1] 0.0
        %6746 = vst [vmem:[%s6743 + $0x3] sm:$0x1] 0.0
        %6747 = vst [vmem:[%s6743 + $0x7] sm:$0x1] 0.0
        %6748 = vst [vmem:[%s6743 + $0x1] sm:$0x3] %v6733
        %6749 = vst [vmem:[%s6743 + $0x5] sm:$0x3] %v6735
        %v6750 = vld [vmem:[#allocation9] sm:$0x3]
        %v6751 = vld [vmem:[#allocation9 + $0x4] sm:$0x3]
        %v6752 = vperm.slane %v6737, 0
        %v6753 = vmul.f32 %v6750, %v6752
        %v6754 = vmul.f32 %v6751, %v6752
        %v6755 = vadd.f32 %v6753, 0.0
        %v6756 = vadd.f32 %v6754, 0.0
        %v6757 = vld [vmem:[#allocation9 + $0x1] sm:$0x3]
        %v6758 = vld [vmem:[#allocation9 + $0x5] sm:$0x3]
        %v6759 = vperm.slane %v6737, 1
        %v6760 = vmul.f32 %v6757, %v6759
        %v6761 = vmul.f32 %v6758, %v6759
        %v6762 = vadd.f32 %v6755, %v6760
        %v6763 = vadd.f32 %v6756, %v6761
        %v6764 = vld [vmem:[#allocation9 + $0x2] sm:$0x3]
        %v6765 = vld [vmem:[#allocation9 + $0x6] sm:$0x3]
        %v6766 = vperm.slane %v6737, 2
        %v6767 = vmul.f32 %v6764, %v6766
        %v6768 = vmul.f32 %v6765, %v6766
        %v6769 = vadd.f32 %v6762, %v6767
        %v6770 = vadd.f32 %v6763, %v6768
        %v6771 = vld [vmem:[%s6743] sm:$0x3]
        %v6772 = vld [vmem:[%s6743 + $0x4] sm:$0x3]
        %v6773 = vperm.slane %v6737, 3
        %v6774 = vmul.f32 %v6771, %v6773
        %v6775 = vmul.f32 %v6772, %v6773
        %v6776 = vadd.f32 %v6769, %v6774
        %v6777 = vadd.f32 %v6770, %v6775
        %v6778 = vld [vmem:[%s6743 + $0x1] sm:$0x3]
        %v6779 = vld [vmem:[%s6743 + $0x5] sm:$0x3]
        %v6780 = vperm.slane %v6737, 4
        %v6781 = vmul.f32 %v6778, %v6780
        %v6782 = vmul.f32 %v6779, %v6780
        %v6783 = vadd.f32 %v6776, %v6781
        %v6784 = vadd.f32 %v6777, %v6782
        %v6785 = vld [vmem:[%s6743 + $0x2] sm:$0x3]
        %v6786 = vld [vmem:[%s6743 + $0x6] sm:$0x3]
        %v6787 = vperm.slane %v6737, 5
        %v6788 = vmul.f32 %v6785, %v6787
        %v6789 = vmul.f32 %v6786, %v6787
        %v6790 = vadd.f32 %v6783, %v6788
        %v6791 = vadd.f32 %v6784, %v6789
        %s6792 = scalar_lea.vmem [#allocation9], 8
        %v6793 = vld [vmem:[%s6792] sm:$0x3]
        %v6794 = vld [vmem:[%s6792 + $0x4] sm:$0x3]
        %v6795 = vperm.slane %v6737, 6
        %v6796 = vmul.f32 %v6793, %v6795
        %v6797 = vmul.f32 %v6794, %v6795
        %v6798 = vadd.f32 %v6790, %v6796
        %v6799 = vadd.f32 %v6791, %v6797
        %v6800 = vld [vmem:[%s6792 + $0x1] sm:$0x3]
        %v6801 = vld [vmem:[%s6792 + $0x5] sm:$0x3]
        %v6802 = vperm.slane %v6737, 7
        %v6803 = vmul.f32 %v6800, %v6802
        %v6804 = vmul.f32 %v6801, %v6802
        %v6805 = vadd.f32 %v6798, %v6803
        %v6806 = vadd.f32 %v6799, %v6804
        %v6807 = vld [vmem:[%s6792 + $0x2] sm:$0x3]
        %v6808 = vld [vmem:[%s6792 + $0x6] sm:$0x3]
        %v6809 = vperm.slane %v6738, 0
        %v6810 = vmul.f32 %v6807, %v6809
        %v6811 = vmul.f32 %v6808, %v6809
        %v6812 = vadd.f32 %v6805, %v6810
        %v6813 = vadd.f32 %v6806, %v6811
        %6816 = vst [vmem:[#allocation1] ss:$4 sm:$0xff] %v6812
        %s6817 = scalar_lea.vmem [#allocation1], 1
        %6818 = vst [vmem:[%s6817] ss:$4 sm:$0xff] %v6813
        %v6819 = vld.sshfl [vmem:[#allocation1] sm:$0xff pattern:$0x73625140]
        %v6821 = vpack.c.bf16 %v6819, %v6819
        %v6822 = vld [vmem:[%s51] sm:$0xf]
        %v6823 = vld [vmem:[%s51 + $0x4] sm:$0xf]
        %v6824 = vld [vmem:[%s51 + $0x8] sm:$0xf]
        %v6825 = vld [vmem:[%s51 + $0xc] sm:$0xf]
        %v6826 = vld [vmem:[%s51 + $0x10] sm:$0xf]
        %v6827 = vld [vmem:[%s51 + $0x14] sm:$0xf]
        %v6828 = vld [vmem:[%s51 + $0x18] sm:$0xf]
        %v6829 = vld [vmem:[%s51 + $0x1c] sm:$0xf]
        %v6830 = vld [vmem:[%s51 + $0x20] sm:$0xf]
        %v6831 = vld [vmem:[%s51 + $0x24] sm:$0xf]
        %v6832 = vld [vmem:[%s51 + $0x28] sm:$0xf]
        %v6833 = vld [vmem:[%s51 + $0x2c] sm:$0xf]
        %v6834 = vld [vmem:[%s51 + $0x30] sm:$0xf]
        %v6835 = vld [vmem:[%s51 + $0x34] sm:$0xf]
        %v6836 = vld [vmem:[%s51 + $0x38] sm:$0xf]
        %v6837 = vld [vmem:[%s51 + $0x3c] sm:$0xf]
        %v6839 = vperm.slane %v6739, 0
        %v6857 = vunpack.c.l.b16 %v6822
        %v6858 = vunpack.c.l.b16 %v6823
        %v6859 = vunpack.c.l.b16 %v6824
        %v6860 = vunpack.c.l.b16 %v6825
        %v6861 = vunpack.c.l.b16 %v6826
        %v6862 = vunpack.c.l.b16 %v6827
        %v6863 = vunpack.c.l.b16 %v6828
        %v6864 = vunpack.c.l.b16 %v6829
        %v6865 = vunpack.c.l.b16 %v6830
        %v6866 = vunpack.c.l.b16 %v6831
        %v6867 = vunpack.c.l.b16 %v6832
        %v6868 = vunpack.c.l.b16 %v6833
        %v6869 = vunpack.c.l.b16 %v6834
        %v6870 = vunpack.c.l.b16 %v6835
        %v6871 = vunpack.c.l.b16 %v6836
        %v6872 = vunpack.c.l.b16 %v6837
        %v6873 = vpack.c.b16 %v6858, %v6857
        %v6874 = vpack.c.b16 %v6860, %v6859
        %v6875 = vpack.c.b16 %v6862, %v6861
        %v6876 = vpack.c.b16 %v6864, %v6863
        %v6877 = vpack.c.b16 %v6866, %v6865
        %v6878 = vpack.c.b16 %v6868, %v6867
        %v6879 = vpack.c.b16 %v6870, %v6869
        %v6880 = vpack.c.b16 %v6872, %v6871
        %6889 = vmatpush.bf16.msra.mxu0 %v6880
        %6890 = vmatpush.bf16.msra.mxu0 %v6879
        %6891 = vmatpush.bf16.msra.mxu0 %v6878
        %6892 = vmatpush.bf16.msra.mxu0 %v6877
        %6893 = vmatpush.bf16.msra.mxu0 %v6876
        %6894 = vmatpush.bf16.msra.mxu0 %v6875
        %6895 = vmatpush.bf16.msra.mxu0 %v6874
        %6896 = vmatpush.bf16.msra.mxu0 %v6873
        %6897 = vmatmul.bf16.gmra.mxu0 %v6821
        %v6898 = vpop.f32.mrf.mxu0
        %v6899 = vadd.f32 %v6839, %v6898
        %v6900 = vpop.f32.mrf.mxu0
        %6901 = vdwg.mxu0
        %v6902 = vmax.f32 %v6899, 0.0
        %v6904 = vrot.slane %v6902, 2
        %v6906 = vld [vmem:[%s55] sm:$0xff]
        %v6907 = vld [vmem:[%s55 + $0x8] sm:$0x1]
        %v6908 = vld [vmem:[%s59] sm:$0x1]
        %6909 = vst [vmem:[#allocation10] sm:$0xf] 0.0
        %s6910 = scalar_lea.vmem [#allocation10], 12
        %6911 = vst [vmem:[%s6910] sm:$0xf] 0.0
        %s6912 = scalar_lea.vmem [#allocation10], 4
        %6913 = vst [vmem:[%s6912] sm:$0x1] 0.0
        %6914 = vst [vmem:[%s6912 + $0x4] sm:$0x1] 0.0
        %6915 = vst [vmem:[%s6912 + $0x3] sm:$0x1] 0.0
        %6916 = vst [vmem:[%s6912 + $0x7] sm:$0x1] 0.0
        %6917 = vst [vmem:[%s6912 + $0x1] sm:$0x3] %v6902
        %6918 = vst [vmem:[%s6912 + $0x5] sm:$0x3] %v6904
        %v6919 = vld [vmem:[#allocation10] sm:$0x3]
        %v6920 = vld [vmem:[#allocation10 + $0x4] sm:$0x3]
        %v6921 = vperm.slane %v6906, 0
        %v6922 = vmul.f32 %v6919, %v6921
        %v6923 = vmul.f32 %v6920, %v6921
        %v6924 = vadd.f32 %v6922, 0.0
        %v6925 = vadd.f32 %v6923, 0.0
        %v6926 = vld [vmem:[#allocation10 + $0x1] sm:$0x3]
        %v6927 = vld [vmem:[#allocation10 + $0x5] sm:$0x3]
        %v6928 = vperm.slane %v6906, 1
        %v6929 = vmul.f32 %v6926, %v6928
        %v6930 = vmul.f32 %v6927, %v6928
        %v6931 = vadd.f32 %v6924, %v6929
        %v6932 = vadd.f32 %v6925, %v6930
        %v6933 = vld [vmem:[#allocation10 + $0x2] sm:$0x3]
        %v6934 = vld [vmem:[#allocation10 + $0x6] sm:$0x3]
        %v6935 = vperm.slane %v6906, 2
        %v6936 = vmul.f32 %v6933, %v6935
        %v6937 = vmul.f32 %v6934, %v6935
        %v6938 = vadd.f32 %v6931, %v6936
        %v6939 = vadd.f32 %v6932, %v6937
        %v6940 = vld [vmem:[%s6912] sm:$0x3]
        %v6941 = vld [vmem:[%s6912 + $0x4] sm:$0x3]
        %v6942 = vperm.slane %v6906, 3
        %v6943 = vmul.f32 %v6940, %v6942
        %v6944 = vmul.f32 %v6941, %v6942
        %v6945 = vadd.f32 %v6938, %v6943
        %v6946 = vadd.f32 %v6939, %v6944
        %v6947 = vld [vmem:[%s6912 + $0x1] sm:$0x3]
        %v6948 = vld [vmem:[%s6912 + $0x5] sm:$0x3]
        %v6949 = vperm.slane %v6906, 4
        %v6950 = vmul.f32 %v6947, %v6949
        %v6951 = vmul.f32 %v6948, %v6949
        %v6952 = vadd.f32 %v6945, %v6950
        %v6953 = vadd.f32 %v6946, %v6951
        %v6954 = vld [vmem:[%s6912 + $0x2] sm:$0x3]
        %v6955 = vld [vmem:[%s6912 + $0x6] sm:$0x3]
        %v6956 = vperm.slane %v6906, 5
        %v6957 = vmul.f32 %v6954, %v6956
        %v6958 = vmul.f32 %v6955, %v6956
        %v6959 = vadd.f32 %v6952, %v6957
        %v6960 = vadd.f32 %v6953, %v6958
        %s6961 = scalar_lea.vmem [#allocation10], 8
        %v6962 = vld [vmem:[%s6961] sm:$0x3]
        %v6963 = vld [vmem:[%s6961 + $0x4] sm:$0x3]
        %v6964 = vperm.slane %v6906, 6
        %v6965 = vmul.f32 %v6962, %v6964
        %v6966 = vmul.f32 %v6963, %v6964
        %v6967 = vadd.f32 %v6959, %v6965
        %v6968 = vadd.f32 %v6960, %v6966
        %v6969 = vld [vmem:[%s6961 + $0x1] sm:$0x3]
        %v6970 = vld [vmem:[%s6961 + $0x5] sm:$0x3]
        %v6971 = vperm.slane %v6906, 7
        %v6972 = vmul.f32 %v6969, %v6971
        %v6973 = vmul.f32 %v6970, %v6971
        %v6974 = vadd.f32 %v6967, %v6972
        %v6975 = vadd.f32 %v6968, %v6973
        %v6976 = vld [vmem:[%s6961 + $0x2] sm:$0x3]
        %v6977 = vld [vmem:[%s6961 + $0x6] sm:$0x3]
        %v6978 = vperm.slane %v6907, 0
        %v6979 = vmul.f32 %v6976, %v6978
        %v6980 = vmul.f32 %v6977, %v6978
        %v6981 = vadd.f32 %v6974, %v6979
        %v6982 = vadd.f32 %v6975, %v6980
        %6985 = vst [vmem:[#allocation1] ss:$4 sm:$0xff] %v6981
        %s6986 = scalar_lea.vmem [#allocation1], 1
        %6987 = vst [vmem:[%s6986] ss:$4 sm:$0xff] %v6982
        %v6988 = vld.sshfl [vmem:[#allocation1] sm:$0xff pattern:$0x73625140]
        %v6990 = vpack.c.bf16 %v6988, %v6988
        %v6991 = vld [vmem:[%s57] sm:$0xf]
        %v6992 = vld [vmem:[%s57 + $0x4] sm:$0xf]
        %v6993 = vld [vmem:[%s57 + $0x8] sm:$0xf]
        %v6994 = vld [vmem:[%s57 + $0xc] sm:$0xf]
        %v6995 = vld [vmem:[%s57 + $0x10] sm:$0xf]
        %v6996 = vld [vmem:[%s57 + $0x14] sm:$0xf]
        %v6997 = vld [vmem:[%s57 + $0x18] sm:$0xf]
        %v6998 = vld [vmem:[%s57 + $0x1c] sm:$0xf]
        %v6999 = vld [vmem:[%s57 + $0x20] sm:$0xf]
        %v7000 = vld [vmem:[%s57 + $0x24] sm:$0xf]
        %v7001 = vld [vmem:[%s57 + $0x28] sm:$0xf]
        %v7002 = vld [vmem:[%s57 + $0x2c] sm:$0xf]
        %v7003 = vld [vmem:[%s57 + $0x30] sm:$0xf]
        %v7004 = vld [vmem:[%s57 + $0x34] sm:$0xf]
        %v7005 = vld [vmem:[%s57 + $0x38] sm:$0xf]
        %v7006 = vld [vmem:[%s57 + $0x3c] sm:$0xf]
        %v7008 = vperm.slane %v6908, 0
        %v7026 = vunpack.c.l.b16 %v6991
        %v7027 = vunpack.c.l.b16 %v6992
        %v7028 = vunpack.c.l.b16 %v6993
        %v7029 = vunpack.c.l.b16 %v6994
        %v7030 = vunpack.c.l.b16 %v6995
        %v7031 = vunpack.c.l.b16 %v6996
        %v7032 = vunpack.c.l.b16 %v6997
        %v7033 = vunpack.c.l.b16 %v6998
        %v7034 = vunpack.c.l.b16 %v6999
        %v7035 = vunpack.c.l.b16 %v7000
        %v7036 = vunpack.c.l.b16 %v7001
        %v7037 = vunpack.c.l.b16 %v7002
        %v7038 = vunpack.c.l.b16 %v7003
        %v7039 = vunpack.c.l.b16 %v7004
        %v7040 = vunpack.c.l.b16 %v7005
        %v7041 = vunpack.c.l.b16 %v7006
        %v7042 = vpack.c.b16 %v7027, %v7026
        %v7043 = vpack.c.b16 %v7029, %v7028
        %v7044 = vpack.c.b16 %v7031, %v7030
        %v7045 = vpack.c.b16 %v7033, %v7032
        %v7046 = vpack.c.b16 %v7035, %v7034
        %v7047 = vpack.c.b16 %v7037, %v7036
        %v7048 = vpack.c.b16 %v7039, %v7038
        %v7049 = vpack.c.b16 %v7041, %v7040
        %7058 = vmatpush.bf16.msra.mxu0 %v7049
        %7059 = vmatpush.bf16.msra.mxu0 %v7048
        %7060 = vmatpush.bf16.msra.mxu0 %v7047
        %7061 = vmatpush.bf16.msra.mxu0 %v7046
        %7062 = vmatpush.bf16.msra.mxu0 %v7045
        %7063 = vmatpush.bf16.msra.mxu0 %v7044
        %7064 = vmatpush.bf16.msra.mxu0 %v7043
        %7065 = vmatpush.bf16.msra.mxu0 %v7042
        %7066 = vmatmul.bf16.gmra.mxu0 %v6990
        %v7067 = vpop.f32.mrf.mxu0
        %v7068 = vadd.f32 %v7008, %v7067
        %v7069 = vpop.f32.mrf.mxu0
        %7070 = vdwg.mxu0
        %v7071 = vmax.f32 %v7068, 0.0
        %v7073 = vrot.slane %v7071, 2
        %v7075 = vld [vmem:[%s61] sm:$0xff]
        %v7076 = vld [vmem:[%s61 + $0x8] sm:$0x1]
        %v7077 = vld [vmem:[#allocation15] sm:$0x1]
        %7078 = vst [vmem:[#allocation11] sm:$0xf] 0.0
        %s7079 = scalar_lea.vmem [#allocation11], 12
        %7080 = vst [vmem:[%s7079] sm:$0xf] 0.0
        %s7081 = scalar_lea.vmem [#allocation11], 4
        %7082 = vst [vmem:[%s7081] sm:$0x1] 0.0
        %7083 = vst [vmem:[%s7081 + $0x4] sm:$0x1] 0.0
        %7084 = vst [vmem:[%s7081 + $0x3] sm:$0x1] 0.0
        %7085 = vst [vmem:[%s7081 + $0x7] sm:$0x1] 0.0
        %7086 = vst [vmem:[%s7081 + $0x1] sm:$0x3] %v7071
        %7087 = vst [vmem:[%s7081 + $0x5] sm:$0x3] %v7073
        %v7088 = vld [vmem:[#allocation11] sm:$0x3]
        %v7089 = vld [vmem:[#allocation11 + $0x4] sm:$0x3]
        %v7090 = vperm.slane %v7075, 0
        %v7091 = vmul.f32 %v7088, %v7090
        %v7092 = vmul.f32 %v7089, %v7090
        %v7093 = vadd.f32 %v7091, 0.0
        %v7094 = vadd.f32 %v7092, 0.0
        %v7095 = vld [vmem:[#allocation11 + $0x1] sm:$0x3]
        %v7096 = vld [vmem:[#allocation11 + $0x5] sm:$0x3]
        %v7097 = vperm.slane %v7075, 1
        %v7098 = vmul.f32 %v7095, %v7097
        %v7099 = vmul.f32 %v7096, %v7097
        %v7100 = vadd.f32 %v7093, %v7098
        %v7101 = vadd.f32 %v7094, %v7099
        %v7102 = vld [vmem:[#allocation11 + $0x2] sm:$0x3]
        %v7103 = vld [vmem:[#allocation11 + $0x6] sm:$0x3]
        %v7104 = vperm.slane %v7075, 2
        %v7105 = vmul.f32 %v7102, %v7104
        %v7106 = vmul.f32 %v7103, %v7104
        %v7107 = vadd.f32 %v7100, %v7105
        %v7108 = vadd.f32 %v7101, %v7106
        %v7109 = vld [vmem:[%s7081] sm:$0x3]
        %v7110 = vld [vmem:[%s7081 + $0x4] sm:$0x3]
        %v7111 = vperm.slane %v7075, 3
        %v7112 = vmul.f32 %v7109, %v7111
        %v7113 = vmul.f32 %v7110, %v7111
        %v7114 = vadd.f32 %v7107, %v7112
        %v7115 = vadd.f32 %v7108, %v7113
        %v7116 = vld [vmem:[%s7081 + $0x1] sm:$0x3]
        %v7117 = vld [vmem:[%s7081 + $0x5] sm:$0x3]
        %v7118 = vperm.slane %v7075, 4
        %v7119 = vmul.f32 %v7116, %v7118
        %v7120 = vmul.f32 %v7117, %v7118
        %v7121 = vadd.f32 %v7114, %v7119
        %v7122 = vadd.f32 %v7115, %v7120
        %v7123 = vld [vmem:[%s7081 + $0x2] sm:$0x3]
        %v7124 = vld [vmem:[%s7081 + $0x6] sm:$0x3]
        %v7125 = vperm.slane %v7075, 5
        %v7126 = vmul.f32 %v7123, %v7125
        %v7127 = vmul.f32 %v7124, %v7125
        %v7128 = vadd.f32 %v7121, %v7126
        %v7129 = vadd.f32 %v7122, %v7127
        %s7130 = scalar_lea.vmem [#allocation11], 8
        %v7131 = vld [vmem:[%s7130] sm:$0x3]
        %v7132 = vld [vmem:[%s7130 + $0x4] sm:$0x3]
        %v7133 = vperm.slane %v7075, 6
        %v7134 = vmul.f32 %v7131, %v7133
        %v7135 = vmul.f32 %v7132, %v7133
        %v7136 = vadd.f32 %v7128, %v7134
        %v7137 = vadd.f32 %v7129, %v7135
        %v7138 = vld [vmem:[%s7130 + $0x1] sm:$0x3]
        %v7139 = vld [vmem:[%s7130 + $0x5] sm:$0x3]
        %v7140 = vperm.slane %v7075, 7
        %v7141 = vmul.f32 %v7138, %v7140
        %v7142 = vmul.f32 %v7139, %v7140
        %v7143 = vadd.f32 %v7136, %v7141
        %v7144 = vadd.f32 %v7137, %v7142
        %v7145 = vld [vmem:[%s7130 + $0x2] sm:$0x3]
        %v7146 = vld [vmem:[%s7130 + $0x6] sm:$0x3]
        %v7147 = vperm.slane %v7076, 0
        %v7148 = vmul.f32 %v7145, %v7147
        %v7149 = vmul.f32 %v7146, %v7147
        %v7150 = vadd.f32 %v7143, %v7148
        %v7151 = vadd.f32 %v7144, %v7149
        %7154 = vst [vmem:[#allocation1] ss:$4 sm:$0xff] %v7150
        %s7155 = scalar_lea.vmem [#allocation1], 1
        %7156 = vst [vmem:[%s7155] ss:$4 sm:$0xff] %v7151
        %v7157 = vld.sshfl [vmem:[#allocation1] sm:$0xff pattern:$0x73625140]
        %v7159 = vpack.c.bf16 %v7157, %v7157
        %v7160 = vld [vmem:[%s63] sm:$0xf]
        %v7161 = vld [vmem:[%s63 + $0x4] sm:$0xf]
        %v7162 = vld [vmem:[%s63 + $0x8] sm:$0xf]
        %v7163 = vld [vmem:[%s63 + $0xc] sm:$0xf]
        %v7164 = vld [vmem:[%s63 + $0x10] sm:$0xf]
        %v7165 = vld [vmem:[%s63 + $0x14] sm:$0xf]
        %v7166 = vld [vmem:[%s63 + $0x18] sm:$0xf]
        %v7167 = vld [vmem:[%s63 + $0x1c] sm:$0xf]
        %v7168 = vld [vmem:[%s63 + $0x20] sm:$0xf]
        %v7169 = vld [vmem:[%s63 + $0x24] sm:$0xf]
        %v7170 = vld [vmem:[%s63 + $0x28] sm:$0xf]
        %v7171 = vld [vmem:[%s63 + $0x2c] sm:$0xf]
        %v7172 = vld [vmem:[%s63 + $0x30] sm:$0xf]
        %v7173 = vld [vmem:[%s63 + $0x34] sm:$0xf]
        %v7174 = vld [vmem:[%s63 + $0x38] sm:$0xf]
        %v7175 = vld [vmem:[%s63 + $0x3c] sm:$0xf]
        %v7177 = vperm.slane %v7077, 0
        %v7195 = vunpack.c.l.b16 %v7160
        %v7196 = vunpack.c.l.b16 %v7161
        %v7197 = vunpack.c.l.b16 %v7162
        %v7198 = vunpack.c.l.b16 %v7163
        %v7199 = vunpack.c.l.b16 %v7164
        %v7200 = vunpack.c.l.b16 %v7165
        %v7201 = vunpack.c.l.b16 %v7166
        %v7202 = vunpack.c.l.b16 %v7167
        %v7203 = vunpack.c.l.b16 %v7168
        %v7204 = vunpack.c.l.b16 %v7169
        %v7205 = vunpack.c.l.b16 %v7170
        %v7206 = vunpack.c.l.b16 %v7171
        %v7207 = vunpack.c.l.b16 %v7172
        %v7208 = vunpack.c.l.b16 %v7173
        %v7209 = vunpack.c.l.b16 %v7174
        %v7210 = vunpack.c.l.b16 %v7175
        %v7211 = vpack.c.b16 %v7196, %v7195
        %v7212 = vpack.c.b16 %v7198, %v7197
        %v7213 = vpack.c.b16 %v7200, %v7199
        %v7214 = vpack.c.b16 %v7202, %v7201
        %v7215 = vpack.c.b16 %v7204, %v7203
        %v7216 = vpack.c.b16 %v7206, %v7205
        %v7217 = vpack.c.b16 %v7208, %v7207
        %v7218 = vpack.c.b16 %v7210, %v7209
        %7227 = vmatpush.bf16.msra.mxu0 %v7218
        %7228 = vmatpush.bf16.msra.mxu0 %v7217
        %7229 = vmatpush.bf16.msra.mxu0 %v7216
        %7230 = vmatpush.bf16.msra.mxu0 %v7215
        %7231 = vmatpush.bf16.msra.mxu0 %v7214
        %7232 = vmatpush.bf16.msra.mxu0 %v7213
        %7233 = vmatpush.bf16.msra.mxu0 %v7212
        %7234 = vmatpush.bf16.msra.mxu0 %v7211
        %7235 = vmatmul.bf16.gmra.mxu0 %v7159
        %v7236 = vpop.f32.mrf.mxu0
        %v7237 = vadd.f32 %v7177, %v7236
        %v7238 = vpop.f32.mrf.mxu0
        %7239 = vdwg.mxu0
        %v7240 = vmax.f32 %v7237, 0.0
        %v7242 = vrot.slane %v7240, 2
        %v7244 = vld [vmem:[%s67] sm:$0xff]
        %v7245 = vld [vmem:[%s67 + $0x8] sm:$0x1]
        %v7246 = vld [vmem:[#allocation18] sm:$0x1]
        %7247 = vst [vmem:[#allocation12] sm:$0xf] 0.0
        %s7248 = scalar_lea.vmem [#allocation12], 12
        %7249 = vst [vmem:[%s7248] sm:$0xf] 0.0
        %s7250 = scalar_lea.vmem [#allocation12], 4
        %7251 = vst [vmem:[%s7250] sm:$0x1] 0.0
        %7252 = vst [vmem:[%s7250 + $0x4] sm:$0x1] 0.0
        %7253 = vst [vmem:[%s7250 + $0x3] sm:$0x1] 0.0
        %7254 = vst [vmem:[%s7250 + $0x7] sm:$0x1] 0.0
        %7255 = vst [vmem:[%s7250 + $0x1] sm:$0x3] %v7240
        %7256 = vst [vmem:[%s7250 + $0x5] sm:$0x3] %v7242
        %v7257 = vld [vmem:[#allocation12] sm:$0x3]
        %v7258 = vld [vmem:[#allocation12 + $0x4] sm:$0x3]
        %v7259 = vperm.slane %v7244, 0
        %v7260 = vmul.f32 %v7257, %v7259
        %v7261 = vmul.f32 %v7258, %v7259
        %v7262 = vadd.f32 %v7260, 0.0
        %v7263 = vadd.f32 %v7261, 0.0
        %v7264 = vld [vmem:[#allocation12 + $0x1] sm:$0x3]
        %v7265 = vld [vmem:[#allocation12 + $0x5] sm:$0x3]
        %v7266 = vperm.slane %v7244, 1
        %v7267 = vmul.f32 %v7264, %v7266
        %v7268 = vmul.f32 %v7265, %v7266
        %v7269 = vadd.f32 %v7262, %v7267
        %v7270 = vadd.f32 %v7263, %v7268
        %v7271 = vld [vmem:[#allocation12 + $0x2] sm:$0x3]
        %v7272 = vld [vmem:[#allocation12 + $0x6] sm:$0x3]
        %v7273 = vperm.slane %v7244, 2
        %v7274 = vmul.f32 %v7271, %v7273
        %v7275 = vmul.f32 %v7272, %v7273
        %v7276 = vadd.f32 %v7269, %v7274
        %v7277 = vadd.f32 %v7270, %v7275
        %v7278 = vld [vmem:[%s7250] sm:$0x3]
        %v7279 = vld [vmem:[%s7250 + $0x4] sm:$0x3]
        %v7280 = vperm.slane %v7244, 3
        %v7281 = vmul.f32 %v7278, %v7280
        %v7282 = vmul.f32 %v7279, %v7280
        %v7283 = vadd.f32 %v7276, %v7281
        %v7284 = vadd.f32 %v7277, %v7282
        %v7285 = vld [vmem:[%s7250 + $0x1] sm:$0x3]
        %v7286 = vld [vmem:[%s7250 + $0x5] sm:$0x3]
        %v7287 = vperm.slane %v7244, 4
        %v7288 = vmul.f32 %v7285, %v7287
        %v7289 = vmul.f32 %v7286, %v7287
        %v7290 = vadd.f32 %v7283, %v7288
        %v7291 = vadd.f32 %v7284, %v7289
        %v7292 = vld [vmem:[%s7250 + $0x2] sm:$0x3]
        %v7293 = vld [vmem:[%s7250 + $0x6] sm:$0x3]
        %v7294 = vperm.slane %v7244, 5
        %v7295 = vmul.f32 %v7292, %v7294
        %v7296 = vmul.f32 %v7293, %v7294
        %v7297 = vadd.f32 %v7290, %v7295
        %v7298 = vadd.f32 %v7291, %v7296
        %s7299 = scalar_lea.vmem [#allocation12], 8
        %v7300 = vld [vmem:[%s7299] sm:$0x3]
        %v7301 = vld [vmem:[%s7299 + $0x4] sm:$0x3]
        %v7302 = vperm.slane %v7244, 6
        %v7303 = vmul.f32 %v7300, %v7302
        %v7304 = vmul.f32 %v7301, %v7302
        %v7305 = vadd.f32 %v7297, %v7303
        %v7306 = vadd.f32 %v7298, %v7304
        %v7307 = vld [vmem:[%s7299 + $0x1] sm:$0x3]
        %v7308 = vld [vmem:[%s7299 + $0x5] sm:$0x3]
        %v7309 = vperm.slane %v7244, 7
        %v7310 = vmul.f32 %v7307, %v7309
        %v7311 = vmul.f32 %v7308, %v7309
        %v7312 = vadd.f32 %v7305, %v7310
        %v7313 = vadd.f32 %v7306, %v7311
        %v7314 = vld [vmem:[%s7299 + $0x2] sm:$0x3]
        %v7315 = vld [vmem:[%s7299 + $0x6] sm:$0x3]
        %v7316 = vperm.slane %v7245, 0
        %v7317 = vmul.f32 %v7314, %v7316
        %v7318 = vmul.f32 %v7315, %v7316
        %v7319 = vadd.f32 %v7312, %v7317
        %v7320 = vadd.f32 %v7313, %v7318
        %7323 = vst [vmem:[#allocation1] ss:$4 sm:$0xff] %v7319
        %s7324 = scalar_lea.vmem [#allocation1], 1
        %7325 = vst [vmem:[%s7324] ss:$4 sm:$0xff] %v7320
        %v7326 = vld.sshfl [vmem:[#allocation1] sm:$0xff pattern:$0x73625140]
        %v7328 = vpack.c.bf16 %v7326, %v7326
        %v7329 = vld [vmem:[%s69] sm:$0xf]
        %v7330 = vld [vmem:[%s69 + $0x4] sm:$0xf]
        %v7331 = vld [vmem:[%s69 + $0x8] sm:$0xf]
        %v7332 = vld [vmem:[%s69 + $0xc] sm:$0xf]
        %v7333 = vld [vmem:[%s69 + $0x10] sm:$0xf]
        %v7334 = vld [vmem:[%s69 + $0x14] sm:$0xf]
        %v7335 = vld [vmem:[%s69 + $0x18] sm:$0xf]
        %v7336 = vld [vmem:[%s69 + $0x1c] sm:$0xf]
        %v7337 = vld [vmem:[%s69 + $0x20] sm:$0xf]
        %v7338 = vld [vmem:[%s69 + $0x24] sm:$0xf]
        %v7339 = vld [vmem:[%s69 + $0x28] sm:$0xf]
        %v7340 = vld [vmem:[%s69 + $0x2c] sm:$0xf]
        %v7341 = vld [vmem:[%s69 + $0x30] sm:$0xf]
        %v7342 = vld [vmem:[%s69 + $0x34] sm:$0xf]
        %v7343 = vld [vmem:[%s69 + $0x38] sm:$0xf]
        %v7344 = vld [vmem:[%s69 + $0x3c] sm:$0xf]
        %v7346 = vperm.slane %v7246, 0
        %v7364 = vunpack.c.l.b16 %v7329
        %v7365 = vunpack.c.l.b16 %v7330
        %v7366 = vunpack.c.l.b16 %v7331
        %v7367 = vunpack.c.l.b16 %v7332
        %v7368 = vunpack.c.l.b16 %v7333
        %v7369 = vunpack.c.l.b16 %v7334
        %v7370 = vunpack.c.l.b16 %v7335
        %v7371 = vunpack.c.l.b16 %v7336
        %v7372 = vunpack.c.l.b16 %v7337
        %v7373 = vunpack.c.l.b16 %v7338
        %v7374 = vunpack.c.l.b16 %v7339
        %v7375 = vunpack.c.l.b16 %v7340
        %v7376 = vunpack.c.l.b16 %v7341
        %v7377 = vunpack.c.l.b16 %v7342
        %v7378 = vunpack.c.l.b16 %v7343
        %v7379 = vunpack.c.l.b16 %v7344
        %v7380 = vpack.c.b16 %v7365, %v7364
        %v7381 = vpack.c.b16 %v7367, %v7366
        %v7382 = vpack.c.b16 %v7369, %v7368
        %v7383 = vpack.c.b16 %v7371, %v7370
        %v7384 = vpack.c.b16 %v7373, %v7372
        %v7385 = vpack.c.b16 %v7375, %v7374
        %v7386 = vpack.c.b16 %v7377, %v7376
        %v7387 = vpack.c.b16 %v7379, %v7378
        %7396 = vmatpush.bf16.msra.mxu0 %v7387
        %7397 = vmatpush.bf16.msra.mxu0 %v7386
        %7398 = vmatpush.bf16.msra.mxu0 %v7385
        %7399 = vmatpush.bf16.msra.mxu0 %v7384
        %7400 = vmatpush.bf16.msra.mxu0 %v7383
        %7401 = vmatpush.bf16.msra.mxu0 %v7382
        %7402 = vmatpush.bf16.msra.mxu0 %v7381
        %7403 = vmatpush.bf16.msra.mxu0 %v7380
        %7404 = vmatmul.bf16.gmra.mxu0 %v7328
        %v7405 = vpop.f32.mrf.mxu0
        %v7406 = vadd.f32 %v7346, %v7405
        %v7407 = vpop.f32.mrf.mxu0
        %7408 = vdwg.mxu0
        %v7409 = vmax.f32 %v7406, 0.0
        %v7411 = vrot.slane %v7409, 2
        %v7413 = vld [vmem:[%s73] sm:$0xff]
        %v7414 = vld [vmem:[%s73 + $0x8] sm:$0x1]
        %v7415 = vld [vmem:[%s77] sm:$0x3]
        %7416 = vst [vmem:[#allocation13] sm:$0xf] 0.0
        %s7417 = scalar_lea.vmem [#allocation13], 12
        %7418 = vst [vmem:[%s7417] sm:$0xf] 0.0
        %s7419 = scalar_lea.vmem [#allocation13], 4
        %7420 = vst [vmem:[%s7419] sm:$0x1] 0.0
        %7421 = vst [vmem:[%s7419 + $0x4] sm:$0x1] 0.0
        %7422 = vst [vmem:[%s7419 + $0x3] sm:$0x1] 0.0
        %7423 = vst [vmem:[%s7419 + $0x7] sm:$0x1] 0.0
        %7424 = vst [vmem:[%s7419 + $0x1] sm:$0x3] %v7409
        %7425 = vst [vmem:[%s7419 + $0x5] sm:$0x3] %v7411
        %v7426 = vld [vmem:[#allocation13] sm:$0x3]
        %v7427 = vperm.slane %v7413, 0
        %v7428 = vmul.f32 %v7426, %v7427
        %v7429 = vadd.f32 %v7428, 0.0
        %v7430 = vld [vmem:[#allocation13 + $0x1] sm:$0x3]
        %v7431 = vperm.slane %v7413, 1
        %v7432 = vmul.f32 %v7430, %v7431
        %v7433 = vadd.f32 %v7429, %v7432
        %v7434 = vld [vmem:[#allocation13 + $0x2] sm:$0x3]
        %v7435 = vperm.slane %v7413, 2
        %v7436 = vmul.f32 %v7434, %v7435
        %v7437 = vadd.f32 %v7433, %v7436
        %v7438 = vld [vmem:[%s7419] sm:$0x3]
        %v7439 = vperm.slane %v7413, 3
        %v7440 = vmul.f32 %v7438, %v7439
        %v7441 = vadd.f32 %v7437, %v7440
        %v7442 = vld [vmem:[%s7419 + $0x1] sm:$0x3]
        %v7443 = vperm.slane %v7413, 4
        %v7444 = vmul.f32 %v7442, %v7443
        %v7445 = vadd.f32 %v7441, %v7444
        %v7446 = vld [vmem:[%s7419 + $0x2] sm:$0x3]
        %v7447 = vperm.slane %v7413, 5
        %v7448 = vmul.f32 %v7446, %v7447
        %v7449 = vadd.f32 %v7445, %v7448
        %s7450 = scalar_lea.vmem [#allocation13], 8
        %v7451 = vld [vmem:[%s7450] sm:$0x3]
        %v7452 = vperm.slane %v7413, 6
        %v7453 = vmul.f32 %v7451, %v7452
        %v7454 = vadd.f32 %v7449, %v7453
        %v7455 = vld [vmem:[%s7450 + $0x1] sm:$0x3]
        %v7456 = vperm.slane %v7413, 7
        %v7457 = vmul.f32 %v7455, %v7456
        %v7458 = vadd.f32 %v7454, %v7457
        %v7459 = vld [vmem:[%s7450 + $0x2] sm:$0x3]
        %v7460 = vperm.slane %v7414, 0
        %v7461 = vmul.f32 %v7459, %v7460
        %v7462 = vadd.f32 %v7458, %v7461
        %v7463 = vpack.c.bf16 %v7462, %v7462
        %v7464 = vld [vmem:[%s75] sm:$0xff]
        %v7465 = vld [vmem:[%s75 + $0x8] sm:$0xff]
        %v7466 = vld [vmem:[%s75 + $0x10] sm:$0xff]
        %v7467 = vld [vmem:[%s75 + $0x18] sm:$0xff]
        %v7468 = vld [vmem:[%s75 + $0x20] sm:$0xff]
        %v7469 = vld [vmem:[%s75 + $0x28] sm:$0xff]
        %v7470 = vld [vmem:[%s75 + $0x30] sm:$0xff]
        %v7471 = vld [vmem:[%s75 + $0x38] sm:$0xff]
        %v7472 = vld [vmem:[%s75 + $0x40] sm:$0xff]
        %v7473 = vld [vmem:[%s75 + $0x48] sm:$0xff]
        %v7474 = vld [vmem:[%s75 + $0x50] sm:$0xff]
        %v7475 = vld [vmem:[%s75 + $0x58] sm:$0xff]
        %v7476 = vld [vmem:[%s75 + $0x60] sm:$0xff]
        %v7477 = vld [vmem:[%s75 + $0x68] sm:$0xff]
        %v7478 = vld [vmem:[%s75 + $0x70] sm:$0xff]
        %v7479 = vld [vmem:[%s75 + $0x78] sm:$0xff]
        %v7496 = vunpack.c.l.b16 %v7464
        %v7497 = vunpack.c.h.b16 %v7464
        %v7498 = vunpack.c.l.b16 %v7465
        %v7499 = vunpack.c.h.b16 %v7465
        %v7500 = vunpack.c.l.b16 %v7466
        %v7501 = vunpack.c.h.b16 %v7466
        %v7502 = vunpack.c.l.b16 %v7467
        %v7503 = vunpack.c.h.b16 %v7467
        %v7504 = vunpack.c.l.b16 %v7468
        %v7505 = vunpack.c.h.b16 %v7468
        %v7506 = vunpack.c.l.b16 %v7469
        %v7507 = vunpack.c.h.b16 %v7469
        %v7508 = vunpack.c.l.b16 %v7470
        %v7509 = vunpack.c.h.b16 %v7470
        %v7510 = vunpack.c.l.b16 %v7471
        %v7511 = vunpack.c.h.b16 %v7471
        %v7512 = vunpack.c.l.b16 %v7472
        %v7513 = vunpack.c.h.b16 %v7472
        %v7514 = vunpack.c.l.b16 %v7473
        %v7515 = vunpack.c.h.b16 %v7473
        %v7516 = vunpack.c.l.b16 %v7474
        %v7517 = vunpack.c.h.b16 %v7474
        %v7518 = vunpack.c.l.b16 %v7475
        %v7519 = vunpack.c.h.b16 %v7475
        %v7520 = vunpack.c.l.b16 %v7476
        %v7521 = vunpack.c.h.b16 %v7476
        %v7522 = vunpack.c.l.b16 %v7477
        %v7523 = vunpack.c.h.b16 %v7477
        %v7524 = vunpack.c.l.b16 %v7478
        %v7525 = vunpack.c.h.b16 %v7478
        %v7526 = vunpack.c.l.b16 %v7479
        %v7527 = vunpack.c.h.b16 %v7479
        %v7528 = vpack.c.b16 %v7498, %v7496
        %v7529 = vpack.c.b16 %v7499, %v7497
        %v7530 = vpack.c.b16 %v7502, %v7500
        %v7531 = vpack.c.b16 %v7503, %v7501
        %v7532 = vpack.c.b16 %v7506, %v7504
        %v7533 = vpack.c.b16 %v7507, %v7505
        %v7534 = vpack.c.b16 %v7510, %v7508
        %v7535 = vpack.c.b16 %v7511, %v7509
        %v7536 = vpack.c.b16 %v7514, %v7512
        %v7537 = vpack.c.b16 %v7515, %v7513
        %v7538 = vpack.c.b16 %v7518, %v7516
        %v7539 = vpack.c.b16 %v7519, %v7517
        %v7540 = vpack.c.b16 %v7522, %v7520
        %v7541 = vpack.c.b16 %v7523, %v7521
        %v7542 = vpack.c.b16 %v7526, %v7524
        %v7543 = vpack.c.b16 %v7527, %v7525
        %v7561 = vperm.slane %v7415, 0
        %v7562 = vperm.slane %v7415, 1
        %7565 = vmatpush.bf16.msra.mxu0 %v7542
        %7566 = vmatpush.bf16.msra.mxu0 %v7540
        %7567 = vmatpush.bf16.msra.mxu0 %v7538
        %7568 = vmatpush.bf16.msra.mxu0 %v7536
        %7569 = vmatpush.bf16.msra.mxu0 %v7534
        %7570 = vmatpush.bf16.msra.mxu0 %v7532
        %7571 = vmatpush.bf16.msra.mxu0 %v7530
        %7572 = vmatpush.bf16.msra.mxu0 %v7528
        %7573 = vmatmul.bf16.gmra.mxu0 %v7463
        %v7574 = vpop.f32.mrf.mxu0
        %v7575 = vadd.f32 %v7561, %v7574
        %v7576 = vpop.f32.mrf.mxu0
        %7577 = vdwg.mxu0
        %7578 = vmatpush.bf16.msra.mxu0 %v7543
        %7579 = vmatpush.bf16.msra.mxu0 %v7541
        %7580 = vmatpush.bf16.msra.mxu0 %v7539
        %7581 = vmatpush.bf16.msra.mxu0 %v7537
        %7582 = vmatpush.bf16.msra.mxu0 %v7535
        %7583 = vmatpush.bf16.msra.mxu0 %v7533
        %7584 = vmatpush.bf16.msra.mxu0 %v7531
        %7585 = vmatpush.bf16.msra.mxu0 %v7529
        %7586 = vmatmul.bf16.gmra.mxu0 %v7463
        %v7587 = vpop.f32.mrf.mxu0
        %v7588 = vadd.f32 %v7562, %v7587
        %v7589 = vpop.f32.mrf.mxu0
        %7590 = vdwg.mxu0
        %v7591 = vmax.f32 %v7575, 0.0
        %v7592 = vmax.f32 %v7588, 0.0
        %v7593 = vld [vmem:[%s79] sm:$0xff]
        %v7594 = vld [vmem:[%s79 + $0x8] sm:$0xff]
        %v7595 = vld [vmem:[%s79 + $0x10] sm:$0x1]
        %v7596 = vld [vmem:[%s79 + $0x18] sm:$0x1]
        %v7597 = vld [vmem:[%s83] sm:$0x3]
        %7598 = vst [vmem:[#allocation14] sm:$0x77] 0.0
        %s7599 = scalar_lea.vmem [#allocation14], 16
        %7600 = vst [vmem:[%s7599] sm:$0x77] 0.0
        %s7601 = scalar_lea.vmem [#allocation14], 8
        %v7602 = vlaneseq
        %vm7603 = vcmp.ge.s32.totalorder %v7602, 0
        %vm7604 = vcmp.lt.s32.totalorder %v7602, 256
        %vm7605 = vmand %vm7603, %vm7604
        %7606 = vst.msk [vmem:[%s7601] ss:$4 sm:$0x3] %vm7605, 0.0
        %s7607 = scalar_lea.vmem %s7601, 2 [#allocation14]
        %7608 = vst.msk [vmem:[%s7607] ss:$4 sm:$0x3] %vm7605, 0.0
        %v7611 = vrot.slane %v7592, 7
        %vm7612 = vcmask 1040384
        %v7613 = vsel %vm7612, %v7591, %v7611
        %s7615 = scalar_lea.vmem %s7601, 1 [#allocation14]
        %7616 = vst.msk [vmem:[%s7615] ss:$4 sm:$0x3] %vm7605, %v7613
        %v7617 = vld [vmem:[#allocation14] ss:$4 sm:$0x3]
        %v7620 = vrot.slane %v7594, 7
        %v7621 = vsel %vm7612, %v7593, %v7620
        %v7623 = vmul.f32 %v7617, %v7621
        %v7624 = vadd.f32 %v7623, 0.0
        %s7625 = scalar_lea.vmem [#allocation14], 1
        %v7626 = vld [vmem:[%s7625] ss:$4 sm:$0x3]
        %7627 = vst [vmem:[#allocation1] sm:$0xff] %v7593
        %7628 = vst [vmem:[#allocation1 + $0x9] sm:$0xff] %v7594
        %s7629 = scalar_lea.vmem [#allocation1], 1
        %v7630 = vld [vmem:[%s7629] ss:$9 sm:$0xff]
        %v7632 = vmul.f32 %v7626, %v7630
        %v7633 = vadd.f32 %v7624, %v7632
        %s7634 = scalar_lea.vmem [#allocation14], 2
        %v7635 = vld [vmem:[%s7634] ss:$4 sm:$0x3]
        %7636 = vst [vmem:[#allocation1] sm:$0xff] %v7593
        %7637 = vst [vmem:[#allocation1 + $0x9] sm:$0xff] %v7594
        %s7638 = scalar_lea.vmem [#allocation1], 2
        %v7639 = vld [vmem:[%s7638] ss:$9 sm:$0xff]
        %v7641 = vmul.f32 %v7635, %v7639
        %v7642 = vadd.f32 %v7633, %v7641
        %v7643 = vld [vmem:[%s7601] ss:$4 sm:$0x3]
        %7644 = vst [vmem:[#allocation1] sm:$0xff] %v7593
        %7645 = vst [vmem:[#allocation1 + $0x9] sm:$0xff] %v7594
        %s7646 = scalar_lea.vmem [#allocation1], 3
        %v7647 = vld [vmem:[%s7646] ss:$9 sm:$0xff]
        %v7649 = vmul.f32 %v7643, %v7647
        %v7650 = vadd.f32 %v7642, %v7649
        %v7651 = vld [vmem:[%s7615] ss:$4 sm:$0x3]
        %7652 = vst [vmem:[#allocation1] sm:$0xff] %v7593
        %7653 = vst [vmem:[#allocation1 + $0x9] sm:$0xff] %v7594
        %s7654 = scalar_lea.vmem [#allocation1], 4
        %v7655 = vld [vmem:[%s7654] ss:$9 sm:$0xff]
        %v7657 = vmul.f32 %v7651, %v7655
        %v7658 = vadd.f32 %v7650, %v7657
        %v7659 = vld [vmem:[%s7607] ss:$4 sm:$0x3]
        %7660 = vst [vmem:[#allocation1] sm:$0xff] %v7593
        %7661 = vst [vmem:[#allocation1 + $0x9] sm:$0xff] %v7594
        %s7662 = scalar_lea.vmem [#allocation1], 5
        %v7663 = vld [vmem:[%s7662] ss:$9 sm:$0xff]
        %v7665 = vmul.f32 %v7659, %v7663
        %v7666 = vadd.f32 %v7658, %v7665
        %v7667 = vld [vmem:[%s7599] ss:$4 sm:$0x3]
        %7668 = vst [vmem:[#allocation1] sm:$0xff] %v7593
        %7669 = vst [vmem:[#allocation1 + $0x9] sm:$0xff] %v7594
        %s7670 = scalar_lea.vmem [#allocation1], 6
        %v7671 = vld [vmem:[%s7670] ss:$9 sm:$0xff]
        %v7673 = vmul.f32 %v7667, %v7671
        %v7674 = vadd.f32 %v7666, %v7673
        %s7675 = scalar_lea.vmem %s7599, 1 [#allocation14]
        %v7676 = vld [vmem:[%s7675] ss:$4 sm:$0x3]
        %7677 = vst [vmem:[#allocation1] sm:$0xff] %v7593
        %7678 = vst [vmem:[#allocation1 + $0x9] sm:$0xff] %v7594
        %s7679 = scalar_lea.vmem [#allocation1], 7
        %v7680 = vld [vmem:[%s7679] ss:$9 sm:$0xff]
        %v7682 = vmul.f32 %v7676, %v7680
        %v7683 = vadd.f32 %v7674, %v7682
        %s7684 = scalar_lea.vmem %s7599, 2 [#allocation14]
        %v7685 = vld [vmem:[%s7684] ss:$4 sm:$0x3]
        %v7688 = vrot.slane %v7596, 7
        %v7689 = vsel %vm7612, %v7595, %v7688
        %v7691 = vmul.f32 %v7685, %v7689
        %v7692 = vadd.f32 %v7683, %v7691
        %v7694 = vperm.slane %v7692, 0
        %v7695 = vperm.slane %v7692, 1
        %v7698 = vpack.c.bf16 %v7694, %v7694
        %v7699 = vpack.c.bf16 %v7695, %v7695
        %v7700 = vld [vmem:[%s81] sm:$0xff]
        %v7701 = vld [vmem:[%s81 + $0x8] sm:$0xff]
        %v7702 = vld [vmem:[%s81 + $0x10] sm:$0xff]
        %v7703 = vld [vmem:[%s81 + $0x18] sm:$0xff]
        %v7704 = vld [vmem:[%s81 + $0x20] sm:$0xff]
        %v7705 = vld [vmem:[%s81 + $0x28] sm:$0xff]
        %v7706 = vld [vmem:[%s81 + $0x30] sm:$0xff]
        %v7707 = vld [vmem:[%s81 + $0x38] sm:$0xff]
        %v7708 = vld [vmem:[%s81 + $0x40] sm:$0xff]
        %v7709 = vld [vmem:[%s81 + $0x48] sm:$0xff]
        %v7710 = vld [vmem:[%s81 + $0x50] sm:$0xff]
        %v7711 = vld [vmem:[%s81 + $0x58] sm:$0xff]
        %v7712 = vld [vmem:[%s81 + $0x60] sm:$0xff]
        %v7713 = vld [vmem:[%s81 + $0x68] sm:$0xff]
        %v7714 = vld [vmem:[%s81 + $0x70] sm:$0xff]
        %v7715 = vld [vmem:[%s81 + $0x78] sm:$0xff]
        %v7716 = vld [vmem:[%s81 + $0x80] sm:$0xff]
        %v7717 = vld [vmem:[%s81 + $0x88] sm:$0xff]
        %v7718 = vld [vmem:[%s81 + $0x90] sm:$0xff]
        %v7719 = vld [vmem:[%s81 + $0x98] sm:$0xff]
        %v7720 = vld [vmem:[%s81 + $0xa0] sm:$0xff]
        %v7721 = vld [vmem:[%s81 + $0xa8] sm:$0xff]
        %v7722 = vld [vmem:[%s81 + $0xb0] sm:$0xff]
        %v7723 = vld [vmem:[%s81 + $0xb8] sm:$0xff]
        %v7724 = vld [vmem:[%s81 + $0xc0] sm:$0xff]
        %v7725 = vld [vmem:[%s81 + $0xc8] sm:$0xff]
        %v7726 = vld [vmem:[%s81 + $0xd0] sm:$0xff]
        %v7727 = vld [vmem:[%s81 + $0xd8] sm:$0xff]
        %v7728 = vld [vmem:[%s81 + $0xe0] sm:$0xff]
        %v7729 = vld [vmem:[%s81 + $0xe8] sm:$0xff]
        %v7730 = vld [vmem:[%s81 + $0xf0] sm:$0xff]
        %v7731 = vld [vmem:[%s81 + $0xf8] sm:$0xff]
        %v7764 = vunpack.c.l.b16 %v7700
        %v7765 = vunpack.c.h.b16 %v7700
        %v7766 = vunpack.c.l.b16 %v7701
        %v7767 = vunpack.c.h.b16 %v7701
        %v7768 = vunpack.c.l.b16 %v7702
        %v7769 = vunpack.c.h.b16 %v7702
        %v7770 = vunpack.c.l.b16 %v7703
        %v7771 = vunpack.c.h.b16 %v7703
        %v7772 = vunpack.c.l.b16 %v7704
        %v7773 = vunpack.c.h.b16 %v7704
        %v7774 = vunpack.c.l.b16 %v7705
        %v7775 = vunpack.c.h.b16 %v7705
        %v7776 = vunpack.c.l.b16 %v7706
        %v7777 = vunpack.c.h.b16 %v7706
        %v7778 = vunpack.c.l.b16 %v7707
        %v7779 = vunpack.c.h.b16 %v7707
        %v7780 = vunpack.c.l.b16 %v7708
        %v7781 = vunpack.c.h.b16 %v7708
        %v7782 = vunpack.c.l.b16 %v7709
        %v7783 = vunpack.c.h.b16 %v7709
        %v7784 = vunpack.c.l.b16 %v7710
        %v7785 = vunpack.c.h.b16 %v7710
        %v7786 = vunpack.c.l.b16 %v7711
        %v7787 = vunpack.c.h.b16 %v7711
        %v7788 = vunpack.c.l.b16 %v7712
        %v7789 = vunpack.c.h.b16 %v7712
        %v7790 = vunpack.c.l.b16 %v7713
        %v7791 = vunpack.c.h.b16 %v7713
        %v7792 = vunpack.c.l.b16 %v7714
        %v7793 = vunpack.c.h.b16 %v7714
        %v7794 = vunpack.c.l.b16 %v7715
        %v7795 = vunpack.c.h.b16 %v7715
        %v7796 = vunpack.c.l.b16 %v7716
        %v7797 = vunpack.c.h.b16 %v7716
        %v7798 = vunpack.c.l.b16 %v7717
        %v7799 = vunpack.c.h.b16 %v7717
        %v7800 = vunpack.c.l.b16 %v7718
        %v7801 = vunpack.c.h.b16 %v7718
        %v7802 = vunpack.c.l.b16 %v7719
        %v7803 = vunpack.c.h.b16 %v7719
        %v7804 = vunpack.c.l.b16 %v7720
        %v7805 = vunpack.c.h.b16 %v7720
        %v7806 = vunpack.c.l.b16 %v7721
        %v7807 = vunpack.c.h.b16 %v7721
        %v7808 = vunpack.c.l.b16 %v7722
        %v7809 = vunpack.c.h.b16 %v7722
        %v7810 = vunpack.c.l.b16 %v7723
        %v7811 = vunpack.c.h.b16 %v7723
        %v7812 = vunpack.c.l.b16 %v7724
        %v7813 = vunpack.c.h.b16 %v7724
        %v7814 = vunpack.c.l.b16 %v7725
        %v7815 = vunpack.c.h.b16 %v7725
        %v7816 = vunpack.c.l.b16 %v7726
        %v7817 = vunpack.c.h.b16 %v7726
        %v7818 = vunpack.c.l.b16 %v7727
        %v7819 = vunpack.c.h.b16 %v7727
        %v7820 = vunpack.c.l.b16 %v7728
        %v7821 = vunpack.c.h.b16 %v7728
        %v7822 = vunpack.c.l.b16 %v7729
        %v7823 = vunpack.c.h.b16 %v7729
        %v7824 = vunpack.c.l.b16 %v7730
        %v7825 = vunpack.c.h.b16 %v7730
        %v7826 = vunpack.c.l.b16 %v7731
        %v7827 = vunpack.c.h.b16 %v7731
        %v7828 = vpack.c.b16 %v7766, %v7764
        %v7829 = vpack.c.b16 %v7767, %v7765
        %v7830 = vpack.c.b16 %v7770, %v7768
        %v7831 = vpack.c.b16 %v7771, %v7769
        %v7832 = vpack.c.b16 %v7774, %v7772
        %v7833 = vpack.c.b16 %v7775, %v7773
        %v7834 = vpack.c.b16 %v7778, %v7776
        %v7835 = vpack.c.b16 %v7779, %v7777
        %v7836 = vpack.c.b16 %v7782, %v7780
        %v7837 = vpack.c.b16 %v7783, %v7781
        %v7838 = vpack.c.b16 %v7786, %v7784
        %v7839 = vpack.c.b16 %v7787, %v7785
        %v7840 = vpack.c.b16 %v7790, %v7788
        %v7841 = vpack.c.b16 %v7791, %v7789
        %v7842 = vpack.c.b16 %v7794, %v7792
        %v7843 = vpack.c.b16 %v7795, %v7793
        %v7844 = vpack.c.b16 %v7798, %v7796
        %v7845 = vpack.c.b16 %v7799, %v7797
        %v7846 = vpack.c.b16 %v7802, %v7800
        %v7847 = vpack.c.b16 %v7803, %v7801
        %v7848 = vpack.c.b16 %v7806, %v7804
        %v7849 = vpack.c.b16 %v7807, %v7805
        %v7850 = vpack.c.b16 %v7810, %v7808
        %v7851 = vpack.c.b16 %v7811, %v7809
        %v7852 = vpack.c.b16 %v7814, %v7812
        %v7853 = vpack.c.b16 %v7815, %v7813
        %v7854 = vpack.c.b16 %v7818, %v7816
        %v7855 = vpack.c.b16 %v7819, %v7817
        %v7856 = vpack.c.b16 %v7822, %v7820
        %v7857 = vpack.c.b16 %v7823, %v7821
        %v7858 = vpack.c.b16 %v7826, %v7824
        %v7859 = vpack.c.b16 %v7827, %v7825
        %v7893 = vperm.slane %v7597, 0
        %v7894 = vperm.slane %v7597, 1
        %7897 = vmatpush.bf16.msra.mxu0 %v7842
        %7898 = vmatpush.bf16.msra.mxu0 %v7840
        %7899 = vmatpush.bf16.msra.mxu0 %v7838
        %7900 = vmatpush.bf16.msra.mxu0 %v7836
        %7901 = vmatpush.bf16.msra.mxu0 %v7834
        %7902 = vmatpush.bf16.msra.mxu0 %v7832
        %7903 = vmatpush.bf16.msra.mxu0 %v7830
        %7904 = vmatpush.bf16.msra.mxu0 %v7828
        %7905 = vmatmul.bf16.gmra.mxu0 %v7698
        %v7906 = vpop.f32.mrf.mxu0
        %v7907 = vadd.f32 %v7893, %v7906
        %v7908 = vpop.f32.mrf.mxu0
        %7909 = vdwg.mxu0
        %7910 = vmatpush.bf16.msra.mxu0 %v7858
        %7911 = vmatpush.bf16.msra.mxu0 %v7856
        %7912 = vmatpush.bf16.msra.mxu0 %v7854
        %7913 = vmatpush.bf16.msra.mxu0 %v7852
        %7914 = vmatpush.bf16.msra.mxu0 %v7850
        %7915 = vmatpush.bf16.msra.mxu0 %v7848
        %7916 = vmatpush.bf16.msra.mxu0 %v7846
        %7917 = vmatpush.bf16.msra.mxu0 %v7844
        %7918 = vmatmul.bf16.gmra.mxu0 %v7699
        %v7919 = vpop.f32.mrf.mxu0
        %v7920 = vadd.f32 %v7907, %v7919
        %v7921 = vpop.f32.mrf.mxu0
        %7922 = vdwg.mxu0
        %7923 = vmatpush.bf16.msra.mxu0 %v7843
        %7924 = vmatpush.bf16.msra.mxu0 %v7841
        %7925 = vmatpush.bf16.msra.mxu0 %v7839
        %7926 = vmatpush.bf16.msra.mxu0 %v7837
        %7927 = vmatpush.bf16.msra.mxu0 %v7835
        %7928 = vmatpush.bf16.msra.mxu0 %v7833
        %7929 = vmatpush.bf16.msra.mxu0 %v7831
        %7930 = vmatpush.bf16.msra.mxu0 %v7829
        %7931 = vmatmul.bf16.gmra.mxu0 %v7698
        %v7932 = vpop.f32.mrf.mxu0
        %v7933 = vadd.f32 %v7894, %v7932
        %v7934 = vpop.f32.mrf.mxu0
        %7935 = vdwg.mxu0
        %7936 = vmatpush.bf16.msra.mxu0 %v7859
        %7937 = vmatpush.bf16.msra.mxu0 %v7857
        %7938 = vmatpush.bf16.msra.mxu0 %v7855
        %7939 = vmatpush.bf16.msra.mxu0 %v7853
        %7940 = vmatpush.bf16.msra.mxu0 %v7851
        %7941 = vmatpush.bf16.msra.mxu0 %v7849
        %7942 = vmatpush.bf16.msra.mxu0 %v7847
        %7943 = vmatpush.bf16.msra.mxu0 %v7845
        %7944 = vmatmul.bf16.gmra.mxu0 %v7699
        %v7945 = vpop.f32.mrf.mxu0
        %v7946 = vadd.f32 %v7933, %v7945
        %v7947 = vpop.f32.mrf.mxu0
        %7948 = vdwg.mxu0
        %v7949 = vmax.f32 %v7920, 0.0
        %v7950 = vmax.f32 %v7946, 0.0
        %v7951 = vadd.f32 %v7949, 0.0
        %v7952 = vadd.f32 %v7950, 0.0
        %v7953 = vpack.c.bf16 %v7951, %v7951
        %v7954 = vpack.c.bf16 %v7952, %v7952
        %v7955 = vld [vmem:[%s85] sm:$0xf]
        %v7956 = vld [vmem:[%s85 + $0x4] sm:$0xf]
        %v7957 = vld [vmem:[%s85 + $0x8] sm:$0xf]
        %v7958 = vld [vmem:[%s85 + $0xc] sm:$0xf]
        %v7959 = vld [vmem:[%s85 + $0x10] sm:$0xf]
        %v7960 = vld [vmem:[%s85 + $0x14] sm:$0xf]
        %v7961 = vld [vmem:[%s85 + $0x18] sm:$0xf]
        %v7962 = vld [vmem:[%s85 + $0x1c] sm:$0xf]
        %v7963 = vld [vmem:[%s85 + $0x20] sm:$0xf]
        %v7964 = vld [vmem:[%s85 + $0x24] sm:$0xf]
        %v7965 = vld [vmem:[%s85 + $0x28] sm:$0xf]
        %v7966 = vld [vmem:[%s85 + $0x2c] sm:$0xf]
        %v7967 = vld [vmem:[%s85 + $0x30] sm:$0xf]
        %v7968 = vld [vmem:[%s85 + $0x34] sm:$0xf]
        %v7969 = vld [vmem:[%s85 + $0x38] sm:$0xf]
        %v7970 = vld [vmem:[%s85 + $0x3c] sm:$0xf]
        %v7971 = vld [vmem:[%s85 + $0x40] sm:$0xf]
        %v7972 = vld [vmem:[%s85 + $0x44] sm:$0xf]
        %v7973 = vld [vmem:[%s85 + $0x48] sm:$0xf]
        %v7974 = vld [vmem:[%s85 + $0x4c] sm:$0xf]
        %v7975 = vld [vmem:[%s85 + $0x50] sm:$0xf]
        %v7976 = vld [vmem:[%s85 + $0x54] sm:$0xf]
        %v7977 = vld [vmem:[%s85 + $0x58] sm:$0xf]
        %v7978 = vld [vmem:[%s85 + $0x5c] sm:$0xf]
        %v7979 = vld [vmem:[%s85 + $0x60] sm:$0xf]
        %v7980 = vld [vmem:[%s85 + $0x64] sm:$0xf]
        %v7981 = vld [vmem:[%s85 + $0x68] sm:$0xf]
        %v7982 = vld [vmem:[%s85 + $0x6c] sm:$0xf]
        %v7983 = vld [vmem:[%s85 + $0x70] sm:$0xf]
        %v7984 = vld [vmem:[%s85 + $0x74] sm:$0xf]
        %v7985 = vld [vmem:[%s85 + $0x78] sm:$0xf]
        %v7986 = vld [vmem:[%s85 + $0x7c] sm:$0xf]
        %v7987 = vld [vmem:[#allocation20] sm:$0x1]
        %v8020 = vunpack.c.l.b16 %v7955
        %v8021 = vunpack.c.l.b16 %v7956
        %v8022 = vunpack.c.l.b16 %v7957
        %v8023 = vunpack.c.l.b16 %v7958
        %v8024 = vunpack.c.l.b16 %v7959
        %v8025 = vunpack.c.l.b16 %v7960
        %v8026 = vunpack.c.l.b16 %v7961
        %v8027 = vunpack.c.l.b16 %v7962
        %v8028 = vunpack.c.l.b16 %v7963
        %v8029 = vunpack.c.l.b16 %v7964
        %v8030 = vunpack.c.l.b16 %v7965
        %v8031 = vunpack.c.l.b16 %v7966
        %v8032 = vunpack.c.l.b16 %v7967
        %v8033 = vunpack.c.l.b16 %v7968
        %v8034 = vunpack.c.l.b16 %v7969
        %v8035 = vunpack.c.l.b16 %v7970
        %v8036 = vunpack.c.l.b16 %v7971
        %v8037 = vunpack.c.l.b16 %v7972
        %v8038 = vunpack.c.l.b16 %v7973
        %v8039 = vunpack.c.l.b16 %v7974
        %v8040 = vunpack.c.l.b16 %v7975
        %v8041 = vunpack.c.l.b16 %v7976
        %v8042 = vunpack.c.l.b16 %v7977
        %v8043 = vunpack.c.l.b16 %v7978
        %v8044 = vunpack.c.l.b16 %v7979
        %v8045 = vunpack.c.l.b16 %v7980
        %v8046 = vunpack.c.l.b16 %v7981
        %v8047 = vunpack.c.l.b16 %v7982
        %v8048 = vunpack.c.l.b16 %v7983
        %v8049 = vunpack.c.l.b16 %v7984
        %v8050 = vunpack.c.l.b16 %v7985
        %v8051 = vunpack.c.l.b16 %v7986
        %v8052 = vpack.c.b16 %v8021, %v8020
        %v8053 = vpack.c.b16 %v8023, %v8022
        %v8054 = vpack.c.b16 %v8025, %v8024
        %v8055 = vpack.c.b16 %v8027, %v8026
        %v8056 = vpack.c.b16 %v8029, %v8028
        %v8057 = vpack.c.b16 %v8031, %v8030
        %v8058 = vpack.c.b16 %v8033, %v8032
        %v8059 = vpack.c.b16 %v8035, %v8034
        %v8060 = vpack.c.b16 %v8037, %v8036
        %v8061 = vpack.c.b16 %v8039, %v8038
        %v8062 = vpack.c.b16 %v8041, %v8040
        %v8063 = vpack.c.b16 %v8043, %v8042
        %v8064 = vpack.c.b16 %v8045, %v8044
        %v8065 = vpack.c.b16 %v8047, %v8046
        %v8066 = vpack.c.b16 %v8049, %v8048
        %v8067 = vpack.c.b16 %v8051, %v8050
        %8084 = vmatpush.bf16.msra.mxu0 %v8059
        %8085 = vmatpush.bf16.msra.mxu0 %v8058
        %8086 = vmatpush.bf16.msra.mxu0 %v8057
        %8087 = vmatpush.bf16.msra.mxu0 %v8056
        %8088 = vmatpush.bf16.msra.mxu0 %v8055
        %8089 = vmatpush.bf16.msra.mxu0 %v8054
        %8090 = vmatpush.bf16.msra.mxu0 %v8053
        %8091 = vmatpush.bf16.msra.mxu0 %v8052
        %8092 = vmatmul.bf16.gmra.mxu0 %v7953
        %v8093 = vpop.f32.mrf.mxu0
        %v8094 = vadd.f32 %v7987, %v8093
        %v8095 = vpop.f32.mrf.mxu0
        %8096 = vdwg.mxu0
        %8097 = vmatpush.bf16.msra.mxu0 %v8067
        %8098 = vmatpush.bf16.msra.mxu0 %v8066
        %8099 = vmatpush.bf16.msra.mxu0 %v8065
        %8100 = vmatpush.bf16.msra.mxu0 %v8064
        %8101 = vmatpush.bf16.msra.mxu0 %v8063
        %8102 = vmatpush.bf16.msra.mxu0 %v8062
        %8103 = vmatpush.bf16.msra.mxu0 %v8061
        %8104 = vmatpush.bf16.msra.mxu0 %v8060
        %8105 = vmatmul.bf16.gmra.mxu0 %v7954
        %v8106 = vpop.f32.mrf.mxu0
        %v8107 = vadd.f32 %v8094, %v8106
        %v8108 = vpop.f32.mrf.mxu0
        %8109 = vdwg.mxu0
        %vm8110 = vcmask 73728
        %8111 = vst.msk [vmem:[%s1358] sm:$0x1] %vm8110, %v8107
        %s8112 = sand.u32 %s1042, 1
        %s8113 = scalar_lea.sflag [#allocation17], %s8112
        %s8114 = sand.u32 %s1042, 1
        %s8115 = scalar_lea.vmem [#allocation21], %s8114
        // Predicated region
        $region209: #{tpu_custom_call.1} parent=195 // pred_check
          %p8116 = pneg %p1052
        $region210: #{tpu_custom_call.1} parent=195 // pred_check_branch
          %8118 = sbr.rel (%p8116) target = $region212
        $region211: #{tpu_custom_call.1} parent=195 // pred_region
          %8120 = vsyncadd %s8113, 0
          %s8121 = scalar_lea.hbm %s89, %s105
          %s8123 = sshll.u32 %s8115, 4
          %s8124 = int_to_ptr.vmem [resolvable:$true] %s8123
          %s8125 = sshll.u32 %s8121, 4
          %s8126 = int_to_ptr.hbm [resolvable:$true] %s8125
          %8128 = dma.vmem_to_hbm [thread:$0]  %s8124, 16, %s8126, %s8113
        $region212: #{tpu_custom_call.1} parent=195 // pred_fallthru
          _
      $region196: #{tpu_custom_call.1} parent=5 // pred_fallthru
        _
      %p8129 = scmp.le.s32.totalorder 2, %s100
      // Predicated region
      $region213: #{tpu_custom_call.1} parent=5 // pred_check
        %p8130 = pneg %p8129
      $region214: #{tpu_custom_call.1} parent=5 // pred_check_branch
        %8132 = sbr.rel (%p8130) target = $region216
      $region215: #{tpu_custom_call.1} parent=5 // pred_region
        %s8133 = ssub.s32 %s100, 2
        // Predicated region
        $region217: #{tpu_custom_call.1} parent=215 // pred_check
          %p8134 = pneg %p1058
        $region218: #{tpu_custom_call.1} parent=215 // pred_check_branch
          %8136 = sbr.rel (%p8134) target = $region220
        $region219: #{tpu_custom_call.1} parent=215 // pred_region
          %s8137 = sand.u32 %s1043, 1
          %s8138 = scalar_lea.sflag [#allocation17], %s8137
          %s8139 = sand.u32 %s1043, 1
          %s8140 = scalar_lea.vmem [#allocation21], %s8139
          %8142 = dma.done %s8138, 16
        $region220: #{tpu_custom_call.1} parent=215 // pred_fallthru
          _
      $region216: #{tpu_custom_call.1} parent=5 // pred_fallthru
        _
    $region6: #{tpu_custom_call.1} parent=1 // loop_footer
      %s104 = sadd.s32 1, %s100
    $region7: #{tpu_custom_call.1} parent=1 // loop_footer_branch
      %99 = sbr.rel target = $region3
    $region8: #{tpu_custom_call.1} parent=1 // loop_exit
      _
    %8143 = vsyncpa [#allocation16], 1
    %s8144 = scalar_lea.sflag [#allocation16], 1
    %8145 = vsyncpa %s8144, 1
    %8146 = vsyncpa [#allocation19], 1
    %8147 = vsyncpa [#allocation17], 1
    %s8148 = scalar_lea.sflag [#allocation17], 1
    %8149 = vsyncpa %s8148, 1

</llo_original>
